<compile_context>
chip_gen: v7x
topology: tpu7x:2x2x1
jax: 0.10.0
libtpu: 0.0.40
codegen_flags: <defaults>
</compile_context>

<pallas_src>
import functools

import jax
import jax.numpy as jnp
from jax import lax
from jax.experimental import pallas as pl
from jax.experimental.pallas import tpu as pltpu

EPS = 1e-5
_VMEM_LIMIT = 32 * 1024 * 1024   # explicit scoped-VMEM budget (safe on v5e/v6e/v7x)
_MM_TILE_CAP = 512               # row-tile cap for the pointwise kernels


def _pick_tile(m, cap=_MM_TILE_CAP):
    """Largest divisor of m that is <= cap and a multiple of 8 (fallback: m)."""
    for d in range(min(m, cap), 0, -1):
        if m % d == 0 and d % 8 == 0:
            return d
    return m


# ---------------------------------------------------------------------------
# Kernel 1: (optional folded-BN + ReLU on the input) -> 1x1 conv (bf16 matmul)
#           -> f32 output + per-tile sum / sum-of-squares for the next BN.
# ---------------------------------------------------------------------------
def _mm_stats_kernel(x_ref, w_ref, a_ref, b_ref, y_ref, sum_ref, ssq_ref, *, pre_relu):
    x = x_ref[...] * a_ref[...] + b_ref[...]          # previous layer's BN folded in (f32)
    if pre_relu:
        x = jnp.maximum(x, 0.0)
    y = jnp.dot(x.astype(jnp.bfloat16), w_ref[...],   # bf16 MXU, f32 accumulate
                preferred_element_type=jnp.float32)
    y_ref[...] = y
    s = jnp.sum(y, axis=0, keepdims=True)             # (1, cout)  partial BN stats (f32)
    q = jnp.sum(y * y, axis=0, keepdims=True)
    sum_ref[...] = jnp.broadcast_to(s[None], sum_ref.shape)
    ssq_ref[...] = jnp.broadcast_to(q[None], ssq_ref.shape)


def matmul_bn_stats(x2d, w_bf16, scale, shift, *, pre_relu):
    m, cin = x2d.shape
    cout = w_bf16.shape[1]
    tm = _pick_tile(m)
    nt = m // tm
    y, ps, pq = pl.pallas_call(
        functools.partial(_mm_stats_kernel, pre_relu=pre_relu),
        grid=(nt,),
        in_specs=[
            pl.BlockSpec((tm, cin), lambda i: (i, 0)),
            pl.BlockSpec((cin, cout), lambda i: (0, 0)),
            pl.BlockSpec((1, cin), lambda i: (0, 0)),
            pl.BlockSpec((1, cin), lambda i: (0, 0)),
        ],
        out_specs=[
            pl.BlockSpec((tm, cout), lambda i: (i, 0)),
            pl.BlockSpec((1, 8, cout), lambda i: (i, 0, 0)),
            pl.BlockSpec((1, 8, cout), lambda i: (i, 0, 0)),
        ],
        out_shape=[
            jax.ShapeDtypeStruct((m, cout), jnp.float32),
            jax.ShapeDtypeStruct((nt, 8, cout), jnp.float32),
            jax.ShapeDtypeStruct((nt, 8, cout), jnp.float32),
        ],
        compiler_params=pltpu.CompilerParams(
            dimension_semantics=("parallel",),
            vmem_limit_bytes=_VMEM_LIMIT),
    )(x2d, w_bf16, scale, shift)
    return y, ps[:, 0, :].sum(axis=0), pq[:, 0, :].sum(axis=0)


# ---------------------------------------------------------------------------
# Kernel 2: bn1+relu1 (folded) -> 3x3 conv with the stride FUSED via
#           space-to-depth input + packed weights -> output + bn2 partials.
# ---------------------------------------------------------------------------
def _conv3x3_kernel(x_ref, wp_ref, a_ref, b_ref, y_ref, sum_ref, ssq_ref,
                    pad_ref, acc_ref, *, s, ho, wo, col_offsets):
    x = x_ref[0]                                                 # (ho, s, wo, s*cin) f32
    h = jnp.maximum(x * a_ref[...] + b_ref[...], 0.0)            # bn1 + relu1 (f32)

    # zero-padded (halo) activated image in VMEM scratch, bf16 for the MXU
    pad_ref[...] = jnp.zeros(pad_ref.shape, pad_ref.dtype)
    for b in range(s):
        pad_ref[b, 1:ho + 1, 1:wo + 1, :] = h[:, b, :, :].astype(pad_ref.dtype)

    acc_ref[...] = jnp.zeros(acc_ref.shape, acc_ref.dtype)       # f32 accumulator scratch
    for a_idx, a_off in enumerate(col_offsets):
        # one unaligned sublane slice per column offset (2 for s=2, 3 for s=1)
        slab = pad_ref[:, :, 1 + a_off:1 + a_off + wo, :]        # (s, ho+2, wo, s*cin)
        for dy in range(3):
            a_dy, b_dy = divmod(dy - 1, s)                       # row block offset / residue
            patch = slab[b_dy, 1 + a_dy:1 + a_dy + ho, :, :]     # (ho, wo, s*cin), cheap slices
            acc_ref[...] += lax.dot_general(
                patch, wp_ref[dy, a_idx],
                dimension_numbers=(((2,), (0,)), ((), ())),
                preferred_element_type=jnp.float32)

    y = acc_ref[...]
    y_ref[0] = y
    sm = jnp.sum(y, axis=(0, 1), keepdims=True)                  # (1, 1, cout)
    sq = jnp.sum(y * y, axis=(0, 1), keepdims=True)
    sum_ref[...] = jnp.broadcast_to(sm, sum_ref.shape)
    ssq_ref[...] = jnp.broadcast_to(sq, ssq_ref.shape)


def _pack_conv3x3_weights(w2, s, col_offsets):
    """Repack HWIO (3,3,C,Cout) into (3, n_col_offsets, s*C, Cout) for the strided form."""
    cin, cout = w2.shape[2], w2.shape[3]
    wp = jnp.zeros((3, len(col_offsets), s * cin, cout), jnp.float32)
    for dy in range(3):
        for dx in range(3):
            a_dx, b_dx = divmod(dx - 1, s)
            wp = wp.at[dy, col_offsets.index(a_dx),
                       b_dx * cin:(b_dx + 1) * cin, :].set(w2[dy, dx])
    return wp.astype(jnp.bfloat16)


def conv3x3_bn_stats(y1, w2, a1, b1, *, stride):
    n, h, w, cin = y1.shape
    cout = w2.shape[3]
    s = stride
    assert h % s == 0 and w % s == 0, "spatial dims must be divisible by the stride"
    ho, wo = h // s, w // s
    col_offsets = (-1, 0, 1) if s == 1 else (-1, 0)
    xv = y1.reshape(n, ho, s, wo, s * cin)            # free row-major reshape (space-to-depth)
    wp = _pack_conv3x3_weights(w2, s, col_offsets)
    a_t = jnp.tile(a1, (1, s))                        # per-channel affine tiled to s*cin
    b_t = jnp.tile(b1, (1, s))
    kern = functools.partial(_conv3x3_kernel, s=s, ho=ho, wo=wo, col_offsets=col_offsets)
    y2, ps, pq = pl.pallas_call(
        kern,
        grid=(n,),
        in_specs=[
            pl.BlockSpec((1, ho, s, wo, s * cin), lambda i: (i, 0, 0, 0, 0)),
            pl.BlockSpec((3, len(col_offsets), s * cin, cout), lambda i: (0, 0, 0, 0)),
            pl.BlockSpec((1, s * cin), lambda i: (0, 0)),
            pl.BlockSpec((1, s * cin), lambda i: (0, 0)),
        ],
        out_specs=[
            pl.BlockSpec((1, ho, wo, cout), lambda i: (i, 0, 0, 0)),
            pl.BlockSpec((1, 8, cout), lambda i: (i, 0, 0)),
            pl.BlockSpec((1, 8, cout), lambda i: (i, 0, 0)),
        ],
        out_shape=[
            jax.ShapeDtypeStruct((n, ho, wo, cout), jnp.float32),
            jax.ShapeDtypeStruct((n, 8, cout), jnp.float32),
            jax.ShapeDtypeStruct((n, 8, cout), jnp.float32),
        ],
        scratch_shapes=[
            pltpu.VMEM((s, ho + 2, wo + 2, s * cin), jnp.bfloat16),  # padded activated image
            pltpu.VMEM((ho, wo, cout), jnp.float32),                 # conv accumulator
        ],
        compiler_params=pltpu.CompilerParams(
            dimension_semantics=("parallel",),
            vmem_limit_bytes=_VMEM_LIMIT),
    )(xv, wp, a_t, b_t)
    return y2, ps[:, 0, :].sum(axis=0), pq[:, 0, :].sum(axis=0)


# ---------------------------------------------------------------------------
# Kernel 3: bn3-apply + bn4-apply + residual add + relu3, aliased onto shortcut.
# ---------------------------------------------------------------------------
def _residual_kernel(z_ref, sc_ref, a3_ref, b3_ref, a4_ref, b4_ref, o_ref):
    z = z_ref[...] * a3_ref[...] + b3_ref[...]        # bn3
    r = sc_ref[...] * a4_ref[...] + b4_ref[...]       # bn4 (projection shortcut)
    o_ref[...] = jnp.maximum(z + r, 0.0)              # residual add + relu3


def residual_add_relu(z, sc, a3, b3, a4, b4):
    m, cexp = z.shape
    tm = _pick_tile(m)
    nt = m // tm
    return pl.pallas_call(
        _residual_kernel,
        grid=(nt,),
        in_specs=[
            pl.BlockSpec((tm, cexp), lambda i: (i, 0)),
            pl.BlockSpec((tm, cexp), lambda i: (i, 0)),
            pl.BlockSpec((1, cexp), lambda i: (0, 0)),
            pl.BlockSpec((1, cexp), lambda i: (0, 0)),
            pl.BlockSpec((1, cexp), lambda i: (0, 0)),
            pl.BlockSpec((1, cexp), lambda i: (0, 0)),
        ],
        out_specs=pl.BlockSpec((tm, cexp), lambda i: (i, 0)),
        out_shape=jax.ShapeDtypeStruct((m, cexp), jnp.float32),
        input_output_aliases={1: 0},                  # output overwrites the shortcut buffer
        compiler_params=pltpu.CompilerParams(
            dimension_semantics=("parallel",),
            vmem_limit_bytes=_VMEM_LIMIT),
    )(z, sc, a3, b3, a4, b4)


# ---------------------------------------------------------------------------
# JAX-side glue: fold batch statistics + gamma/beta into per-channel scale/shift.
# ---------------------------------------------------------------------------
def _bn_affine(psum, psumsq, gamma, beta, count):
    mean = psum / count
    var = jnp.maximum(psumsq / count - mean * mean, 0.0)
    a = gamma * lax.rsqrt(var + EPS)
    b = beta - mean * a
    return a.reshape(1, -1), b.reshape(1, -1)


# ---------------------------------------------------------------------------
# Parameters (deterministic synthetic init) + forward wrapper
# ---------------------------------------------------------------------------
def init_params(key, in_channels, channels_expansion, first_construct):
    out_channels = in_channels if first_construct else in_channels // 2
    cexp = in_channels * channels_expansion
    ks = jax.random.split(key, 12)

    def w(k, shape, fan_in):
        return jax.random.normal(k, shape, jnp.float32) / jnp.sqrt(float(fan_in))

    return {
        'w1': w(ks[0], (in_channels, out_channels), in_channels),               # conv1 (Cin, Cmid)
        'w2': w(ks[1], (3, 3, out_channels, out_channels), 9 * out_channels),   # conv2 HWIO
        'w3': w(ks[2], (out_channels, cexp), out_channels),                     # conv3 (Cmid, Cexp)
        'w4': w(ks[3], (in_channels, cexp), in_channels),                       # conv4 (Cin, Cexp)
        'g1': 1.0 + 0.1 * jax.random.normal(ks[4], (out_channels,), jnp.float32),
        'b1': 0.1 * jax.random.normal(ks[5], (out_channels,), jnp.float32),
        'g2': 1.0 + 0.1 * jax.random.normal(ks[6], (out_channels,), jnp.float32),
        'b2': 0.1 * jax.random.normal(ks[7], (out_channels,), jnp.float32),
        'g3': 1.0 + 0.1 * jax.random.normal(ks[8], (cexp,), jnp.float32),
        'b3': 0.1 * jax.random.normal(ks[9], (cexp,), jnp.float32),
        'g4': 1.0 + 0.1 * jax.random.normal(ks[10], (cexp,), jnp.float32),
        'b4': 0.1 * jax.random.normal(ks[11], (cexp,), jnp.float32),
    }


def conv_bottleneck_forward(x_nchw, p, stride_expansion):
    s = int(stride_expansion)
    x = jnp.transpose(x_nchw, (0, 2, 3, 1)).astype(jnp.float32)   # NCHW -> NHWC
    n, h, w, cin = x.shape
    cexp = p['w3'].shape[1]
    m = n * h * w

    ones_cin = jnp.ones((1, cin), jnp.float32)
    zeros_cin = jnp.zeros((1, cin), jnp.float32)

    # conv1 (1x1) -> y1 + bn1 batch statistics
    y1, s1, q1 = matmul_bn_stats(x.reshape(m, cin), p['w1'].astype(jnp.bfloat16),
                                 ones_cin, zeros_cin, pre_relu=False)
    a1, b1 = _bn_affine(s1, q1, p['g1'], p['b1'], m)
    cmid = p['w1'].shape[1]

    # fused bn1+relu1 -> conv2 (3x3, stride s, fused) -> y2 + bn2 batch statistics
    y2, s2, q2 = conv3x3_bn_stats(y1.reshape(n, h, w, cmid), p['w2'], a1, b1, stride=s)
    ho, wo = y2.shape[1], y2.shape[2]
    ms = n * ho * wo
    a2, b2 = _bn_affine(s2, q2, p['g2'], p['b2'], ms)

    # fused bn2+relu2 -> conv3 (1x1) -> z + bn3 batch statistics
    z, s3, q3 = matmul_bn_stats(y2.reshape(ms, cmid), p['w3'].astype(jnp.bfloat16),
                                a2, b2, pre_relu=True)
    a3, b3 = _bn_affine(s3, q3, p['g3'], p['b3'], ms)

    # projection shortcut: conv4 (1x1, stride s) -> sc + bn4 batch statistics
    xs = x[:, ::s, ::s, :].reshape(ms, cin)
    sc, s4, q4 = matmul_bn_stats(xs, p['w4'].astype(jnp.bfloat16),
                                 ones_cin, zeros_cin, pre_relu=False)
    a4, b4 = _bn_affine(s4, q4, p['g4'], p['b4'], ms)

    # bn3 + bn4 + residual add + relu3 (output aliased onto the shortcut buffer)
    out = residual_add_relu(z, sc, a3, b3, a4, b4)
    out = out.reshape(n, ho, wo, cexp)
    return jnp.transpose(out, (0, 3, 1, 2))            # NHWC -> NCHW


# ---------------------------------------------------------------------------
# Pure-JAX f32 reference (PyTorch training-mode BN semantics) for a sanity check
# ---------------------------------------------------------------------------
def ref_forward(x_nchw, p, s):
    x = jnp.transpose(x_nchw, (0, 2, 3, 1))

    def bn(y, g, b):
        mu = jnp.mean(y, axis=(0, 1, 2), keepdims=True)
        v = jnp.mean((y - mu) ** 2, axis=(0, 1, 2), keepdims=True)
        return (y - mu) / jnp.sqrt(v + EPS) * g + b

    y = jnp.einsum('nhwc,cd->nhwd', x, p['w1'])
    y = jax.nn.relu(bn(y, p['g1'], p['b1']))
    y = lax.conv_general_dilated(y, p['w2'], (s, s), ((1, 1), (1, 1)),
                                 dimension_numbers=('NHWC', 'HWIO', 'NHWC'))
    y = jax.nn.relu(bn(y, p['g2'], p['b2']))
    y = jnp.einsum('nhwc,cd->nhwd', y, p['w3'])
    y = bn(y, p['g3'], p['b3'])
    xs = x[:, ::s, ::s, :]
    sc = bn(jnp.einsum('nhwc,cd->nhwd', xs, p['w4']), p['g4'], p['b4'])
    return jnp.transpose(jax.nn.relu(y + sc), (0, 3, 1, 2))


if __name__ == "__main__":
    key = jax.random.PRNGKey(0)
    configs = [
        # (in_channels, channels_expansion, stride_expansion, first_construct, N, H=W)
        (4, 2, 1, True, 2, 16),
        (8, 4, 2, False, 2, 32),
    ]
    fwd = jax.jit(conv_bottleneck_forward, static_argnums=2)
    for idx, (cin, ce, se, fc, nb, hw) in enumerate(configs):
        kx, kp = jax.random.split(jax.random.fold_in(key, idx))
        x = jax.random.normal(kx, (nb, cin, hw, hw), jnp.float32)   # NCHW like PyTorch
        params = init_params(kp, cin, ce, fc)

        out = jax.block_until_ready(fwd(x, params, se))
        ref = ref_forward(x, params, se)

        ho = hw // se
        assert out.shape == (nb, cin * ce, ho, ho), out.shape
        # bf16 MXU operands (f32 accumulation / f32 BN stats) -> slightly looser tolerance
        err = float(jnp.max(jnp.abs(out - ref)))
        assert jnp.allclose(out, ref, atol=4e-2, rtol=4e-2), err
    print("KERNEL_OK")
</pallas_src>

<mosaic_0001>
module attributes {stable_mosaic.version = 11 : i64} {
  func.func @_mm_stats_kernel(%arg0: i32, %arg1: memref<512x4xf32, #tpu.memory_space<vmem>>, %arg2: memref<4x4xbf16, #tpu.memory_space<vmem>>, %arg3: memref<1x4xf32, #tpu.memory_space<vmem>>, %arg4: memref<1x4xf32, #tpu.memory_space<vmem>>, %arg5: memref<512x4xf32, #tpu.memory_space<vmem>>, %arg6: memref<1x8x4xf32, #tpu.memory_space<vmem>>, %arg7: memref<1x8x4xf32, #tpu.memory_space<vmem>>) attributes {dimension_semantics = [#tpu.dimension_semantics<parallel>], iteration_bounds = array<i64: 1>, scalar_prefetch = 0 : i64, scratch_operands = 0 : i64, tpu.core_type = #tpu.core_type<tc>, window_params = [{transform_indices = @transform_0, window_bounds = array<i64: 512, 4>}, {pipeline_mode = #tpu.pipeline_mode<synchronous>, transform_indices = @transform_1, window_bounds = array<i64: 4, 4>}, {pipeline_mode = #tpu.pipeline_mode<synchronous>, transform_indices = @transform_2, window_bounds = array<i64: 1, 4>}, {pipeline_mode = #tpu.pipeline_mode<synchronous>, transform_indices = @transform_3, window_bounds = array<i64: 1, 4>}, {transform_indices = @transform_4, window_bounds = array<i64: 512, 4>}, {transform_indices = @transform_5, window_bounds = array<i64: 1, 8, 4>}, {transform_indices = @transform_6, window_bounds = array<i64: 1, 8, 4>}]} {
    %c0 = arith.constant 0 : index
    %c0_0 = arith.constant 0 : index
    %0 = vector.load %arg1[%c0, %c0_0] : memref<512x4xf32, #tpu.memory_space<vmem>>, vector<512x4xf32>
    %c0_1 = arith.constant 0 : index
    %c0_2 = arith.constant 0 : index
    %1 = vector.load %arg3[%c0_1, %c0_2] : memref<1x4xf32, #tpu.memory_space<vmem>>, vector<1x4xf32>
    %2 = vector.broadcast %1 : vector<1x4xf32> to vector<512x4xf32>
    %3 = arith.mulf %0, %2 : vector<512x4xf32>
    %c0_3 = arith.constant 0 : index
    %c0_4 = arith.constant 0 : index
    %4 = vector.load %arg4[%c0_3, %c0_4] : memref<1x4xf32, #tpu.memory_space<vmem>>, vector<1x4xf32>
    %5 = vector.broadcast %4 : vector<1x4xf32> to vector<512x4xf32>
    %6 = arith.addf %3, %5 : vector<512x4xf32>
    %7 = arith.truncf %6 : vector<512x4xf32> to vector<512x4xbf16>
    %c0_5 = arith.constant 0 : index
    %c0_6 = arith.constant 0 : index
    %8 = vector.load %arg2[%c0_5, %c0_6] : memref<4x4xbf16, #tpu.memory_space<vmem>>, vector<4x4xbf16>
    %cst = arith.constant dense<0.000000e+00> : vector<512x4xf32>
    %9 = tpu.matmul %7, %8, %cst {dimension_numbers = #tpu.dot_dimension_numbers<[1], [0], [0], [1], [0, 0, 1, 1], [], []>} : vector<512x4xbf16>, vector<4x4xbf16>, vector<512x4xf32> -> vector<512x4xf32>
    %c0_7 = arith.constant 0 : index
    %c0_8 = arith.constant 0 : index
    %10 = vector.load %arg5[%c0_7, %c0_8] : memref<512x4xf32, #tpu.memory_space<vmem>>, vector<512x4xf32>
    tpu.vector_store %arg5[%c0_7, %c0_8], %9 {strides = array<i32>} : memref<512x4xf32, #tpu.memory_space<vmem>>, vector<512x4xf32>,
    %cst_9 = arith.constant dense<0.000000e+00> : vector<4xf32>
    %11 = vector.multi_reduction <add>, %9, %cst_9 [0] : vector<512x4xf32> to vector<4xf32>
    %12 = vector.shape_cast %11 : vector<4xf32> to vector<1x4xf32>
    %13 = arith.mulf %9, %9 : vector<512x4xf32>
    %cst_10 = arith.constant dense<0.000000e+00> : vector<4xf32>
    %14 = vector.multi_reduction <add>, %13, %cst_10 [0] : vector<512x4xf32> to vector<4xf32>
    %15 = vector.shape_cast %14 : vector<4xf32> to vector<1x4xf32>
    %16 = vector.shape_cast %12 : vector<1x4xf32> to vector<1x1x4xf32>
    %17 = vector.shape_cast %16 : vector<1x1x4xf32> to vector<1x1x4xf32>
    %18 = vector.broadcast %17 : vector<1x1x4xf32> to vector<1x8x4xf32>
    %c0_11 = arith.constant 0 : index
    %c0_12 = arith.constant 0 : index
    %c0_13 = arith.constant 0 : index
    %19 = vector.load %arg6[%c0_11, %c0_12, %c0_13] : memref<1x8x4xf32, #tpu.memory_space<vmem>>, vector<1x8x4xf32>
    tpu.vector_store %arg6[%c0_11, %c0_12, %c0_13], %18 {strides = array<i32>} : memref<1x8x4xf32, #tpu.memory_space<vmem>>, vector<1x8x4xf32>,
    %20 = vector.shape_cast %15 : vector<1x4xf32> to vector<1x1x4xf32>
    %21 = vector.shape_cast %20 : vector<1x1x4xf32> to vector<1x1x4xf32>
    %22 = vector.broadcast %21 : vector<1x1x4xf32> to vector<1x8x4xf32>
    %c0_14 = arith.constant 0 : index
    %c0_15 = arith.constant 0 : index
    %c0_16 = arith.constant 0 : index
    %23 = vector.load %arg7[%c0_14, %c0_15, %c0_16] : memref<1x8x4xf32, #tpu.memory_space<vmem>>, vector<1x8x4xf32>
    tpu.vector_store %arg7[%c0_14, %c0_15, %c0_16], %22 {strides = array<i32>} : memref<1x8x4xf32, #tpu.memory_space<vmem>>, vector<1x8x4xf32>,
    return
  }
  func.func @transform_0(%arg0: i32) -> (i32, i32) {
    %c0_i32 = arith.constant 0 : i32
    %c0_i32_0 = arith.constant 0 : i32
    return %arg0, %c0_i32 : i32, i32
  }
  func.func @transform_1(%arg0: i32) -> (i32, i32) {
    %c0_i32 = arith.constant 0 : i32
    %c0_i32_0 = arith.constant 0 : i32
    %c0_i32_1 = arith.constant 0 : i32
    return %c0_i32, %c0_i32_0 : i32, i32
  }
  func.func @transform_2(%arg0: i32) -> (i32, i32) {
    %c0_i32 = arith.constant 0 : i32
    %c0_i32_0 = arith.constant 0 : i32
    %c0_i32_1 = arith.constant 0 : i32
    return %c0_i32, %c0_i32_0 : i32, i32
  }
  func.func @transform_3(%arg0: i32) -> (i32, i32) {
    %c0_i32 = arith.constant 0 : i32
    %c0_i32_0 = arith.constant 0 : i32
    %c0_i32_1 = arith.constant 0 : i32
    return %c0_i32, %c0_i32_0 : i32, i32
  }
  func.func @transform_4(%arg0: i32) -> (i32, i32) {
    %c0_i32 = arith.constant 0 : i32
    %c0_i32_0 = arith.constant 0 : i32
    return %arg0, %c0_i32 : i32, i32
  }
  func.func @transform_5(%arg0: i32) -> (i32, i32, i32) {
    %c0_i32 = arith.constant 0 : i32
    %c0_i32_0 = arith.constant 0 : i32
    %c0_i32_1 = arith.constant 0 : i32
    return %arg0, %c0_i32, %c0_i32_0 : i32, i32, i32
  }
  func.func @transform_6(%arg0: i32) -> (i32, i32, i32) {
    %c0_i32 = arith.constant 0 : i32
    %c0_i32_0 = arith.constant 0 : i32
    %c0_i32_1 = arith.constant 0 : i32
    return %arg0, %c0_i32, %c0_i32_0 : i32, i32, i32
  }
}

module attributes {stable_mosaic.version = 11 : i64} {
  func.func @_mm_stats_kernel(%arg0: i32, %arg1: memref<512x4xf32, #tpu.memory_space<vmem>>, %arg2: memref<4x8xbf16, #tpu.memory_space<vmem>>, %arg3: memref<1x4xf32, #tpu.memory_space<vmem>>, %arg4: memref<1x4xf32, #tpu.memory_space<vmem>>, %arg5: memref<512x8xf32, #tpu.memory_space<vmem>>, %arg6: memref<1x8x8xf32, #tpu.memory_space<vmem>>, %arg7: memref<1x8x8xf32, #tpu.memory_space<vmem>>) attributes {dimension_semantics = [#tpu.dimension_semantics<parallel>], iteration_bounds = array<i64: 1>, scalar_prefetch = 0 : i64, scratch_operands = 0 : i64, tpu.core_type = #tpu.core_type<tc>, window_params = [{transform_indices = @transform_0, window_bounds = array<i64: 512, 4>}, {pipeline_mode = #tpu.pipeline_mode<synchronous>, transform_indices = @transform_1, window_bounds = array<i64: 4, 8>}, {pipeline_mode = #tpu.pipeline_mode<synchronous>, transform_indices = @transform_2, window_bounds = array<i64: 1, 4>}, {pipeline_mode = #tpu.pipeline_mode<synchronous>, transform_indices = @transform_3, window_bounds = array<i64: 1, 4>}, {transform_indices = @transform_4, window_bounds = array<i64: 512, 8>}, {transform_indices = @transform_5, window_bounds = array<i64: 1, 8, 8>}, {transform_indices = @transform_6, window_bounds = array<i64: 1, 8, 8>}]} {
    %c0 = arith.constant 0 : index
    %c0_0 = arith.constant 0 : index
    %0 = vector.load %arg1[%c0, %c0_0] : memref<512x4xf32, #tpu.memory_space<vmem>>, vector<512x4xf32>
    %c0_1 = arith.constant 0 : index
    %c0_2 = arith.constant 0 : index
    %1 = vector.load %arg3[%c0_1, %c0_2] : memref<1x4xf32, #tpu.memory_space<vmem>>, vector<1x4xf32>
    %2 = vector.broadcast %1 : vector<1x4xf32> to vector<512x4xf32>
    %3 = arith.mulf %0, %2 : vector<512x4xf32>
    %c0_3 = arith.constant 0 : index
    %c0_4 = arith.constant 0 : index
    %4 = vector.load %arg4[%c0_3, %c0_4] : memref<1x4xf32, #tpu.memory_space<vmem>>, vector<1x4xf32>
    %5 = vector.broadcast %4 : vector<1x4xf32> to vector<512x4xf32>
    %6 = arith.addf %3, %5 : vector<512x4xf32>
    %cst = arith.constant 0.000000e+00 : f32
    %7 = vector.broadcast %cst : f32 to vector<512x4xf32>
    %8 = arith.maximumf %6, %7 : vector<512x4xf32>
    %9 = arith.truncf %8 : vector<512x4xf32> to vector<512x4xbf16>
    %c0_5 = arith.constant 0 : index
    %c0_6 = arith.constant 0 : index
    %10 = vector.load %arg2[%c0_5, %c0_6] : memref<4x8xbf16, #tpu.memory_space<vmem>>, vector<4x8xbf16>
    %cst_7 = arith.constant dense<0.000000e+00> : vector<512x8xf32>
    %11 = tpu.matmul %9, %10, %cst_7 {dimension_numbers = #tpu.dot_dimension_numbers<[1], [0], [0], [1], [0, 0, 1, 1], [], []>} : vector<512x4xbf16>, vector<4x8xbf16>, vector<512x8xf32> -> vector<512x8xf32>
    %c0_8 = arith.constant 0 : index
    %c0_9 = arith.constant 0 : index
    %12 = vector.load %arg5[%c0_8, %c0_9] : memref<512x8xf32, #tpu.memory_space<vmem>>, vector<512x8xf32>
    tpu.vector_store %arg5[%c0_8, %c0_9], %11 {strides = array<i32>} : memref<512x8xf32, #tpu.memory_space<vmem>>, vector<512x8xf32>,
    %cst_10 = arith.constant dense<0.000000e+00> : vector<8xf32>
    %13 = vector.multi_reduction <add>, %11, %cst_10 [0] : vector<512x8xf32> to vector<8xf32>
    %14 = vector.shape_cast %13 : vector<8xf32> to vector<1x8xf32>
    %15 = arith.mulf %11, %11 : vector<512x8xf32>
    %cst_11 = arith.constant dense<0.000000e+00> : vector<8xf32>
    %16 = vector.multi_reduction <add>, %15, %cst_11 [0] : vector<512x8xf32> to vector<8xf32>
    %17 = vector.shape_cast %16 : vector<8xf32> to vector<1x8xf32>
    %18 = vector.shape_cast %14 : vector<1x8xf32> to vector<1x1x8xf32>
    %19 = vector.shape_cast %18 : vector<1x1x8xf32> to vector<1x1x8xf32>
    %20 = vector.broadcast %19 : vector<1x1x8xf32> to vector<1x8x8xf32>
    %c0_12 = arith.constant 0 : index
    %c0_13 = arith.constant 0 : index
    %c0_14 = arith.constant 0 : index
    %21 = vector.load %arg6[%c0_12, %c0_13, %c0_14] : memref<1x8x8xf32, #tpu.memory_space<vmem>>, vector<1x8x8xf32>
    tpu.vector_store %arg6[%c0_12, %c0_13, %c0_14], %20 {strides = array<i32>} : memref<1x8x8xf32, #tpu.memory_space<vmem>>, vector<1x8x8xf32>,
    %22 = vector.shape_cast %17 : vector<1x8xf32> to vector<1x1x8xf32>
    %23 = vector.shape_cast %22 : vector<1x1x8xf32> to vector<1x1x8xf32>
    %24 = vector.broadcast %23 : vector<1x1x8xf32> to vector<1x8x8xf32>
    %c0_15 = arith.constant 0 : index
    %c0_16 = arith.constant 0 : index
    %c0_17 = arith.constant 0 : index
    %25 = vector.load %arg7[%c0_15, %c0_16, %c0_17] : memref<1x8x8xf32, #tpu.memory_space<vmem>>, vector<1x8x8xf32>
    tpu.vector_store %arg7[%c0_15, %c0_16, %c0_17], %24 {strides = array<i32>} : memref<1x8x8xf32, #tpu.memory_space<vmem>>, vector<1x8x8xf32>,
    return
  }
  func.func @transform_0(%arg0: i32) -> (i32, i32) {
    %c0_i32 = arith.constant 0 : i32
    %c0_i32_0 = arith.constant 0 : i32
    return %arg0, %c0_i32 : i32, i32
  }
  func.func @transform_1(%arg0: i32) -> (i32, i32) {
    %c0_i32 = arith.constant 0 : i32
    %c0_i32_0 = arith.constant 0 : i32
    %c0_i32_1 = arith.constant 0 : i32
    return %c0_i32, %c0_i32_0 : i32, i32
  }
  func.func @transform_2(%arg0: i32) -> (i32, i32) {
    %c0_i32 = arith.constant 0 : i32
    %c0_i32_0 = arith.constant 0 : i32
    %c0_i32_1 = arith.constant 0 : i32
    return %c0_i32, %c0_i32_0 : i32, i32
  }
  func.func @transform_3(%arg0: i32) -> (i32, i32) {
    %c0_i32 = arith.constant 0 : i32
    %c0_i32_0 = arith.constant 0 : i32
    %c0_i32_1 = arith.constant 0 : i32
    return %c0_i32, %c0_i32_0 : i32, i32
  }
  func.func @transform_4(%arg0: i32) -> (i32, i32) {
    %c0_i32 = arith.constant 0 : i32
    %c0_i32_0 = arith.constant 0 : i32
    return %arg0, %c0_i32 : i32, i32
  }
  func.func @transform_5(%arg0: i32) -> (i32, i32, i32) {
    %c0_i32 = arith.constant 0 : i32
    %c0_i32_0 = arith.constant 0 : i32
    %c0_i32_1 = arith.constant 0 : i32
    return %arg0, %c0_i32, %c0_i32_0 : i32, i32, i32
  }
  func.func @transform_6(%arg0: i32) -> (i32, i32, i32) {
    %c0_i32 = arith.constant 0 : i32
    %c0_i32_0 = arith.constant 0 : i32
    %c0_i32_1 = arith.constant 0 : i32
    return %arg0, %c0_i32, %c0_i32_0 : i32, i32, i32
  }
}

module attributes {stable_mosaic.version = 11 : i64} {
  func.func @_conv3x3_kernel(%arg0: i32, %arg1: memref<1x16x1x16x4xf32, #tpu.memory_space<vmem>>, %arg2: memref<3x3x4x4xbf16, #tpu.memory_space<vmem>>, %arg3: memref<1x4xf32, #tpu.memory_space<vmem>>, %arg4: memref<1x4xf32, #tpu.memory_space<vmem>>, %arg5: memref<1x16x16x4xf32, #tpu.memory_space<vmem>>, %arg6: memref<1x8x4xf32, #tpu.memory_space<vmem>>, %arg7: memref<1x8x4xf32, #tpu.memory_space<vmem>>, %arg8: memref<1x18x18x4xbf16, #tpu.memory_space<vmem>>, %arg9: memref<16x16x4xf32, #tpu.memory_space<vmem>>) attributes {dimension_semantics = [#tpu.dimension_semantics<parallel>], iteration_bounds = array<i64: 2>, scalar_prefetch = 0 : i64, scratch_operands = 2 : i64, tpu.core_type = #tpu.core_type<tc>, window_params = [{transform_indices = @transform_0, window_bounds = array<i64: 1, 16, 1, 16, 4>}, {pipeline_mode = #tpu.pipeline_mode<synchronous>, transform_indices = @transform_1, window_bounds = array<i64: 3, 3, 4, 4>}, {pipeline_mode = #tpu.pipeline_mode<synchronous>, transform_indices = @transform_2, window_bounds = array<i64: 1, 4>}, {pipeline_mode = #tpu.pipeline_mode<synchronous>, transform_indices = @transform_3, window_bounds = array<i64: 1, 4>}, {transform_indices = @transform_4, window_bounds = array<i64: 1, 16, 16, 4>}, {transform_indices = @transform_5, window_bounds = array<i64: 1, 8, 4>}, {transform_indices = @transform_6, window_bounds = array<i64: 1, 8, 4>}]} {
    %c0 = arith.constant 0 : index
    %c0_0 = arith.constant 0 : index
    %c0_1 = arith.constant 0 : index
    %c0_2 = arith.constant 0 : index
    %c0_3 = arith.constant 0 : index
    %0 = vector.load %arg1[%c0, %c0_0, %c0_1, %c0_2, %c0_3] : memref<1x16x1x16x4xf32, #tpu.memory_space<vmem>>, vector<1x16x1x16x4xf32>
    %1 = vector.shape_cast %0 : vector<1x16x1x16x4xf32> to vector<16x1x16x4xf32>
    %c0_4 = arith.constant 0 : index
    %c0_5 = arith.constant 0 : index
    %2 = vector.load %arg3[%c0_4, %c0_5] : memref<1x4xf32, #tpu.memory_space<vmem>>, vector<1x4xf32>
    %3 = vector.shape_cast %2 : vector<1x4xf32> to vector<1x1x1x4xf32>
    %4 = vector.broadcast %3 : vector<1x1x1x4xf32> to vector<16x1x16x4xf32>
    %5 = arith.mulf %1, %4 : vector<16x1x16x4xf32>
    %c0_6 = arith.constant 0 : index
    %c0_7 = arith.constant 0 : index
    %6 = vector.load %arg4[%c0_6, %c0_7] : memref<1x4xf32, #tpu.memory_space<vmem>>, vector<1x4xf32>
    %7 = vector.shape_cast %6 : vector<1x4xf32> to vector<1x1x1x4xf32>
    %8 = vector.broadcast %7 : vector<1x1x1x4xf32> to vector<16x1x16x4xf32>
    %9 = arith.addf %5, %8 : vector<16x1x16x4xf32>
    %cst = arith.constant 0.000000e+00 : f32
    %10 = vector.broadcast %cst : f32 to vector<16x1x16x4xf32>
    %11 = arith.maximumf %9, %10 : vector<16x1x16x4xf32>
    %cst_8 = arith.constant 0.000000e+00 : bf16
    %12 = vector.broadcast %cst_8 : bf16 to vector<1x18x18x4xbf16>
    %c0_9 = arith.constant 0 : index
    %c0_10 = arith.constant 0 : index
    %c0_11 = arith.constant 0 : index
    %c0_12 = arith.constant 0 : index
    %13 = vector.load %arg8[%c0_9, %c0_10, %c0_11, %c0_12] : memref<1x18x18x4xbf16, #tpu.memory_space<vmem>>, vector<1x18x18x4xbf16>
    tpu.vector_store %arg8[%c0_9, %c0_10, %c0_11, %c0_12], %12 {strides = array<i32>} : memref<1x18x18x4xbf16, #tpu.memory_space<vmem>>, vector<1x18x18x4xbf16>,
    %14 = vector.shape_cast %11 : vector<16x1x16x4xf32> to vector<16x16x4xf32>
    %15 = arith.truncf %14 : vector<16x16x4xf32> to vector<16x16x4xbf16>
    %c0_13 = arith.constant 0 : index
    %c1 = arith.constant 1 : index
    %c1_14 = arith.constant 1 : index
    %c0_15 = arith.constant 0 : index
    %16 = vector.load %arg8[%c0_13, %c1, %c1_14, %c0_15] : memref<1x18x18x4xbf16, #tpu.memory_space<vmem>>, vector<1x16x16x4xbf16>
    %17 = vector.shape_cast %16 : vector<1x16x16x4xbf16> to vector<16x16x4xbf16>
    %18 = vector.shape_cast %15 : vector<16x16x4xbf16> to vector<1x16x16x4xbf16>
    tpu.vector_store %arg8[%c0_13, %c1, %c1_14, %c0_15], %18 {strides = array<i32>} : memref<1x18x18x4xbf16, #tpu.memory_space<vmem>>, vector<1x16x16x4xbf16>,
    %cst_16 = arith.constant 0.000000e+00 : f32
    %19 = vector.broadcast %cst_16 : f32 to vector<16x16x4xf32>
    %c0_17 = arith.constant 0 : index
    %c0_18 = arith.constant 0 : index
    %c0_19 = arith.constant 0 : index
    %20 = vector.load %arg9[%c0_17, %c0_18, %c0_19] : memref<16x16x4xf32, #tpu.memory_space<vmem>>, vector<16x16x4xf32>
    tpu.vector_store %arg9[%c0_17, %c0_18, %c0_19], %19 {strides = array<i32>} : memref<16x16x4xf32, #tpu.memory_space<vmem>>, vector<16x16x4xf32>,
    %c0_20 = arith.constant 0 : index
    %c0_21 = arith.constant 0 : index
    %c0_22 = arith.constant 0 : index
    %c0_23 = arith.constant 0 : index
    %21 = vector.load %arg8[%c0_20, %c0_21, %c0_22, %c0_23] : memref<1x18x18x4xbf16, #tpu.memory_space<vmem>>, vector<1x18x16x4xbf16>
    %22 = vector.extract_strided_slice %21 {offsets = [0, 0, 0, 0], sizes = [1, 16, 16, 4], strides = [1, 1, 1, 1]} : vector<1x18x16x4xbf16> to vector<1x16x16x4xbf16>
    %23 = vector.shape_cast %22 : vector<1x16x16x4xbf16> to vector<16x16x4xbf16>
    %c0_24 = arith.constant 0 : index
    %c0_25 = arith.constant 0 : index
    %c0_26 = arith.constant 0 : index
    %24 = vector.load %arg9[%c0_24, %c0_25, %c0_26] : memref<16x16x4xf32, #tpu.memory_space<vmem>>, vector<16x16x4xf32>
    %c0_27 = arith.constant 0 : index
    %c0_28 = arith.constant 0 : index
    %c0_29 = arith.constant 0 : index
    %c0_30 = arith.constant 0 : index
    %25 = vector.load %arg2[%c0_27, %c0_28, %c0_29, %c0_30] : memref<3x3x4x4xbf16, #tpu.memory_space<vmem>>, vector<1x1x4x4xbf16>
    %26 = vector.shape_cast %25 : vector<1x1x4x4xbf16> to vector<4x4xbf16>
    %cst_31 = arith.constant dense<0.000000e+00> : vector<16x16x4xf32>
    %27 = tpu.matmul %23, %26, %cst_31 {dimension_numbers = #tpu.dot_dimension_numbers<[2], [0], [0, 1], [1], [0, 0, 0, 1, 1, 1], [], []>} : vector<16x16x4xbf16>, vector<4x4xbf16>, vector<16x16x4xf32> -> vector<16x16x4xf32>
    %28 = arith.addf %24, %27 : vector<16x16x4xf32>
    %c0_32 = arith.constant 0 : index
    %c0_33 = arith.constant 0 : index
    %c0_34 = arith.constant 0 : index
    %29 = vector.load %arg9[%c0_32, %c0_33, %c0_34] : memref<16x16x4xf32, #tpu.memory_space<vmem>>, vector<16x16x4xf32>
    tpu.vector_store %arg9[%c0_32, %c0_33, %c0_34], %28 {strides = array<i32>} : memref<16x16x4xf32, #tpu.memory_space<vmem>>, vector<16x16x4xf32>,
    %30 = vector.extract_strided_slice %21 {offsets = [0, 1, 0, 0], sizes = [1, 16, 16, 4], strides = [1, 1, 1, 1]} : vector<1x18x16x4xbf16> to vector<1x16x16x4xbf16>
    %31 = vector.shape_cast %30 : vector<1x16x16x4xbf16> to vector<16x16x4xbf16>
    %c0_35 = arith.constant 0 : index
    %c0_36 = arith.constant 0 : index
    %c0_37 = arith.constant 0 : index
    %32 = vector.load %arg9[%c0_35, %c0_36, %c0_37] : memref<16x16x4xf32, #tpu.memory_space<vmem>>, vector<16x16x4xf32>
    %c1_38 = arith.constant 1 : index
    %c0_39 = arith.constant 0 : index
    %c0_40 = arith.constant 0 : index
    %c0_41 = arith.constant 0 : index
    %33 = vector.load %arg2[%c1_38, %c0_39, %c0_40, %c0_41] : memref<3x3x4x4xbf16, #tpu.memory_space<vmem>>, vector<1x1x4x4xbf16>
    %34 = vector.shape_cast %33 : vector<1x1x4x4xbf16> to vector<4x4xbf16>
    %cst_42 = arith.constant dense<0.000000e+00> : vector<16x16x4xf32>
    %35 = tpu.matmul %31, %34, %cst_42 {dimension_numbers = #tpu.dot_dimension_numbers<[2], [0], [0, 1], [1], [0, 0, 0, 1, 1, 1], [], []>} : vector<16x16x4xbf16>, vector<4x4xbf16>, vector<16x16x4xf32> -> vector<16x16x4xf32>
    %36 = arith.addf %32, %35 : vector<16x16x4xf32>
    %c0_43 = arith.constant 0 : index
    %c0_44 = arith.constant 0 : index
    %c0_45 = arith.constant 0 : index
    %37 = vector.load %arg9[%c0_43, %c0_44, %c0_45] : memref<16x16x4xf32, #tpu.memory_space<vmem>>, vector<16x16x4xf32>
    tpu.vector_store %arg9[%c0_43, %c0_44, %c0_45], %36 {strides = array<i32>} : memref<16x16x4xf32, #tpu.memory_space<vmem>>, vector<16x16x4xf32>,
    %38 = vector.extract_strided_slice %21 {offsets = [0, 2, 0, 0], sizes = [1, 16, 16, 4], strides = [1, 1, 1, 1]} : vector<1x18x16x4xbf16> to vector<1x16x16x4xbf16>
    %39 = vector.shape_cast %38 : vector<1x16x16x4xbf16> to vector<16x16x4xbf16>
    %c0_46 = arith.constant 0 : index
    %c0_47 = arith.constant 0 : index
    %c0_48 = arith.constant 0 : index
    %40 = vector.load %arg9[%c0_46, %c0_47, %c0_48] : memref<16x16x4xf32, #tpu.memory_space<vmem>>, vector<16x16x4xf32>
    %c2 = arith.constant 2 : index
    %c0_49 = arith.constant 0 : index
    %c0_50 = arith.constant 0 : index
    %c0_51 = arith.constant 0 : index
    %41 = vector.load %arg2[%c2, %c0_49, %c0_50, %c0_51] : memref<3x3x4x4xbf16, #tpu.memory_space<vmem>>, vector<1x1x4x4xbf16>
    %42 = vector.shape_cast %41 : vector<1x1x4x4xbf16> to vector<4x4xbf16>
    %cst_52 = arith.constant dense<0.000000e+00> : vector<16x16x4xf32>
    %43 = tpu.matmul %39, %42, %cst_52 {dimension_numbers = #tpu.dot_dimension_numbers<[2], [0], [0, 1], [1], [0, 0, 0, 1, 1, 1], [], []>} : vector<16x16x4xbf16>, vector<4x4xbf16>, vector<16x16x4xf32> -> vector<16x16x4xf32>
    %44 = arith.addf %40, %43 : vector<16x16x4xf32>
    %c0_53 = arith.constant 0 : index
    %c0_54 = arith.constant 0 : index
    %c0_55 = arith.constant 0 : index
    %45 = vector.load %arg9[%c0_53, %c0_54, %c0_55] : memref<16x16x4xf32, #tpu.memory_space<vmem>>, vector<16x16x4xf32>
    tpu.vector_store %arg9[%c0_53, %c0_54, %c0_55], %44 {strides = array<i32>} : memref<16x16x4xf32, #tpu.memory_space<vmem>>, vector<16x16x4xf32>,
    %c0_56 = arith.constant 0 : index
    %c0_57 = arith.constant 0 : index
    %c1_58 = arith.constant 1 : index
    %c0_59 = arith.constant 0 : index
    %46 = vector.load %arg8[%c0_56, %c0_57, %c1_58, %c0_59] : memref<1x18x18x4xbf16, #tpu.memory_space<vmem>>, vector<1x18x16x4xbf16>
    %47 = vector.extract_strided_slice %46 {offsets = [0, 0, 0, 0], sizes = [1, 16, 16, 4], strides = [1, 1, 1, 1]} : vector<1x18x16x4xbf16> to vector<1x16x16x4xbf16>
    %48 = vector.shape_cast %47 : vector<1x16x16x4xbf16> to vector<16x16x4xbf16>
    %c0_60 = arith.constant 0 : index
    %c0_61 = arith.constant 0 : index
    %c0_62 = arith.constant 0 : index
    %49 = vector.load %arg9[%c0_60, %c0_61, %c0_62] : memref<16x16x4xf32, #tpu.memory_space<vmem>>, vector<16x16x4xf32>
    %c0_63 = arith.constant 0 : index
    %c1_64 = arith.constant 1 : index
    %c0_65 = arith.constant 0 : index
    %c0_66 = arith.constant 0 : index
    %50 = vector.load %arg2[%c0_63, %c1_64, %c0_65, %c0_66] : memref<3x3x4x4xbf16, #tpu.memory_space<vmem>>, vector<1x1x4x4xbf16>
    %51 = vector.shape_cast %50 : vector<1x1x4x4xbf16> to vector<4x4xbf16>
    %cst_67 = arith.constant dense<0.000000e+00> : vector<16x16x4xf32>
    %52 = tpu.matmul %48, %51, %cst_67 {dimension_numbers = #tpu.dot_dimension_numbers<[2], [0], [0, 1], [1], [0, 0, 0, 1, 1, 1], [], []>} : vector<16x16x4xbf16>, vector<4x4xbf16>, vector<16x16x4xf32> -> vector<16x16x4xf32>
    %53 = arith.addf %49, %52 : vector<16x16x4xf32>
    %c0_68 = arith.constant 0 : index
    %c0_69 = arith.constant 0 : index
    %c0_70 = arith.constant 0 : index
    %54 = vector.load %arg9[%c0_68, %c0_69, %c0_70] : memref<16x16x4xf32, #tpu.memory_space<vmem>>, vector<16x16x4xf32>
    tpu.vector_store %arg9[%c0_68, %c0_69, %c0_70], %53 {strides = array<i32>} : memref<16x16x4xf32, #tpu.memory_space<vmem>>, vector<16x16x4xf32>,
    %55 = vector.extract_strided_slice %46 {offsets = [0, 1, 0, 0], sizes = [1, 16, 16, 4], strides = [1, 1, 1, 1]} : vector<1x18x16x4xbf16> to vector<1x16x16x4xbf16>
    %56 = vector.shape_cast %55 : vector<1x16x16x4xbf16> to vector<16x16x4xbf16>
    %c0_71 = arith.constant 0 : index
    %c0_72 = arith.constant 0 : index
    %c0_73 = arith.constant 0 : index
    %57 = vector.load %arg9[%c0_71, %c0_72, %c0_73] : memref<16x16x4xf32, #tpu.memory_space<vmem>>, vector<16x16x4xf32>
    %c1_74 = arith.constant 1 : index
    %c1_75 = arith.constant 1 : index
    %c0_76 = arith.constant 0 : index
    %c0_77 = arith.constant 0 : index
    %58 = vector.load %arg2[%c1_74, %c1_75, %c0_76, %c0_77] : memref<3x3x4x4xbf16, #tpu.memory_space<vmem>>, vector<1x1x4x4xbf16>
    %59 = vector.shape_cast %58 : vector<1x1x4x4xbf16> to vector<4x4xbf16>
    %cst_78 = arith.constant dense<0.000000e+00> : vector<16x16x4xf32>
    %60 = tpu.matmul %56, %59, %cst_78 {dimension_numbers = #tpu.dot_dimension_numbers<[2], [0], [0, 1], [1], [0, 0, 0, 1, 1, 1], [], []>} : vector<16x16x4xbf16>, vector<4x4xbf16>, vector<16x16x4xf32> -> vector<16x16x4xf32>
    %61 = arith.addf %57, %60 : vector<16x16x4xf32>
    %c0_79 = arith.constant 0 : index
    %c0_80 = arith.constant 0 : index
    %c0_81 = arith.constant 0 : index
    %62 = vector.load %arg9[%c0_79, %c0_80, %c0_81] : memref<16x16x4xf32, #tpu.memory_space<vmem>>, vector<16x16x4xf32>
    tpu.vector_store %arg9[%c0_79, %c0_80, %c0_81], %61 {strides = array<i32>} : memref<16x16x4xf32, #tpu.memory_space<vmem>>, vector<16x16x4xf32>,
    %63 = vector.extract_strided_slice %46 {offsets = [0, 2, 0, 0], sizes = [1, 16, 16, 4], strides = [1, 1, 1, 1]} : vector<1x18x16x4xbf16> to vector<1x16x16x4xbf16>
    %64 = vector.shape_cast %63 : vector<1x16x16x4xbf16> to vector<16x16x4xbf16>
    %c0_82 = arith.constant 0 : index
    %c0_83 = arith.constant 0 : index
    %c0_84 = arith.constant 0 : index
    %65 = vector.load %arg9[%c0_82, %c0_83, %c0_84] : memref<16x16x4xf32, #tpu.memory_space<vmem>>, vector<16x16x4xf32>
    %c2_85 = arith.constant 2 : index
    %c1_86 = arith.constant 1 : index
    %c0_87 = arith.constant 0 : index
    %c0_88 = arith.constant 0 : index
    %66 = vector.load %arg2[%c2_85, %c1_86, %c0_87, %c0_88] : memref<3x3x4x4xbf16, #tpu.memory_space<vmem>>, vector<1x1x4x4xbf16>
    %67 = vector.shape_cast %66 : vector<1x1x4x4xbf16> to vector<4x4xbf16>
    %cst_89 = arith.constant dense<0.000000e+00> : vector<16x16x4xf32>
    %68 = tpu.matmul %64, %67, %cst_89 {dimension_numbers = #tpu.dot_dimension_numbers<[2], [0], [0, 1], [1], [0, 0, 0, 1, 1, 1], [], []>} : vector<16x16x4xbf16>, vector<4x4xbf16>, vector<16x16x4xf32> -> vector<16x16x4xf32>
    %69 = arith.addf %65, %68 : vector<16x16x4xf32>
    %c0_90 = arith.constant 0 : index
    %c0_91 = arith.constant 0 : index
    %c0_92 = arith.constant 0 : index
    %70 = vector.load %arg9[%c0_90, %c0_91, %c0_92] : memref<16x16x4xf32, #tpu.memory_space<vmem>>, vector<16x16x4xf32>
    tpu.vector_store %arg9[%c0_90, %c0_91, %c0_92], %69 {strides = array<i32>} : memref<16x16x4xf32, #tpu.memory_space<vmem>>, vector<16x16x4xf32>,
    %c0_93 = arith.constant 0 : index
    %c0_94 = arith.constant 0 : index
    %c2_95 = arith.constant 2 : index
    %c0_96 = arith.constant 0 : index
    %71 = vector.load %arg8[%c0_93, %c0_94, %c2_95, %c0_96] : memref<1x18x18x4xbf16, #tpu.memory_space<vmem>>, vector<1x18x16x4xbf16>
    %72 = vector.extract_strided_slice %71 {offsets = [0, 0, 0, 0], sizes = [1, 16, 16, 4], strides = [1, 1, 1, 1]} : vector<1x18x16x4xbf16> to vector<1x16x16x4xbf16>
    %73 = vector.shape_cast %72 : vector<1x16x16x4xbf16> to vector<16x16x4xbf16>
    %c0_97 = arith.constant 0 : index
    %c0_98 = arith.constant 0 : index
    %c0_99 = arith.constant 0 : index
    %74 = vector.load %arg9[%c0_97, %c0_98, %c0_99] : memref<16x16x4xf32, #tpu.memory_space<vmem>>, vector<16x16x4xf32>
    %c0_100 = arith.constant 0 : index
    %c2_101 = arith.constant 2 : index
    %c0_102 = arith.constant 0 : index
    %c0_103 = arith.constant 0 : index
    %75 = vector.load %arg2[%c0_100, %c2_101, %c0_102, %c0_103] : memref<3x3x4x4xbf16, #tpu.memory_space<vmem>>, vector<1x1x4x4xbf16>
    %76 = vector.shape_cast %75 : vector<1x1x4x4xbf16> to vector<4x4xbf16>
    %cst_104 = arith.constant dense<0.000000e+00> : vector<16x16x4xf32>
    %77 = tpu.matmul %73, %76, %cst_104 {dimension_numbers = #tpu.dot_dimension_numbers<[2], [0], [0, 1], [1], [0, 0, 0, 1, 1, 1], [], []>} : vector<16x16x4xbf16>, vector<4x4xbf16>, vector<16x16x4xf32> -> vector<16x16x4xf32>
    %78 = arith.addf %74, %77 : vector<16x16x4xf32>
    %c0_105 = arith.constant 0 : index
    %c0_106 = arith.constant 0 : index
    %c0_107 = arith.constant 0 : index
    %79 = vector.load %arg9[%c0_105, %c0_106, %c0_107] : memref<16x16x4xf32, #tpu.memory_space<vmem>>, vector<16x16x4xf32>
    tpu.vector_store %arg9[%c0_105, %c0_106, %c0_107], %78 {strides = array<i32>} : memref<16x16x4xf32, #tpu.memory_space<vmem>>, vector<16x16x4xf32>,
    %80 = vector.extract_strided_slice %71 {offsets = [0, 1, 0, 0], sizes = [1, 16, 16, 4], strides = [1, 1, 1, 1]} : vector<1x18x16x4xbf16> to vector<1x16x16x4xbf16>
    %81 = vector.shape_cast %80 : vector<1x16x16x4xbf16> to vector<16x16x4xbf16>
    %c0_108 = arith.constant 0 : index
    %c0_109 = arith.constant 0 : index
    %c0_110 = arith.constant 0 : index
    %82 = vector.load %arg9[%c0_108, %c0_109, %c0_110] : memref<16x16x4xf32, #tpu.memory_space<vmem>>, vector<16x16x4xf32>
    %c1_111 = arith.constant 1 : index
    %c2_112 = arith.constant 2 : index
    %c0_113 = arith.constant 0 : index
    %c0_114 = arith.constant 0 : index
    %83 = vector.load %arg2[%c1_111, %c2_112, %c0_113, %c0_114] : memref<3x3x4x4xbf16, #tpu.memory_space<vmem>>, vector<1x1x4x4xbf16>
    %84 = vector.shape_cast %83 : vector<1x1x4x4xbf16> to vector<4x4xbf16>
    %cst_115 = arith.constant dense<0.000000e+00> : vector<16x16x4xf32>
    %85 = tpu.matmul %81, %84, %cst_115 {dimension_numbers = #tpu.dot_dimension_numbers<[2], [0], [0, 1], [1], [0, 0, 0, 1, 1, 1], [], []>} : vector<16x16x4xbf16>, vector<4x4xbf16>, vector<16x16x4xf32> -> vector<16x16x4xf32>
    %86 = arith.addf %82, %85 : vector<16x16x4xf32>
    %c0_116 = arith.constant 0 : index
    %c0_117 = arith.constant 0 : index
    %c0_118 = arith.constant 0 : index
    %87 = vector.load %arg9[%c0_116, %c0_117, %c0_118] : memref<16x16x4xf32, #tpu.memory_space<vmem>>, vector<16x16x4xf32>
    tpu.vector_store %arg9[%c0_116, %c0_117, %c0_118], %86 {strides = array<i32>} : memref<16x16x4xf32, #tpu.memory_space<vmem>>, vector<16x16x4xf32>,
    %88 = vector.extract_strided_slice %71 {offsets = [0, 2, 0, 0], sizes = [1, 16, 16, 4], strides = [1, 1, 1, 1]} : vector<1x18x16x4xbf16> to vector<1x16x16x4xbf16>
    %89 = vector.shape_cast %88 : vector<1x16x16x4xbf16> to vector<16x16x4xbf16>
    %c0_119 = arith.constant 0 : index
    %c0_120 = arith.constant 0 : index
    %c0_121 = arith.constant 0 : index
    %90 = vector.load %arg9[%c0_119, %c0_120, %c0_121] : memref<16x16x4xf32, #tpu.memory_space<vmem>>, vector<16x16x4xf32>
    %c2_122 = arith.constant 2 : index
    %c2_123 = arith.constant 2 : index
    %c0_124 = arith.constant 0 : index
    %c0_125 = arith.constant 0 : index
    %91 = vector.load %arg2[%c2_122, %c2_123, %c0_124, %c0_125] : memref<3x3x4x4xbf16, #tpu.memory_space<vmem>>, vector<1x1x4x4xbf16>
    %92 = vector.shape_cast %91 : vector<1x1x4x4xbf16> to vector<4x4xbf16>
    %cst_126 = arith.constant dense<0.000000e+00> : vector<16x16x4xf32>
    %93 = tpu.matmul %89, %92, %cst_126 {dimension_numbers = #tpu.dot_dimension_numbers<[2], [0], [0, 1], [1], [0, 0, 0, 1, 1, 1], [], []>} : vector<16x16x4xbf16>, vector<4x4xbf16>, vector<16x16x4xf32> -> vector<16x16x4xf32>
    %94 = arith.addf %90, %93 : vector<16x16x4xf32>
    %c0_127 = arith.constant 0 : index
    %c0_128 = arith.constant 0 : index
    %c0_129 = arith.constant 0 : index
    %95 = vector.load %arg9[%c0_127, %c0_128, %c0_129] : memref<16x16x4xf32, #tpu.memory_space<vmem>>, vector<16x16x4xf32>
    tpu.vector_store %arg9[%c0_127, %c0_128, %c0_129], %94 {strides = array<i32>} : memref<16x16x4xf32, #tpu.memory_space<vmem>>, vector<16x16x4xf32>,
    %c0_130 = arith.constant 0 : index
    %c0_131 = arith.constant 0 : index
    %c0_132 = arith.constant 0 : index
    %96 = vector.load %arg9[%c0_130, %c0_131, %c0_132] : memref<16x16x4xf32, #tpu.memory_space<vmem>>, vector<16x16x4xf32>
    %c0_133 = arith.constant 0 : index
    %c0_134 = arith.constant 0 : index
    %c0_135 = arith.constant 0 : index
    %c0_136 = arith.constant 0 : index
    %97 = vector.load %arg5[%c0_133, %c0_134, %c0_135, %c0_136] : memref<1x16x16x4xf32, #tpu.memory_space<vmem>>, vector<1x16x16x4xf32>
    %98 = vector.shape_cast %97 : vector<1x16x16x4xf32> to vector<16x16x4xf32>
    %99 = vector.shape_cast %96 : vector<16x16x4xf32> to vector<1x16x16x4xf32>
    tpu.vector_store %arg5[%c0_133, %c0_134, %c0_135, %c0_136], %99 {strides = array<i32>} : memref<1x16x16x4xf32, #tpu.memory_space<vmem>>, vector<1x16x16x4xf32>,
    %cst_137 = arith.constant dense<0.000000e+00> : vector<4xf32>
    %100 = vector.multi_reduction <add>, %96, %cst_137 [0, 1] : vector<16x16x4xf32> to vector<4xf32>
    %101 = vector.shape_cast %100 : vector<4xf32> to vector<1x1x4xf32>
    %102 = arith.mulf %96, %96 : vector<16x16x4xf32>
    %cst_138 = arith.constant dense<0.000000e+00> : vector<4xf32>
    %103 = vector.multi_reduction <add>, %102, %cst_138 [0, 1] : vector<16x16x4xf32> to vector<4xf32>
    %104 = vector.shape_cast %103 : vector<4xf32> to vector<1x1x4xf32>
    %105 = vector.shape_cast %101 : vector<1x1x4xf32> to vector<1x1x4xf32>
    %106 = vector.broadcast %105 : vector<1x1x4xf32> to vector<1x8x4xf32>
    %c0_139 = arith.constant 0 : index
    %c0_140 = arith.constant 0 : index
    %c0_141 = arith.constant 0 : index
    %107 = vector.load %arg6[%c0_139, %c0_140, %c0_141] : memref<1x8x4xf32, #tpu.memory_space<vmem>>, vector<1x8x4xf32>
    tpu.vector_store %arg6[%c0_139, %c0_140, %c0_141], %106 {strides = array<i32>} : memref<1x8x4xf32, #tpu.memory_space<vmem>>, vector<1x8x4xf32>,
    %108 = vector.shape_cast %104 : vector<1x1x4xf32> to vector<1x1x4xf32>
    %109 = vector.broadcast %108 : vector<1x1x4xf32> to vector<1x8x4xf32>
    %c0_142 = arith.constant 0 : index
    %c0_143 = arith.constant 0 : index
    %c0_144 = arith.constant 0 : index
    %110 = vector.load %arg7[%c0_142, %c0_143, %c0_144] : memref<1x8x4xf32, #tpu.memory_space<vmem>>, vector<1x8x4xf32>
    tpu.vector_store %arg7[%c0_142, %c0_143, %c0_144], %109 {strides = array<i32>} : memref<1x8x4xf32, #tpu.memory_space<vmem>>, vector<1x8x4xf32>,
    return
  }
  func.func @transform_0(%arg0: i32) -> (i32, i32, i32, i32, i32) {
    %c0_i32 = arith.constant 0 : i32
    %c0_i32_0 = arith.constant 0 : i32
    %c0_i32_1 = arith.constant 0 : i32
    %c0_i32_2 = arith.constant 0 : i32
    %c0_i32_3 = arith.constant 0 : i32
    return %arg0, %c0_i32, %c0_i32_0, %c0_i32_1, %c0_i32_2 : i32, i32, i32, i32, i32
  }
  func.func @transform_1(%arg0: i32) -> (i32, i32, i32, i32) {
    %c0_i32 = arith.constant 0 : i32
    %c0_i32_0 = arith.constant 0 : i32
    %c0_i32_1 = arith.constant 0 : i32
    %c0_i32_2 = arith.constant 0 : i32
    %c0_i32_3 = arith.constant 0 : i32
    return %c0_i32, %c0_i32_0, %c0_i32_1, %c0_i32_2 : i32, i32, i32, i32
  }
  func.func @transform_2(%arg0: i32) -> (i32, i32) {
    %c0_i32 = arith.constant 0 : i32
    %c0_i32_0 = arith.constant 0 : i32
    %c0_i32_1 = arith.constant 0 : i32
    return %c0_i32, %c0_i32_0 : i32, i32
  }
  func.func @transform_3(%arg0: i32) -> (i32, i32) {
    %c0_i32 = arith.constant 0 : i32
    %c0_i32_0 = arith.constant 0 : i32
    %c0_i32_1 = arith.constant 0 : i32
    return %c0_i32, %c0_i32_0 : i32, i32
  }
  func.func @transform_4(%arg0: i32) -> (i32, i32, i32, i32) {
    %c0_i32 = arith.constant 0 : i32
    %c0_i32_0 = arith.constant 0 : i32
    %c0_i32_1 = arith.constant 0 : i32
    %c0_i32_2 = arith.constant 0 : i32
    return %arg0, %c0_i32, %c0_i32_0, %c0_i32_1 : i32, i32, i32, i32
  }
  func.func @transform_5(%arg0: i32) -> (i32, i32, i32) {
    %c0_i32 = arith.constant 0 : i32
    %c0_i32_0 = arith.constant 0 : i32
    %c0_i32_1 = arith.constant 0 : i32
    return %arg0, %c0_i32, %c0_i32_0 : i32, i32, i32
  }
  func.func @transform_6(%arg0: i32) -> (i32, i32, i32) {
    %c0_i32 = arith.constant 0 : i32
    %c0_i32_0 = arith.constant 0 : i32
    %c0_i32_1 = arith.constant 0 : i32
    return %arg0, %c0_i32, %c0_i32_0 : i32, i32, i32
  }
}

module attributes {stable_mosaic.version = 11 : i64} {
  func.func @_mm_stats_kernel(%arg0: i32, %arg1: memref<512x4xf32, #tpu.memory_space<vmem>>, %arg2: memref<4x8xbf16, #tpu.memory_space<vmem>>, %arg3: memref<1x4xf32, #tpu.memory_space<vmem>>, %arg4: memref<1x4xf32, #tpu.memory_space<vmem>>, %arg5: memref<512x8xf32, #tpu.memory_space<vmem>>, %arg6: memref<1x8x8xf32, #tpu.memory_space<vmem>>, %arg7: memref<1x8x8xf32, #tpu.memory_space<vmem>>) attributes {dimension_semantics = [#tpu.dimension_semantics<parallel>], iteration_bounds = array<i64: 1>, scalar_prefetch = 0 : i64, scratch_operands = 0 : i64, tpu.core_type = #tpu.core_type<tc>, window_params = [{transform_indices = @transform_0, window_bounds = array<i64: 512, 4>}, {pipeline_mode = #tpu.pipeline_mode<synchronous>, transform_indices = @transform_1, window_bounds = array<i64: 4, 8>}, {pipeline_mode = #tpu.pipeline_mode<synchronous>, transform_indices = @transform_2, window_bounds = array<i64: 1, 4>}, {pipeline_mode = #tpu.pipeline_mode<synchronous>, transform_indices = @transform_3, window_bounds = array<i64: 1, 4>}, {transform_indices = @transform_4, window_bounds = array<i64: 512, 8>}, {transform_indices = @transform_5, window_bounds = array<i64: 1, 8, 8>}, {transform_indices = @transform_6, window_bounds = array<i64: 1, 8, 8>}]} {
    %c0 = arith.constant 0 : index
    %c0_0 = arith.constant 0 : index
    %0 = vector.load %arg1[%c0, %c0_0] : memref<512x4xf32, #tpu.memory_space<vmem>>, vector<512x4xf32>
    %c0_1 = arith.constant 0 : index
    %c0_2 = arith.constant 0 : index
    %1 = vector.load %arg3[%c0_1, %c0_2] : memref<1x4xf32, #tpu.memory_space<vmem>>, vector<1x4xf32>
    %2 = vector.broadcast %1 : vector<1x4xf32> to vector<512x4xf32>
    %3 = arith.mulf %0, %2 : vector<512x4xf32>
    %c0_3 = arith.constant 0 : index
    %c0_4 = arith.constant 0 : index
    %4 = vector.load %arg4[%c0_3, %c0_4] : memref<1x4xf32, #tpu.memory_space<vmem>>, vector<1x4xf32>
    %5 = vector.broadcast %4 : vector<1x4xf32> to vector<512x4xf32>
    %6 = arith.addf %3, %5 : vector<512x4xf32>
    %7 = arith.truncf %6 : vector<512x4xf32> to vector<512x4xbf16>
    %c0_5 = arith.constant 0 : index
    %c0_6 = arith.constant 0 : index
    %8 = vector.load %arg2[%c0_5, %c0_6] : memref<4x8xbf16, #tpu.memory_space<vmem>>, vector<4x8xbf16>
    %cst = arith.constant dense<0.000000e+00> : vector<512x8xf32>
    %9 = tpu.matmul %7, %8, %cst {dimension_numbers = #tpu.dot_dimension_numbers<[1], [0], [0], [1], [0, 0, 1, 1], [], []>} : vector<512x4xbf16>, vector<4x8xbf16>, vector<512x8xf32> -> vector<512x8xf32>
    %c0_7 = arith.constant 0 : index
    %c0_8 = arith.constant 0 : index
    %10 = vector.load %arg5[%c0_7, %c0_8] : memref<512x8xf32, #tpu.memory_space<vmem>>, vector<512x8xf32>
    tpu.vector_store %arg5[%c0_7, %c0_8], %9 {strides = array<i32>} : memref<512x8xf32, #tpu.memory_space<vmem>>, vector<512x8xf32>,
    %cst_9 = arith.constant dense<0.000000e+00> : vector<8xf32>
    %11 = vector.multi_reduction <add>, %9, %cst_9 [0] : vector<512x8xf32> to vector<8xf32>
    %12 = vector.shape_cast %11 : vector<8xf32> to vector<1x8xf32>
    %13 = arith.mulf %9, %9 : vector<512x8xf32>
    %cst_10 = arith.constant dense<0.000000e+00> : vector<8xf32>
    %14 = vector.multi_reduction <add>, %13, %cst_10 [0] : vector<512x8xf32> to vector<8xf32>
    %15 = vector.shape_cast %14 : vector<8xf32> to vector<1x8xf32>
    %16 = vector.shape_cast %12 : vector<1x8xf32> to vector<1x1x8xf32>
    %17 = vector.shape_cast %16 : vector<1x1x8xf32> to vector<1x1x8xf32>
    %18 = vector.broadcast %17 : vector<1x1x8xf32> to vector<1x8x8xf32>
    %c0_11 = arith.constant 0 : index
    %c0_12 = arith.constant 0 : index
    %c0_13 = arith.constant 0 : index
    %19 = vector.load %arg6[%c0_11, %c0_12, %c0_13] : memref<1x8x8xf32, #tpu.memory_space<vmem>>, vector<1x8x8xf32>
    tpu.vector_store %arg6[%c0_11, %c0_12, %c0_13], %18 {strides = array<i32>} : memref<1x8x8xf32, #tpu.memory_space<vmem>>, vector<1x8x8xf32>,
    %20 = vector.shape_cast %15 : vector<1x8xf32> to vector<1x1x8xf32>
    %21 = vector.shape_cast %20 : vector<1x1x8xf32> to vector<1x1x8xf32>
    %22 = vector.broadcast %21 : vector<1x1x8xf32> to vector<1x8x8xf32>
    %c0_14 = arith.constant 0 : index
    %c0_15 = arith.constant 0 : index
    %c0_16 = arith.constant 0 : index
    %23 = vector.load %arg7[%c0_14, %c0_15, %c0_16] : memref<1x8x8xf32, #tpu.memory_space<vmem>>, vector<1x8x8xf32>
    tpu.vector_store %arg7[%c0_14, %c0_15, %c0_16], %22 {strides = array<i32>} : memref<1x8x8xf32, #tpu.memory_space<vmem>>, vector<1x8x8xf32>,
    return
  }
  func.func @transform_0(%arg0: i32) -> (i32, i32) {
    %c0_i32 = arith.constant 0 : i32
    %c0_i32_0 = arith.constant 0 : i32
    return %arg0, %c0_i32 : i32, i32
  }
  func.func @transform_1(%arg0: i32) -> (i32, i32) {
    %c0_i32 = arith.constant 0 : i32
    %c0_i32_0 = arith.constant 0 : i32
    %c0_i32_1 = arith.constant 0 : i32
    return %c0_i32, %c0_i32_0 : i32, i32
  }
  func.func @transform_2(%arg0: i32) -> (i32, i32) {
    %c0_i32 = arith.constant 0 : i32
    %c0_i32_0 = arith.constant 0 : i32
    %c0_i32_1 = arith.constant 0 : i32
    return %c0_i32, %c0_i32_0 : i32, i32
  }
  func.func @transform_3(%arg0: i32) -> (i32, i32) {
    %c0_i32 = arith.constant 0 : i32
    %c0_i32_0 = arith.constant 0 : i32
    %c0_i32_1 = arith.constant 0 : i32
    return %c0_i32, %c0_i32_0 : i32, i32
  }
  func.func @transform_4(%arg0: i32) -> (i32, i32) {
    %c0_i32 = arith.constant 0 : i32
    %c0_i32_0 = arith.constant 0 : i32
    return %arg0, %c0_i32 : i32, i32
  }
  func.func @transform_5(%arg0: i32) -> (i32, i32, i32) {
    %c0_i32 = arith.constant 0 : i32
    %c0_i32_0 = arith.constant 0 : i32
    %c0_i32_1 = arith.constant 0 : i32
    return %arg0, %c0_i32, %c0_i32_0 : i32, i32, i32
  }
  func.func @transform_6(%arg0: i32) -> (i32, i32, i32) {
    %c0_i32 = arith.constant 0 : i32
    %c0_i32_0 = arith.constant 0 : i32
    %c0_i32_1 = arith.constant 0 : i32
    return %arg0, %c0_i32, %c0_i32_0 : i32, i32, i32
  }
}

module attributes {stable_mosaic.version = 11 : i64} {
  func.func @_residual_kernel(%arg0: i32, %arg1: memref<512x8xf32, #tpu.memory_space<vmem>>, %arg2: memref<512x8xf32, #tpu.memory_space<vmem>>, %arg3: memref<1x8xf32, #tpu.memory_space<vmem>>, %arg4: memref<1x8xf32, #tpu.memory_space<vmem>>, %arg5: memref<1x8xf32, #tpu.memory_space<vmem>>, %arg6: memref<1x8xf32, #tpu.memory_space<vmem>>, %arg7: memref<512x8xf32, #tpu.memory_space<vmem>>) attributes {dimension_semantics = [#tpu.dimension_semantics<parallel>], iteration_bounds = array<i64: 1>, scalar_prefetch = 0 : i64, scratch_operands = 0 : i64, tpu.core_type = #tpu.core_type<tc>, window_params = [{transform_indices = @transform_0, window_bounds = array<i64: 512, 8>}, {transform_indices = @transform_1, window_bounds = array<i64: 512, 8>}, {pipeline_mode = #tpu.pipeline_mode<synchronous>, transform_indices = @transform_2, window_bounds = array<i64: 1, 8>}, {pipeline_mode = #tpu.pipeline_mode<synchronous>, transform_indices = @transform_3, window_bounds = array<i64: 1, 8>}, {pipeline_mode = #tpu.pipeline_mode<synchronous>, transform_indices = @transform_4, window_bounds = array<i64: 1, 8>}, {pipeline_mode = #tpu.pipeline_mode<synchronous>, transform_indices = @transform_5, window_bounds = array<i64: 1, 8>}, {transform_indices = @transform_6, window_bounds = array<i64: 512, 8>}]} {
    %c0 = arith.constant 0 : index
    %c0_0 = arith.constant 0 : index
    %0 = vector.load %arg1[%c0, %c0_0] : memref<512x8xf32, #tpu.memory_space<vmem>>, vector<512x8xf32>
    %c0_1 = arith.constant 0 : index
    %c0_2 = arith.constant 0 : index
    %1 = vector.load %arg3[%c0_1, %c0_2] : memref<1x8xf32, #tpu.memory_space<vmem>>, vector<1x8xf32>
    %2 = vector.broadcast %1 : vector<1x8xf32> to vector<512x8xf32>
    %3 = arith.mulf %0, %2 : vector<512x8xf32>
    %c0_3 = arith.constant 0 : index
    %c0_4 = arith.constant 0 : index
    %4 = vector.load %arg4[%c0_3, %c0_4] : memref<1x8xf32, #tpu.memory_space<vmem>>, vector<1x8xf32>
    %5 = vector.broadcast %4 : vector<1x8xf32> to vector<512x8xf32>
    %6 = arith.addf %3, %5 : vector<512x8xf32>
    %c0_5 = arith.constant 0 : index
    %c0_6 = arith.constant 0 : index
    %7 = vector.load %arg2[%c0_5, %c0_6] : memref<512x8xf32, #tpu.memory_space<vmem>>, vector<512x8xf32>
    %c0_7 = arith.constant 0 : index
    %c0_8 = arith.constant 0 : index
    %8 = vector.load %arg5[%c0_7, %c0_8] : memref<1x8xf32, #tpu.memory_space<vmem>>, vector<1x8xf32>
    %9 = vector.broadcast %8 : vector<1x8xf32> to vector<512x8xf32>
    %10 = arith.mulf %7, %9 : vector<512x8xf32>
    %c0_9 = arith.constant 0 : index
    %c0_10 = arith.constant 0 : index
    %11 = vector.load %arg6[%c0_9, %c0_10] : memref<1x8xf32, #tpu.memory_space<vmem>>, vector<1x8xf32>
    %12 = vector.broadcast %11 : vector<1x8xf32> to vector<512x8xf32>
    %13 = arith.addf %10, %12 : vector<512x8xf32>
    %14 = arith.addf %6, %13 : vector<512x8xf32>
    %cst = arith.constant 0.000000e+00 : f32
    %15 = vector.broadcast %cst : f32 to vector<512x8xf32>
    %16 = arith.maximumf %14, %15 : vector<512x8xf32>
    %c0_11 = arith.constant 0 : index
    %c0_12 = arith.constant 0 : index
    %17 = vector.load %arg7[%c0_11, %c0_12] : memref<512x8xf32, #tpu.memory_space<vmem>>, vector<512x8xf32>
    tpu.vector_store %arg7[%c0_11, %c0_12], %16 {strides = array<i32>} : memref<512x8xf32, #tpu.memory_space<vmem>>, vector<512x8xf32>,
    return
  }
  func.func @transform_0(%arg0: i32) -> (i32, i32) {
    %c0_i32 = arith.constant 0 : i32
    %c0_i32_0 = arith.constant 0 : i32
    return %arg0, %c0_i32 : i32, i32
  }
  func.func @transform_1(%arg0: i32) -> (i32, i32) {
    %c0_i32 = arith.constant 0 : i32
    %c0_i32_0 = arith.constant 0 : i32
    return %arg0, %c0_i32 : i32, i32
  }
  func.func @transform_2(%arg0: i32) -> (i32, i32) {
    %c0_i32 = arith.constant 0 : i32
    %c0_i32_0 = arith.constant 0 : i32
    %c0_i32_1 = arith.constant 0 : i32
    return %c0_i32, %c0_i32_0 : i32, i32
  }
  func.func @transform_3(%arg0: i32) -> (i32, i32) {
    %c0_i32 = arith.constant 0 : i32
    %c0_i32_0 = arith.constant 0 : i32
    %c0_i32_1 = arith.constant 0 : i32
    return %c0_i32, %c0_i32_0 : i32, i32
  }
  func.func @transform_4(%arg0: i32) -> (i32, i32) {
    %c0_i32 = arith.constant 0 : i32
    %c0_i32_0 = arith.constant 0 : i32
    %c0_i32_1 = arith.constant 0 : i32
    return %c0_i32, %c0_i32_0 : i32, i32
  }
  func.func @transform_5(%arg0: i32) -> (i32, i32) {
    %c0_i32 = arith.constant 0 : i32
    %c0_i32_0 = arith.constant 0 : i32
    %c0_i32_1 = arith.constant 0 : i32
    return %c0_i32, %c0_i32_0 : i32, i32
  }
  func.func @transform_6(%arg0: i32) -> (i32, i32) {
    %c0_i32 = arith.constant 0 : i32
    %c0_i32_0 = arith.constant 0 : i32
    return %arg0, %c0_i32 : i32, i32
  }
}

</mosaic_0001>

<llo_original>
// kernel: conv_bottleneck_forward.5
$region0: #{conv_bottleneck_forward.5}
  #allocation0 [shape = 'u32[]', space=smem, size = 0x4, offset = 0x4, fixed_abs, tag = 'smem constant byte address 0x4 - core index']
  #allocation1 [shape = 'u32[144,128]{1,0:T(1,128)}', space=vmem, size = 0x12000, scoped, tag = 'internal scratch']
  %s0 = inlined_call_operand.vmem [shape: f32[512,4], index: 0, kind: input, shape index: {}]
  %s1 = inlined_call_operand.vmem [shape: bf16[4,4], index: 1, kind: input, shape index: {}]
  %s2 = inlined_call_operand.vmem [shape: f32[1,4], index: 2, kind: input, shape index: {}]
  %s3 = inlined_call_operand.vmem [shape: f32[1,4], index: 3, kind: input, shape index: {}]
  %s4 = inlined_call_operand.vmem [shape: f32[512,4], index: 4, kind: output, shape index: {0}]
  %s5 = inlined_call_operand.vmem [shape: f32[1,8,4], index: 5, kind: output, shape index: {1}]
  %s6 = inlined_call_operand.vmem [shape: f32[1,8,4], index: 6, kind: output, shape index: {2}]
  %7 = xla_tuple %s4, %s5, %s6
  %s8 = sld [smem:[#allocation0]]
  $region42: #{conv_bottleneck_forward.5} parent=0
    _
  %s10 = ssub.s32 1, %s8
  %s11 = scalar_select 0, %s10, %s8
  // Predicated region
  $region2: #{conv_bottleneck_forward.5} parent=0 // pred_check
    _
  $region3: #{conv_bottleneck_forward.5} parent=0 // pred_check_branch
    %13 = sbr.rel (0) target = $region5
  $region4: #{conv_bottleneck_forward.5} parent=0 // pred_region
    _
  $region5: #{conv_bottleneck_forward.5} parent=0 // pred_fallthru
    _
  // Predicated region
  $region6: #{conv_bottleneck_forward.5} parent=0 // pred_check
    _
  $region7: #{conv_bottleneck_forward.5} parent=0 // pred_check_branch
    %15 = sbr.rel (0) target = $region9
  $region8: #{conv_bottleneck_forward.5} parent=0 // pred_region
    _
  $region9: #{conv_bottleneck_forward.5} parent=0 // pred_fallthru
    _
  // Predicated region
  $region10: #{conv_bottleneck_forward.5} parent=0 // pred_check
    _
  $region11: #{conv_bottleneck_forward.5} parent=0 // pred_check_branch
    %17 = sbr.rel (0) target = $region13
  $region12: #{conv_bottleneck_forward.5} parent=0 // pred_region
    _
  $region13: #{conv_bottleneck_forward.5} parent=0 // pred_fallthru
    _
  // Predicated region
  $region14: #{conv_bottleneck_forward.5} parent=0 // pred_check
    _
  $region15: #{conv_bottleneck_forward.5} parent=0 // pred_check_branch
    %19 = sbr.rel (0) target = $region17
  $region16: #{conv_bottleneck_forward.5} parent=0 // pred_region
    _
  $region17: #{conv_bottleneck_forward.5} parent=0 // pred_fallthru
    _
  %v21 = vld [vmem:[%s0] sm:$0xff]
  %v22 = vld [vmem:[%s0 + $0x8] sm:$0xff]
  %v23 = vld [vmem:[%s0 + $0x10] sm:$0xff]
  %v24 = vld [vmem:[%s0 + $0x18] sm:$0xff]
  %v25 = vld [vmem:[%s0 + $0x20] sm:$0xff]
  %v26 = vld [vmem:[%s0 + $0x28] sm:$0xff]
  %v27 = vld [vmem:[%s0 + $0x30] sm:$0xff]
  %v28 = vld [vmem:[%s0 + $0x38] sm:$0xff]
  %v29 = vld [vmem:[%s0 + $0x40] sm:$0xff]
  %v30 = vld [vmem:[%s0 + $0x48] sm:$0xff]
  %v31 = vld [vmem:[%s0 + $0x50] sm:$0xff]
  %v32 = vld [vmem:[%s0 + $0x58] sm:$0xff]
  %v33 = vld [vmem:[%s0 + $0x60] sm:$0xff]
  %v34 = vld [vmem:[%s0 + $0x68] sm:$0xff]
  %v35 = vld [vmem:[%s0 + $0x70] sm:$0xff]
  %v36 = vld [vmem:[%s0 + $0x78] sm:$0xff]
  %v37 = vld [vmem:[%s0 + $0x80] sm:$0xff]
  %v38 = vld [vmem:[%s0 + $0x88] sm:$0xff]
  %v39 = vld [vmem:[%s0 + $0x90] sm:$0xff]
  %v40 = vld [vmem:[%s0 + $0x98] sm:$0xff]
  %v41 = vld [vmem:[%s0 + $0xa0] sm:$0xff]
  %v42 = vld [vmem:[%s0 + $0xa8] sm:$0xff]
  %v43 = vld [vmem:[%s0 + $0xb0] sm:$0xff]
  %v44 = vld [vmem:[%s0 + $0xb8] sm:$0xff]
  %v45 = vld [vmem:[%s0 + $0xc0] sm:$0xff]
  %v46 = vld [vmem:[%s0 + $0xc8] sm:$0xff]
  %v47 = vld [vmem:[%s0 + $0xd0] sm:$0xff]
  %v48 = vld [vmem:[%s0 + $0xd8] sm:$0xff]
  %v49 = vld [vmem:[%s0 + $0xe0] sm:$0xff]
  %v50 = vld [vmem:[%s0 + $0xe8] sm:$0xff]
  %v51 = vld [vmem:[%s0 + $0xf0] sm:$0xff]
  %v52 = vld [vmem:[%s0 + $0xf8] sm:$0xff]
  %v53 = vld [vmem:[%s0 + $0x100] sm:$0xff]
  %v54 = vld [vmem:[%s0 + $0x108] sm:$0xff]
  %v55 = vld [vmem:[%s0 + $0x110] sm:$0xff]
  %v56 = vld [vmem:[%s0 + $0x118] sm:$0xff]
  %v57 = vld [vmem:[%s0 + $0x120] sm:$0xff]
  %v58 = vld [vmem:[%s0 + $0x128] sm:$0xff]
  %v59 = vld [vmem:[%s0 + $0x130] sm:$0xff]
  %v60 = vld [vmem:[%s0 + $0x138] sm:$0xff]
  %v61 = vld [vmem:[%s0 + $0x140] sm:$0xff]
  %v62 = vld [vmem:[%s0 + $0x148] sm:$0xff]
  %v63 = vld [vmem:[%s0 + $0x150] sm:$0xff]
  %v64 = vld [vmem:[%s0 + $0x158] sm:$0xff]
  %v65 = vld [vmem:[%s0 + $0x160] sm:$0xff]
  %v66 = vld [vmem:[%s0 + $0x168] sm:$0xff]
  %v67 = vld [vmem:[%s0 + $0x170] sm:$0xff]
  %v68 = vld [vmem:[%s0 + $0x178] sm:$0xff]
  %v69 = vld [vmem:[%s0 + $0x180] sm:$0xff]
  %v70 = vld [vmem:[%s0 + $0x188] sm:$0xff]
  %v71 = vld [vmem:[%s0 + $0x190] sm:$0xff]
  %v72 = vld [vmem:[%s0 + $0x198] sm:$0xff]
  %v73 = vld [vmem:[%s0 + $0x1a0] sm:$0xff]
  %v74 = vld [vmem:[%s0 + $0x1a8] sm:$0xff]
  %v75 = vld [vmem:[%s0 + $0x1b0] sm:$0xff]
  %v76 = vld [vmem:[%s0 + $0x1b8] sm:$0xff]
  %v77 = vld [vmem:[%s0 + $0x1c0] sm:$0xff]
  %v78 = vld [vmem:[%s0 + $0x1c8] sm:$0xff]
  %v79 = vld [vmem:[%s0 + $0x1d0] sm:$0xff]
  %v80 = vld [vmem:[%s0 + $0x1d8] sm:$0xff]
  %v81 = vld [vmem:[%s0 + $0x1e0] sm:$0xff]
  %v82 = vld [vmem:[%s0 + $0x1e8] sm:$0xff]
  %v83 = vld [vmem:[%s0 + $0x1f0] sm:$0xff]
  %v84 = vld [vmem:[%s0 + $0x1f8] sm:$0xff]
  %v85 = vld [vmem:[%s2] sm:$0x1]
  %v87 = vlaneseq
  %v88 = vshrl.u32 %v87, 7
  %v89 = vsub.s32 0, %v88
  %v90 = vrot.slane %v85, %v89
  %v92 = vmul.f32 %v21, %v90
  %v93 = vmul.f32 %v22, %v90
  %v94 = vmul.f32 %v23, %v90
  %v95 = vmul.f32 %v24, %v90
  %v96 = vmul.f32 %v25, %v90
  %v97 = vmul.f32 %v26, %v90
  %v98 = vmul.f32 %v27, %v90
  %v99 = vmul.f32 %v28, %v90
  %v100 = vmul.f32 %v29, %v90
  %v101 = vmul.f32 %v30, %v90
  %v102 = vmul.f32 %v31, %v90
  %v103 = vmul.f32 %v32, %v90
  %v104 = vmul.f32 %v33, %v90
  %v105 = vmul.f32 %v34, %v90
  %v106 = vmul.f32 %v35, %v90
  %v107 = vmul.f32 %v36, %v90
  %v108 = vmul.f32 %v37, %v90
  %v109 = vmul.f32 %v38, %v90
  %v110 = vmul.f32 %v39, %v90
  %v111 = vmul.f32 %v40, %v90
  %v112 = vmul.f32 %v41, %v90
  %v113 = vmul.f32 %v42, %v90
  %v114 = vmul.f32 %v43, %v90
  %v115 = vmul.f32 %v44, %v90
  %v116 = vmul.f32 %v45, %v90
  %v117 = vmul.f32 %v46, %v90
  %v118 = vmul.f32 %v47, %v90
  %v119 = vmul.f32 %v48, %v90
  %v120 = vmul.f32 %v49, %v90
  %v121 = vmul.f32 %v50, %v90
  %v122 = vmul.f32 %v51, %v90
  %v123 = vmul.f32 %v52, %v90
  %v124 = vmul.f32 %v53, %v90
  %v125 = vmul.f32 %v54, %v90
  %v126 = vmul.f32 %v55, %v90
  %v127 = vmul.f32 %v56, %v90
  %v128 = vmul.f32 %v57, %v90
  %v129 = vmul.f32 %v58, %v90
  %v130 = vmul.f32 %v59, %v90
  %v131 = vmul.f32 %v60, %v90
  %v132 = vmul.f32 %v61, %v90
  %v133 = vmul.f32 %v62, %v90
  %v134 = vmul.f32 %v63, %v90
  %v135 = vmul.f32 %v64, %v90
  %v136 = vmul.f32 %v65, %v90
  %v137 = vmul.f32 %v66, %v90
  %v138 = vmul.f32 %v67, %v90
  %v139 = vmul.f32 %v68, %v90
  %v140 = vmul.f32 %v69, %v90
  %v141 = vmul.f32 %v70, %v90
  %v142 = vmul.f32 %v71, %v90
  %v143 = vmul.f32 %v72, %v90
  %v144 = vmul.f32 %v73, %v90
  %v145 = vmul.f32 %v74, %v90
  %v146 = vmul.f32 %v75, %v90
  %v147 = vmul.f32 %v76, %v90
  %v148 = vmul.f32 %v77, %v90
  %v149 = vmul.f32 %v78, %v90
  %v150 = vmul.f32 %v79, %v90
  %v151 = vmul.f32 %v80, %v90
  %v152 = vmul.f32 %v81, %v90
  %v153 = vmul.f32 %v82, %v90
  %v154 = vmul.f32 %v83, %v90
  %v155 = vmul.f32 %v84, %v90
  %v156 = vld [vmem:[%s3] sm:$0x1]
  %v158 = vlaneseq
  %v159 = vshrl.u32 %v158, 7
  %v160 = vsub.s32 0, %v159
  %v161 = vrot.slane %v156, %v160
  %v163 = vadd.f32 %v92, %v161
  %v164 = vadd.f32 %v93, %v161
  %v165 = vadd.f32 %v94, %v161
  %v166 = vadd.f32 %v95, %v161
  %v167 = vadd.f32 %v96, %v161
  %v168 = vadd.f32 %v97, %v161
  %v169 = vadd.f32 %v98, %v161
  %v170 = vadd.f32 %v99, %v161
  %v171 = vadd.f32 %v100, %v161
  %v172 = vadd.f32 %v101, %v161
  %v173 = vadd.f32 %v102, %v161
  %v174 = vadd.f32 %v103, %v161
  %v175 = vadd.f32 %v104, %v161
  %v176 = vadd.f32 %v105, %v161
  %v177 = vadd.f32 %v106, %v161
  %v178 = vadd.f32 %v107, %v161
  %v179 = vadd.f32 %v108, %v161
  %v180 = vadd.f32 %v109, %v161
  %v181 = vadd.f32 %v110, %v161
  %v182 = vadd.f32 %v111, %v161
  %v183 = vadd.f32 %v112, %v161
  %v184 = vadd.f32 %v113, %v161
  %v185 = vadd.f32 %v114, %v161
  %v186 = vadd.f32 %v115, %v161
  %v187 = vadd.f32 %v116, %v161
  %v188 = vadd.f32 %v117, %v161
  %v189 = vadd.f32 %v118, %v161
  %v190 = vadd.f32 %v119, %v161
  %v191 = vadd.f32 %v120, %v161
  %v192 = vadd.f32 %v121, %v161
  %v193 = vadd.f32 %v122, %v161
  %v194 = vadd.f32 %v123, %v161
  %v195 = vadd.f32 %v124, %v161
  %v196 = vadd.f32 %v125, %v161
  %v197 = vadd.f32 %v126, %v161
  %v198 = vadd.f32 %v127, %v161
  %v199 = vadd.f32 %v128, %v161
  %v200 = vadd.f32 %v129, %v161
  %v201 = vadd.f32 %v130, %v161
  %v202 = vadd.f32 %v131, %v161
  %v203 = vadd.f32 %v132, %v161
  %v204 = vadd.f32 %v133, %v161
  %v205 = vadd.f32 %v134, %v161
  %v206 = vadd.f32 %v135, %v161
  %v207 = vadd.f32 %v136, %v161
  %v208 = vadd.f32 %v137, %v161
  %v209 = vadd.f32 %v138, %v161
  %v210 = vadd.f32 %v139, %v161
  %v211 = vadd.f32 %v140, %v161
  %v212 = vadd.f32 %v141, %v161
  %v213 = vadd.f32 %v142, %v161
  %v214 = vadd.f32 %v143, %v161
  %v215 = vadd.f32 %v144, %v161
  %v216 = vadd.f32 %v145, %v161
  %v217 = vadd.f32 %v146, %v161
  %v218 = vadd.f32 %v147, %v161
  %v219 = vadd.f32 %v148, %v161
  %v220 = vadd.f32 %v149, %v161
  %v221 = vadd.f32 %v150, %v161
  %v222 = vadd.f32 %v151, %v161
  %v223 = vadd.f32 %v152, %v161
  %v224 = vadd.f32 %v153, %v161
  %v225 = vadd.f32 %v154, %v161
  %v226 = vadd.f32 %v155, %v161
  %v227 = vpack.c.bf16 %v164, %v163
  %v228 = vpack.c.bf16 %v166, %v165
  %v229 = vpack.c.bf16 %v168, %v167
  %v230 = vpack.c.bf16 %v170, %v169
  %v231 = vpack.c.bf16 %v172, %v171
  %v232 = vpack.c.bf16 %v174, %v173
  %v233 = vpack.c.bf16 %v176, %v175
  %v234 = vpack.c.bf16 %v178, %v177
  %v235 = vpack.c.bf16 %v180, %v179
  %v236 = vpack.c.bf16 %v182, %v181
  %v237 = vpack.c.bf16 %v184, %v183
  %v238 = vpack.c.bf16 %v186, %v185
  %v239 = vpack.c.bf16 %v188, %v187
  %v240 = vpack.c.bf16 %v190, %v189
  %v241 = vpack.c.bf16 %v192, %v191
  %v242 = vpack.c.bf16 %v194, %v193
  %v243 = vpack.c.bf16 %v196, %v195
  %v244 = vpack.c.bf16 %v198, %v197
  %v245 = vpack.c.bf16 %v200, %v199
  %v246 = vpack.c.bf16 %v202, %v201
  %v247 = vpack.c.bf16 %v204, %v203
  %v248 = vpack.c.bf16 %v206, %v205
  %v249 = vpack.c.bf16 %v208, %v207
  %v250 = vpack.c.bf16 %v210, %v209
  %v251 = vpack.c.bf16 %v212, %v211
  %v252 = vpack.c.bf16 %v214, %v213
  %v253 = vpack.c.bf16 %v216, %v215
  %v254 = vpack.c.bf16 %v218, %v217
  %v255 = vpack.c.bf16 %v220, %v219
  %v256 = vpack.c.bf16 %v222, %v221
  %v257 = vpack.c.bf16 %v224, %v223
  %v258 = vpack.c.bf16 %v226, %v225
  %v259 = vld [vmem:[%s1] sm:$0x3]
  %vm260 = vcmask 31744
  %v262 = vsel %vm260, %v227, 0
  %v265 = vsel %vm260, %v228, 0
  %v268 = vsel %vm260, %v229, 0
  %v271 = vsel %vm260, %v230, 0
  %v274 = vsel %vm260, %v231, 0
  %v277 = vsel %vm260, %v232, 0
  %v280 = vsel %vm260, %v233, 0
  %v283 = vsel %vm260, %v234, 0
  %v286 = vsel %vm260, %v235, 0
  %v289 = vsel %vm260, %v236, 0
  %v292 = vsel %vm260, %v237, 0
  %v295 = vsel %vm260, %v238, 0
  %v298 = vsel %vm260, %v239, 0
  %v301 = vsel %vm260, %v240, 0
  %v304 = vsel %vm260, %v241, 0
  %v307 = vsel %vm260, %v242, 0
  %v310 = vsel %vm260, %v243, 0
  %v313 = vsel %vm260, %v244, 0
  %v316 = vsel %vm260, %v245, 0
  %v319 = vsel %vm260, %v246, 0
  %v322 = vsel %vm260, %v247, 0
  %v325 = vsel %vm260, %v248, 0
  %v328 = vsel %vm260, %v249, 0
  %v331 = vsel %vm260, %v250, 0
  %v334 = vsel %vm260, %v251, 0
  %v337 = vsel %vm260, %v252, 0
  %v340 = vsel %vm260, %v253, 0
  %v343 = vsel %vm260, %v254, 0
  %v346 = vsel %vm260, %v255, 0
  %v349 = vsel %vm260, %v256, 0
  %v352 = vsel %vm260, %v257, 0
  %v355 = vsel %vm260, %v258, 0
  %vm357 = vcmask 1041408
  %v359 = vsel %vm357, %v259, 0
  %361 = vmatprep.subr.bf16.mxu0 0
  %362 = vmatpush1.bf16.msra.mxu0 %v359
  %363 = vmatprep.subr.bf16.mxu0 0
  %364 = vmatpush1.bf16.msra.mxu0 0
  %365 = vmatprep.subr.bf16.mxu0 0
  %366 = vmatpush1.bf16.msra.mxu0 0
  %367 = vmatprep.subr.bf16.mxu0 0
  %368 = vmatpush1.bf16.msra.mxu0 0
  %369 = vmatprep.subr.bf16.mxu0 0
  %370 = vmatpush1.bf16.msra.mxu0 0
  %371 = vmatprep.subr.bf16.mxu0 0
  %372 = vmatpush1.bf16.msra.mxu0 0
  %373 = vmatprep.subr.bf16.mxu0 0
  %374 = vmatpush1.bf16.msra.mxu0 0
  %375 = vmatprep.subr.bf16.mxu0 0
  %376 = vmatpush1.bf16.msra.mxu0 0
  %377 = vmatprep.subr.bf16.mxu0 0
  %378 = vmatpush1.bf16.msra.mxu0 0
  %379 = vmatprep.subr.bf16.mxu0 0
  %380 = vmatpush1.bf16.msra.mxu0 0
  %381 = vmatprep.subr.bf16.mxu0 0
  %382 = vmatpush1.bf16.msra.mxu0 0
  %383 = vmatprep.subr.bf16.mxu0 0
  %384 = vmatpush1.bf16.msra.mxu0 0
  %385 = vmatprep.subr.bf16.mxu0 0
  %386 = vmatpush1.bf16.msra.mxu0 0
  %387 = vmatprep.subr.bf16.mxu0 0
  %388 = vmatpush1.bf16.msra.mxu0 0
  %389 = vmatprep.subr.bf16.mxu0 0
  %390 = vmatpush1.bf16.msra.mxu0 0
  %391 = vmatprep.subr.bf16.mxu0 0
  %392 = vmatpush1.bf16.msra.mxu0 0
  %393 = vmatprep.mubr.bf16.mxu0 0
  %394 = vmatmul.mubr.bf16.gmra.mrb[0].mxu0 %v262
  %v395 = vpop.f32.mrb[0].mxu0
  %v396 = vadd.f32 0.0, %v395
  %v397 = vpop.f32.mrb[0].mxu0
  %v398 = vpop.f32.mrb[0].mxu0
  %v399 = vadd.f32 0.0, %v398
  %v400 = vpop.f32.mrb[0].mxu0
  %401 = vmatprep.mubr.bf16.mxu0 0
  %402 = vmatmul.mubr.bf16.gmra.mrb[0].mxu0 %v265
  %v403 = vpop.f32.mrb[0].mxu0
  %v404 = vadd.f32 0.0, %v403
  %v405 = vpop.f32.mrb[0].mxu0
  %v406 = vpop.f32.mrb[0].mxu0
  %v407 = vadd.f32 0.0, %v406
  %v408 = vpop.f32.mrb[0].mxu0
  %409 = vmatprep.mubr.bf16.mxu0 0
  %410 = vmatmul.mubr.bf16.gmra.mrb[0].mxu0 %v268
  %v411 = vpop.f32.mrb[0].mxu0
  %v412 = vadd.f32 0.0, %v411
  %v413 = vpop.f32.mrb[0].mxu0
  %v414 = vpop.f32.mrb[0].mxu0
  %v415 = vadd.f32 0.0, %v414
  %v416 = vpop.f32.mrb[0].mxu0
  %417 = vmatprep.mubr.bf16.mxu0 0
  %418 = vmatmul.mubr.bf16.gmra.mrb[0].mxu0 %v271
  %v419 = vpop.f32.mrb[0].mxu0
  %v420 = vadd.f32 0.0, %v419
  %v421 = vpop.f32.mrb[0].mxu0
  %v422 = vpop.f32.mrb[0].mxu0
  %v423 = vadd.f32 0.0, %v422
  %v424 = vpop.f32.mrb[0].mxu0
  %425 = vmatprep.mubr.bf16.mxu0 0
  %426 = vmatmul.mubr.bf16.gmra.mrb[0].mxu0 %v274
  %v427 = vpop.f32.mrb[0].mxu0
  %v428 = vadd.f32 0.0, %v427
  %v429 = vpop.f32.mrb[0].mxu0
  %v430 = vpop.f32.mrb[0].mxu0
  %v431 = vadd.f32 0.0, %v430
  %v432 = vpop.f32.mrb[0].mxu0
  %433 = vmatprep.mubr.bf16.mxu0 0
  %434 = vmatmul.mubr.bf16.gmra.mrb[0].mxu0 %v277
  %v435 = vpop.f32.mrb[0].mxu0
  %v436 = vadd.f32 0.0, %v435
  %v437 = vpop.f32.mrb[0].mxu0
  %v438 = vpop.f32.mrb[0].mxu0
  %v439 = vadd.f32 0.0, %v438
  %v440 = vpop.f32.mrb[0].mxu0
  %441 = vmatprep.mubr.bf16.mxu0 0
  %442 = vmatmul.mubr.bf16.gmra.mrb[0].mxu0 %v280
  %v443 = vpop.f32.mrb[0].mxu0
  %v444 = vadd.f32 0.0, %v443
  %v445 = vpop.f32.mrb[0].mxu0
  %v446 = vpop.f32.mrb[0].mxu0
  %v447 = vadd.f32 0.0, %v446
  %v448 = vpop.f32.mrb[0].mxu0
  %449 = vmatprep.mubr.bf16.mxu0 0
  %450 = vmatmul.mubr.bf16.gmra.mrb[0].mxu0 %v283
  %v451 = vpop.f32.mrb[0].mxu0
  %v452 = vadd.f32 0.0, %v451
  %v453 = vpop.f32.mrb[0].mxu0
  %v454 = vpop.f32.mrb[0].mxu0
  %v455 = vadd.f32 0.0, %v454
  %v456 = vpop.f32.mrb[0].mxu0
  %457 = vmatprep.mubr.bf16.mxu0 0
  %458 = vmatmul.mubr.bf16.gmra.mrb[0].mxu0 %v286
  %v459 = vpop.f32.mrb[0].mxu0
  %v460 = vadd.f32 0.0, %v459
  %v461 = vpop.f32.mrb[0].mxu0
  %v462 = vpop.f32.mrb[0].mxu0
  %v463 = vadd.f32 0.0, %v462
  %v464 = vpop.f32.mrb[0].mxu0
  %465 = vmatprep.mubr.bf16.mxu0 0
  %466 = vmatmul.mubr.bf16.gmra.mrb[0].mxu0 %v289
  %v467 = vpop.f32.mrb[0].mxu0
  %v468 = vadd.f32 0.0, %v467
  %v469 = vpop.f32.mrb[0].mxu0
  %v470 = vpop.f32.mrb[0].mxu0
  %v471 = vadd.f32 0.0, %v470
  %v472 = vpop.f32.mrb[0].mxu0
  %473 = vmatprep.mubr.bf16.mxu0 0
  %474 = vmatmul.mubr.bf16.gmra.mrb[0].mxu0 %v292
  %v475 = vpop.f32.mrb[0].mxu0
  %v476 = vadd.f32 0.0, %v475
  %v477 = vpop.f32.mrb[0].mxu0
  %v478 = vpop.f32.mrb[0].mxu0
  %v479 = vadd.f32 0.0, %v478
  %v480 = vpop.f32.mrb[0].mxu0
  %481 = vmatprep.mubr.bf16.mxu0 0
  %482 = vmatmul.mubr.bf16.gmra.mrb[0].mxu0 %v295
  %v483 = vpop.f32.mrb[0].mxu0
  %v484 = vadd.f32 0.0, %v483
  %v485 = vpop.f32.mrb[0].mxu0
  %v486 = vpop.f32.mrb[0].mxu0
  %v487 = vadd.f32 0.0, %v486
  %v488 = vpop.f32.mrb[0].mxu0
  %489 = vmatprep.mubr.bf16.mxu0 0
  %490 = vmatmul.mubr.bf16.gmra.mrb[0].mxu0 %v298
  %v491 = vpop.f32.mrb[0].mxu0
  %v492 = vadd.f32 0.0, %v491
  %v493 = vpop.f32.mrb[0].mxu0
  %v494 = vpop.f32.mrb[0].mxu0
  %v495 = vadd.f32 0.0, %v494
  %v496 = vpop.f32.mrb[0].mxu0
  %497 = vmatprep.mubr.bf16.mxu0 0
  %498 = vmatmul.mubr.bf16.gmra.mrb[0].mxu0 %v301
  %v499 = vpop.f32.mrb[0].mxu0
  %v500 = vadd.f32 0.0, %v499
  %v501 = vpop.f32.mrb[0].mxu0
  %v502 = vpop.f32.mrb[0].mxu0
  %v503 = vadd.f32 0.0, %v502
  %v504 = vpop.f32.mrb[0].mxu0
  %505 = vmatprep.mubr.bf16.mxu0 0
  %506 = vmatmul.mubr.bf16.gmra.mrb[0].mxu0 %v304
  %v507 = vpop.f32.mrb[0].mxu0
  %v508 = vadd.f32 0.0, %v507
  %v509 = vpop.f32.mrb[0].mxu0
  %v510 = vpop.f32.mrb[0].mxu0
  %v511 = vadd.f32 0.0, %v510
  %v512 = vpop.f32.mrb[0].mxu0
  %513 = vmatprep.mubr.bf16.mxu0 0
  %514 = vmatmul.mubr.bf16.gmra.mrb[0].mxu0 %v307
  %v515 = vpop.f32.mrb[0].mxu0
  %v516 = vadd.f32 0.0, %v515
  %v517 = vpop.f32.mrb[0].mxu0
  %v518 = vpop.f32.mrb[0].mxu0
  %v519 = vadd.f32 0.0, %v518
  %v520 = vpop.f32.mrb[0].mxu0
  %521 = vmatprep.mubr.bf16.mxu0 0
  %522 = vmatmul.mubr.bf16.gmra.mrb[0].mxu0 %v310
  %v523 = vpop.f32.mrb[0].mxu0
  %v524 = vadd.f32 0.0, %v523
  %v525 = vpop.f32.mrb[0].mxu0
  %v526 = vpop.f32.mrb[0].mxu0
  %v527 = vadd.f32 0.0, %v526
  %v528 = vpop.f32.mrb[0].mxu0
  %529 = vmatprep.mubr.bf16.mxu0 0
  %530 = vmatmul.mubr.bf16.gmra.mrb[0].mxu0 %v313
  %v531 = vpop.f32.mrb[0].mxu0
  %v532 = vadd.f32 0.0, %v531
  %v533 = vpop.f32.mrb[0].mxu0
  %v534 = vpop.f32.mrb[0].mxu0
  %v535 = vadd.f32 0.0, %v534
  %v536 = vpop.f32.mrb[0].mxu0
  %537 = vmatprep.mubr.bf16.mxu0 0
  %538 = vmatmul.mubr.bf16.gmra.mrb[0].mxu0 %v316
  %v539 = vpop.f32.mrb[0].mxu0
  %v540 = vadd.f32 0.0, %v539
  %v541 = vpop.f32.mrb[0].mxu0
  %v542 = vpop.f32.mrb[0].mxu0
  %v543 = vadd.f32 0.0, %v542
  %v544 = vpop.f32.mrb[0].mxu0
  %545 = vmatprep.mubr.bf16.mxu0 0
  %546 = vmatmul.mubr.bf16.gmra.mrb[0].mxu0 %v319
  %v547 = vpop.f32.mrb[0].mxu0
  %v548 = vadd.f32 0.0, %v547
  %v549 = vpop.f32.mrb[0].mxu0
  %v550 = vpop.f32.mrb[0].mxu0
  %v551 = vadd.f32 0.0, %v550
  %v552 = vpop.f32.mrb[0].mxu0
  %553 = vmatprep.mubr.bf16.mxu0 0
  %554 = vmatmul.mubr.bf16.gmra.mrb[0].mxu0 %v322
  %v555 = vpop.f32.mrb[0].mxu0
  %v556 = vadd.f32 0.0, %v555
  %v557 = vpop.f32.mrb[0].mxu0
  %v558 = vpop.f32.mrb[0].mxu0
  %v559 = vadd.f32 0.0, %v558
  %v560 = vpop.f32.mrb[0].mxu0
  %561 = vmatprep.mubr.bf16.mxu0 0
  %562 = vmatmul.mubr.bf16.gmra.mrb[0].mxu0 %v325
  %v563 = vpop.f32.mrb[0].mxu0
  %v564 = vadd.f32 0.0, %v563
  %v565 = vpop.f32.mrb[0].mxu0
  %v566 = vpop.f32.mrb[0].mxu0
  %v567 = vadd.f32 0.0, %v566
  %v568 = vpop.f32.mrb[0].mxu0
  %569 = vmatprep.mubr.bf16.mxu0 0
  %570 = vmatmul.mubr.bf16.gmra.mrb[0].mxu0 %v328
  %v571 = vpop.f32.mrb[0].mxu0
  %v572 = vadd.f32 0.0, %v571
  %v573 = vpop.f32.mrb[0].mxu0
  %v574 = vpop.f32.mrb[0].mxu0
  %v575 = vadd.f32 0.0, %v574
  %v576 = vpop.f32.mrb[0].mxu0
  %577 = vmatprep.mubr.bf16.mxu0 0
  %578 = vmatmul.mubr.bf16.gmra.mrb[0].mxu0 %v331
  %v579 = vpop.f32.mrb[0].mxu0
  %v580 = vadd.f32 0.0, %v579
  %v581 = vpop.f32.mrb[0].mxu0
  %v582 = vpop.f32.mrb[0].mxu0
  %v583 = vadd.f32 0.0, %v582
  %v584 = vpop.f32.mrb[0].mxu0
  %585 = vmatprep.mubr.bf16.mxu0 0
  %586 = vmatmul.mubr.bf16.gmra.mrb[0].mxu0 %v334
  %v587 = vpop.f32.mrb[0].mxu0
  %v588 = vadd.f32 0.0, %v587
  %v589 = vpop.f32.mrb[0].mxu0
  %v590 = vpop.f32.mrb[0].mxu0
  %v591 = vadd.f32 0.0, %v590
  %v592 = vpop.f32.mrb[0].mxu0
  %593 = vmatprep.mubr.bf16.mxu0 0
  %594 = vmatmul.mubr.bf16.gmra.mrb[0].mxu0 %v337
  %v595 = vpop.f32.mrb[0].mxu0
  %v596 = vadd.f32 0.0, %v595
  %v597 = vpop.f32.mrb[0].mxu0
  %v598 = vpop.f32.mrb[0].mxu0
  %v599 = vadd.f32 0.0, %v598
  %v600 = vpop.f32.mrb[0].mxu0
  %601 = vmatprep.mubr.bf16.mxu0 0
  %602 = vmatmul.mubr.bf16.gmra.mrb[0].mxu0 %v340
  %v603 = vpop.f32.mrb[0].mxu0
  %v604 = vadd.f32 0.0, %v603
  %v605 = vpop.f32.mrb[0].mxu0
  %v606 = vpop.f32.mrb[0].mxu0
  %v607 = vadd.f32 0.0, %v606
  %v608 = vpop.f32.mrb[0].mxu0
  %609 = vmatprep.mubr.bf16.mxu0 0
  %610 = vmatmul.mubr.bf16.gmra.mrb[0].mxu0 %v343
  %v611 = vpop.f32.mrb[0].mxu0
  %v612 = vadd.f32 0.0, %v611
  %v613 = vpop.f32.mrb[0].mxu0
  %v614 = vpop.f32.mrb[0].mxu0
  %v615 = vadd.f32 0.0, %v614
  %v616 = vpop.f32.mrb[0].mxu0
  %617 = vmatprep.mubr.bf16.mxu0 0
  %618 = vmatmul.mubr.bf16.gmra.mrb[0].mxu0 %v346
  %v619 = vpop.f32.mrb[0].mxu0
  %v620 = vadd.f32 0.0, %v619
  %v621 = vpop.f32.mrb[0].mxu0
  %v622 = vpop.f32.mrb[0].mxu0
  %v623 = vadd.f32 0.0, %v622
  %v624 = vpop.f32.mrb[0].mxu0
  %625 = vmatprep.mubr.bf16.mxu0 0
  %626 = vmatmul.mubr.bf16.gmra.mrb[0].mxu0 %v349
  %v627 = vpop.f32.mrb[0].mxu0
  %v628 = vadd.f32 0.0, %v627
  %v629 = vpop.f32.mrb[0].mxu0
  %v630 = vpop.f32.mrb[0].mxu0
  %v631 = vadd.f32 0.0, %v630
  %v632 = vpop.f32.mrb[0].mxu0
  %633 = vmatprep.mubr.bf16.mxu0 0
  %634 = vmatmul.mubr.bf16.gmra.mrb[0].mxu0 %v352
  %v635 = vpop.f32.mrb[0].mxu0
  %v636 = vadd.f32 0.0, %v635
  %v637 = vpop.f32.mrb[0].mxu0
  %v638 = vpop.f32.mrb[0].mxu0
  %v639 = vadd.f32 0.0, %v638
  %v640 = vpop.f32.mrb[0].mxu0
  %641 = vmatprep.mubr.bf16.mxu0 0
  %642 = vmatmul.mubr.bf16.gmra.mrb[0].mxu0 %v355
  %v643 = vpop.f32.mrb[0].mxu0
  %v644 = vadd.f32 0.0, %v643
  %v645 = vpop.f32.mrb[0].mxu0
  %v646 = vpop.f32.mrb[0].mxu0
  %v647 = vadd.f32 0.0, %v646
  %v648 = vpop.f32.mrb[0].mxu0
  %649 = vdwg.mxu0
  %650 = vst.msk [vmem:[%s4] sm:$0xff] %vm260, %v396
  %651 = vst.msk [vmem:[%s4 + $0x8] sm:$0xff] %vm260, %v399
  %652 = vst.msk [vmem:[%s4 + $0x10] sm:$0xff] %vm260, %v404
  %653 = vst.msk [vmem:[%s4 + $0x18] sm:$0xff] %vm260, %v407
  %654 = vst.msk [vmem:[%s4 + $0x20] sm:$0xff] %vm260, %v412
  %655 = vst.msk [vmem:[%s4 + $0x28] sm:$0xff] %vm260, %v415
  %656 = vst.msk [vmem:[%s4 + $0x30] sm:$0xff] %vm260, %v420
  %657 = vst.msk [vmem:[%s4 + $0x38] sm:$0xff] %vm260, %v423
  %658 = vst.msk [vmem:[%s4 + $0x40] sm:$0xff] %vm260, %v428
  %659 = vst.msk [vmem:[%s4 + $0x48] sm:$0xff] %vm260, %v431
  %660 = vst.msk [vmem:[%s4 + $0x50] sm:$0xff] %vm260, %v436
  %661 = vst.msk [vmem:[%s4 + $0x58] sm:$0xff] %vm260, %v439
  %662 = vst.msk [vmem:[%s4 + $0x60] sm:$0xff] %vm260, %v444
  %663 = vst.msk [vmem:[%s4 + $0x68] sm:$0xff] %vm260, %v447
  %664 = vst.msk [vmem:[%s4 + $0x70] sm:$0xff] %vm260, %v452
  %665 = vst.msk [vmem:[%s4 + $0x78] sm:$0xff] %vm260, %v455
  %666 = vst.msk [vmem:[%s4 + $0x80] sm:$0xff] %vm260, %v460
  %667 = vst.msk [vmem:[%s4 + $0x88] sm:$0xff] %vm260, %v463
  %668 = vst.msk [vmem:[%s4 + $0x90] sm:$0xff] %vm260, %v468
  %669 = vst.msk [vmem:[%s4 + $0x98] sm:$0xff] %vm260, %v471
  %670 = vst.msk [vmem:[%s4 + $0xa0] sm:$0xff] %vm260, %v476
  %671 = vst.msk [vmem:[%s4 + $0xa8] sm:$0xff] %vm260, %v479
  %672 = vst.msk [vmem:[%s4 + $0xb0] sm:$0xff] %vm260, %v484
  %673 = vst.msk [vmem:[%s4 + $0xb8] sm:$0xff] %vm260, %v487
  %674 = vst.msk [vmem:[%s4 + $0xc0] sm:$0xff] %vm260, %v492
  %675 = vst.msk [vmem:[%s4 + $0xc8] sm:$0xff] %vm260, %v495
  %676 = vst.msk [vmem:[%s4 + $0xd0] sm:$0xff] %vm260, %v500
  %677 = vst.msk [vmem:[%s4 + $0xd8] sm:$0xff] %vm260, %v503
  %678 = vst.msk [vmem:[%s4 + $0xe0] sm:$0xff] %vm260, %v508
  %679 = vst.msk [vmem:[%s4 + $0xe8] sm:$0xff] %vm260, %v511
  %680 = vst.msk [vmem:[%s4 + $0xf0] sm:$0xff] %vm260, %v516
  %681 = vst.msk [vmem:[%s4 + $0xf8] sm:$0xff] %vm260, %v519
  %682 = vst.msk [vmem:[%s4 + $0x100] sm:$0xff] %vm260, %v524
  %683 = vst.msk [vmem:[%s4 + $0x108] sm:$0xff] %vm260, %v527
  %684 = vst.msk [vmem:[%s4 + $0x110] sm:$0xff] %vm260, %v532
  %685 = vst.msk [vmem:[%s4 + $0x118] sm:$0xff] %vm260, %v535
  %686 = vst.msk [vmem:[%s4 + $0x120] sm:$0xff] %vm260, %v540
  %687 = vst.msk [vmem:[%s4 + $0x128] sm:$0xff] %vm260, %v543
  %688 = vst.msk [vmem:[%s4 + $0x130] sm:$0xff] %vm260, %v548
  %689 = vst.msk [vmem:[%s4 + $0x138] sm:$0xff] %vm260, %v551
  %690 = vst.msk [vmem:[%s4 + $0x140] sm:$0xff] %vm260, %v556
  %691 = vst.msk [vmem:[%s4 + $0x148] sm:$0xff] %vm260, %v559
  %692 = vst.msk [vmem:[%s4 + $0x150] sm:$0xff] %vm260, %v564
  %693 = vst.msk [vmem:[%s4 + $0x158] sm:$0xff] %vm260, %v567
  %694 = vst.msk [vmem:[%s4 + $0x160] sm:$0xff] %vm260, %v572
  %695 = vst.msk [vmem:[%s4 + $0x168] sm:$0xff] %vm260, %v575
  %696 = vst.msk [vmem:[%s4 + $0x170] sm:$0xff] %vm260, %v580
  %697 = vst.msk [vmem:[%s4 + $0x178] sm:$0xff] %vm260, %v583
  %698 = vst.msk [vmem:[%s4 + $0x180] sm:$0xff] %vm260, %v588
  %699 = vst.msk [vmem:[%s4 + $0x188] sm:$0xff] %vm260, %v591
  %700 = vst.msk [vmem:[%s4 + $0x190] sm:$0xff] %vm260, %v596
  %701 = vst.msk [vmem:[%s4 + $0x198] sm:$0xff] %vm260, %v599
  %702 = vst.msk [vmem:[%s4 + $0x1a0] sm:$0xff] %vm260, %v604
  %703 = vst.msk [vmem:[%s4 + $0x1a8] sm:$0xff] %vm260, %v607
  %704 = vst.msk [vmem:[%s4 + $0x1b0] sm:$0xff] %vm260, %v612
  %705 = vst.msk [vmem:[%s4 + $0x1b8] sm:$0xff] %vm260, %v615
  %706 = vst.msk [vmem:[%s4 + $0x1c0] sm:$0xff] %vm260, %v620
  %707 = vst.msk [vmem:[%s4 + $0x1c8] sm:$0xff] %vm260, %v623
  %708 = vst.msk [vmem:[%s4 + $0x1d0] sm:$0xff] %vm260, %v628
  %709 = vst.msk [vmem:[%s4 + $0x1d8] sm:$0xff] %vm260, %v631
  %710 = vst.msk [vmem:[%s4 + $0x1e0] sm:$0xff] %vm260, %v636
  %711 = vst.msk [vmem:[%s4 + $0x1e8] sm:$0xff] %vm260, %v639
  %712 = vst.msk [vmem:[%s4 + $0x1f0] sm:$0xff] %vm260, %v644
  %713 = vst.msk [vmem:[%s4 + $0x1f8] sm:$0xff] %vm260, %v647
  %v714 = vsel %vm260, %v396, 0.0
  %v715 = vsel %vm260, %v399, 0.0
  %v716 = vadd.f32 %v714, %v715
  %v717 = vsel %vm260, %v404, 0.0
  %v718 = vadd.f32 %v716, %v717
  %v719 = vsel %vm260, %v407, 0.0
  %v720 = vadd.f32 %v718, %v719
  %v721 = vsel %vm260, %v412, 0.0
  %v722 = vadd.f32 %v720, %v721
  %v723 = vsel %vm260, %v415, 0.0
  %v724 = vadd.f32 %v722, %v723
  %v725 = vsel %vm260, %v420, 0.0
  %v726 = vadd.f32 %v724, %v725
  %v727 = vsel %vm260, %v423, 0.0
  %v728 = vadd.f32 %v726, %v727
  %v729 = vsel %vm260, %v428, 0.0
  %v730 = vadd.f32 %v728, %v729
  %v731 = vsel %vm260, %v431, 0.0
  %v732 = vadd.f32 %v730, %v731
  %v733 = vsel %vm260, %v436, 0.0
  %v734 = vadd.f32 %v732, %v733
  %v735 = vsel %vm260, %v439, 0.0
  %v736 = vadd.f32 %v734, %v735
  %v737 = vsel %vm260, %v444, 0.0
  %v738 = vadd.f32 %v736, %v737
  %v739 = vsel %vm260, %v447, 0.0
  %v740 = vadd.f32 %v738, %v739
  %v741 = vsel %vm260, %v452, 0.0
  %v742 = vadd.f32 %v740, %v741
  %v743 = vsel %vm260, %v455, 0.0
  %v744 = vadd.f32 %v742, %v743
  %v745 = vsel %vm260, %v460, 0.0
  %v746 = vadd.f32 %v744, %v745
  %v747 = vsel %vm260, %v463, 0.0
  %v748 = vadd.f32 %v746, %v747
  %v749 = vsel %vm260, %v468, 0.0
  %v750 = vadd.f32 %v748, %v749
  %v751 = vsel %vm260, %v471, 0.0
  %v752 = vadd.f32 %v750, %v751
  %v753 = vsel %vm260, %v476, 0.0
  %v754 = vadd.f32 %v752, %v753
  %v755 = vsel %vm260, %v479, 0.0
  %v756 = vadd.f32 %v754, %v755
  %v757 = vsel %vm260, %v484, 0.0
  %v758 = vadd.f32 %v756, %v757
  %v759 = vsel %vm260, %v487, 0.0
  %v760 = vadd.f32 %v758, %v759
  %v761 = vsel %vm260, %v492, 0.0
  %v762 = vadd.f32 %v760, %v761
  %v763 = vsel %vm260, %v495, 0.0
  %v764 = vadd.f32 %v762, %v763
  %v765 = vsel %vm260, %v500, 0.0
  %v766 = vadd.f32 %v764, %v765
  %v767 = vsel %vm260, %v503, 0.0
  %v768 = vadd.f32 %v766, %v767
  %v769 = vsel %vm260, %v508, 0.0
  %v770 = vadd.f32 %v768, %v769
  %v771 = vsel %vm260, %v511, 0.0
  %v772 = vadd.f32 %v770, %v771
  %v773 = vsel %vm260, %v516, 0.0
  %v774 = vadd.f32 %v772, %v773
  %v775 = vsel %vm260, %v519, 0.0
  %v776 = vadd.f32 %v774, %v775
  %v777 = vsel %vm260, %v524, 0.0
  %v778 = vadd.f32 %v776, %v777
  %v779 = vsel %vm260, %v527, 0.0
  %v780 = vadd.f32 %v778, %v779
  %v781 = vsel %vm260, %v532, 0.0
  %v782 = vadd.f32 %v780, %v781
  %v783 = vsel %vm260, %v535, 0.0
  %v784 = vadd.f32 %v782, %v783
  %v785 = vsel %vm260, %v540, 0.0
  %v786 = vadd.f32 %v784, %v785
  %v787 = vsel %vm260, %v543, 0.0
  %v788 = vadd.f32 %v786, %v787
  %v789 = vsel %vm260, %v548, 0.0
  %v790 = vadd.f32 %v788, %v789
  %v791 = vsel %vm260, %v551, 0.0
  %v792 = vadd.f32 %v790, %v791
  %v793 = vsel %vm260, %v556, 0.0
  %v794 = vadd.f32 %v792, %v793
  %v795 = vsel %vm260, %v559, 0.0
  %v796 = vadd.f32 %v794, %v795
  %v797 = vsel %vm260, %v564, 0.0
  %v798 = vadd.f32 %v796, %v797
  %v799 = vsel %vm260, %v567, 0.0
  %v800 = vadd.f32 %v798, %v799
  %v801 = vsel %vm260, %v572, 0.0
  %v802 = vadd.f32 %v800, %v801
  %v803 = vsel %vm260, %v575, 0.0
  %v804 = vadd.f32 %v802, %v803
  %v805 = vsel %vm260, %v580, 0.0
  %v806 = vadd.f32 %v804, %v805
  %v807 = vsel %vm260, %v583, 0.0
  %v808 = vadd.f32 %v806, %v807
  %v809 = vsel %vm260, %v588, 0.0
  %v810 = vadd.f32 %v808, %v809
  %v811 = vsel %vm260, %v591, 0.0
  %v812 = vadd.f32 %v810, %v811
  %v813 = vsel %vm260, %v596, 0.0
  %v814 = vadd.f32 %v812, %v813
  %v815 = vsel %vm260, %v599, 0.0
  %v816 = vadd.f32 %v814, %v815
  %v817 = vsel %vm260, %v604, 0.0
  %v818 = vadd.f32 %v816, %v817
  %v819 = vsel %vm260, %v607, 0.0
  %v820 = vadd.f32 %v818, %v819
  %v821 = vsel %vm260, %v612, 0.0
  %v822 = vadd.f32 %v820, %v821
  %v823 = vsel %vm260, %v615, 0.0
  %v824 = vadd.f32 %v822, %v823
  %v825 = vsel %vm260, %v620, 0.0
  %v826 = vadd.f32 %v824, %v825
  %v827 = vsel %vm260, %v623, 0.0
  %v828 = vadd.f32 %v826, %v827
  %v829 = vsel %vm260, %v628, 0.0
  %v830 = vadd.f32 %v828, %v829
  %v831 = vsel %vm260, %v631, 0.0
  %v832 = vadd.f32 %v830, %v831
  %v833 = vsel %vm260, %v636, 0.0
  %v834 = vadd.f32 %v832, %v833
  %v835 = vsel %vm260, %v639, 0.0
  %v836 = vadd.f32 %v834, %v835
  %v837 = vsel %vm260, %v644, 0.0
  %v838 = vadd.f32 %v836, %v837
  %v839 = vsel %vm260, %v647, 0.0
  %v840 = vadd.f32 %v838, %v839
  %v841 = vrot.slane %v840, 4
  %v842 = vadd.f32 %v840, %v841
  %v843 = vrot.slane %v842, 2
  %v844 = vadd.f32 %v842, %v843
  %v845 = vrot.slane %v844, 1
  %v846 = vadd.f32 %v844, %v845
  %v847 = vmul.f32 %v396, %v396
  %v848 = vmul.f32 %v399, %v399
  %v849 = vmul.f32 %v404, %v404
  %v850 = vmul.f32 %v407, %v407
  %v851 = vmul.f32 %v412, %v412
  %v852 = vmul.f32 %v415, %v415
  %v853 = vmul.f32 %v420, %v420
  %v854 = vmul.f32 %v423, %v423
  %v855 = vmul.f32 %v428, %v428
  %v856 = vmul.f32 %v431, %v431
  %v857 = vmul.f32 %v436, %v436
  %v858 = vmul.f32 %v439, %v439
  %v859 = vmul.f32 %v444, %v444
  %v860 = vmul.f32 %v447, %v447
  %v861 = vmul.f32 %v452, %v452
  %v862 = vmul.f32 %v455, %v455
  %v863 = vmul.f32 %v460, %v460
  %v864 = vmul.f32 %v463, %v463
  %v865 = vmul.f32 %v468, %v468
  %v866 = vmul.f32 %v471, %v471
  %v867 = vmul.f32 %v476, %v476
  %v868 = vmul.f32 %v479, %v479
  %v869 = vmul.f32 %v484, %v484
  %v870 = vmul.f32 %v487, %v487
  %v871 = vmul.f32 %v492, %v492
  %v872 = vmul.f32 %v495, %v495
  %v873 = vmul.f32 %v500, %v500
  %v874 = vmul.f32 %v503, %v503
  %v875 = vmul.f32 %v508, %v508
  %v876 = vmul.f32 %v511, %v511
  %v877 = vmul.f32 %v516, %v516
  %v878 = vmul.f32 %v519, %v519
  %v879 = vmul.f32 %v524, %v524
  %v880 = vmul.f32 %v527, %v527
  %v881 = vmul.f32 %v532, %v532
  %v882 = vmul.f32 %v535, %v535
  %v883 = vmul.f32 %v540, %v540
  %v884 = vmul.f32 %v543, %v543
  %v885 = vmul.f32 %v548, %v548
  %v886 = vmul.f32 %v551, %v551
  %v887 = vmul.f32 %v556, %v556
  %v888 = vmul.f32 %v559, %v559
  %v889 = vmul.f32 %v564, %v564
  %v890 = vmul.f32 %v567, %v567
  %v891 = vmul.f32 %v572, %v572
  %v892 = vmul.f32 %v575, %v575
  %v893 = vmul.f32 %v580, %v580
  %v894 = vmul.f32 %v583, %v583
  %v895 = vmul.f32 %v588, %v588
  %v896 = vmul.f32 %v591, %v591
  %v897 = vmul.f32 %v596, %v596
  %v898 = vmul.f32 %v599, %v599
  %v899 = vmul.f32 %v604, %v604
  %v900 = vmul.f32 %v607, %v607
  %v901 = vmul.f32 %v612, %v612
  %v902 = vmul.f32 %v615, %v615
  %v903 = vmul.f32 %v620, %v620
  %v904 = vmul.f32 %v623, %v623
  %v905 = vmul.f32 %v628, %v628
  %v906 = vmul.f32 %v631, %v631
  %v907 = vmul.f32 %v636, %v636
  %v908 = vmul.f32 %v639, %v639
  %v909 = vmul.f32 %v644, %v644
  %v910 = vmul.f32 %v647, %v647
  %v911 = vsel %vm260, %v847, 0.0
  %v912 = vsel %vm260, %v848, 0.0
  %v913 = vadd.f32 %v911, %v912
  %v914 = vsel %vm260, %v849, 0.0
  %v915 = vadd.f32 %v913, %v914
  %v916 = vsel %vm260, %v850, 0.0
  %v917 = vadd.f32 %v915, %v916
  %v918 = vsel %vm260, %v851, 0.0
  %v919 = vadd.f32 %v917, %v918
  %v920 = vsel %vm260, %v852, 0.0
  %v921 = vadd.f32 %v919, %v920
  %v922 = vsel %vm260, %v853, 0.0
  %v923 = vadd.f32 %v921, %v922
  %v924 = vsel %vm260, %v854, 0.0
  %v925 = vadd.f32 %v923, %v924
  %v926 = vsel %vm260, %v855, 0.0
  %v927 = vadd.f32 %v925, %v926
  %v928 = vsel %vm260, %v856, 0.0
  %v929 = vadd.f32 %v927, %v928
  %v930 = vsel %vm260, %v857, 0.0
  %v931 = vadd.f32 %v929, %v930
  %v932 = vsel %vm260, %v858, 0.0
  %v933 = vadd.f32 %v931, %v932
  %v934 = vsel %vm260, %v859, 0.0
  %v935 = vadd.f32 %v933, %v934
  %v936 = vsel %vm260, %v860, 0.0
  %v937 = vadd.f32 %v935, %v936
  %v938 = vsel %vm260, %v861, 0.0
  %v939 = vadd.f32 %v937, %v938
  %v940 = vsel %vm260, %v862, 0.0
  %v941 = vadd.f32 %v939, %v940
  %v942 = vsel %vm260, %v863, 0.0
  %v943 = vadd.f32 %v941, %v942
  %v944 = vsel %vm260, %v864, 0.0
  %v945 = vadd.f32 %v943, %v944
  %v946 = vsel %vm260, %v865, 0.0
  %v947 = vadd.f32 %v945, %v946
  %v948 = vsel %vm260, %v866, 0.0
  %v949 = vadd.f32 %v947, %v948
  %v950 = vsel %vm260, %v867, 0.0
  %v951 = vadd.f32 %v949, %v950
  %v952 = vsel %vm260, %v868, 0.0
  %v953 = vadd.f32 %v951, %v952
  %v954 = vsel %vm260, %v869, 0.0
  %v955 = vadd.f32 %v953, %v954
  %v956 = vsel %vm260, %v870, 0.0
  %v957 = vadd.f32 %v955, %v956
  %v958 = vsel %vm260, %v871, 0.0
  %v959 = vadd.f32 %v957, %v958
  %v960 = vsel %vm260, %v872, 0.0
  %v961 = vadd.f32 %v959, %v960
  %v962 = vsel %vm260, %v873, 0.0
  %v963 = vadd.f32 %v961, %v962
  %v964 = vsel %vm260, %v874, 0.0
  %v965 = vadd.f32 %v963, %v964
  %v966 = vsel %vm260, %v875, 0.0
  %v967 = vadd.f32 %v965, %v966
  %v968 = vsel %vm260, %v876, 0.0
  %v969 = vadd.f32 %v967, %v968
  %v970 = vsel %vm260, %v877, 0.0
  %v971 = vadd.f32 %v969, %v970
  %v972 = vsel %vm260, %v878, 0.0
  %v973 = vadd.f32 %v971, %v972
  %v974 = vsel %vm260, %v879, 0.0
  %v975 = vadd.f32 %v973, %v974
  %v976 = vsel %vm260, %v880, 0.0
  %v977 = vadd.f32 %v975, %v976
  %v978 = vsel %vm260, %v881, 0.0
  %v979 = vadd.f32 %v977, %v978
  %v980 = vsel %vm260, %v882, 0.0
  %v981 = vadd.f32 %v979, %v980
  %v982 = vsel %vm260, %v883, 0.0
  %v983 = vadd.f32 %v981, %v982
  %v984 = vsel %vm260, %v884, 0.0
  %v985 = vadd.f32 %v983, %v984
  %v986 = vsel %vm260, %v885, 0.0
  %v987 = vadd.f32 %v985, %v986
  %v988 = vsel %vm260, %v886, 0.0
  %v989 = vadd.f32 %v987, %v988
  %v990 = vsel %vm260, %v887, 0.0
  %v991 = vadd.f32 %v989, %v990
  %v992 = vsel %vm260, %v888, 0.0
  %v993 = vadd.f32 %v991, %v992
  %v994 = vsel %vm260, %v889, 0.0
  %v995 = vadd.f32 %v993, %v994
  %v996 = vsel %vm260, %v890, 0.0
  %v997 = vadd.f32 %v995, %v996
  %v998 = vsel %vm260, %v891, 0.0
  %v999 = vadd.f32 %v997, %v998
  %v1000 = vsel %vm260, %v892, 0.0
  %v1001 = vadd.f32 %v999, %v1000
  %v1002 = vsel %vm260, %v893, 0.0
  %v1003 = vadd.f32 %v1001, %v1002
  %v1004 = vsel %vm260, %v894, 0.0
  %v1005 = vadd.f32 %v1003, %v1004
  %v1006 = vsel %vm260, %v895, 0.0
  %v1007 = vadd.f32 %v1005, %v1006
  %v1008 = vsel %vm260, %v896, 0.0
  %v1009 = vadd.f32 %v1007, %v1008
  %v1010 = vsel %vm260, %v897, 0.0
  %v1011 = vadd.f32 %v1009, %v1010
  %v1012 = vsel %vm260, %v898, 0.0
  %v1013 = vadd.f32 %v1011, %v1012
  %v1014 = vsel %vm260, %v899, 0.0
  %v1015 = vadd.f32 %v1013, %v1014
  %v1016 = vsel %vm260, %v900, 0.0
  %v1017 = vadd.f32 %v1015, %v1016
  %v1018 = vsel %vm260, %v901, 0.0
  %v1019 = vadd.f32 %v1017, %v1018
  %v1020 = vsel %vm260, %v902, 0.0
  %v1021 = vadd.f32 %v1019, %v1020
  %v1022 = vsel %vm260, %v903, 0.0
  %v1023 = vadd.f32 %v1021, %v1022
  %v1024 = vsel %vm260, %v904, 0.0
  %v1025 = vadd.f32 %v1023, %v1024
  %v1026 = vsel %vm260, %v905, 0.0
  %v1027 = vadd.f32 %v1025, %v1026
  %v1028 = vsel %vm260, %v906, 0.0
  %v1029 = vadd.f32 %v1027, %v1028
  %v1030 = vsel %vm260, %v907, 0.0
  %v1031 = vadd.f32 %v1029, %v1030
  %v1032 = vsel %vm260, %v908, 0.0
  %v1033 = vadd.f32 %v1031, %v1032
  %v1034 = vsel %vm260, %v909, 0.0
  %v1035 = vadd.f32 %v1033, %v1034
  %v1036 = vsel %vm260, %v910, 0.0
  %v1037 = vadd.f32 %v1035, %v1036
  %v1038 = vrot.slane %v1037, 4
  %v1039 = vadd.f32 %v1037, %v1038
  %v1040 = vrot.slane %v1039, 2
  %v1041 = vadd.f32 %v1039, %v1040
  %v1042 = vrot.slane %v1041, 1
  %v1043 = vadd.f32 %v1041, %v1042
  %1044 = vst.msk [vmem:[%s5] sm:$0xff] %vm260, %v846
  %1045 = vst.msk [vmem:[%s6] sm:$0xff] %vm260, %v1043
  // Predicated region
  $region18: #{conv_bottleneck_forward.5} parent=0 // pred_check
    _
  $region19: #{conv_bottleneck_forward.5} parent=0 // pred_check_branch
    %1047 = sbr.rel (0) target = $region21
  $region20: #{conv_bottleneck_forward.5} parent=0 // pred_region
    _
  $region21: #{conv_bottleneck_forward.5} parent=0 // pred_fallthru
    _
  // Predicated region
  $region22: #{conv_bottleneck_forward.5} parent=0 // pred_check
    _
  $region23: #{conv_bottleneck_forward.5} parent=0 // pred_check_branch
    %1049 = sbr.rel (0) target = $region25
  $region24: #{conv_bottleneck_forward.5} parent=0 // pred_region
    _
  $region25: #{conv_bottleneck_forward.5} parent=0 // pred_fallthru
    _
  // Predicated region
  $region26: #{conv_bottleneck_forward.5} parent=0 // pred_check
    _
  $region27: #{conv_bottleneck_forward.5} parent=0 // pred_check_branch
    %1051 = sbr.rel (0) target = $region29
  $region28: #{conv_bottleneck_forward.5} parent=0 // pred_region
    _
  $region29: #{conv_bottleneck_forward.5} parent=0 // pred_fallthru
    _
  // Predicated region
  $region30: #{conv_bottleneck_forward.5} parent=0 // pred_check
    _
  $region31: #{conv_bottleneck_forward.5} parent=0 // pred_check_branch
    %1053 = sbr.rel (0) target = $region33
  $region32: #{conv_bottleneck_forward.5} parent=0 // pred_region
    _
  $region33: #{conv_bottleneck_forward.5} parent=0 // pred_fallthru
    _
  // Predicated region
  $region34: #{conv_bottleneck_forward.5} parent=0 // pred_check
    _
  $region35: #{conv_bottleneck_forward.5} parent=0 // pred_check_branch
    %1055 = sbr.rel (0) target = $region37
  $region36: #{conv_bottleneck_forward.5} parent=0 // pred_region
    _
  $region37: #{conv_bottleneck_forward.5} parent=0 // pred_fallthru
    _
  // Predicated region
  $region38: #{conv_bottleneck_forward.5} parent=0 // pred_check
    _
  $region39: #{conv_bottleneck_forward.5} parent=0 // pred_check_branch
    %1057 = sbr.rel (0) target = $region41
  $region40: #{conv_bottleneck_forward.5} parent=0 // pred_region
    _
  $region41: #{conv_bottleneck_forward.5} parent=0 // pred_fallthru
    _

// kernel: conv_bottleneck_forward.7
$region0: #{conv_bottleneck_forward.7}
  #allocation0 [shape = 'u32[]', space=smem, size = 0x4, offset = 0x4, fixed_abs, tag = 'smem constant byte address 0x4 - core index']
  #allocation1 [shape = 'u32[144,128]{1,0:T(1,128)}', space=vmem, size = 0x12000, scoped, tag = 'internal scratch']
  %s0 = inlined_call_operand.vmem [shape: f32[512,4], index: 0, kind: input, shape index: {}]
  %s1 = inlined_call_operand.vmem [shape: bf16[4,8], index: 1, kind: input, shape index: {}]
  %s2 = inlined_call_operand.vmem [shape: f32[1,4], index: 2, kind: input, shape index: {}]
  %s3 = inlined_call_operand.vmem [shape: f32[1,4], index: 3, kind: input, shape index: {}]
  %s4 = inlined_call_operand.vmem [shape: f32[512,8], index: 4, kind: output, shape index: {0}]
  %s5 = inlined_call_operand.vmem [shape: f32[1,8,8], index: 5, kind: output, shape index: {1}]
  %s6 = inlined_call_operand.vmem [shape: f32[1,8,8], index: 6, kind: output, shape index: {2}]
  %7 = xla_tuple %s4, %s5, %s6
  %s8 = sld [smem:[#allocation0]]
  $region42: #{conv_bottleneck_forward.7} parent=0
    _
  %s10 = ssub.s32 1, %s8
  %s11 = scalar_select 0, %s10, %s8
  // Predicated region
  $region2: #{conv_bottleneck_forward.7} parent=0 // pred_check
    _
  $region3: #{conv_bottleneck_forward.7} parent=0 // pred_check_branch
    %13 = sbr.rel (0) target = $region5
  $region4: #{conv_bottleneck_forward.7} parent=0 // pred_region
    _
  $region5: #{conv_bottleneck_forward.7} parent=0 // pred_fallthru
    _
  // Predicated region
  $region6: #{conv_bottleneck_forward.7} parent=0 // pred_check
    _
  $region7: #{conv_bottleneck_forward.7} parent=0 // pred_check_branch
    %15 = sbr.rel (0) target = $region9
  $region8: #{conv_bottleneck_forward.7} parent=0 // pred_region
    _
  $region9: #{conv_bottleneck_forward.7} parent=0 // pred_fallthru
    _
  // Predicated region
  $region10: #{conv_bottleneck_forward.7} parent=0 // pred_check
    _
  $region11: #{conv_bottleneck_forward.7} parent=0 // pred_check_branch
    %17 = sbr.rel (0) target = $region13
  $region12: #{conv_bottleneck_forward.7} parent=0 // pred_region
    _
  $region13: #{conv_bottleneck_forward.7} parent=0 // pred_fallthru
    _
  // Predicated region
  $region14: #{conv_bottleneck_forward.7} parent=0 // pred_check
    _
  $region15: #{conv_bottleneck_forward.7} parent=0 // pred_check_branch
    %19 = sbr.rel (0) target = $region17
  $region16: #{conv_bottleneck_forward.7} parent=0 // pred_region
    _
  $region17: #{conv_bottleneck_forward.7} parent=0 // pred_fallthru
    _
  %v21 = vld [vmem:[%s0] sm:$0xff]
  %v22 = vld [vmem:[%s0 + $0x8] sm:$0xff]
  %v23 = vld [vmem:[%s0 + $0x10] sm:$0xff]
  %v24 = vld [vmem:[%s0 + $0x18] sm:$0xff]
  %v25 = vld [vmem:[%s0 + $0x20] sm:$0xff]
  %v26 = vld [vmem:[%s0 + $0x28] sm:$0xff]
  %v27 = vld [vmem:[%s0 + $0x30] sm:$0xff]
  %v28 = vld [vmem:[%s0 + $0x38] sm:$0xff]
  %v29 = vld [vmem:[%s0 + $0x40] sm:$0xff]
  %v30 = vld [vmem:[%s0 + $0x48] sm:$0xff]
  %v31 = vld [vmem:[%s0 + $0x50] sm:$0xff]
  %v32 = vld [vmem:[%s0 + $0x58] sm:$0xff]
  %v33 = vld [vmem:[%s0 + $0x60] sm:$0xff]
  %v34 = vld [vmem:[%s0 + $0x68] sm:$0xff]
  %v35 = vld [vmem:[%s0 + $0x70] sm:$0xff]
  %v36 = vld [vmem:[%s0 + $0x78] sm:$0xff]
  %v37 = vld [vmem:[%s0 + $0x80] sm:$0xff]
  %v38 = vld [vmem:[%s0 + $0x88] sm:$0xff]
  %v39 = vld [vmem:[%s0 + $0x90] sm:$0xff]
  %v40 = vld [vmem:[%s0 + $0x98] sm:$0xff]
  %v41 = vld [vmem:[%s0 + $0xa0] sm:$0xff]
  %v42 = vld [vmem:[%s0 + $0xa8] sm:$0xff]
  %v43 = vld [vmem:[%s0 + $0xb0] sm:$0xff]
  %v44 = vld [vmem:[%s0 + $0xb8] sm:$0xff]
  %v45 = vld [vmem:[%s0 + $0xc0] sm:$0xff]
  %v46 = vld [vmem:[%s0 + $0xc8] sm:$0xff]
  %v47 = vld [vmem:[%s0 + $0xd0] sm:$0xff]
  %v48 = vld [vmem:[%s0 + $0xd8] sm:$0xff]
  %v49 = vld [vmem:[%s0 + $0xe0] sm:$0xff]
  %v50 = vld [vmem:[%s0 + $0xe8] sm:$0xff]
  %v51 = vld [vmem:[%s0 + $0xf0] sm:$0xff]
  %v52 = vld [vmem:[%s0 + $0xf8] sm:$0xff]
  %v53 = vld [vmem:[%s0 + $0x100] sm:$0xff]
  %v54 = vld [vmem:[%s0 + $0x108] sm:$0xff]
  %v55 = vld [vmem:[%s0 + $0x110] sm:$0xff]
  %v56 = vld [vmem:[%s0 + $0x118] sm:$0xff]
  %v57 = vld [vmem:[%s0 + $0x120] sm:$0xff]
  %v58 = vld [vmem:[%s0 + $0x128] sm:$0xff]
  %v59 = vld [vmem:[%s0 + $0x130] sm:$0xff]
  %v60 = vld [vmem:[%s0 + $0x138] sm:$0xff]
  %v61 = vld [vmem:[%s0 + $0x140] sm:$0xff]
  %v62 = vld [vmem:[%s0 + $0x148] sm:$0xff]
  %v63 = vld [vmem:[%s0 + $0x150] sm:$0xff]
  %v64 = vld [vmem:[%s0 + $0x158] sm:$0xff]
  %v65 = vld [vmem:[%s0 + $0x160] sm:$0xff]
  %v66 = vld [vmem:[%s0 + $0x168] sm:$0xff]
  %v67 = vld [vmem:[%s0 + $0x170] sm:$0xff]
  %v68 = vld [vmem:[%s0 + $0x178] sm:$0xff]
  %v69 = vld [vmem:[%s0 + $0x180] sm:$0xff]
  %v70 = vld [vmem:[%s0 + $0x188] sm:$0xff]
  %v71 = vld [vmem:[%s0 + $0x190] sm:$0xff]
  %v72 = vld [vmem:[%s0 + $0x198] sm:$0xff]
  %v73 = vld [vmem:[%s0 + $0x1a0] sm:$0xff]
  %v74 = vld [vmem:[%s0 + $0x1a8] sm:$0xff]
  %v75 = vld [vmem:[%s0 + $0x1b0] sm:$0xff]
  %v76 = vld [vmem:[%s0 + $0x1b8] sm:$0xff]
  %v77 = vld [vmem:[%s0 + $0x1c0] sm:$0xff]
  %v78 = vld [vmem:[%s0 + $0x1c8] sm:$0xff]
  %v79 = vld [vmem:[%s0 + $0x1d0] sm:$0xff]
  %v80 = vld [vmem:[%s0 + $0x1d8] sm:$0xff]
  %v81 = vld [vmem:[%s0 + $0x1e0] sm:$0xff]
  %v82 = vld [vmem:[%s0 + $0x1e8] sm:$0xff]
  %v83 = vld [vmem:[%s0 + $0x1f0] sm:$0xff]
  %v84 = vld [vmem:[%s0 + $0x1f8] sm:$0xff]
  %v85 = vld [vmem:[%s2] sm:$0x1]
  %v87 = vlaneseq
  %v88 = vshrl.u32 %v87, 7
  %v89 = vsub.s32 0, %v88
  %v90 = vrot.slane %v85, %v89
  %v92 = vmul.f32 %v21, %v90
  %v93 = vmul.f32 %v22, %v90
  %v94 = vmul.f32 %v23, %v90
  %v95 = vmul.f32 %v24, %v90
  %v96 = vmul.f32 %v25, %v90
  %v97 = vmul.f32 %v26, %v90
  %v98 = vmul.f32 %v27, %v90
  %v99 = vmul.f32 %v28, %v90
  %v100 = vmul.f32 %v29, %v90
  %v101 = vmul.f32 %v30, %v90
  %v102 = vmul.f32 %v31, %v90
  %v103 = vmul.f32 %v32, %v90
  %v104 = vmul.f32 %v33, %v90
  %v105 = vmul.f32 %v34, %v90
  %v106 = vmul.f32 %v35, %v90
  %v107 = vmul.f32 %v36, %v90
  %v108 = vmul.f32 %v37, %v90
  %v109 = vmul.f32 %v38, %v90
  %v110 = vmul.f32 %v39, %v90
  %v111 = vmul.f32 %v40, %v90
  %v112 = vmul.f32 %v41, %v90
  %v113 = vmul.f32 %v42, %v90
  %v114 = vmul.f32 %v43, %v90
  %v115 = vmul.f32 %v44, %v90
  %v116 = vmul.f32 %v45, %v90
  %v117 = vmul.f32 %v46, %v90
  %v118 = vmul.f32 %v47, %v90
  %v119 = vmul.f32 %v48, %v90
  %v120 = vmul.f32 %v49, %v90
  %v121 = vmul.f32 %v50, %v90
  %v122 = vmul.f32 %v51, %v90
  %v123 = vmul.f32 %v52, %v90
  %v124 = vmul.f32 %v53, %v90
  %v125 = vmul.f32 %v54, %v90
  %v126 = vmul.f32 %v55, %v90
  %v127 = vmul.f32 %v56, %v90
  %v128 = vmul.f32 %v57, %v90
  %v129 = vmul.f32 %v58, %v90
  %v130 = vmul.f32 %v59, %v90
  %v131 = vmul.f32 %v60, %v90
  %v132 = vmul.f32 %v61, %v90
  %v133 = vmul.f32 %v62, %v90
  %v134 = vmul.f32 %v63, %v90
  %v135 = vmul.f32 %v64, %v90
  %v136 = vmul.f32 %v65, %v90
  %v137 = vmul.f32 %v66, %v90
  %v138 = vmul.f32 %v67, %v90
  %v139 = vmul.f32 %v68, %v90
  %v140 = vmul.f32 %v69, %v90
  %v141 = vmul.f32 %v70, %v90
  %v142 = vmul.f32 %v71, %v90
  %v143 = vmul.f32 %v72, %v90
  %v144 = vmul.f32 %v73, %v90
  %v145 = vmul.f32 %v74, %v90
  %v146 = vmul.f32 %v75, %v90
  %v147 = vmul.f32 %v76, %v90
  %v148 = vmul.f32 %v77, %v90
  %v149 = vmul.f32 %v78, %v90
  %v150 = vmul.f32 %v79, %v90
  %v151 = vmul.f32 %v80, %v90
  %v152 = vmul.f32 %v81, %v90
  %v153 = vmul.f32 %v82, %v90
  %v154 = vmul.f32 %v83, %v90
  %v155 = vmul.f32 %v84, %v90
  %v156 = vld [vmem:[%s3] sm:$0x1]
  %v158 = vlaneseq
  %v159 = vshrl.u32 %v158, 7
  %v160 = vsub.s32 0, %v159
  %v161 = vrot.slane %v156, %v160
  %v163 = vadd.f32 %v92, %v161
  %v164 = vadd.f32 %v93, %v161
  %v165 = vadd.f32 %v94, %v161
  %v166 = vadd.f32 %v95, %v161
  %v167 = vadd.f32 %v96, %v161
  %v168 = vadd.f32 %v97, %v161
  %v169 = vadd.f32 %v98, %v161
  %v170 = vadd.f32 %v99, %v161
  %v171 = vadd.f32 %v100, %v161
  %v172 = vadd.f32 %v101, %v161
  %v173 = vadd.f32 %v102, %v161
  %v174 = vadd.f32 %v103, %v161
  %v175 = vadd.f32 %v104, %v161
  %v176 = vadd.f32 %v105, %v161
  %v177 = vadd.f32 %v106, %v161
  %v178 = vadd.f32 %v107, %v161
  %v179 = vadd.f32 %v108, %v161
  %v180 = vadd.f32 %v109, %v161
  %v181 = vadd.f32 %v110, %v161
  %v182 = vadd.f32 %v111, %v161
  %v183 = vadd.f32 %v112, %v161
  %v184 = vadd.f32 %v113, %v161
  %v185 = vadd.f32 %v114, %v161
  %v186 = vadd.f32 %v115, %v161
  %v187 = vadd.f32 %v116, %v161
  %v188 = vadd.f32 %v117, %v161
  %v189 = vadd.f32 %v118, %v161
  %v190 = vadd.f32 %v119, %v161
  %v191 = vadd.f32 %v120, %v161
  %v192 = vadd.f32 %v121, %v161
  %v193 = vadd.f32 %v122, %v161
  %v194 = vadd.f32 %v123, %v161
  %v195 = vadd.f32 %v124, %v161
  %v196 = vadd.f32 %v125, %v161
  %v197 = vadd.f32 %v126, %v161
  %v198 = vadd.f32 %v127, %v161
  %v199 = vadd.f32 %v128, %v161
  %v200 = vadd.f32 %v129, %v161
  %v201 = vadd.f32 %v130, %v161
  %v202 = vadd.f32 %v131, %v161
  %v203 = vadd.f32 %v132, %v161
  %v204 = vadd.f32 %v133, %v161
  %v205 = vadd.f32 %v134, %v161
  %v206 = vadd.f32 %v135, %v161
  %v207 = vadd.f32 %v136, %v161
  %v208 = vadd.f32 %v137, %v161
  %v209 = vadd.f32 %v138, %v161
  %v210 = vadd.f32 %v139, %v161
  %v211 = vadd.f32 %v140, %v161
  %v212 = vadd.f32 %v141, %v161
  %v213 = vadd.f32 %v142, %v161
  %v214 = vadd.f32 %v143, %v161
  %v215 = vadd.f32 %v144, %v161
  %v216 = vadd.f32 %v145, %v161
  %v217 = vadd.f32 %v146, %v161
  %v218 = vadd.f32 %v147, %v161
  %v219 = vadd.f32 %v148, %v161
  %v220 = vadd.f32 %v149, %v161
  %v221 = vadd.f32 %v150, %v161
  %v222 = vadd.f32 %v151, %v161
  %v223 = vadd.f32 %v152, %v161
  %v224 = vadd.f32 %v153, %v161
  %v225 = vadd.f32 %v154, %v161
  %v226 = vadd.f32 %v155, %v161
  %v227 = vmax.f32 %v163, 0.0
  %v228 = vmax.f32 %v164, 0.0
  %v229 = vmax.f32 %v165, 0.0
  %v230 = vmax.f32 %v166, 0.0
  %v231 = vmax.f32 %v167, 0.0
  %v232 = vmax.f32 %v168, 0.0
  %v233 = vmax.f32 %v169, 0.0
  %v234 = vmax.f32 %v170, 0.0
  %v235 = vmax.f32 %v171, 0.0
  %v236 = vmax.f32 %v172, 0.0
  %v237 = vmax.f32 %v173, 0.0
  %v238 = vmax.f32 %v174, 0.0
  %v239 = vmax.f32 %v175, 0.0
  %v240 = vmax.f32 %v176, 0.0
  %v241 = vmax.f32 %v177, 0.0
  %v242 = vmax.f32 %v178, 0.0
  %v243 = vmax.f32 %v179, 0.0
  %v244 = vmax.f32 %v180, 0.0
  %v245 = vmax.f32 %v181, 0.0
  %v246 = vmax.f32 %v182, 0.0
  %v247 = vmax.f32 %v183, 0.0
  %v248 = vmax.f32 %v184, 0.0
  %v249 = vmax.f32 %v185, 0.0
  %v250 = vmax.f32 %v186, 0.0
  %v251 = vmax.f32 %v187, 0.0
  %v252 = vmax.f32 %v188, 0.0
  %v253 = vmax.f32 %v189, 0.0
  %v254 = vmax.f32 %v190, 0.0
  %v255 = vmax.f32 %v191, 0.0
  %v256 = vmax.f32 %v192, 0.0
  %v257 = vmax.f32 %v193, 0.0
  %v258 = vmax.f32 %v194, 0.0
  %v259 = vmax.f32 %v195, 0.0
  %v260 = vmax.f32 %v196, 0.0
  %v261 = vmax.f32 %v197, 0.0
  %v262 = vmax.f32 %v198, 0.0
  %v263 = vmax.f32 %v199, 0.0
  %v264 = vmax.f32 %v200, 0.0
  %v265 = vmax.f32 %v201, 0.0
  %v266 = vmax.f32 %v202, 0.0
  %v267 = vmax.f32 %v203, 0.0
  %v268 = vmax.f32 %v204, 0.0
  %v269 = vmax.f32 %v205, 0.0
  %v270 = vmax.f32 %v206, 0.0
  %v271 = vmax.f32 %v207, 0.0
  %v272 = vmax.f32 %v208, 0.0
  %v273 = vmax.f32 %v209, 0.0
  %v274 = vmax.f32 %v210, 0.0
  %v275 = vmax.f32 %v211, 0.0
  %v276 = vmax.f32 %v212, 0.0
  %v277 = vmax.f32 %v213, 0.0
  %v278 = vmax.f32 %v214, 0.0
  %v279 = vmax.f32 %v215, 0.0
  %v280 = vmax.f32 %v216, 0.0
  %v281 = vmax.f32 %v217, 0.0
  %v282 = vmax.f32 %v218, 0.0
  %v283 = vmax.f32 %v219, 0.0
  %v284 = vmax.f32 %v220, 0.0
  %v285 = vmax.f32 %v221, 0.0
  %v286 = vmax.f32 %v222, 0.0
  %v287 = vmax.f32 %v223, 0.0
  %v288 = vmax.f32 %v224, 0.0
  %v289 = vmax.f32 %v225, 0.0
  %v290 = vmax.f32 %v226, 0.0
  %v291 = vpack.c.bf16 %v228, %v227
  %v292 = vpack.c.bf16 %v230, %v229
  %v293 = vpack.c.bf16 %v232, %v231
  %v294 = vpack.c.bf16 %v234, %v233
  %v295 = vpack.c.bf16 %v236, %v235
  %v296 = vpack.c.bf16 %v238, %v237
  %v297 = vpack.c.bf16 %v240, %v239
  %v298 = vpack.c.bf16 %v242, %v241
  %v299 = vpack.c.bf16 %v244, %v243
  %v300 = vpack.c.bf16 %v246, %v245
  %v301 = vpack.c.bf16 %v248, %v247
  %v302 = vpack.c.bf16 %v250, %v249
  %v303 = vpack.c.bf16 %v252, %v251
  %v304 = vpack.c.bf16 %v254, %v253
  %v305 = vpack.c.bf16 %v256, %v255
  %v306 = vpack.c.bf16 %v258, %v257
  %v307 = vpack.c.bf16 %v260, %v259
  %v308 = vpack.c.bf16 %v262, %v261
  %v309 = vpack.c.bf16 %v264, %v263
  %v310 = vpack.c.bf16 %v266, %v265
  %v311 = vpack.c.bf16 %v268, %v267
  %v312 = vpack.c.bf16 %v270, %v269
  %v313 = vpack.c.bf16 %v272, %v271
  %v314 = vpack.c.bf16 %v274, %v273
  %v315 = vpack.c.bf16 %v276, %v275
  %v316 = vpack.c.bf16 %v278, %v277
  %v317 = vpack.c.bf16 %v280, %v279
  %v318 = vpack.c.bf16 %v282, %v281
  %v319 = vpack.c.bf16 %v284, %v283
  %v320 = vpack.c.bf16 %v286, %v285
  %v321 = vpack.c.bf16 %v288, %v287
  %v322 = vpack.c.bf16 %v290, %v289
  %v323 = vld [vmem:[%s1] sm:$0x3]
  %vm324 = vcmask 31744
  %v326 = vsel %vm324, %v291, 0
  %v329 = vsel %vm324, %v292, 0
  %v332 = vsel %vm324, %v293, 0
  %v335 = vsel %vm324, %v294, 0
  %v338 = vsel %vm324, %v295, 0
  %v341 = vsel %vm324, %v296, 0
  %v344 = vsel %vm324, %v297, 0
  %v347 = vsel %vm324, %v298, 0
  %v350 = vsel %vm324, %v299, 0
  %v353 = vsel %vm324, %v300, 0
  %v356 = vsel %vm324, %v301, 0
  %v359 = vsel %vm324, %v302, 0
  %v362 = vsel %vm324, %v303, 0
  %v365 = vsel %vm324, %v304, 0
  %v368 = vsel %vm324, %v305, 0
  %v371 = vsel %vm324, %v306, 0
  %v374 = vsel %vm324, %v307, 0
  %v377 = vsel %vm324, %v308, 0
  %v380 = vsel %vm324, %v309, 0
  %v383 = vsel %vm324, %v310, 0
  %v386 = vsel %vm324, %v311, 0
  %v389 = vsel %vm324, %v312, 0
  %v392 = vsel %vm324, %v313, 0
  %v395 = vsel %vm324, %v314, 0
  %v398 = vsel %vm324, %v315, 0
  %v401 = vsel %vm324, %v316, 0
  %v404 = vsel %vm324, %v317, 0
  %v407 = vsel %vm324, %v318, 0
  %v410 = vsel %vm324, %v319, 0
  %v413 = vsel %vm324, %v320, 0
  %v416 = vsel %vm324, %v321, 0
  %v419 = vsel %vm324, %v322, 0
  %vm421 = vcmask 1041408
  %v423 = vsel %vm421, %v323, 0
  %425 = vmatprep.subr.bf16.mxu0 0
  %426 = vmatpush1.bf16.msra.mxu0 %v423
  %427 = vmatprep.subr.bf16.mxu0 0
  %428 = vmatpush1.bf16.msra.mxu0 0
  %429 = vmatprep.subr.bf16.mxu0 0
  %430 = vmatpush1.bf16.msra.mxu0 0
  %431 = vmatprep.subr.bf16.mxu0 0
  %432 = vmatpush1.bf16.msra.mxu0 0
  %433 = vmatprep.subr.bf16.mxu0 0
  %434 = vmatpush1.bf16.msra.mxu0 0
  %435 = vmatprep.subr.bf16.mxu0 0
  %436 = vmatpush1.bf16.msra.mxu0 0
  %437 = vmatprep.subr.bf16.mxu0 0
  %438 = vmatpush1.bf16.msra.mxu0 0
  %439 = vmatprep.subr.bf16.mxu0 0
  %440 = vmatpush1.bf16.msra.mxu0 0
  %441 = vmatprep.subr.bf16.mxu0 0
  %442 = vmatpush1.bf16.msra.mxu0 0
  %443 = vmatprep.subr.bf16.mxu0 0
  %444 = vmatpush1.bf16.msra.mxu0 0
  %445 = vmatprep.subr.bf16.mxu0 0
  %446 = vmatpush1.bf16.msra.mxu0 0
  %447 = vmatprep.subr.bf16.mxu0 0
  %448 = vmatpush1.bf16.msra.mxu0 0
  %449 = vmatprep.subr.bf16.mxu0 0
  %450 = vmatpush1.bf16.msra.mxu0 0
  %451 = vmatprep.subr.bf16.mxu0 0
  %452 = vmatpush1.bf16.msra.mxu0 0
  %453 = vmatprep.subr.bf16.mxu0 0
  %454 = vmatpush1.bf16.msra.mxu0 0
  %455 = vmatprep.subr.bf16.mxu0 0
  %456 = vmatpush1.bf16.msra.mxu0 0
  %457 = vmatprep.mubr.bf16.mxu0 0
  %458 = vmatmul.mubr.bf16.gmra.mrb[0].mxu0 %v326
  %v459 = vpop.f32.mrb[0].mxu0
  %v460 = vadd.f32 0.0, %v459
  %v461 = vpop.f32.mrb[0].mxu0
  %v462 = vpop.f32.mrb[0].mxu0
  %v463 = vadd.f32 0.0, %v462
  %v464 = vpop.f32.mrb[0].mxu0
  %465 = vmatprep.mubr.bf16.mxu0 0
  %466 = vmatmul.mubr.bf16.gmra.mrb[0].mxu0 %v329
  %v467 = vpop.f32.mrb[0].mxu0
  %v468 = vadd.f32 0.0, %v467
  %v469 = vpop.f32.mrb[0].mxu0
  %v470 = vpop.f32.mrb[0].mxu0
  %v471 = vadd.f32 0.0, %v470
  %v472 = vpop.f32.mrb[0].mxu0
  %473 = vmatprep.mubr.bf16.mxu0 0
  %474 = vmatmul.mubr.bf16.gmra.mrb[0].mxu0 %v332
  %v475 = vpop.f32.mrb[0].mxu0
  %v476 = vadd.f32 0.0, %v475
  %v477 = vpop.f32.mrb[0].mxu0
  %v478 = vpop.f32.mrb[0].mxu0
  %v479 = vadd.f32 0.0, %v478
  %v480 = vpop.f32.mrb[0].mxu0
  %481 = vmatprep.mubr.bf16.mxu0 0
  %482 = vmatmul.mubr.bf16.gmra.mrb[0].mxu0 %v335
  %v483 = vpop.f32.mrb[0].mxu0
  %v484 = vadd.f32 0.0, %v483
  %v485 = vpop.f32.mrb[0].mxu0
  %v486 = vpop.f32.mrb[0].mxu0
  %v487 = vadd.f32 0.0, %v486
  %v488 = vpop.f32.mrb[0].mxu0
  %489 = vmatprep.mubr.bf16.mxu0 0
  %490 = vmatmul.mubr.bf16.gmra.mrb[0].mxu0 %v338
  %v491 = vpop.f32.mrb[0].mxu0
  %v492 = vadd.f32 0.0, %v491
  %v493 = vpop.f32.mrb[0].mxu0
  %v494 = vpop.f32.mrb[0].mxu0
  %v495 = vadd.f32 0.0, %v494
  %v496 = vpop.f32.mrb[0].mxu0
  %497 = vmatprep.mubr.bf16.mxu0 0
  %498 = vmatmul.mubr.bf16.gmra.mrb[0].mxu0 %v341
  %v499 = vpop.f32.mrb[0].mxu0
  %v500 = vadd.f32 0.0, %v499
  %v501 = vpop.f32.mrb[0].mxu0
  %v502 = vpop.f32.mrb[0].mxu0
  %v503 = vadd.f32 0.0, %v502
  %v504 = vpop.f32.mrb[0].mxu0
  %505 = vmatprep.mubr.bf16.mxu0 0
  %506 = vmatmul.mubr.bf16.gmra.mrb[0].mxu0 %v344
  %v507 = vpop.f32.mrb[0].mxu0
  %v508 = vadd.f32 0.0, %v507
  %v509 = vpop.f32.mrb[0].mxu0
  %v510 = vpop.f32.mrb[0].mxu0
  %v511 = vadd.f32 0.0, %v510
  %v512 = vpop.f32.mrb[0].mxu0
  %513 = vmatprep.mubr.bf16.mxu0 0
  %514 = vmatmul.mubr.bf16.gmra.mrb[0].mxu0 %v347
  %v515 = vpop.f32.mrb[0].mxu0
  %v516 = vadd.f32 0.0, %v515
  %v517 = vpop.f32.mrb[0].mxu0
  %v518 = vpop.f32.mrb[0].mxu0
  %v519 = vadd.f32 0.0, %v518
  %v520 = vpop.f32.mrb[0].mxu0
  %521 = vmatprep.mubr.bf16.mxu0 0
  %522 = vmatmul.mubr.bf16.gmra.mrb[0].mxu0 %v350
  %v523 = vpop.f32.mrb[0].mxu0
  %v524 = vadd.f32 0.0, %v523
  %v525 = vpop.f32.mrb[0].mxu0
  %v526 = vpop.f32.mrb[0].mxu0
  %v527 = vadd.f32 0.0, %v526
  %v528 = vpop.f32.mrb[0].mxu0
  %529 = vmatprep.mubr.bf16.mxu0 0
  %530 = vmatmul.mubr.bf16.gmra.mrb[0].mxu0 %v353
  %v531 = vpop.f32.mrb[0].mxu0
  %v532 = vadd.f32 0.0, %v531
  %v533 = vpop.f32.mrb[0].mxu0
  %v534 = vpop.f32.mrb[0].mxu0
  %v535 = vadd.f32 0.0, %v534
  %v536 = vpop.f32.mrb[0].mxu0
  %537 = vmatprep.mubr.bf16.mxu0 0
  %538 = vmatmul.mubr.bf16.gmra.mrb[0].mxu0 %v356
  %v539 = vpop.f32.mrb[0].mxu0
  %v540 = vadd.f32 0.0, %v539
  %v541 = vpop.f32.mrb[0].mxu0
  %v542 = vpop.f32.mrb[0].mxu0
  %v543 = vadd.f32 0.0, %v542
  %v544 = vpop.f32.mrb[0].mxu0
  %545 = vmatprep.mubr.bf16.mxu0 0
  %546 = vmatmul.mubr.bf16.gmra.mrb[0].mxu0 %v359
  %v547 = vpop.f32.mrb[0].mxu0
  %v548 = vadd.f32 0.0, %v547
  %v549 = vpop.f32.mrb[0].mxu0
  %v550 = vpop.f32.mrb[0].mxu0
  %v551 = vadd.f32 0.0, %v550
  %v552 = vpop.f32.mrb[0].mxu0
  %553 = vmatprep.mubr.bf16.mxu0 0
  %554 = vmatmul.mubr.bf16.gmra.mrb[0].mxu0 %v362
  %v555 = vpop.f32.mrb[0].mxu0
  %v556 = vadd.f32 0.0, %v555
  %v557 = vpop.f32.mrb[0].mxu0
  %v558 = vpop.f32.mrb[0].mxu0
  %v559 = vadd.f32 0.0, %v558
  %v560 = vpop.f32.mrb[0].mxu0
  %561 = vmatprep.mubr.bf16.mxu0 0
  %562 = vmatmul.mubr.bf16.gmra.mrb[0].mxu0 %v365
  %v563 = vpop.f32.mrb[0].mxu0
  %v564 = vadd.f32 0.0, %v563
  %v565 = vpop.f32.mrb[0].mxu0
  %v566 = vpop.f32.mrb[0].mxu0
  %v567 = vadd.f32 0.0, %v566
  %v568 = vpop.f32.mrb[0].mxu0
  %569 = vmatprep.mubr.bf16.mxu0 0
  %570 = vmatmul.mubr.bf16.gmra.mrb[0].mxu0 %v368
  %v571 = vpop.f32.mrb[0].mxu0
  %v572 = vadd.f32 0.0, %v571
  %v573 = vpop.f32.mrb[0].mxu0
  %v574 = vpop.f32.mrb[0].mxu0
  %v575 = vadd.f32 0.0, %v574
  %v576 = vpop.f32.mrb[0].mxu0
  %577 = vmatprep.mubr.bf16.mxu0 0
  %578 = vmatmul.mubr.bf16.gmra.mrb[0].mxu0 %v371
  %v579 = vpop.f32.mrb[0].mxu0
  %v580 = vadd.f32 0.0, %v579
  %v581 = vpop.f32.mrb[0].mxu0
  %v582 = vpop.f32.mrb[0].mxu0
  %v583 = vadd.f32 0.0, %v582
  %v584 = vpop.f32.mrb[0].mxu0
  %585 = vmatprep.mubr.bf16.mxu0 0
  %586 = vmatmul.mubr.bf16.gmra.mrb[0].mxu0 %v374
  %v587 = vpop.f32.mrb[0].mxu0
  %v588 = vadd.f32 0.0, %v587
  %v589 = vpop.f32.mrb[0].mxu0
  %v590 = vpop.f32.mrb[0].mxu0
  %v591 = vadd.f32 0.0, %v590
  %v592 = vpop.f32.mrb[0].mxu0
  %593 = vmatprep.mubr.bf16.mxu0 0
  %594 = vmatmul.mubr.bf16.gmra.mrb[0].mxu0 %v377
  %v595 = vpop.f32.mrb[0].mxu0
  %v596 = vadd.f32 0.0, %v595
  %v597 = vpop.f32.mrb[0].mxu0
  %v598 = vpop.f32.mrb[0].mxu0
  %v599 = vadd.f32 0.0, %v598
  %v600 = vpop.f32.mrb[0].mxu0
  %601 = vmatprep.mubr.bf16.mxu0 0
  %602 = vmatmul.mubr.bf16.gmra.mrb[0].mxu0 %v380
  %v603 = vpop.f32.mrb[0].mxu0
  %v604 = vadd.f32 0.0, %v603
  %v605 = vpop.f32.mrb[0].mxu0
  %v606 = vpop.f32.mrb[0].mxu0
  %v607 = vadd.f32 0.0, %v606
  %v608 = vpop.f32.mrb[0].mxu0
  %609 = vmatprep.mubr.bf16.mxu0 0
  %610 = vmatmul.mubr.bf16.gmra.mrb[0].mxu0 %v383
  %v611 = vpop.f32.mrb[0].mxu0
  %v612 = vadd.f32 0.0, %v611
  %v613 = vpop.f32.mrb[0].mxu0
  %v614 = vpop.f32.mrb[0].mxu0
  %v615 = vadd.f32 0.0, %v614
  %v616 = vpop.f32.mrb[0].mxu0
  %617 = vmatprep.mubr.bf16.mxu0 0
  %618 = vmatmul.mubr.bf16.gmra.mrb[0].mxu0 %v386
  %v619 = vpop.f32.mrb[0].mxu0
  %v620 = vadd.f32 0.0, %v619
  %v621 = vpop.f32.mrb[0].mxu0
  %v622 = vpop.f32.mrb[0].mxu0
  %v623 = vadd.f32 0.0, %v622
  %v624 = vpop.f32.mrb[0].mxu0
  %625 = vmatprep.mubr.bf16.mxu0 0
  %626 = vmatmul.mubr.bf16.gmra.mrb[0].mxu0 %v389
  %v627 = vpop.f32.mrb[0].mxu0
  %v628 = vadd.f32 0.0, %v627
  %v629 = vpop.f32.mrb[0].mxu0
  %v630 = vpop.f32.mrb[0].mxu0
  %v631 = vadd.f32 0.0, %v630
  %v632 = vpop.f32.mrb[0].mxu0
  %633 = vmatprep.mubr.bf16.mxu0 0
  %634 = vmatmul.mubr.bf16.gmra.mrb[0].mxu0 %v392
  %v635 = vpop.f32.mrb[0].mxu0
  %v636 = vadd.f32 0.0, %v635
  %v637 = vpop.f32.mrb[0].mxu0
  %v638 = vpop.f32.mrb[0].mxu0
  %v639 = vadd.f32 0.0, %v638
  %v640 = vpop.f32.mrb[0].mxu0
  %641 = vmatprep.mubr.bf16.mxu0 0
  %642 = vmatmul.mubr.bf16.gmra.mrb[0].mxu0 %v395
  %v643 = vpop.f32.mrb[0].mxu0
  %v644 = vadd.f32 0.0, %v643
  %v645 = vpop.f32.mrb[0].mxu0
  %v646 = vpop.f32.mrb[0].mxu0
  %v647 = vadd.f32 0.0, %v646
  %v648 = vpop.f32.mrb[0].mxu0
  %649 = vmatprep.mubr.bf16.mxu0 0
  %650 = vmatmul.mubr.bf16.gmra.mrb[0].mxu0 %v398
  %v651 = vpop.f32.mrb[0].mxu0
  %v652 = vadd.f32 0.0, %v651
  %v653 = vpop.f32.mrb[0].mxu0
  %v654 = vpop.f32.mrb[0].mxu0
  %v655 = vadd.f32 0.0, %v654
  %v656 = vpop.f32.mrb[0].mxu0
  %657 = vmatprep.mubr.bf16.mxu0 0
  %658 = vmatmul.mubr.bf16.gmra.mrb[0].mxu0 %v401
  %v659 = vpop.f32.mrb[0].mxu0
  %v660 = vadd.f32 0.0, %v659
  %v661 = vpop.f32.mrb[0].mxu0
  %v662 = vpop.f32.mrb[0].mxu0
  %v663 = vadd.f32 0.0, %v662
  %v664 = vpop.f32.mrb[0].mxu0
  %665 = vmatprep.mubr.bf16.mxu0 0
  %666 = vmatmul.mubr.bf16.gmra.mrb[0].mxu0 %v404
  %v667 = vpop.f32.mrb[0].mxu0
  %v668 = vadd.f32 0.0, %v667
  %v669 = vpop.f32.mrb[0].mxu0
  %v670 = vpop.f32.mrb[0].mxu0
  %v671 = vadd.f32 0.0, %v670
  %v672 = vpop.f32.mrb[0].mxu0
  %673 = vmatprep.mubr.bf16.mxu0 0
  %674 = vmatmul.mubr.bf16.gmra.mrb[0].mxu0 %v407
  %v675 = vpop.f32.mrb[0].mxu0
  %v676 = vadd.f32 0.0, %v675
  %v677 = vpop.f32.mrb[0].mxu0
  %v678 = vpop.f32.mrb[0].mxu0
  %v679 = vadd.f32 0.0, %v678
  %v680 = vpop.f32.mrb[0].mxu0
  %681 = vmatprep.mubr.bf16.mxu0 0
  %682 = vmatmul.mubr.bf16.gmra.mrb[0].mxu0 %v410
  %v683 = vpop.f32.mrb[0].mxu0
  %v684 = vadd.f32 0.0, %v683
  %v685 = vpop.f32.mrb[0].mxu0
  %v686 = vpop.f32.mrb[0].mxu0
  %v687 = vadd.f32 0.0, %v686
  %v688 = vpop.f32.mrb[0].mxu0
  %689 = vmatprep.mubr.bf16.mxu0 0
  %690 = vmatmul.mubr.bf16.gmra.mrb[0].mxu0 %v413
  %v691 = vpop.f32.mrb[0].mxu0
  %v692 = vadd.f32 0.0, %v691
  %v693 = vpop.f32.mrb[0].mxu0
  %v694 = vpop.f32.mrb[0].mxu0
  %v695 = vadd.f32 0.0, %v694
  %v696 = vpop.f32.mrb[0].mxu0
  %697 = vmatprep.mubr.bf16.mxu0 0
  %698 = vmatmul.mubr.bf16.gmra.mrb[0].mxu0 %v416
  %v699 = vpop.f32.mrb[0].mxu0
  %v700 = vadd.f32 0.0, %v699
  %v701 = vpop.f32.mrb[0].mxu0
  %v702 = vpop.f32.mrb[0].mxu0
  %v703 = vadd.f32 0.0, %v702
  %v704 = vpop.f32.mrb[0].mxu0
  %705 = vmatprep.mubr.bf16.mxu0 0
  %706 = vmatmul.mubr.bf16.gmra.mrb[0].mxu0 %v419
  %v707 = vpop.f32.mrb[0].mxu0
  %v708 = vadd.f32 0.0, %v707
  %v709 = vpop.f32.mrb[0].mxu0
  %v710 = vpop.f32.mrb[0].mxu0
  %v711 = vadd.f32 0.0, %v710
  %v712 = vpop.f32.mrb[0].mxu0
  %713 = vdwg.mxu0
  %vm714 = vcmask 64512
  %715 = vst.msk [vmem:[%s4] sm:$0xff] %vm714, %v460
  %716 = vst.msk [vmem:[%s4 + $0x8] sm:$0xff] %vm714, %v463
  %717 = vst.msk [vmem:[%s4 + $0x10] sm:$0xff] %vm714, %v468
  %718 = vst.msk [vmem:[%s4 + $0x18] sm:$0xff] %vm714, %v471
  %719 = vst.msk [vmem:[%s4 + $0x20] sm:$0xff] %vm714, %v476
  %720 = vst.msk [vmem:[%s4 + $0x28] sm:$0xff] %vm714, %v479
  %721 = vst.msk [vmem:[%s4 + $0x30] sm:$0xff] %vm714, %v484
  %722 = vst.msk [vmem:[%s4 + $0x38] sm:$0xff] %vm714, %v487
  %723 = vst.msk [vmem:[%s4 + $0x40] sm:$0xff] %vm714, %v492
  %724 = vst.msk [vmem:[%s4 + $0x48] sm:$0xff] %vm714, %v495
  %725 = vst.msk [vmem:[%s4 + $0x50] sm:$0xff] %vm714, %v500
  %726 = vst.msk [vmem:[%s4 + $0x58] sm:$0xff] %vm714, %v503
  %727 = vst.msk [vmem:[%s4 + $0x60] sm:$0xff] %vm714, %v508
  %728 = vst.msk [vmem:[%s4 + $0x68] sm:$0xff] %vm714, %v511
  %729 = vst.msk [vmem:[%s4 + $0x70] sm:$0xff] %vm714, %v516
  %730 = vst.msk [vmem:[%s4 + $0x78] sm:$0xff] %vm714, %v519
  %731 = vst.msk [vmem:[%s4 + $0x80] sm:$0xff] %vm714, %v524
  %732 = vst.msk [vmem:[%s4 + $0x88] sm:$0xff] %vm714, %v527
  %733 = vst.msk [vmem:[%s4 + $0x90] sm:$0xff] %vm714, %v532
  %734 = vst.msk [vmem:[%s4 + $0x98] sm:$0xff] %vm714, %v535
  %735 = vst.msk [vmem:[%s4 + $0xa0] sm:$0xff] %vm714, %v540
  %736 = vst.msk [vmem:[%s4 + $0xa8] sm:$0xff] %vm714, %v543
  %737 = vst.msk [vmem:[%s4 + $0xb0] sm:$0xff] %vm714, %v548
  %738 = vst.msk [vmem:[%s4 + $0xb8] sm:$0xff] %vm714, %v551
  %739 = vst.msk [vmem:[%s4 + $0xc0] sm:$0xff] %vm714, %v556
  %740 = vst.msk [vmem:[%s4 + $0xc8] sm:$0xff] %vm714, %v559
  %741 = vst.msk [vmem:[%s4 + $0xd0] sm:$0xff] %vm714, %v564
  %742 = vst.msk [vmem:[%s4 + $0xd8] sm:$0xff] %vm714, %v567
  %743 = vst.msk [vmem:[%s4 + $0xe0] sm:$0xff] %vm714, %v572
  %744 = vst.msk [vmem:[%s4 + $0xe8] sm:$0xff] %vm714, %v575
  %745 = vst.msk [vmem:[%s4 + $0xf0] sm:$0xff] %vm714, %v580
  %746 = vst.msk [vmem:[%s4 + $0xf8] sm:$0xff] %vm714, %v583
  %747 = vst.msk [vmem:[%s4 + $0x100] sm:$0xff] %vm714, %v588
  %748 = vst.msk [vmem:[%s4 + $0x108] sm:$0xff] %vm714, %v591
  %749 = vst.msk [vmem:[%s4 + $0x110] sm:$0xff] %vm714, %v596
  %750 = vst.msk [vmem:[%s4 + $0x118] sm:$0xff] %vm714, %v599
  %751 = vst.msk [vmem:[%s4 + $0x120] sm:$0xff] %vm714, %v604
  %752 = vst.msk [vmem:[%s4 + $0x128] sm:$0xff] %vm714, %v607
  %753 = vst.msk [vmem:[%s4 + $0x130] sm:$0xff] %vm714, %v612
  %754 = vst.msk [vmem:[%s4 + $0x138] sm:$0xff] %vm714, %v615
  %755 = vst.msk [vmem:[%s4 + $0x140] sm:$0xff] %vm714, %v620
  %756 = vst.msk [vmem:[%s4 + $0x148] sm:$0xff] %vm714, %v623
  %757 = vst.msk [vmem:[%s4 + $0x150] sm:$0xff] %vm714, %v628
  %758 = vst.msk [vmem:[%s4 + $0x158] sm:$0xff] %vm714, %v631
  %759 = vst.msk [vmem:[%s4 + $0x160] sm:$0xff] %vm714, %v636
  %760 = vst.msk [vmem:[%s4 + $0x168] sm:$0xff] %vm714, %v639
  %761 = vst.msk [vmem:[%s4 + $0x170] sm:$0xff] %vm714, %v644
  %762 = vst.msk [vmem:[%s4 + $0x178] sm:$0xff] %vm714, %v647
  %763 = vst.msk [vmem:[%s4 + $0x180] sm:$0xff] %vm714, %v652
  %764 = vst.msk [vmem:[%s4 + $0x188] sm:$0xff] %vm714, %v655
  %765 = vst.msk [vmem:[%s4 + $0x190] sm:$0xff] %vm714, %v660
  %766 = vst.msk [vmem:[%s4 + $0x198] sm:$0xff] %vm714, %v663
  %767 = vst.msk [vmem:[%s4 + $0x1a0] sm:$0xff] %vm714, %v668
  %768 = vst.msk [vmem:[%s4 + $0x1a8] sm:$0xff] %vm714, %v671
  %769 = vst.msk [vmem:[%s4 + $0x1b0] sm:$0xff] %vm714, %v676
  %770 = vst.msk [vmem:[%s4 + $0x1b8] sm:$0xff] %vm714, %v679
  %771 = vst.msk [vmem:[%s4 + $0x1c0] sm:$0xff] %vm714, %v684
  %772 = vst.msk [vmem:[%s4 + $0x1c8] sm:$0xff] %vm714, %v687
  %773 = vst.msk [vmem:[%s4 + $0x1d0] sm:$0xff] %vm714, %v692
  %774 = vst.msk [vmem:[%s4 + $0x1d8] sm:$0xff] %vm714, %v695
  %775 = vst.msk [vmem:[%s4 + $0x1e0] sm:$0xff] %vm714, %v700
  %776 = vst.msk [vmem:[%s4 + $0x1e8] sm:$0xff] %vm714, %v703
  %777 = vst.msk [vmem:[%s4 + $0x1f0] sm:$0xff] %vm714, %v708
  %778 = vst.msk [vmem:[%s4 + $0x1f8] sm:$0xff] %vm714, %v711
  %v779 = vsel %vm714, %v460, 0.0
  %v780 = vsel %vm714, %v463, 0.0
  %v781 = vadd.f32 %v779, %v780
  %v782 = vsel %vm714, %v468, 0.0
  %v783 = vadd.f32 %v781, %v782
  %v784 = vsel %vm714, %v471, 0.0
  %v785 = vadd.f32 %v783, %v784
  %v786 = vsel %vm714, %v476, 0.0
  %v787 = vadd.f32 %v785, %v786
  %v788 = vsel %vm714, %v479, 0.0
  %v789 = vadd.f32 %v787, %v788
  %v790 = vsel %vm714, %v484, 0.0
  %v791 = vadd.f32 %v789, %v790
  %v792 = vsel %vm714, %v487, 0.0
  %v793 = vadd.f32 %v791, %v792
  %v794 = vsel %vm714, %v492, 0.0
  %v795 = vadd.f32 %v793, %v794
  %v796 = vsel %vm714, %v495, 0.0
  %v797 = vadd.f32 %v795, %v796
  %v798 = vsel %vm714, %v500, 0.0
  %v799 = vadd.f32 %v797, %v798
  %v800 = vsel %vm714, %v503, 0.0
  %v801 = vadd.f32 %v799, %v800
  %v802 = vsel %vm714, %v508, 0.0
  %v803 = vadd.f32 %v801, %v802
  %v804 = vsel %vm714, %v511, 0.0
  %v805 = vadd.f32 %v803, %v804
  %v806 = vsel %vm714, %v516, 0.0
  %v807 = vadd.f32 %v805, %v806
  %v808 = vsel %vm714, %v519, 0.0
  %v809 = vadd.f32 %v807, %v808
  %v810 = vsel %vm714, %v524, 0.0
  %v811 = vadd.f32 %v809, %v810
  %v812 = vsel %vm714, %v527, 0.0
  %v813 = vadd.f32 %v811, %v812
  %v814 = vsel %vm714, %v532, 0.0
  %v815 = vadd.f32 %v813, %v814
  %v816 = vsel %vm714, %v535, 0.0
  %v817 = vadd.f32 %v815, %v816
  %v818 = vsel %vm714, %v540, 0.0
  %v819 = vadd.f32 %v817, %v818
  %v820 = vsel %vm714, %v543, 0.0
  %v821 = vadd.f32 %v819, %v820
  %v822 = vsel %vm714, %v548, 0.0
  %v823 = vadd.f32 %v821, %v822
  %v824 = vsel %vm714, %v551, 0.0
  %v825 = vadd.f32 %v823, %v824
  %v826 = vsel %vm714, %v556, 0.0
  %v827 = vadd.f32 %v825, %v826
  %v828 = vsel %vm714, %v559, 0.0
  %v829 = vadd.f32 %v827, %v828
  %v830 = vsel %vm714, %v564, 0.0
  %v831 = vadd.f32 %v829, %v830
  %v832 = vsel %vm714, %v567, 0.0
  %v833 = vadd.f32 %v831, %v832
  %v834 = vsel %vm714, %v572, 0.0
  %v835 = vadd.f32 %v833, %v834
  %v836 = vsel %vm714, %v575, 0.0
  %v837 = vadd.f32 %v835, %v836
  %v838 = vsel %vm714, %v580, 0.0
  %v839 = vadd.f32 %v837, %v838
  %v840 = vsel %vm714, %v583, 0.0
  %v841 = vadd.f32 %v839, %v840
  %v842 = vsel %vm714, %v588, 0.0
  %v843 = vadd.f32 %v841, %v842
  %v844 = vsel %vm714, %v591, 0.0
  %v845 = vadd.f32 %v843, %v844
  %v846 = vsel %vm714, %v596, 0.0
  %v847 = vadd.f32 %v845, %v846
  %v848 = vsel %vm714, %v599, 0.0
  %v849 = vadd.f32 %v847, %v848
  %v850 = vsel %vm714, %v604, 0.0
  %v851 = vadd.f32 %v849, %v850
  %v852 = vsel %vm714, %v607, 0.0
  %v853 = vadd.f32 %v851, %v852
  %v854 = vsel %vm714, %v612, 0.0
  %v855 = vadd.f32 %v853, %v854
  %v856 = vsel %vm714, %v615, 0.0
  %v857 = vadd.f32 %v855, %v856
  %v858 = vsel %vm714, %v620, 0.0
  %v859 = vadd.f32 %v857, %v858
  %v860 = vsel %vm714, %v623, 0.0
  %v861 = vadd.f32 %v859, %v860
  %v862 = vsel %vm714, %v628, 0.0
  %v863 = vadd.f32 %v861, %v862
  %v864 = vsel %vm714, %v631, 0.0
  %v865 = vadd.f32 %v863, %v864
  %v866 = vsel %vm714, %v636, 0.0
  %v867 = vadd.f32 %v865, %v866
  %v868 = vsel %vm714, %v639, 0.0
  %v869 = vadd.f32 %v867, %v868
  %v870 = vsel %vm714, %v644, 0.0
  %v871 = vadd.f32 %v869, %v870
  %v872 = vsel %vm714, %v647, 0.0
  %v873 = vadd.f32 %v871, %v872
  %v874 = vsel %vm714, %v652, 0.0
  %v875 = vadd.f32 %v873, %v874
  %v876 = vsel %vm714, %v655, 0.0
  %v877 = vadd.f32 %v875, %v876
  %v878 = vsel %vm714, %v660, 0.0
  %v879 = vadd.f32 %v877, %v878
  %v880 = vsel %vm714, %v663, 0.0
  %v881 = vadd.f32 %v879, %v880
  %v882 = vsel %vm714, %v668, 0.0
  %v883 = vadd.f32 %v881, %v882
  %v884 = vsel %vm714, %v671, 0.0
  %v885 = vadd.f32 %v883, %v884
  %v886 = vsel %vm714, %v676, 0.0
  %v887 = vadd.f32 %v885, %v886
  %v888 = vsel %vm714, %v679, 0.0
  %v889 = vadd.f32 %v887, %v888
  %v890 = vsel %vm714, %v684, 0.0
  %v891 = vadd.f32 %v889, %v890
  %v892 = vsel %vm714, %v687, 0.0
  %v893 = vadd.f32 %v891, %v892
  %v894 = vsel %vm714, %v692, 0.0
  %v895 = vadd.f32 %v893, %v894
  %v896 = vsel %vm714, %v695, 0.0
  %v897 = vadd.f32 %v895, %v896
  %v898 = vsel %vm714, %v700, 0.0
  %v899 = vadd.f32 %v897, %v898
  %v900 = vsel %vm714, %v703, 0.0
  %v901 = vadd.f32 %v899, %v900
  %v902 = vsel %vm714, %v708, 0.0
  %v903 = vadd.f32 %v901, %v902
  %v904 = vsel %vm714, %v711, 0.0
  %v905 = vadd.f32 %v903, %v904
  %v906 = vrot.slane %v905, 4
  %v907 = vadd.f32 %v905, %v906
  %v908 = vrot.slane %v907, 2
  %v909 = vadd.f32 %v907, %v908
  %v910 = vrot.slane %v909, 1
  %v911 = vadd.f32 %v909, %v910
  %v912 = vmul.f32 %v460, %v460
  %v913 = vmul.f32 %v463, %v463
  %v914 = vmul.f32 %v468, %v468
  %v915 = vmul.f32 %v471, %v471
  %v916 = vmul.f32 %v476, %v476
  %v917 = vmul.f32 %v479, %v479
  %v918 = vmul.f32 %v484, %v484
  %v919 = vmul.f32 %v487, %v487
  %v920 = vmul.f32 %v492, %v492
  %v921 = vmul.f32 %v495, %v495
  %v922 = vmul.f32 %v500, %v500
  %v923 = vmul.f32 %v503, %v503
  %v924 = vmul.f32 %v508, %v508
  %v925 = vmul.f32 %v511, %v511
  %v926 = vmul.f32 %v516, %v516
  %v927 = vmul.f32 %v519, %v519
  %v928 = vmul.f32 %v524, %v524
  %v929 = vmul.f32 %v527, %v527
  %v930 = vmul.f32 %v532, %v532
  %v931 = vmul.f32 %v535, %v535
  %v932 = vmul.f32 %v540, %v540
  %v933 = vmul.f32 %v543, %v543
  %v934 = vmul.f32 %v548, %v548
  %v935 = vmul.f32 %v551, %v551
  %v936 = vmul.f32 %v556, %v556
  %v937 = vmul.f32 %v559, %v559
  %v938 = vmul.f32 %v564, %v564
  %v939 = vmul.f32 %v567, %v567
  %v940 = vmul.f32 %v572, %v572
  %v941 = vmul.f32 %v575, %v575
  %v942 = vmul.f32 %v580, %v580
  %v943 = vmul.f32 %v583, %v583
  %v944 = vmul.f32 %v588, %v588
  %v945 = vmul.f32 %v591, %v591
  %v946 = vmul.f32 %v596, %v596
  %v947 = vmul.f32 %v599, %v599
  %v948 = vmul.f32 %v604, %v604
  %v949 = vmul.f32 %v607, %v607
  %v950 = vmul.f32 %v612, %v612
  %v951 = vmul.f32 %v615, %v615
  %v952 = vmul.f32 %v620, %v620
  %v953 = vmul.f32 %v623, %v623
  %v954 = vmul.f32 %v628, %v628
  %v955 = vmul.f32 %v631, %v631
  %v956 = vmul.f32 %v636, %v636
  %v957 = vmul.f32 %v639, %v639
  %v958 = vmul.f32 %v644, %v644
  %v959 = vmul.f32 %v647, %v647
  %v960 = vmul.f32 %v652, %v652
  %v961 = vmul.f32 %v655, %v655
  %v962 = vmul.f32 %v660, %v660
  %v963 = vmul.f32 %v663, %v663
  %v964 = vmul.f32 %v668, %v668
  %v965 = vmul.f32 %v671, %v671
  %v966 = vmul.f32 %v676, %v676
  %v967 = vmul.f32 %v679, %v679
  %v968 = vmul.f32 %v684, %v684
  %v969 = vmul.f32 %v687, %v687
  %v970 = vmul.f32 %v692, %v692
  %v971 = vmul.f32 %v695, %v695
  %v972 = vmul.f32 %v700, %v700
  %v973 = vmul.f32 %v703, %v703
  %v974 = vmul.f32 %v708, %v708
  %v975 = vmul.f32 %v711, %v711
  %v976 = vsel %vm714, %v912, 0.0
  %v977 = vsel %vm714, %v913, 0.0
  %v978 = vadd.f32 %v976, %v977
  %v979 = vsel %vm714, %v914, 0.0
  %v980 = vadd.f32 %v978, %v979
  %v981 = vsel %vm714, %v915, 0.0
  %v982 = vadd.f32 %v980, %v981
  %v983 = vsel %vm714, %v916, 0.0
  %v984 = vadd.f32 %v982, %v983
  %v985 = vsel %vm714, %v917, 0.0
  %v986 = vadd.f32 %v984, %v985
  %v987 = vsel %vm714, %v918, 0.0
  %v988 = vadd.f32 %v986, %v987
  %v989 = vsel %vm714, %v919, 0.0
  %v990 = vadd.f32 %v988, %v989
  %v991 = vsel %vm714, %v920, 0.0
  %v992 = vadd.f32 %v990, %v991
  %v993 = vsel %vm714, %v921, 0.0
  %v994 = vadd.f32 %v992, %v993
  %v995 = vsel %vm714, %v922, 0.0
  %v996 = vadd.f32 %v994, %v995
  %v997 = vsel %vm714, %v923, 0.0
  %v998 = vadd.f32 %v996, %v997
  %v999 = vsel %vm714, %v924, 0.0
  %v1000 = vadd.f32 %v998, %v999
  %v1001 = vsel %vm714, %v925, 0.0
  %v1002 = vadd.f32 %v1000, %v1001
  %v1003 = vsel %vm714, %v926, 0.0
  %v1004 = vadd.f32 %v1002, %v1003
  %v1005 = vsel %vm714, %v927, 0.0
  %v1006 = vadd.f32 %v1004, %v1005
  %v1007 = vsel %vm714, %v928, 0.0
  %v1008 = vadd.f32 %v1006, %v1007
  %v1009 = vsel %vm714, %v929, 0.0
  %v1010 = vadd.f32 %v1008, %v1009
  %v1011 = vsel %vm714, %v930, 0.0
  %v1012 = vadd.f32 %v1010, %v1011
  %v1013 = vsel %vm714, %v931, 0.0
  %v1014 = vadd.f32 %v1012, %v1013
  %v1015 = vsel %vm714, %v932, 0.0
  %v1016 = vadd.f32 %v1014, %v1015
  %v1017 = vsel %vm714, %v933, 0.0
  %v1018 = vadd.f32 %v1016, %v1017
  %v1019 = vsel %vm714, %v934, 0.0
  %v1020 = vadd.f32 %v1018, %v1019
  %v1021 = vsel %vm714, %v935, 0.0
  %v1022 = vadd.f32 %v1020, %v1021
  %v1023 = vsel %vm714, %v936, 0.0
  %v1024 = vadd.f32 %v1022, %v1023
  %v1025 = vsel %vm714, %v937, 0.0
  %v1026 = vadd.f32 %v1024, %v1025
  %v1027 = vsel %vm714, %v938, 0.0
  %v1028 = vadd.f32 %v1026, %v1027
  %v1029 = vsel %vm714, %v939, 0.0
  %v1030 = vadd.f32 %v1028, %v1029
  %v1031 = vsel %vm714, %v940, 0.0
  %v1032 = vadd.f32 %v1030, %v1031
  %v1033 = vsel %vm714, %v941, 0.0
  %v1034 = vadd.f32 %v1032, %v1033
  %v1035 = vsel %vm714, %v942, 0.0
  %v1036 = vadd.f32 %v1034, %v1035
  %v1037 = vsel %vm714, %v943, 0.0
  %v1038 = vadd.f32 %v1036, %v1037
  %v1039 = vsel %vm714, %v944, 0.0
  %v1040 = vadd.f32 %v1038, %v1039
  %v1041 = vsel %vm714, %v945, 0.0
  %v1042 = vadd.f32 %v1040, %v1041
  %v1043 = vsel %vm714, %v946, 0.0
  %v1044 = vadd.f32 %v1042, %v1043
  %v1045 = vsel %vm714, %v947, 0.0
  %v1046 = vadd.f32 %v1044, %v1045
  %v1047 = vsel %vm714, %v948, 0.0
  %v1048 = vadd.f32 %v1046, %v1047
  %v1049 = vsel %vm714, %v949, 0.0
  %v1050 = vadd.f32 %v1048, %v1049
  %v1051 = vsel %vm714, %v950, 0.0
  %v1052 = vadd.f32 %v1050, %v1051
  %v1053 = vsel %vm714, %v951, 0.0
  %v1054 = vadd.f32 %v1052, %v1053
  %v1055 = vsel %vm714, %v952, 0.0
  %v1056 = vadd.f32 %v1054, %v1055
  %v1057 = vsel %vm714, %v953, 0.0
  %v1058 = vadd.f32 %v1056, %v1057
  %v1059 = vsel %vm714, %v954, 0.0
  %v1060 = vadd.f32 %v1058, %v1059
  %v1061 = vsel %vm714, %v955, 0.0
  %v1062 = vadd.f32 %v1060, %v1061
  %v1063 = vsel %vm714, %v956, 0.0
  %v1064 = vadd.f32 %v1062, %v1063
  %v1065 = vsel %vm714, %v957, 0.0
  %v1066 = vadd.f32 %v1064, %v1065
  %v1067 = vsel %vm714, %v958, 0.0
  %v1068 = vadd.f32 %v1066, %v1067
  %v1069 = vsel %vm714, %v959, 0.0
  %v1070 = vadd.f32 %v1068, %v1069
  %v1071 = vsel %vm714, %v960, 0.0
  %v1072 = vadd.f32 %v1070, %v1071
  %v1073 = vsel %vm714, %v961, 0.0
  %v1074 = vadd.f32 %v1072, %v1073
  %v1075 = vsel %vm714, %v962, 0.0
  %v1076 = vadd.f32 %v1074, %v1075
  %v1077 = vsel %vm714, %v963, 0.0
  %v1078 = vadd.f32 %v1076, %v1077
  %v1079 = vsel %vm714, %v964, 0.0
  %v1080 = vadd.f32 %v1078, %v1079
  %v1081 = vsel %vm714, %v965, 0.0
  %v1082 = vadd.f32 %v1080, %v1081
  %v1083 = vsel %vm714, %v966, 0.0
  %v1084 = vadd.f32 %v1082, %v1083
  %v1085 = vsel %vm714, %v967, 0.0
  %v1086 = vadd.f32 %v1084, %v1085
  %v1087 = vsel %vm714, %v968, 0.0
  %v1088 = vadd.f32 %v1086, %v1087
  %v1089 = vsel %vm714, %v969, 0.0
  %v1090 = vadd.f32 %v1088, %v1089
  %v1091 = vsel %vm714, %v970, 0.0
  %v1092 = vadd.f32 %v1090, %v1091
  %v1093 = vsel %vm714, %v971, 0.0
  %v1094 = vadd.f32 %v1092, %v1093
  %v1095 = vsel %vm714, %v972, 0.0
  %v1096 = vadd.f32 %v1094, %v1095
  %v1097 = vsel %vm714, %v973, 0.0
  %v1098 = vadd.f32 %v1096, %v1097
  %v1099 = vsel %vm714, %v974, 0.0
  %v1100 = vadd.f32 %v1098, %v1099
  %v1101 = vsel %vm714, %v975, 0.0
  %v1102 = vadd.f32 %v1100, %v1101
  %v1103 = vrot.slane %v1102, 4
  %v1104 = vadd.f32 %v1102, %v1103
  %v1105 = vrot.slane %v1104, 2
  %v1106 = vadd.f32 %v1104, %v1105
  %v1107 = vrot.slane %v1106, 1
  %v1108 = vadd.f32 %v1106, %v1107
  %1109 = vst.msk [vmem:[%s5] sm:$0xff] %vm714, %v911
  %1110 = vst.msk [vmem:[%s6] sm:$0xff] %vm714, %v1108
  // Predicated region
  $region18: #{conv_bottleneck_forward.7} parent=0 // pred_check
    _
  $region19: #{conv_bottleneck_forward.7} parent=0 // pred_check_branch
    %1112 = sbr.rel (0) target = $region21
  $region20: #{conv_bottleneck_forward.7} parent=0 // pred_region
    _
  $region21: #{conv_bottleneck_forward.7} parent=0 // pred_fallthru
    _
  // Predicated region
  $region22: #{conv_bottleneck_forward.7} parent=0 // pred_check
    _
  $region23: #{conv_bottleneck_forward.7} parent=0 // pred_check_branch
    %1114 = sbr.rel (0) target = $region25
  $region24: #{conv_bottleneck_forward.7} parent=0 // pred_region
    _
  $region25: #{conv_bottleneck_forward.7} parent=0 // pred_fallthru
    _
  // Predicated region
  $region26: #{conv_bottleneck_forward.7} parent=0 // pred_check
    _
  $region27: #{conv_bottleneck_forward.7} parent=0 // pred_check_branch
    %1116 = sbr.rel (0) target = $region29
  $region28: #{conv_bottleneck_forward.7} parent=0 // pred_region
    _
  $region29: #{conv_bottleneck_forward.7} parent=0 // pred_fallthru
    _
  // Predicated region
  $region30: #{conv_bottleneck_forward.7} parent=0 // pred_check
    _
  $region31: #{conv_bottleneck_forward.7} parent=0 // pred_check_branch
    %1118 = sbr.rel (0) target = $region33
  $region32: #{conv_bottleneck_forward.7} parent=0 // pred_region
    _
  $region33: #{conv_bottleneck_forward.7} parent=0 // pred_fallthru
    _
  // Predicated region
  $region34: #{conv_bottleneck_forward.7} parent=0 // pred_check
    _
  $region35: #{conv_bottleneck_forward.7} parent=0 // pred_check_branch
    %1120 = sbr.rel (0) target = $region37
  $region36: #{conv_bottleneck_forward.7} parent=0 // pred_region
    _
  $region37: #{conv_bottleneck_forward.7} parent=0 // pred_fallthru
    _
  // Predicated region
  $region38: #{conv_bottleneck_forward.7} parent=0 // pred_check
    _
  $region39: #{conv_bottleneck_forward.7} parent=0 // pred_check_branch
    %1122 = sbr.rel (0) target = $region41
  $region40: #{conv_bottleneck_forward.7} parent=0 // pred_region
    _
  $region41: #{conv_bottleneck_forward.7} parent=0 // pred_fallthru
    _

// kernel: conv_bottleneck_forward.8
$region0: #{conv_bottleneck_forward.8}
  #allocation0 [shape = 'u32[]', space=smem, size = 0x4, offset = 0x4, fixed_abs, tag = 'smem constant byte address 0x4 - core index']
  #allocation1 [shape = 'u32[144,128]{1,0:T(1,128)}', space=vmem, size = 0x12000, scoped, tag = 'internal scratch']
  %s0 = inlined_call_operand.vmem [shape: f32[512,4], index: 0, kind: input, shape index: {}]
  %s1 = inlined_call_operand.vmem [shape: bf16[4,8], index: 1, kind: input, shape index: {}]
  %s2 = inlined_call_operand.vmem [shape: f32[1,4], index: 2, kind: input, shape index: {}]
  %s3 = inlined_call_operand.vmem [shape: f32[1,4], index: 3, kind: input, shape index: {}]
  %s4 = inlined_call_operand.vmem [shape: f32[512,8], index: 4, kind: output, shape index: {0}]
  %s5 = inlined_call_operand.vmem [shape: f32[1,8,8], index: 5, kind: output, shape index: {1}]
  %s6 = inlined_call_operand.vmem [shape: f32[1,8,8], index: 6, kind: output, shape index: {2}]
  %7 = xla_tuple %s4, %s5, %s6
  %s8 = sld [smem:[#allocation0]]
  $region42: #{conv_bottleneck_forward.8} parent=0
    _
  %s10 = ssub.s32 1, %s8
  %s11 = scalar_select 0, %s10, %s8
  // Predicated region
  $region2: #{conv_bottleneck_forward.8} parent=0 // pred_check
    _
  $region3: #{conv_bottleneck_forward.8} parent=0 // pred_check_branch
    %13 = sbr.rel (0) target = $region5
  $region4: #{conv_bottleneck_forward.8} parent=0 // pred_region
    _
  $region5: #{conv_bottleneck_forward.8} parent=0 // pred_fallthru
    _
  // Predicated region
  $region6: #{conv_bottleneck_forward.8} parent=0 // pred_check
    _
  $region7: #{conv_bottleneck_forward.8} parent=0 // pred_check_branch
    %15 = sbr.rel (0) target = $region9
  $region8: #{conv_bottleneck_forward.8} parent=0 // pred_region
    _
  $region9: #{conv_bottleneck_forward.8} parent=0 // pred_fallthru
    _
  // Predicated region
  $region10: #{conv_bottleneck_forward.8} parent=0 // pred_check
    _
  $region11: #{conv_bottleneck_forward.8} parent=0 // pred_check_branch
    %17 = sbr.rel (0) target = $region13
  $region12: #{conv_bottleneck_forward.8} parent=0 // pred_region
    _
  $region13: #{conv_bottleneck_forward.8} parent=0 // pred_fallthru
    _
  // Predicated region
  $region14: #{conv_bottleneck_forward.8} parent=0 // pred_check
    _
  $region15: #{conv_bottleneck_forward.8} parent=0 // pred_check_branch
    %19 = sbr.rel (0) target = $region17
  $region16: #{conv_bottleneck_forward.8} parent=0 // pred_region
    _
  $region17: #{conv_bottleneck_forward.8} parent=0 // pred_fallthru
    _
  %v21 = vld [vmem:[%s0] sm:$0xff]
  %v22 = vld [vmem:[%s0 + $0x8] sm:$0xff]
  %v23 = vld [vmem:[%s0 + $0x10] sm:$0xff]
  %v24 = vld [vmem:[%s0 + $0x18] sm:$0xff]
  %v25 = vld [vmem:[%s0 + $0x20] sm:$0xff]
  %v26 = vld [vmem:[%s0 + $0x28] sm:$0xff]
  %v27 = vld [vmem:[%s0 + $0x30] sm:$0xff]
  %v28 = vld [vmem:[%s0 + $0x38] sm:$0xff]
  %v29 = vld [vmem:[%s0 + $0x40] sm:$0xff]
  %v30 = vld [vmem:[%s0 + $0x48] sm:$0xff]
  %v31 = vld [vmem:[%s0 + $0x50] sm:$0xff]
  %v32 = vld [vmem:[%s0 + $0x58] sm:$0xff]
  %v33 = vld [vmem:[%s0 + $0x60] sm:$0xff]
  %v34 = vld [vmem:[%s0 + $0x68] sm:$0xff]
  %v35 = vld [vmem:[%s0 + $0x70] sm:$0xff]
  %v36 = vld [vmem:[%s0 + $0x78] sm:$0xff]
  %v37 = vld [vmem:[%s0 + $0x80] sm:$0xff]
  %v38 = vld [vmem:[%s0 + $0x88] sm:$0xff]
  %v39 = vld [vmem:[%s0 + $0x90] sm:$0xff]
  %v40 = vld [vmem:[%s0 + $0x98] sm:$0xff]
  %v41 = vld [vmem:[%s0 + $0xa0] sm:$0xff]
  %v42 = vld [vmem:[%s0 + $0xa8] sm:$0xff]
  %v43 = vld [vmem:[%s0 + $0xb0] sm:$0xff]
  %v44 = vld [vmem:[%s0 + $0xb8] sm:$0xff]
  %v45 = vld [vmem:[%s0 + $0xc0] sm:$0xff]
  %v46 = vld [vmem:[%s0 + $0xc8] sm:$0xff]
  %v47 = vld [vmem:[%s0 + $0xd0] sm:$0xff]
  %v48 = vld [vmem:[%s0 + $0xd8] sm:$0xff]
  %v49 = vld [vmem:[%s0 + $0xe0] sm:$0xff]
  %v50 = vld [vmem:[%s0 + $0xe8] sm:$0xff]
  %v51 = vld [vmem:[%s0 + $0xf0] sm:$0xff]
  %v52 = vld [vmem:[%s0 + $0xf8] sm:$0xff]
  %v53 = vld [vmem:[%s0 + $0x100] sm:$0xff]
  %v54 = vld [vmem:[%s0 + $0x108] sm:$0xff]
  %v55 = vld [vmem:[%s0 + $0x110] sm:$0xff]
  %v56 = vld [vmem:[%s0 + $0x118] sm:$0xff]
  %v57 = vld [vmem:[%s0 + $0x120] sm:$0xff]
  %v58 = vld [vmem:[%s0 + $0x128] sm:$0xff]
  %v59 = vld [vmem:[%s0 + $0x130] sm:$0xff]
  %v60 = vld [vmem:[%s0 + $0x138] sm:$0xff]
  %v61 = vld [vmem:[%s0 + $0x140] sm:$0xff]
  %v62 = vld [vmem:[%s0 + $0x148] sm:$0xff]
  %v63 = vld [vmem:[%s0 + $0x150] sm:$0xff]
  %v64 = vld [vmem:[%s0 + $0x158] sm:$0xff]
  %v65 = vld [vmem:[%s0 + $0x160] sm:$0xff]
  %v66 = vld [vmem:[%s0 + $0x168] sm:$0xff]
  %v67 = vld [vmem:[%s0 + $0x170] sm:$0xff]
  %v68 = vld [vmem:[%s0 + $0x178] sm:$0xff]
  %v69 = vld [vmem:[%s0 + $0x180] sm:$0xff]
  %v70 = vld [vmem:[%s0 + $0x188] sm:$0xff]
  %v71 = vld [vmem:[%s0 + $0x190] sm:$0xff]
  %v72 = vld [vmem:[%s0 + $0x198] sm:$0xff]
  %v73 = vld [vmem:[%s0 + $0x1a0] sm:$0xff]
  %v74 = vld [vmem:[%s0 + $0x1a8] sm:$0xff]
  %v75 = vld [vmem:[%s0 + $0x1b0] sm:$0xff]
  %v76 = vld [vmem:[%s0 + $0x1b8] sm:$0xff]
  %v77 = vld [vmem:[%s0 + $0x1c0] sm:$0xff]
  %v78 = vld [vmem:[%s0 + $0x1c8] sm:$0xff]
  %v79 = vld [vmem:[%s0 + $0x1d0] sm:$0xff]
  %v80 = vld [vmem:[%s0 + $0x1d8] sm:$0xff]
  %v81 = vld [vmem:[%s0 + $0x1e0] sm:$0xff]
  %v82 = vld [vmem:[%s0 + $0x1e8] sm:$0xff]
  %v83 = vld [vmem:[%s0 + $0x1f0] sm:$0xff]
  %v84 = vld [vmem:[%s0 + $0x1f8] sm:$0xff]
  %v85 = vld [vmem:[%s2] sm:$0x1]
  %v87 = vlaneseq
  %v88 = vshrl.u32 %v87, 7
  %v89 = vsub.s32 0, %v88
  %v90 = vrot.slane %v85, %v89
  %v92 = vmul.f32 %v21, %v90
  %v93 = vmul.f32 %v22, %v90
  %v94 = vmul.f32 %v23, %v90
  %v95 = vmul.f32 %v24, %v90
  %v96 = vmul.f32 %v25, %v90
  %v97 = vmul.f32 %v26, %v90
  %v98 = vmul.f32 %v27, %v90
  %v99 = vmul.f32 %v28, %v90
  %v100 = vmul.f32 %v29, %v90
  %v101 = vmul.f32 %v30, %v90
  %v102 = vmul.f32 %v31, %v90
  %v103 = vmul.f32 %v32, %v90
  %v104 = vmul.f32 %v33, %v90
  %v105 = vmul.f32 %v34, %v90
  %v106 = vmul.f32 %v35, %v90
  %v107 = vmul.f32 %v36, %v90
  %v108 = vmul.f32 %v37, %v90
  %v109 = vmul.f32 %v38, %v90
  %v110 = vmul.f32 %v39, %v90
  %v111 = vmul.f32 %v40, %v90
  %v112 = vmul.f32 %v41, %v90
  %v113 = vmul.f32 %v42, %v90
  %v114 = vmul.f32 %v43, %v90
  %v115 = vmul.f32 %v44, %v90
  %v116 = vmul.f32 %v45, %v90
  %v117 = vmul.f32 %v46, %v90
  %v118 = vmul.f32 %v47, %v90
  %v119 = vmul.f32 %v48, %v90
  %v120 = vmul.f32 %v49, %v90
  %v121 = vmul.f32 %v50, %v90
  %v122 = vmul.f32 %v51, %v90
  %v123 = vmul.f32 %v52, %v90
  %v124 = vmul.f32 %v53, %v90
  %v125 = vmul.f32 %v54, %v90
  %v126 = vmul.f32 %v55, %v90
  %v127 = vmul.f32 %v56, %v90
  %v128 = vmul.f32 %v57, %v90
  %v129 = vmul.f32 %v58, %v90
  %v130 = vmul.f32 %v59, %v90
  %v131 = vmul.f32 %v60, %v90
  %v132 = vmul.f32 %v61, %v90
  %v133 = vmul.f32 %v62, %v90
  %v134 = vmul.f32 %v63, %v90
  %v135 = vmul.f32 %v64, %v90
  %v136 = vmul.f32 %v65, %v90
  %v137 = vmul.f32 %v66, %v90
  %v138 = vmul.f32 %v67, %v90
  %v139 = vmul.f32 %v68, %v90
  %v140 = vmul.f32 %v69, %v90
  %v141 = vmul.f32 %v70, %v90
  %v142 = vmul.f32 %v71, %v90
  %v143 = vmul.f32 %v72, %v90
  %v144 = vmul.f32 %v73, %v90
  %v145 = vmul.f32 %v74, %v90
  %v146 = vmul.f32 %v75, %v90
  %v147 = vmul.f32 %v76, %v90
  %v148 = vmul.f32 %v77, %v90
  %v149 = vmul.f32 %v78, %v90
  %v150 = vmul.f32 %v79, %v90
  %v151 = vmul.f32 %v80, %v90
  %v152 = vmul.f32 %v81, %v90
  %v153 = vmul.f32 %v82, %v90
  %v154 = vmul.f32 %v83, %v90
  %v155 = vmul.f32 %v84, %v90
  %v156 = vld [vmem:[%s3] sm:$0x1]
  %v158 = vlaneseq
  %v159 = vshrl.u32 %v158, 7
  %v160 = vsub.s32 0, %v159
  %v161 = vrot.slane %v156, %v160
  %v163 = vadd.f32 %v92, %v161
  %v164 = vadd.f32 %v93, %v161
  %v165 = vadd.f32 %v94, %v161
  %v166 = vadd.f32 %v95, %v161
  %v167 = vadd.f32 %v96, %v161
  %v168 = vadd.f32 %v97, %v161
  %v169 = vadd.f32 %v98, %v161
  %v170 = vadd.f32 %v99, %v161
  %v171 = vadd.f32 %v100, %v161
  %v172 = vadd.f32 %v101, %v161
  %v173 = vadd.f32 %v102, %v161
  %v174 = vadd.f32 %v103, %v161
  %v175 = vadd.f32 %v104, %v161
  %v176 = vadd.f32 %v105, %v161
  %v177 = vadd.f32 %v106, %v161
  %v178 = vadd.f32 %v107, %v161
  %v179 = vadd.f32 %v108, %v161
  %v180 = vadd.f32 %v109, %v161
  %v181 = vadd.f32 %v110, %v161
  %v182 = vadd.f32 %v111, %v161
  %v183 = vadd.f32 %v112, %v161
  %v184 = vadd.f32 %v113, %v161
  %v185 = vadd.f32 %v114, %v161
  %v186 = vadd.f32 %v115, %v161
  %v187 = vadd.f32 %v116, %v161
  %v188 = vadd.f32 %v117, %v161
  %v189 = vadd.f32 %v118, %v161
  %v190 = vadd.f32 %v119, %v161
  %v191 = vadd.f32 %v120, %v161
  %v192 = vadd.f32 %v121, %v161
  %v193 = vadd.f32 %v122, %v161
  %v194 = vadd.f32 %v123, %v161
  %v195 = vadd.f32 %v124, %v161
  %v196 = vadd.f32 %v125, %v161
  %v197 = vadd.f32 %v126, %v161
  %v198 = vadd.f32 %v127, %v161
  %v199 = vadd.f32 %v128, %v161
  %v200 = vadd.f32 %v129, %v161
  %v201 = vadd.f32 %v130, %v161
  %v202 = vadd.f32 %v131, %v161
  %v203 = vadd.f32 %v132, %v161
  %v204 = vadd.f32 %v133, %v161
  %v205 = vadd.f32 %v134, %v161
  %v206 = vadd.f32 %v135, %v161
  %v207 = vadd.f32 %v136, %v161
  %v208 = vadd.f32 %v137, %v161
  %v209 = vadd.f32 %v138, %v161
  %v210 = vadd.f32 %v139, %v161
  %v211 = vadd.f32 %v140, %v161
  %v212 = vadd.f32 %v141, %v161
  %v213 = vadd.f32 %v142, %v161
  %v214 = vadd.f32 %v143, %v161
  %v215 = vadd.f32 %v144, %v161
  %v216 = vadd.f32 %v145, %v161
  %v217 = vadd.f32 %v146, %v161
  %v218 = vadd.f32 %v147, %v161
  %v219 = vadd.f32 %v148, %v161
  %v220 = vadd.f32 %v149, %v161
  %v221 = vadd.f32 %v150, %v161
  %v222 = vadd.f32 %v151, %v161
  %v223 = vadd.f32 %v152, %v161
  %v224 = vadd.f32 %v153, %v161
  %v225 = vadd.f32 %v154, %v161
  %v226 = vadd.f32 %v155, %v161
  %v227 = vpack.c.bf16 %v164, %v163
  %v228 = vpack.c.bf16 %v166, %v165
  %v229 = vpack.c.bf16 %v168, %v167
  %v230 = vpack.c.bf16 %v170, %v169
  %v231 = vpack.c.bf16 %v172, %v171
  %v232 = vpack.c.bf16 %v174, %v173
  %v233 = vpack.c.bf16 %v176, %v175
  %v234 = vpack.c.bf16 %v178, %v177
  %v235 = vpack.c.bf16 %v180, %v179
  %v236 = vpack.c.bf16 %v182, %v181
  %v237 = vpack.c.bf16 %v184, %v183
  %v238 = vpack.c.bf16 %v186, %v185
  %v239 = vpack.c.bf16 %v188, %v187
  %v240 = vpack.c.bf16 %v190, %v189
  %v241 = vpack.c.bf16 %v192, %v191
  %v242 = vpack.c.bf16 %v194, %v193
  %v243 = vpack.c.bf16 %v196, %v195
  %v244 = vpack.c.bf16 %v198, %v197
  %v245 = vpack.c.bf16 %v200, %v199
  %v246 = vpack.c.bf16 %v202, %v201
  %v247 = vpack.c.bf16 %v204, %v203
  %v248 = vpack.c.bf16 %v206, %v205
  %v249 = vpack.c.bf16 %v208, %v207
  %v250 = vpack.c.bf16 %v210, %v209
  %v251 = vpack.c.bf16 %v212, %v211
  %v252 = vpack.c.bf16 %v214, %v213
  %v253 = vpack.c.bf16 %v216, %v215
  %v254 = vpack.c.bf16 %v218, %v217
  %v255 = vpack.c.bf16 %v220, %v219
  %v256 = vpack.c.bf16 %v222, %v221
  %v257 = vpack.c.bf16 %v224, %v223
  %v258 = vpack.c.bf16 %v226, %v225
  %v259 = vld [vmem:[%s1] sm:$0x3]
  %vm260 = vcmask 31744
  %v262 = vsel %vm260, %v227, 0
  %v265 = vsel %vm260, %v228, 0
  %v268 = vsel %vm260, %v229, 0
  %v271 = vsel %vm260, %v230, 0
  %v274 = vsel %vm260, %v231, 0
  %v277 = vsel %vm260, %v232, 0
  %v280 = vsel %vm260, %v233, 0
  %v283 = vsel %vm260, %v234, 0
  %v286 = vsel %vm260, %v235, 0
  %v289 = vsel %vm260, %v236, 0
  %v292 = vsel %vm260, %v237, 0
  %v295 = vsel %vm260, %v238, 0
  %v298 = vsel %vm260, %v239, 0
  %v301 = vsel %vm260, %v240, 0
  %v304 = vsel %vm260, %v241, 0
  %v307 = vsel %vm260, %v242, 0
  %v310 = vsel %vm260, %v243, 0
  %v313 = vsel %vm260, %v244, 0
  %v316 = vsel %vm260, %v245, 0
  %v319 = vsel %vm260, %v246, 0
  %v322 = vsel %vm260, %v247, 0
  %v325 = vsel %vm260, %v248, 0
  %v328 = vsel %vm260, %v249, 0
  %v331 = vsel %vm260, %v250, 0
  %v334 = vsel %vm260, %v251, 0
  %v337 = vsel %vm260, %v252, 0
  %v340 = vsel %vm260, %v253, 0
  %v343 = vsel %vm260, %v254, 0
  %v346 = vsel %vm260, %v255, 0
  %v349 = vsel %vm260, %v256, 0
  %v352 = vsel %vm260, %v257, 0
  %v355 = vsel %vm260, %v258, 0
  %vm357 = vcmask 1041408
  %v359 = vsel %vm357, %v259, 0
  %361 = vmatprep.subr.bf16.mxu0 0
  %362 = vmatpush1.bf16.msra.mxu0 %v359
  %363 = vmatprep.subr.bf16.mxu0 0
  %364 = vmatpush1.bf16.msra.mxu0 0
  %365 = vmatprep.subr.bf16.mxu0 0
  %366 = vmatpush1.bf16.msra.mxu0 0
  %367 = vmatprep.subr.bf16.mxu0 0
  %368 = vmatpush1.bf16.msra.mxu0 0
  %369 = vmatprep.subr.bf16.mxu0 0
  %370 = vmatpush1.bf16.msra.mxu0 0
  %371 = vmatprep.subr.bf16.mxu0 0
  %372 = vmatpush1.bf16.msra.mxu0 0
  %373 = vmatprep.subr.bf16.mxu0 0
  %374 = vmatpush1.bf16.msra.mxu0 0
  %375 = vmatprep.subr.bf16.mxu0 0
  %376 = vmatpush1.bf16.msra.mxu0 0
  %377 = vmatprep.subr.bf16.mxu0 0
  %378 = vmatpush1.bf16.msra.mxu0 0
  %379 = vmatprep.subr.bf16.mxu0 0
  %380 = vmatpush1.bf16.msra.mxu0 0
  %381 = vmatprep.subr.bf16.mxu0 0
  %382 = vmatpush1.bf16.msra.mxu0 0
  %383 = vmatprep.subr.bf16.mxu0 0
  %384 = vmatpush1.bf16.msra.mxu0 0
  %385 = vmatprep.subr.bf16.mxu0 0
  %386 = vmatpush1.bf16.msra.mxu0 0
  %387 = vmatprep.subr.bf16.mxu0 0
  %388 = vmatpush1.bf16.msra.mxu0 0
  %389 = vmatprep.subr.bf16.mxu0 0
  %390 = vmatpush1.bf16.msra.mxu0 0
  %391 = vmatprep.subr.bf16.mxu0 0
  %392 = vmatpush1.bf16.msra.mxu0 0
  %393 = vmatprep.mubr.bf16.mxu0 0
  %394 = vmatmul.mubr.bf16.gmra.mrb[0].mxu0 %v262
  %v395 = vpop.f32.mrb[0].mxu0
  %v396 = vadd.f32 0.0, %v395
  %v397 = vpop.f32.mrb[0].mxu0
  %v398 = vpop.f32.mrb[0].mxu0
  %v399 = vadd.f32 0.0, %v398
  %v400 = vpop.f32.mrb[0].mxu0
  %401 = vmatprep.mubr.bf16.mxu0 0
  %402 = vmatmul.mubr.bf16.gmra.mrb[0].mxu0 %v265
  %v403 = vpop.f32.mrb[0].mxu0
  %v404 = vadd.f32 0.0, %v403
  %v405 = vpop.f32.mrb[0].mxu0
  %v406 = vpop.f32.mrb[0].mxu0
  %v407 = vadd.f32 0.0, %v406
  %v408 = vpop.f32.mrb[0].mxu0
  %409 = vmatprep.mubr.bf16.mxu0 0
  %410 = vmatmul.mubr.bf16.gmra.mrb[0].mxu0 %v268
  %v411 = vpop.f32.mrb[0].mxu0
  %v412 = vadd.f32 0.0, %v411
  %v413 = vpop.f32.mrb[0].mxu0
  %v414 = vpop.f32.mrb[0].mxu0
  %v415 = vadd.f32 0.0, %v414
  %v416 = vpop.f32.mrb[0].mxu0
  %417 = vmatprep.mubr.bf16.mxu0 0
  %418 = vmatmul.mubr.bf16.gmra.mrb[0].mxu0 %v271
  %v419 = vpop.f32.mrb[0].mxu0
  %v420 = vadd.f32 0.0, %v419
  %v421 = vpop.f32.mrb[0].mxu0
  %v422 = vpop.f32.mrb[0].mxu0
  %v423 = vadd.f32 0.0, %v422
  %v424 = vpop.f32.mrb[0].mxu0
  %425 = vmatprep.mubr.bf16.mxu0 0
  %426 = vmatmul.mubr.bf16.gmra.mrb[0].mxu0 %v274
  %v427 = vpop.f32.mrb[0].mxu0
  %v428 = vadd.f32 0.0, %v427
  %v429 = vpop.f32.mrb[0].mxu0
  %v430 = vpop.f32.mrb[0].mxu0
  %v431 = vadd.f32 0.0, %v430
  %v432 = vpop.f32.mrb[0].mxu0
  %433 = vmatprep.mubr.bf16.mxu0 0
  %434 = vmatmul.mubr.bf16.gmra.mrb[0].mxu0 %v277
  %v435 = vpop.f32.mrb[0].mxu0
  %v436 = vadd.f32 0.0, %v435
  %v437 = vpop.f32.mrb[0].mxu0
  %v438 = vpop.f32.mrb[0].mxu0
  %v439 = vadd.f32 0.0, %v438
  %v440 = vpop.f32.mrb[0].mxu0
  %441 = vmatprep.mubr.bf16.mxu0 0
  %442 = vmatmul.mubr.bf16.gmra.mrb[0].mxu0 %v280
  %v443 = vpop.f32.mrb[0].mxu0
  %v444 = vadd.f32 0.0, %v443
  %v445 = vpop.f32.mrb[0].mxu0
  %v446 = vpop.f32.mrb[0].mxu0
  %v447 = vadd.f32 0.0, %v446
  %v448 = vpop.f32.mrb[0].mxu0
  %449 = vmatprep.mubr.bf16.mxu0 0
  %450 = vmatmul.mubr.bf16.gmra.mrb[0].mxu0 %v283
  %v451 = vpop.f32.mrb[0].mxu0
  %v452 = vadd.f32 0.0, %v451
  %v453 = vpop.f32.mrb[0].mxu0
  %v454 = vpop.f32.mrb[0].mxu0
  %v455 = vadd.f32 0.0, %v454
  %v456 = vpop.f32.mrb[0].mxu0
  %457 = vmatprep.mubr.bf16.mxu0 0
  %458 = vmatmul.mubr.bf16.gmra.mrb[0].mxu0 %v286
  %v459 = vpop.f32.mrb[0].mxu0
  %v460 = vadd.f32 0.0, %v459
  %v461 = vpop.f32.mrb[0].mxu0
  %v462 = vpop.f32.mrb[0].mxu0
  %v463 = vadd.f32 0.0, %v462
  %v464 = vpop.f32.mrb[0].mxu0
  %465 = vmatprep.mubr.bf16.mxu0 0
  %466 = vmatmul.mubr.bf16.gmra.mrb[0].mxu0 %v289
  %v467 = vpop.f32.mrb[0].mxu0
  %v468 = vadd.f32 0.0, %v467
  %v469 = vpop.f32.mrb[0].mxu0
  %v470 = vpop.f32.mrb[0].mxu0
  %v471 = vadd.f32 0.0, %v470
  %v472 = vpop.f32.mrb[0].mxu0
  %473 = vmatprep.mubr.bf16.mxu0 0
  %474 = vmatmul.mubr.bf16.gmra.mrb[0].mxu0 %v292
  %v475 = vpop.f32.mrb[0].mxu0
  %v476 = vadd.f32 0.0, %v475
  %v477 = vpop.f32.mrb[0].mxu0
  %v478 = vpop.f32.mrb[0].mxu0
  %v479 = vadd.f32 0.0, %v478
  %v480 = vpop.f32.mrb[0].mxu0
  %481 = vmatprep.mubr.bf16.mxu0 0
  %482 = vmatmul.mubr.bf16.gmra.mrb[0].mxu0 %v295
  %v483 = vpop.f32.mrb[0].mxu0
  %v484 = vadd.f32 0.0, %v483
  %v485 = vpop.f32.mrb[0].mxu0
  %v486 = vpop.f32.mrb[0].mxu0
  %v487 = vadd.f32 0.0, %v486
  %v488 = vpop.f32.mrb[0].mxu0
  %489 = vmatprep.mubr.bf16.mxu0 0
  %490 = vmatmul.mubr.bf16.gmra.mrb[0].mxu0 %v298
  %v491 = vpop.f32.mrb[0].mxu0
  %v492 = vadd.f32 0.0, %v491
  %v493 = vpop.f32.mrb[0].mxu0
  %v494 = vpop.f32.mrb[0].mxu0
  %v495 = vadd.f32 0.0, %v494
  %v496 = vpop.f32.mrb[0].mxu0
  %497 = vmatprep.mubr.bf16.mxu0 0
  %498 = vmatmul.mubr.bf16.gmra.mrb[0].mxu0 %v301
  %v499 = vpop.f32.mrb[0].mxu0
  %v500 = vadd.f32 0.0, %v499
  %v501 = vpop.f32.mrb[0].mxu0
  %v502 = vpop.f32.mrb[0].mxu0
  %v503 = vadd.f32 0.0, %v502
  %v504 = vpop.f32.mrb[0].mxu0
  %505 = vmatprep.mubr.bf16.mxu0 0
  %506 = vmatmul.mubr.bf16.gmra.mrb[0].mxu0 %v304
  %v507 = vpop.f32.mrb[0].mxu0
  %v508 = vadd.f32 0.0, %v507
  %v509 = vpop.f32.mrb[0].mxu0
  %v510 = vpop.f32.mrb[0].mxu0
  %v511 = vadd.f32 0.0, %v510
  %v512 = vpop.f32.mrb[0].mxu0
  %513 = vmatprep.mubr.bf16.mxu0 0
  %514 = vmatmul.mubr.bf16.gmra.mrb[0].mxu0 %v307
  %v515 = vpop.f32.mrb[0].mxu0
  %v516 = vadd.f32 0.0, %v515
  %v517 = vpop.f32.mrb[0].mxu0
  %v518 = vpop.f32.mrb[0].mxu0
  %v519 = vadd.f32 0.0, %v518
  %v520 = vpop.f32.mrb[0].mxu0
  %521 = vmatprep.mubr.bf16.mxu0 0
  %522 = vmatmul.mubr.bf16.gmra.mrb[0].mxu0 %v310
  %v523 = vpop.f32.mrb[0].mxu0
  %v524 = vadd.f32 0.0, %v523
  %v525 = vpop.f32.mrb[0].mxu0
  %v526 = vpop.f32.mrb[0].mxu0
  %v527 = vadd.f32 0.0, %v526
  %v528 = vpop.f32.mrb[0].mxu0
  %529 = vmatprep.mubr.bf16.mxu0 0
  %530 = vmatmul.mubr.bf16.gmra.mrb[0].mxu0 %v313
  %v531 = vpop.f32.mrb[0].mxu0
  %v532 = vadd.f32 0.0, %v531
  %v533 = vpop.f32.mrb[0].mxu0
  %v534 = vpop.f32.mrb[0].mxu0
  %v535 = vadd.f32 0.0, %v534
  %v536 = vpop.f32.mrb[0].mxu0
  %537 = vmatprep.mubr.bf16.mxu0 0
  %538 = vmatmul.mubr.bf16.gmra.mrb[0].mxu0 %v316
  %v539 = vpop.f32.mrb[0].mxu0
  %v540 = vadd.f32 0.0, %v539
  %v541 = vpop.f32.mrb[0].mxu0
  %v542 = vpop.f32.mrb[0].mxu0
  %v543 = vadd.f32 0.0, %v542
  %v544 = vpop.f32.mrb[0].mxu0
  %545 = vmatprep.mubr.bf16.mxu0 0
  %546 = vmatmul.mubr.bf16.gmra.mrb[0].mxu0 %v319
  %v547 = vpop.f32.mrb[0].mxu0
  %v548 = vadd.f32 0.0, %v547
  %v549 = vpop.f32.mrb[0].mxu0
  %v550 = vpop.f32.mrb[0].mxu0
  %v551 = vadd.f32 0.0, %v550
  %v552 = vpop.f32.mrb[0].mxu0
  %553 = vmatprep.mubr.bf16.mxu0 0
  %554 = vmatmul.mubr.bf16.gmra.mrb[0].mxu0 %v322
  %v555 = vpop.f32.mrb[0].mxu0
  %v556 = vadd.f32 0.0, %v555
  %v557 = vpop.f32.mrb[0].mxu0
  %v558 = vpop.f32.mrb[0].mxu0
  %v559 = vadd.f32 0.0, %v558
  %v560 = vpop.f32.mrb[0].mxu0
  %561 = vmatprep.mubr.bf16.mxu0 0
  %562 = vmatmul.mubr.bf16.gmra.mrb[0].mxu0 %v325
  %v563 = vpop.f32.mrb[0].mxu0
  %v564 = vadd.f32 0.0, %v563
  %v565 = vpop.f32.mrb[0].mxu0
  %v566 = vpop.f32.mrb[0].mxu0
  %v567 = vadd.f32 0.0, %v566
  %v568 = vpop.f32.mrb[0].mxu0
  %569 = vmatprep.mubr.bf16.mxu0 0
  %570 = vmatmul.mubr.bf16.gmra.mrb[0].mxu0 %v328
  %v571 = vpop.f32.mrb[0].mxu0
  %v572 = vadd.f32 0.0, %v571
  %v573 = vpop.f32.mrb[0].mxu0
  %v574 = vpop.f32.mrb[0].mxu0
  %v575 = vadd.f32 0.0, %v574
  %v576 = vpop.f32.mrb[0].mxu0
  %577 = vmatprep.mubr.bf16.mxu0 0
  %578 = vmatmul.mubr.bf16.gmra.mrb[0].mxu0 %v331
  %v579 = vpop.f32.mrb[0].mxu0
  %v580 = vadd.f32 0.0, %v579
  %v581 = vpop.f32.mrb[0].mxu0
  %v582 = vpop.f32.mrb[0].mxu0
  %v583 = vadd.f32 0.0, %v582
  %v584 = vpop.f32.mrb[0].mxu0
  %585 = vmatprep.mubr.bf16.mxu0 0
  %586 = vmatmul.mubr.bf16.gmra.mrb[0].mxu0 %v334
  %v587 = vpop.f32.mrb[0].mxu0
  %v588 = vadd.f32 0.0, %v587
  %v589 = vpop.f32.mrb[0].mxu0
  %v590 = vpop.f32.mrb[0].mxu0
  %v591 = vadd.f32 0.0, %v590
  %v592 = vpop.f32.mrb[0].mxu0
  %593 = vmatprep.mubr.bf16.mxu0 0
  %594 = vmatmul.mubr.bf16.gmra.mrb[0].mxu0 %v337
  %v595 = vpop.f32.mrb[0].mxu0
  %v596 = vadd.f32 0.0, %v595
  %v597 = vpop.f32.mrb[0].mxu0
  %v598 = vpop.f32.mrb[0].mxu0
  %v599 = vadd.f32 0.0, %v598
  %v600 = vpop.f32.mrb[0].mxu0
  %601 = vmatprep.mubr.bf16.mxu0 0
  %602 = vmatmul.mubr.bf16.gmra.mrb[0].mxu0 %v340
  %v603 = vpop.f32.mrb[0].mxu0
  %v604 = vadd.f32 0.0, %v603
  %v605 = vpop.f32.mrb[0].mxu0
  %v606 = vpop.f32.mrb[0].mxu0
  %v607 = vadd.f32 0.0, %v606
  %v608 = vpop.f32.mrb[0].mxu0
  %609 = vmatprep.mubr.bf16.mxu0 0
  %610 = vmatmul.mubr.bf16.gmra.mrb[0].mxu0 %v343
  %v611 = vpop.f32.mrb[0].mxu0
  %v612 = vadd.f32 0.0, %v611
  %v613 = vpop.f32.mrb[0].mxu0
  %v614 = vpop.f32.mrb[0].mxu0
  %v615 = vadd.f32 0.0, %v614
  %v616 = vpop.f32.mrb[0].mxu0
  %617 = vmatprep.mubr.bf16.mxu0 0
  %618 = vmatmul.mubr.bf16.gmra.mrb[0].mxu0 %v346
  %v619 = vpop.f32.mrb[0].mxu0
  %v620 = vadd.f32 0.0, %v619
  %v621 = vpop.f32.mrb[0].mxu0
  %v622 = vpop.f32.mrb[0].mxu0
  %v623 = vadd.f32 0.0, %v622
  %v624 = vpop.f32.mrb[0].mxu0
  %625 = vmatprep.mubr.bf16.mxu0 0
  %626 = vmatmul.mubr.bf16.gmra.mrb[0].mxu0 %v349
  %v627 = vpop.f32.mrb[0].mxu0
  %v628 = vadd.f32 0.0, %v627
  %v629 = vpop.f32.mrb[0].mxu0
  %v630 = vpop.f32.mrb[0].mxu0
  %v631 = vadd.f32 0.0, %v630
  %v632 = vpop.f32.mrb[0].mxu0
  %633 = vmatprep.mubr.bf16.mxu0 0
  %634 = vmatmul.mubr.bf16.gmra.mrb[0].mxu0 %v352
  %v635 = vpop.f32.mrb[0].mxu0
  %v636 = vadd.f32 0.0, %v635
  %v637 = vpop.f32.mrb[0].mxu0
  %v638 = vpop.f32.mrb[0].mxu0
  %v639 = vadd.f32 0.0, %v638
  %v640 = vpop.f32.mrb[0].mxu0
  %641 = vmatprep.mubr.bf16.mxu0 0
  %642 = vmatmul.mubr.bf16.gmra.mrb[0].mxu0 %v355
  %v643 = vpop.f32.mrb[0].mxu0
  %v644 = vadd.f32 0.0, %v643
  %v645 = vpop.f32.mrb[0].mxu0
  %v646 = vpop.f32.mrb[0].mxu0
  %v647 = vadd.f32 0.0, %v646
  %v648 = vpop.f32.mrb[0].mxu0
  %649 = vdwg.mxu0
  %vm650 = vcmask 64512
  %651 = vst.msk [vmem:[%s4] sm:$0xff] %vm650, %v396
  %652 = vst.msk [vmem:[%s4 + $0x8] sm:$0xff] %vm650, %v399
  %653 = vst.msk [vmem:[%s4 + $0x10] sm:$0xff] %vm650, %v404
  %654 = vst.msk [vmem:[%s4 + $0x18] sm:$0xff] %vm650, %v407
  %655 = vst.msk [vmem:[%s4 + $0x20] sm:$0xff] %vm650, %v412
  %656 = vst.msk [vmem:[%s4 + $0x28] sm:$0xff] %vm650, %v415
  %657 = vst.msk [vmem:[%s4 + $0x30] sm:$0xff] %vm650, %v420
  %658 = vst.msk [vmem:[%s4 + $0x38] sm:$0xff] %vm650, %v423
  %659 = vst.msk [vmem:[%s4 + $0x40] sm:$0xff] %vm650, %v428
  %660 = vst.msk [vmem:[%s4 + $0x48] sm:$0xff] %vm650, %v431
  %661 = vst.msk [vmem:[%s4 + $0x50] sm:$0xff] %vm650, %v436
  %662 = vst.msk [vmem:[%s4 + $0x58] sm:$0xff] %vm650, %v439
  %663 = vst.msk [vmem:[%s4 + $0x60] sm:$0xff] %vm650, %v444
  %664 = vst.msk [vmem:[%s4 + $0x68] sm:$0xff] %vm650, %v447
  %665 = vst.msk [vmem:[%s4 + $0x70] sm:$0xff] %vm650, %v452
  %666 = vst.msk [vmem:[%s4 + $0x78] sm:$0xff] %vm650, %v455
  %667 = vst.msk [vmem:[%s4 + $0x80] sm:$0xff] %vm650, %v460
  %668 = vst.msk [vmem:[%s4 + $0x88] sm:$0xff] %vm650, %v463
  %669 = vst.msk [vmem:[%s4 + $0x90] sm:$0xff] %vm650, %v468
  %670 = vst.msk [vmem:[%s4 + $0x98] sm:$0xff] %vm650, %v471
  %671 = vst.msk [vmem:[%s4 + $0xa0] sm:$0xff] %vm650, %v476
  %672 = vst.msk [vmem:[%s4 + $0xa8] sm:$0xff] %vm650, %v479
  %673 = vst.msk [vmem:[%s4 + $0xb0] sm:$0xff] %vm650, %v484
  %674 = vst.msk [vmem:[%s4 + $0xb8] sm:$0xff] %vm650, %v487
  %675 = vst.msk [vmem:[%s4 + $0xc0] sm:$0xff] %vm650, %v492
  %676 = vst.msk [vmem:[%s4 + $0xc8] sm:$0xff] %vm650, %v495
  %677 = vst.msk [vmem:[%s4 + $0xd0] sm:$0xff] %vm650, %v500
  %678 = vst.msk [vmem:[%s4 + $0xd8] sm:$0xff] %vm650, %v503
  %679 = vst.msk [vmem:[%s4 + $0xe0] sm:$0xff] %vm650, %v508
  %680 = vst.msk [vmem:[%s4 + $0xe8] sm:$0xff] %vm650, %v511
  %681 = vst.msk [vmem:[%s4 + $0xf0] sm:$0xff] %vm650, %v516
  %682 = vst.msk [vmem:[%s4 + $0xf8] sm:$0xff] %vm650, %v519
  %683 = vst.msk [vmem:[%s4 + $0x100] sm:$0xff] %vm650, %v524
  %684 = vst.msk [vmem:[%s4 + $0x108] sm:$0xff] %vm650, %v527
  %685 = vst.msk [vmem:[%s4 + $0x110] sm:$0xff] %vm650, %v532
  %686 = vst.msk [vmem:[%s4 + $0x118] sm:$0xff] %vm650, %v535
  %687 = vst.msk [vmem:[%s4 + $0x120] sm:$0xff] %vm650, %v540
  %688 = vst.msk [vmem:[%s4 + $0x128] sm:$0xff] %vm650, %v543
  %689 = vst.msk [vmem:[%s4 + $0x130] sm:$0xff] %vm650, %v548
  %690 = vst.msk [vmem:[%s4 + $0x138] sm:$0xff] %vm650, %v551
  %691 = vst.msk [vmem:[%s4 + $0x140] sm:$0xff] %vm650, %v556
  %692 = vst.msk [vmem:[%s4 + $0x148] sm:$0xff] %vm650, %v559
  %693 = vst.msk [vmem:[%s4 + $0x150] sm:$0xff] %vm650, %v564
  %694 = vst.msk [vmem:[%s4 + $0x158] sm:$0xff] %vm650, %v567
  %695 = vst.msk [vmem:[%s4 + $0x160] sm:$0xff] %vm650, %v572
  %696 = vst.msk [vmem:[%s4 + $0x168] sm:$0xff] %vm650, %v575
  %697 = vst.msk [vmem:[%s4 + $0x170] sm:$0xff] %vm650, %v580
  %698 = vst.msk [vmem:[%s4 + $0x178] sm:$0xff] %vm650, %v583
  %699 = vst.msk [vmem:[%s4 + $0x180] sm:$0xff] %vm650, %v588
  %700 = vst.msk [vmem:[%s4 + $0x188] sm:$0xff] %vm650, %v591
  %701 = vst.msk [vmem:[%s4 + $0x190] sm:$0xff] %vm650, %v596
  %702 = vst.msk [vmem:[%s4 + $0x198] sm:$0xff] %vm650, %v599
  %703 = vst.msk [vmem:[%s4 + $0x1a0] sm:$0xff] %vm650, %v604
  %704 = vst.msk [vmem:[%s4 + $0x1a8] sm:$0xff] %vm650, %v607
  %705 = vst.msk [vmem:[%s4 + $0x1b0] sm:$0xff] %vm650, %v612
  %706 = vst.msk [vmem:[%s4 + $0x1b8] sm:$0xff] %vm650, %v615
  %707 = vst.msk [vmem:[%s4 + $0x1c0] sm:$0xff] %vm650, %v620
  %708 = vst.msk [vmem:[%s4 + $0x1c8] sm:$0xff] %vm650, %v623
  %709 = vst.msk [vmem:[%s4 + $0x1d0] sm:$0xff] %vm650, %v628
  %710 = vst.msk [vmem:[%s4 + $0x1d8] sm:$0xff] %vm650, %v631
  %711 = vst.msk [vmem:[%s4 + $0x1e0] sm:$0xff] %vm650, %v636
  %712 = vst.msk [vmem:[%s4 + $0x1e8] sm:$0xff] %vm650, %v639
  %713 = vst.msk [vmem:[%s4 + $0x1f0] sm:$0xff] %vm650, %v644
  %714 = vst.msk [vmem:[%s4 + $0x1f8] sm:$0xff] %vm650, %v647
  %v715 = vsel %vm650, %v396, 0.0
  %v716 = vsel %vm650, %v399, 0.0
  %v717 = vadd.f32 %v715, %v716
  %v718 = vsel %vm650, %v404, 0.0
  %v719 = vadd.f32 %v717, %v718
  %v720 = vsel %vm650, %v407, 0.0
  %v721 = vadd.f32 %v719, %v720
  %v722 = vsel %vm650, %v412, 0.0
  %v723 = vadd.f32 %v721, %v722
  %v724 = vsel %vm650, %v415, 0.0
  %v725 = vadd.f32 %v723, %v724
  %v726 = vsel %vm650, %v420, 0.0
  %v727 = vadd.f32 %v725, %v726
  %v728 = vsel %vm650, %v423, 0.0
  %v729 = vadd.f32 %v727, %v728
  %v730 = vsel %vm650, %v428, 0.0
  %v731 = vadd.f32 %v729, %v730
  %v732 = vsel %vm650, %v431, 0.0
  %v733 = vadd.f32 %v731, %v732
  %v734 = vsel %vm650, %v436, 0.0
  %v735 = vadd.f32 %v733, %v734
  %v736 = vsel %vm650, %v439, 0.0
  %v737 = vadd.f32 %v735, %v736
  %v738 = vsel %vm650, %v444, 0.0
  %v739 = vadd.f32 %v737, %v738
  %v740 = vsel %vm650, %v447, 0.0
  %v741 = vadd.f32 %v739, %v740
  %v742 = vsel %vm650, %v452, 0.0
  %v743 = vadd.f32 %v741, %v742
  %v744 = vsel %vm650, %v455, 0.0
  %v745 = vadd.f32 %v743, %v744
  %v746 = vsel %vm650, %v460, 0.0
  %v747 = vadd.f32 %v745, %v746
  %v748 = vsel %vm650, %v463, 0.0
  %v749 = vadd.f32 %v747, %v748
  %v750 = vsel %vm650, %v468, 0.0
  %v751 = vadd.f32 %v749, %v750
  %v752 = vsel %vm650, %v471, 0.0
  %v753 = vadd.f32 %v751, %v752
  %v754 = vsel %vm650, %v476, 0.0
  %v755 = vadd.f32 %v753, %v754
  %v756 = vsel %vm650, %v479, 0.0
  %v757 = vadd.f32 %v755, %v756
  %v758 = vsel %vm650, %v484, 0.0
  %v759 = vadd.f32 %v757, %v758
  %v760 = vsel %vm650, %v487, 0.0
  %v761 = vadd.f32 %v759, %v760
  %v762 = vsel %vm650, %v492, 0.0
  %v763 = vadd.f32 %v761, %v762
  %v764 = vsel %vm650, %v495, 0.0
  %v765 = vadd.f32 %v763, %v764
  %v766 = vsel %vm650, %v500, 0.0
  %v767 = vadd.f32 %v765, %v766
  %v768 = vsel %vm650, %v503, 0.0
  %v769 = vadd.f32 %v767, %v768
  %v770 = vsel %vm650, %v508, 0.0
  %v771 = vadd.f32 %v769, %v770
  %v772 = vsel %vm650, %v511, 0.0
  %v773 = vadd.f32 %v771, %v772
  %v774 = vsel %vm650, %v516, 0.0
  %v775 = vadd.f32 %v773, %v774
  %v776 = vsel %vm650, %v519, 0.0
  %v777 = vadd.f32 %v775, %v776
  %v778 = vsel %vm650, %v524, 0.0
  %v779 = vadd.f32 %v777, %v778
  %v780 = vsel %vm650, %v527, 0.0
  %v781 = vadd.f32 %v779, %v780
  %v782 = vsel %vm650, %v532, 0.0
  %v783 = vadd.f32 %v781, %v782
  %v784 = vsel %vm650, %v535, 0.0
  %v785 = vadd.f32 %v783, %v784
  %v786 = vsel %vm650, %v540, 0.0
  %v787 = vadd.f32 %v785, %v786
  %v788 = vsel %vm650, %v543, 0.0
  %v789 = vadd.f32 %v787, %v788
  %v790 = vsel %vm650, %v548, 0.0
  %v791 = vadd.f32 %v789, %v790
  %v792 = vsel %vm650, %v551, 0.0
  %v793 = vadd.f32 %v791, %v792
  %v794 = vsel %vm650, %v556, 0.0
  %v795 = vadd.f32 %v793, %v794
  %v796 = vsel %vm650, %v559, 0.0
  %v797 = vadd.f32 %v795, %v796
  %v798 = vsel %vm650, %v564, 0.0
  %v799 = vadd.f32 %v797, %v798
  %v800 = vsel %vm650, %v567, 0.0
  %v801 = vadd.f32 %v799, %v800
  %v802 = vsel %vm650, %v572, 0.0
  %v803 = vadd.f32 %v801, %v802
  %v804 = vsel %vm650, %v575, 0.0
  %v805 = vadd.f32 %v803, %v804
  %v806 = vsel %vm650, %v580, 0.0
  %v807 = vadd.f32 %v805, %v806
  %v808 = vsel %vm650, %v583, 0.0
  %v809 = vadd.f32 %v807, %v808
  %v810 = vsel %vm650, %v588, 0.0
  %v811 = vadd.f32 %v809, %v810
  %v812 = vsel %vm650, %v591, 0.0
  %v813 = vadd.f32 %v811, %v812
  %v814 = vsel %vm650, %v596, 0.0
  %v815 = vadd.f32 %v813, %v814
  %v816 = vsel %vm650, %v599, 0.0
  %v817 = vadd.f32 %v815, %v816
  %v818 = vsel %vm650, %v604, 0.0
  %v819 = vadd.f32 %v817, %v818
  %v820 = vsel %vm650, %v607, 0.0
  %v821 = vadd.f32 %v819, %v820
  %v822 = vsel %vm650, %v612, 0.0
  %v823 = vadd.f32 %v821, %v822
  %v824 = vsel %vm650, %v615, 0.0
  %v825 = vadd.f32 %v823, %v824
  %v826 = vsel %vm650, %v620, 0.0
  %v827 = vadd.f32 %v825, %v826
  %v828 = vsel %vm650, %v623, 0.0
  %v829 = vadd.f32 %v827, %v828
  %v830 = vsel %vm650, %v628, 0.0
  %v831 = vadd.f32 %v829, %v830
  %v832 = vsel %vm650, %v631, 0.0
  %v833 = vadd.f32 %v831, %v832
  %v834 = vsel %vm650, %v636, 0.0
  %v835 = vadd.f32 %v833, %v834
  %v836 = vsel %vm650, %v639, 0.0
  %v837 = vadd.f32 %v835, %v836
  %v838 = vsel %vm650, %v644, 0.0
  %v839 = vadd.f32 %v837, %v838
  %v840 = vsel %vm650, %v647, 0.0
  %v841 = vadd.f32 %v839, %v840
  %v842 = vrot.slane %v841, 4
  %v843 = vadd.f32 %v841, %v842
  %v844 = vrot.slane %v843, 2
  %v845 = vadd.f32 %v843, %v844
  %v846 = vrot.slane %v845, 1
  %v847 = vadd.f32 %v845, %v846
  %v848 = vmul.f32 %v396, %v396
  %v849 = vmul.f32 %v399, %v399
  %v850 = vmul.f32 %v404, %v404
  %v851 = vmul.f32 %v407, %v407
  %v852 = vmul.f32 %v412, %v412
  %v853 = vmul.f32 %v415, %v415
  %v854 = vmul.f32 %v420, %v420
  %v855 = vmul.f32 %v423, %v423
  %v856 = vmul.f32 %v428, %v428
  %v857 = vmul.f32 %v431, %v431
  %v858 = vmul.f32 %v436, %v436
  %v859 = vmul.f32 %v439, %v439
  %v860 = vmul.f32 %v444, %v444
  %v861 = vmul.f32 %v447, %v447
  %v862 = vmul.f32 %v452, %v452
  %v863 = vmul.f32 %v455, %v455
  %v864 = vmul.f32 %v460, %v460
  %v865 = vmul.f32 %v463, %v463
  %v866 = vmul.f32 %v468, %v468
  %v867 = vmul.f32 %v471, %v471
  %v868 = vmul.f32 %v476, %v476
  %v869 = vmul.f32 %v479, %v479
  %v870 = vmul.f32 %v484, %v484
  %v871 = vmul.f32 %v487, %v487
  %v872 = vmul.f32 %v492, %v492
  %v873 = vmul.f32 %v495, %v495
  %v874 = vmul.f32 %v500, %v500
  %v875 = vmul.f32 %v503, %v503
  %v876 = vmul.f32 %v508, %v508
  %v877 = vmul.f32 %v511, %v511
  %v878 = vmul.f32 %v516, %v516
  %v879 = vmul.f32 %v519, %v519
  %v880 = vmul.f32 %v524, %v524
  %v881 = vmul.f32 %v527, %v527
  %v882 = vmul.f32 %v532, %v532
  %v883 = vmul.f32 %v535, %v535
  %v884 = vmul.f32 %v540, %v540
  %v885 = vmul.f32 %v543, %v543
  %v886 = vmul.f32 %v548, %v548
  %v887 = vmul.f32 %v551, %v551
  %v888 = vmul.f32 %v556, %v556
  %v889 = vmul.f32 %v559, %v559
  %v890 = vmul.f32 %v564, %v564
  %v891 = vmul.f32 %v567, %v567
  %v892 = vmul.f32 %v572, %v572
  %v893 = vmul.f32 %v575, %v575
  %v894 = vmul.f32 %v580, %v580
  %v895 = vmul.f32 %v583, %v583
  %v896 = vmul.f32 %v588, %v588
  %v897 = vmul.f32 %v591, %v591
  %v898 = vmul.f32 %v596, %v596
  %v899 = vmul.f32 %v599, %v599
  %v900 = vmul.f32 %v604, %v604
  %v901 = vmul.f32 %v607, %v607
  %v902 = vmul.f32 %v612, %v612
  %v903 = vmul.f32 %v615, %v615
  %v904 = vmul.f32 %v620, %v620
  %v905 = vmul.f32 %v623, %v623
  %v906 = vmul.f32 %v628, %v628
  %v907 = vmul.f32 %v631, %v631
  %v908 = vmul.f32 %v636, %v636
  %v909 = vmul.f32 %v639, %v639
  %v910 = vmul.f32 %v644, %v644
  %v911 = vmul.f32 %v647, %v647
  %v912 = vsel %vm650, %v848, 0.0
  %v913 = vsel %vm650, %v849, 0.0
  %v914 = vadd.f32 %v912, %v913
  %v915 = vsel %vm650, %v850, 0.0
  %v916 = vadd.f32 %v914, %v915
  %v917 = vsel %vm650, %v851, 0.0
  %v918 = vadd.f32 %v916, %v917
  %v919 = vsel %vm650, %v852, 0.0
  %v920 = vadd.f32 %v918, %v919
  %v921 = vsel %vm650, %v853, 0.0
  %v922 = vadd.f32 %v920, %v921
  %v923 = vsel %vm650, %v854, 0.0
  %v924 = vadd.f32 %v922, %v923
  %v925 = vsel %vm650, %v855, 0.0
  %v926 = vadd.f32 %v924, %v925
  %v927 = vsel %vm650, %v856, 0.0
  %v928 = vadd.f32 %v926, %v927
  %v929 = vsel %vm650, %v857, 0.0
  %v930 = vadd.f32 %v928, %v929
  %v931 = vsel %vm650, %v858, 0.0
  %v932 = vadd.f32 %v930, %v931
  %v933 = vsel %vm650, %v859, 0.0
  %v934 = vadd.f32 %v932, %v933
  %v935 = vsel %vm650, %v860, 0.0
  %v936 = vadd.f32 %v934, %v935
  %v937 = vsel %vm650, %v861, 0.0
  %v938 = vadd.f32 %v936, %v937
  %v939 = vsel %vm650, %v862, 0.0
  %v940 = vadd.f32 %v938, %v939
  %v941 = vsel %vm650, %v863, 0.0
  %v942 = vadd.f32 %v940, %v941
  %v943 = vsel %vm650, %v864, 0.0
  %v944 = vadd.f32 %v942, %v943
  %v945 = vsel %vm650, %v865, 0.0
  %v946 = vadd.f32 %v944, %v945
  %v947 = vsel %vm650, %v866, 0.0
  %v948 = vadd.f32 %v946, %v947
  %v949 = vsel %vm650, %v867, 0.0
  %v950 = vadd.f32 %v948, %v949
  %v951 = vsel %vm650, %v868, 0.0
  %v952 = vadd.f32 %v950, %v951
  %v953 = vsel %vm650, %v869, 0.0
  %v954 = vadd.f32 %v952, %v953
  %v955 = vsel %vm650, %v870, 0.0
  %v956 = vadd.f32 %v954, %v955
  %v957 = vsel %vm650, %v871, 0.0
  %v958 = vadd.f32 %v956, %v957
  %v959 = vsel %vm650, %v872, 0.0
  %v960 = vadd.f32 %v958, %v959
  %v961 = vsel %vm650, %v873, 0.0
  %v962 = vadd.f32 %v960, %v961
  %v963 = vsel %vm650, %v874, 0.0
  %v964 = vadd.f32 %v962, %v963
  %v965 = vsel %vm650, %v875, 0.0
  %v966 = vadd.f32 %v964, %v965
  %v967 = vsel %vm650, %v876, 0.0
  %v968 = vadd.f32 %v966, %v967
  %v969 = vsel %vm650, %v877, 0.0
  %v970 = vadd.f32 %v968, %v969
  %v971 = vsel %vm650, %v878, 0.0
  %v972 = vadd.f32 %v970, %v971
  %v973 = vsel %vm650, %v879, 0.0
  %v974 = vadd.f32 %v972, %v973
  %v975 = vsel %vm650, %v880, 0.0
  %v976 = vadd.f32 %v974, %v975
  %v977 = vsel %vm650, %v881, 0.0
  %v978 = vadd.f32 %v976, %v977
  %v979 = vsel %vm650, %v882, 0.0
  %v980 = vadd.f32 %v978, %v979
  %v981 = vsel %vm650, %v883, 0.0
  %v982 = vadd.f32 %v980, %v981
  %v983 = vsel %vm650, %v884, 0.0
  %v984 = vadd.f32 %v982, %v983
  %v985 = vsel %vm650, %v885, 0.0
  %v986 = vadd.f32 %v984, %v985
  %v987 = vsel %vm650, %v886, 0.0
  %v988 = vadd.f32 %v986, %v987
  %v989 = vsel %vm650, %v887, 0.0
  %v990 = vadd.f32 %v988, %v989
  %v991 = vsel %vm650, %v888, 0.0
  %v992 = vadd.f32 %v990, %v991
  %v993 = vsel %vm650, %v889, 0.0
  %v994 = vadd.f32 %v992, %v993
  %v995 = vsel %vm650, %v890, 0.0
  %v996 = vadd.f32 %v994, %v995
  %v997 = vsel %vm650, %v891, 0.0
  %v998 = vadd.f32 %v996, %v997
  %v999 = vsel %vm650, %v892, 0.0
  %v1000 = vadd.f32 %v998, %v999
  %v1001 = vsel %vm650, %v893, 0.0
  %v1002 = vadd.f32 %v1000, %v1001
  %v1003 = vsel %vm650, %v894, 0.0
  %v1004 = vadd.f32 %v1002, %v1003
  %v1005 = vsel %vm650, %v895, 0.0
  %v1006 = vadd.f32 %v1004, %v1005
  %v1007 = vsel %vm650, %v896, 0.0
  %v1008 = vadd.f32 %v1006, %v1007
  %v1009 = vsel %vm650, %v897, 0.0
  %v1010 = vadd.f32 %v1008, %v1009
  %v1011 = vsel %vm650, %v898, 0.0
  %v1012 = vadd.f32 %v1010, %v1011
  %v1013 = vsel %vm650, %v899, 0.0
  %v1014 = vadd.f32 %v1012, %v1013
  %v1015 = vsel %vm650, %v900, 0.0
  %v1016 = vadd.f32 %v1014, %v1015
  %v1017 = vsel %vm650, %v901, 0.0
  %v1018 = vadd.f32 %v1016, %v1017
  %v1019 = vsel %vm650, %v902, 0.0
  %v1020 = vadd.f32 %v1018, %v1019
  %v1021 = vsel %vm650, %v903, 0.0
  %v1022 = vadd.f32 %v1020, %v1021
  %v1023 = vsel %vm650, %v904, 0.0
  %v1024 = vadd.f32 %v1022, %v1023
  %v1025 = vsel %vm650, %v905, 0.0
  %v1026 = vadd.f32 %v1024, %v1025
  %v1027 = vsel %vm650, %v906, 0.0
  %v1028 = vadd.f32 %v1026, %v1027
  %v1029 = vsel %vm650, %v907, 0.0
  %v1030 = vadd.f32 %v1028, %v1029
  %v1031 = vsel %vm650, %v908, 0.0
  %v1032 = vadd.f32 %v1030, %v1031
  %v1033 = vsel %vm650, %v909, 0.0
  %v1034 = vadd.f32 %v1032, %v1033
  %v1035 = vsel %vm650, %v910, 0.0
  %v1036 = vadd.f32 %v1034, %v1035
  %v1037 = vsel %vm650, %v911, 0.0
  %v1038 = vadd.f32 %v1036, %v1037
  %v1039 = vrot.slane %v1038, 4
  %v1040 = vadd.f32 %v1038, %v1039
  %v1041 = vrot.slane %v1040, 2
  %v1042 = vadd.f32 %v1040, %v1041
  %v1043 = vrot.slane %v1042, 1
  %v1044 = vadd.f32 %v1042, %v1043
  %1045 = vst.msk [vmem:[%s5] sm:$0xff] %vm650, %v847
  %1046 = vst.msk [vmem:[%s6] sm:$0xff] %vm650, %v1044
  // Predicated region
  $region18: #{conv_bottleneck_forward.8} parent=0 // pred_check
    _
  $region19: #{conv_bottleneck_forward.8} parent=0 // pred_check_branch
    %1048 = sbr.rel (0) target = $region21
  $region20: #{conv_bottleneck_forward.8} parent=0 // pred_region
    _
  $region21: #{conv_bottleneck_forward.8} parent=0 // pred_fallthru
    _
  // Predicated region
  $region22: #{conv_bottleneck_forward.8} parent=0 // pred_check
    _
  $region23: #{conv_bottleneck_forward.8} parent=0 // pred_check_branch
    %1050 = sbr.rel (0) target = $region25
  $region24: #{conv_bottleneck_forward.8} parent=0 // pred_region
    _
  $region25: #{conv_bottleneck_forward.8} parent=0 // pred_fallthru
    _
  // Predicated region
  $region26: #{conv_bottleneck_forward.8} parent=0 // pred_check
    _
  $region27: #{conv_bottleneck_forward.8} parent=0 // pred_check_branch
    %1052 = sbr.rel (0) target = $region29
  $region28: #{conv_bottleneck_forward.8} parent=0 // pred_region
    _
  $region29: #{conv_bottleneck_forward.8} parent=0 // pred_fallthru
    _
  // Predicated region
  $region30: #{conv_bottleneck_forward.8} parent=0 // pred_check
    _
  $region31: #{conv_bottleneck_forward.8} parent=0 // pred_check_branch
    %1054 = sbr.rel (0) target = $region33
  $region32: #{conv_bottleneck_forward.8} parent=0 // pred_region
    _
  $region33: #{conv_bottleneck_forward.8} parent=0 // pred_fallthru
    _
  // Predicated region
  $region34: #{conv_bottleneck_forward.8} parent=0 // pred_check
    _
  $region35: #{conv_bottleneck_forward.8} parent=0 // pred_check_branch
    %1056 = sbr.rel (0) target = $region37
  $region36: #{conv_bottleneck_forward.8} parent=0 // pred_region
    _
  $region37: #{conv_bottleneck_forward.8} parent=0 // pred_fallthru
    _
  // Predicated region
  $region38: #{conv_bottleneck_forward.8} parent=0 // pred_check
    _
  $region39: #{conv_bottleneck_forward.8} parent=0 // pred_check_branch
    %1058 = sbr.rel (0) target = $region41
  $region40: #{conv_bottleneck_forward.8} parent=0 // pred_region
    _
  $region41: #{conv_bottleneck_forward.8} parent=0 // pred_fallthru
    _

// kernel: conv_bottleneck_forward.9
$region0: #{conv_bottleneck_forward.9}
  #allocation0 [shape = 'u32[]', space=smem, size = 0x4, offset = 0x4, fixed_abs, tag = 'smem constant byte address 0x4 - core index']
  #allocation1 [shape = 'u32[144,128]{1,0:T(1,128)}', space=vmem, size = 0x12000, scoped, tag = 'internal scratch']
  %s0 = inlined_call_operand.vmem [shape: f32[512,8], index: 0, kind: input, shape index: {}]
  %s1 = inlined_call_operand.vmem [shape: f32[512,8], index: 1, kind: input, shape index: {}, may-alias: {1,6}]
  %s2 = inlined_call_operand.vmem [shape: f32[1,8], index: 2, kind: input, shape index: {}]
  %s3 = inlined_call_operand.vmem [shape: f32[1,8], index: 3, kind: input, shape index: {}]
  %s4 = inlined_call_operand.vmem [shape: f32[1,8], index: 4, kind: input, shape index: {}]
  %s5 = inlined_call_operand.vmem [shape: f32[1,8], index: 5, kind: input, shape index: {}]
  %s6 = inlined_call_operand.vmem [shape: f32[512,8], index: 6, kind: output, shape index: {}, may-alias: {1,6}]
  %s7 = sld [smem:[#allocation0]]
  $region34: #{conv_bottleneck_forward.9} parent=0
    _
  %s9 = ssub.s32 1, %s7
  %s10 = scalar_select 0, %s9, %s7
  // Predicated region
  $region2: #{conv_bottleneck_forward.9} parent=0 // pred_check
    _
  $region3: #{conv_bottleneck_forward.9} parent=0 // pred_check_branch
    %12 = sbr.rel (0) target = $region5
  $region4: #{conv_bottleneck_forward.9} parent=0 // pred_region
    _
  $region5: #{conv_bottleneck_forward.9} parent=0 // pred_fallthru
    _
  // Predicated region
  $region6: #{conv_bottleneck_forward.9} parent=0 // pred_check
    _
  $region7: #{conv_bottleneck_forward.9} parent=0 // pred_check_branch
    %14 = sbr.rel (0) target = $region9
  $region8: #{conv_bottleneck_forward.9} parent=0 // pred_region
    _
  $region9: #{conv_bottleneck_forward.9} parent=0 // pred_fallthru
    _
  // Predicated region
  $region10: #{conv_bottleneck_forward.9} parent=0 // pred_check
    _
  $region11: #{conv_bottleneck_forward.9} parent=0 // pred_check_branch
    %16 = sbr.rel (0) target = $region13
  $region12: #{conv_bottleneck_forward.9} parent=0 // pred_region
    _
  $region13: #{conv_bottleneck_forward.9} parent=0 // pred_fallthru
    _
  // Predicated region
  $region14: #{conv_bottleneck_forward.9} parent=0 // pred_check
    _
  $region15: #{conv_bottleneck_forward.9} parent=0 // pred_check_branch
    %18 = sbr.rel (0) target = $region17
  $region16: #{conv_bottleneck_forward.9} parent=0 // pred_region
    _
  $region17: #{conv_bottleneck_forward.9} parent=0 // pred_fallthru
    _
  // Predicated region
  $region18: #{conv_bottleneck_forward.9} parent=0 // pred_check
    _
  $region19: #{conv_bottleneck_forward.9} parent=0 // pred_check_branch
    %20 = sbr.rel (0) target = $region21
  $region20: #{conv_bottleneck_forward.9} parent=0 // pred_region
    _
  $region21: #{conv_bottleneck_forward.9} parent=0 // pred_fallthru
    _
  // Predicated region
  $region22: #{conv_bottleneck_forward.9} parent=0 // pred_check
    _
  $region23: #{conv_bottleneck_forward.9} parent=0 // pred_check_branch
    %22 = sbr.rel (0) target = $region25
  $region24: #{conv_bottleneck_forward.9} parent=0 // pred_region
    _
  $region25: #{conv_bottleneck_forward.9} parent=0 // pred_fallthru
    _
  %v23 = vld [vmem:[%s0] sm:$0xff]
  %v24 = vld [vmem:[%s0 + $0x8] sm:$0xff]
  %v25 = vld [vmem:[%s0 + $0x10] sm:$0xff]
  %v26 = vld [vmem:[%s0 + $0x18] sm:$0xff]
  %v27 = vld [vmem:[%s0 + $0x20] sm:$0xff]
  %v28 = vld [vmem:[%s0 + $0x28] sm:$0xff]
  %v29 = vld [vmem:[%s0 + $0x30] sm:$0xff]
  %v30 = vld [vmem:[%s0 + $0x38] sm:$0xff]
  %v31 = vld [vmem:[%s0 + $0x40] sm:$0xff]
  %v32 = vld [vmem:[%s0 + $0x48] sm:$0xff]
  %v33 = vld [vmem:[%s0 + $0x50] sm:$0xff]
  %v34 = vld [vmem:[%s0 + $0x58] sm:$0xff]
  %v35 = vld [vmem:[%s0 + $0x60] sm:$0xff]
  %v36 = vld [vmem:[%s0 + $0x68] sm:$0xff]
  %v37 = vld [vmem:[%s0 + $0x70] sm:$0xff]
  %v38 = vld [vmem:[%s0 + $0x78] sm:$0xff]
  %v39 = vld [vmem:[%s0 + $0x80] sm:$0xff]
  %v40 = vld [vmem:[%s0 + $0x88] sm:$0xff]
  %v41 = vld [vmem:[%s0 + $0x90] sm:$0xff]
  %v42 = vld [vmem:[%s0 + $0x98] sm:$0xff]
  %v43 = vld [vmem:[%s0 + $0xa0] sm:$0xff]
  %v44 = vld [vmem:[%s0 + $0xa8] sm:$0xff]
  %v45 = vld [vmem:[%s0 + $0xb0] sm:$0xff]
  %v46 = vld [vmem:[%s0 + $0xb8] sm:$0xff]
  %v47 = vld [vmem:[%s0 + $0xc0] sm:$0xff]
  %v48 = vld [vmem:[%s0 + $0xc8] sm:$0xff]
  %v49 = vld [vmem:[%s0 + $0xd0] sm:$0xff]
  %v50 = vld [vmem:[%s0 + $0xd8] sm:$0xff]
  %v51 = vld [vmem:[%s0 + $0xe0] sm:$0xff]
  %v52 = vld [vmem:[%s0 + $0xe8] sm:$0xff]
  %v53 = vld [vmem:[%s0 + $0xf0] sm:$0xff]
  %v54 = vld [vmem:[%s0 + $0xf8] sm:$0xff]
  %v55 = vld [vmem:[%s0 + $0x100] sm:$0xff]
  %v56 = vld [vmem:[%s0 + $0x108] sm:$0xff]
  %v57 = vld [vmem:[%s0 + $0x110] sm:$0xff]
  %v58 = vld [vmem:[%s0 + $0x118] sm:$0xff]
  %v59 = vld [vmem:[%s0 + $0x120] sm:$0xff]
  %v60 = vld [vmem:[%s0 + $0x128] sm:$0xff]
  %v61 = vld [vmem:[%s0 + $0x130] sm:$0xff]
  %v62 = vld [vmem:[%s0 + $0x138] sm:$0xff]
  %v63 = vld [vmem:[%s0 + $0x140] sm:$0xff]
  %v64 = vld [vmem:[%s0 + $0x148] sm:$0xff]
  %v65 = vld [vmem:[%s0 + $0x150] sm:$0xff]
  %v66 = vld [vmem:[%s0 + $0x158] sm:$0xff]
  %v67 = vld [vmem:[%s0 + $0x160] sm:$0xff]
  %v68 = vld [vmem:[%s0 + $0x168] sm:$0xff]
  %v69 = vld [vmem:[%s0 + $0x170] sm:$0xff]
  %v70 = vld [vmem:[%s0 + $0x178] sm:$0xff]
  %v71 = vld [vmem:[%s0 + $0x180] sm:$0xff]
  %v72 = vld [vmem:[%s0 + $0x188] sm:$0xff]
  %v73 = vld [vmem:[%s0 + $0x190] sm:$0xff]
  %v74 = vld [vmem:[%s0 + $0x198] sm:$0xff]
  %v75 = vld [vmem:[%s0 + $0x1a0] sm:$0xff]
  %v76 = vld [vmem:[%s0 + $0x1a8] sm:$0xff]
  %v77 = vld [vmem:[%s0 + $0x1b0] sm:$0xff]
  %v78 = vld [vmem:[%s0 + $0x1b8] sm:$0xff]
  %v79 = vld [vmem:[%s0 + $0x1c0] sm:$0xff]
  %v80 = vld [vmem:[%s0 + $0x1c8] sm:$0xff]
  %v81 = vld [vmem:[%s0 + $0x1d0] sm:$0xff]
  %v82 = vld [vmem:[%s0 + $0x1d8] sm:$0xff]
  %v83 = vld [vmem:[%s0 + $0x1e0] sm:$0xff]
  %v84 = vld [vmem:[%s0 + $0x1e8] sm:$0xff]
  %v85 = vld [vmem:[%s0 + $0x1f0] sm:$0xff]
  %v86 = vld [vmem:[%s0 + $0x1f8] sm:$0xff]
  %v87 = vld [vmem:[%s2] sm:$0x1]
  %v89 = vlaneseq
  %v90 = vshrl.u32 %v89, 7
  %v91 = vsub.s32 0, %v90
  %v92 = vrot.slane %v87, %v91
  %v94 = vmul.f32 %v23, %v92
  %v95 = vmul.f32 %v24, %v92
  %v96 = vmul.f32 %v25, %v92
  %v97 = vmul.f32 %v26, %v92
  %v98 = vmul.f32 %v27, %v92
  %v99 = vmul.f32 %v28, %v92
  %v100 = vmul.f32 %v29, %v92
  %v101 = vmul.f32 %v30, %v92
  %v102 = vmul.f32 %v31, %v92
  %v103 = vmul.f32 %v32, %v92
  %v104 = vmul.f32 %v33, %v92
  %v105 = vmul.f32 %v34, %v92
  %v106 = vmul.f32 %v35, %v92
  %v107 = vmul.f32 %v36, %v92
  %v108 = vmul.f32 %v37, %v92
  %v109 = vmul.f32 %v38, %v92
  %v110 = vmul.f32 %v39, %v92
  %v111 = vmul.f32 %v40, %v92
  %v112 = vmul.f32 %v41, %v92
  %v113 = vmul.f32 %v42, %v92
  %v114 = vmul.f32 %v43, %v92
  %v115 = vmul.f32 %v44, %v92
  %v116 = vmul.f32 %v45, %v92
  %v117 = vmul.f32 %v46, %v92
  %v118 = vmul.f32 %v47, %v92
  %v119 = vmul.f32 %v48, %v92
  %v120 = vmul.f32 %v49, %v92
  %v121 = vmul.f32 %v50, %v92
  %v122 = vmul.f32 %v51, %v92
  %v123 = vmul.f32 %v52, %v92
  %v124 = vmul.f32 %v53, %v92
  %v125 = vmul.f32 %v54, %v92
  %v126 = vmul.f32 %v55, %v92
  %v127 = vmul.f32 %v56, %v92
  %v128 = vmul.f32 %v57, %v92
  %v129 = vmul.f32 %v58, %v92
  %v130 = vmul.f32 %v59, %v92
  %v131 = vmul.f32 %v60, %v92
  %v132 = vmul.f32 %v61, %v92
  %v133 = vmul.f32 %v62, %v92
  %v134 = vmul.f32 %v63, %v92
  %v135 = vmul.f32 %v64, %v92
  %v136 = vmul.f32 %v65, %v92
  %v137 = vmul.f32 %v66, %v92
  %v138 = vmul.f32 %v67, %v92
  %v139 = vmul.f32 %v68, %v92
  %v140 = vmul.f32 %v69, %v92
  %v141 = vmul.f32 %v70, %v92
  %v142 = vmul.f32 %v71, %v92
  %v143 = vmul.f32 %v72, %v92
  %v144 = vmul.f32 %v73, %v92
  %v145 = vmul.f32 %v74, %v92
  %v146 = vmul.f32 %v75, %v92
  %v147 = vmul.f32 %v76, %v92
  %v148 = vmul.f32 %v77, %v92
  %v149 = vmul.f32 %v78, %v92
  %v150 = vmul.f32 %v79, %v92
  %v151 = vmul.f32 %v80, %v92
  %v152 = vmul.f32 %v81, %v92
  %v153 = vmul.f32 %v82, %v92
  %v154 = vmul.f32 %v83, %v92
  %v155 = vmul.f32 %v84, %v92
  %v156 = vmul.f32 %v85, %v92
  %v157 = vmul.f32 %v86, %v92
  %v158 = vld [vmem:[%s3] sm:$0x1]
  %v160 = vlaneseq
  %v161 = vshrl.u32 %v160, 7
  %v162 = vsub.s32 0, %v161
  %v163 = vrot.slane %v158, %v162
  %v165 = vadd.f32 %v94, %v163
  %v166 = vadd.f32 %v95, %v163
  %v167 = vadd.f32 %v96, %v163
  %v168 = vadd.f32 %v97, %v163
  %v169 = vadd.f32 %v98, %v163
  %v170 = vadd.f32 %v99, %v163
  %v171 = vadd.f32 %v100, %v163
  %v172 = vadd.f32 %v101, %v163
  %v173 = vadd.f32 %v102, %v163
  %v174 = vadd.f32 %v103, %v163
  %v175 = vadd.f32 %v104, %v163
  %v176 = vadd.f32 %v105, %v163
  %v177 = vadd.f32 %v106, %v163
  %v178 = vadd.f32 %v107, %v163
  %v179 = vadd.f32 %v108, %v163
  %v180 = vadd.f32 %v109, %v163
  %v181 = vadd.f32 %v110, %v163
  %v182 = vadd.f32 %v111, %v163
  %v183 = vadd.f32 %v112, %v163
  %v184 = vadd.f32 %v113, %v163
  %v185 = vadd.f32 %v114, %v163
  %v186 = vadd.f32 %v115, %v163
  %v187 = vadd.f32 %v116, %v163
  %v188 = vadd.f32 %v117, %v163
  %v189 = vadd.f32 %v118, %v163
  %v190 = vadd.f32 %v119, %v163
  %v191 = vadd.f32 %v120, %v163
  %v192 = vadd.f32 %v121, %v163
  %v193 = vadd.f32 %v122, %v163
  %v194 = vadd.f32 %v123, %v163
  %v195 = vadd.f32 %v124, %v163
  %v196 = vadd.f32 %v125, %v163
  %v197 = vadd.f32 %v126, %v163
  %v198 = vadd.f32 %v127, %v163
  %v199 = vadd.f32 %v128, %v163
  %v200 = vadd.f32 %v129, %v163
  %v201 = vadd.f32 %v130, %v163
  %v202 = vadd.f32 %v131, %v163
  %v203 = vadd.f32 %v132, %v163
  %v204 = vadd.f32 %v133, %v163
  %v205 = vadd.f32 %v134, %v163
  %v206 = vadd.f32 %v135, %v163
  %v207 = vadd.f32 %v136, %v163
  %v208 = vadd.f32 %v137, %v163
  %v209 = vadd.f32 %v138, %v163
  %v210 = vadd.f32 %v139, %v163
  %v211 = vadd.f32 %v140, %v163
  %v212 = vadd.f32 %v141, %v163
  %v213 = vadd.f32 %v142, %v163
  %v214 = vadd.f32 %v143, %v163
  %v215 = vadd.f32 %v144, %v163
  %v216 = vadd.f32 %v145, %v163
  %v217 = vadd.f32 %v146, %v163
  %v218 = vadd.f32 %v147, %v163
  %v219 = vadd.f32 %v148, %v163
  %v220 = vadd.f32 %v149, %v163
  %v221 = vadd.f32 %v150, %v163
  %v222 = vadd.f32 %v151, %v163
  %v223 = vadd.f32 %v152, %v163
  %v224 = vadd.f32 %v153, %v163
  %v225 = vadd.f32 %v154, %v163
  %v226 = vadd.f32 %v155, %v163
  %v227 = vadd.f32 %v156, %v163
  %v228 = vadd.f32 %v157, %v163
  %v229 = vld [vmem:[%s1] sm:$0xff]
  %v230 = vld [vmem:[%s1 + $0x8] sm:$0xff]
  %v231 = vld [vmem:[%s1 + $0x10] sm:$0xff]
  %v232 = vld [vmem:[%s1 + $0x18] sm:$0xff]
  %v233 = vld [vmem:[%s1 + $0x20] sm:$0xff]
  %v234 = vld [vmem:[%s1 + $0x28] sm:$0xff]
  %v235 = vld [vmem:[%s1 + $0x30] sm:$0xff]
  %v236 = vld [vmem:[%s1 + $0x38] sm:$0xff]
  %v237 = vld [vmem:[%s1 + $0x40] sm:$0xff]
  %v238 = vld [vmem:[%s1 + $0x48] sm:$0xff]
  %v239 = vld [vmem:[%s1 + $0x50] sm:$0xff]
  %v240 = vld [vmem:[%s1 + $0x58] sm:$0xff]
  %v241 = vld [vmem:[%s1 + $0x60] sm:$0xff]
  %v242 = vld [vmem:[%s1 + $0x68] sm:$0xff]
  %v243 = vld [vmem:[%s1 + $0x70] sm:$0xff]
  %v244 = vld [vmem:[%s1 + $0x78] sm:$0xff]
  %v245 = vld [vmem:[%s1 + $0x80] sm:$0xff]
  %v246 = vld [vmem:[%s1 + $0x88] sm:$0xff]
  %v247 = vld [vmem:[%s1 + $0x90] sm:$0xff]
  %v248 = vld [vmem:[%s1 + $0x98] sm:$0xff]
  %v249 = vld [vmem:[%s1 + $0xa0] sm:$0xff]
  %v250 = vld [vmem:[%s1 + $0xa8] sm:$0xff]
  %v251 = vld [vmem:[%s1 + $0xb0] sm:$0xff]
  %v252 = vld [vmem:[%s1 + $0xb8] sm:$0xff]
  %v253 = vld [vmem:[%s1 + $0xc0] sm:$0xff]
  %v254 = vld [vmem:[%s1 + $0xc8] sm:$0xff]
  %v255 = vld [vmem:[%s1 + $0xd0] sm:$0xff]
  %v256 = vld [vmem:[%s1 + $0xd8] sm:$0xff]
  %v257 = vld [vmem:[%s1 + $0xe0] sm:$0xff]
  %v258 = vld [vmem:[%s1 + $0xe8] sm:$0xff]
  %v259 = vld [vmem:[%s1 + $0xf0] sm:$0xff]
  %v260 = vld [vmem:[%s1 + $0xf8] sm:$0xff]
  %v261 = vld [vmem:[%s1 + $0x100] sm:$0xff]
  %v262 = vld [vmem:[%s1 + $0x108] sm:$0xff]
  %v263 = vld [vmem:[%s1 + $0x110] sm:$0xff]
  %v264 = vld [vmem:[%s1 + $0x118] sm:$0xff]
  %v265 = vld [vmem:[%s1 + $0x120] sm:$0xff]
  %v266 = vld [vmem:[%s1 + $0x128] sm:$0xff]
  %v267 = vld [vmem:[%s1 + $0x130] sm:$0xff]
  %v268 = vld [vmem:[%s1 + $0x138] sm:$0xff]
  %v269 = vld [vmem:[%s1 + $0x140] sm:$0xff]
  %v270 = vld [vmem:[%s1 + $0x148] sm:$0xff]
  %v271 = vld [vmem:[%s1 + $0x150] sm:$0xff]
  %v272 = vld [vmem:[%s1 + $0x158] sm:$0xff]
  %v273 = vld [vmem:[%s1 + $0x160] sm:$0xff]
  %v274 = vld [vmem:[%s1 + $0x168] sm:$0xff]
  %v275 = vld [vmem:[%s1 + $0x170] sm:$0xff]
  %v276 = vld [vmem:[%s1 + $0x178] sm:$0xff]
  %v277 = vld [vmem:[%s1 + $0x180] sm:$0xff]
  %v278 = vld [vmem:[%s1 + $0x188] sm:$0xff]
  %v279 = vld [vmem:[%s1 + $0x190] sm:$0xff]
  %v280 = vld [vmem:[%s1 + $0x198] sm:$0xff]
  %v281 = vld [vmem:[%s1 + $0x1a0] sm:$0xff]
  %v282 = vld [vmem:[%s1 + $0x1a8] sm:$0xff]
  %v283 = vld [vmem:[%s1 + $0x1b0] sm:$0xff]
  %v284 = vld [vmem:[%s1 + $0x1b8] sm:$0xff]
  %v285 = vld [vmem:[%s1 + $0x1c0] sm:$0xff]
  %v286 = vld [vmem:[%s1 + $0x1c8] sm:$0xff]
  %v287 = vld [vmem:[%s1 + $0x1d0] sm:$0xff]
  %v288 = vld [vmem:[%s1 + $0x1d8] sm:$0xff]
  %v289 = vld [vmem:[%s1 + $0x1e0] sm:$0xff]
  %v290 = vld [vmem:[%s1 + $0x1e8] sm:$0xff]
  %v291 = vld [vmem:[%s1 + $0x1f0] sm:$0xff]
  %v292 = vld [vmem:[%s1 + $0x1f8] sm:$0xff]
  %v293 = vld [vmem:[%s4] sm:$0x1]
  %v295 = vlaneseq
  %v296 = vshrl.u32 %v295, 7
  %v297 = vsub.s32 0, %v296
  %v298 = vrot.slane %v293, %v297
  %v300 = vmul.f32 %v229, %v298
  %v301 = vmul.f32 %v230, %v298
  %v302 = vmul.f32 %v231, %v298
  %v303 = vmul.f32 %v232, %v298
  %v304 = vmul.f32 %v233, %v298
  %v305 = vmul.f32 %v234, %v298
  %v306 = vmul.f32 %v235, %v298
  %v307 = vmul.f32 %v236, %v298
  %v308 = vmul.f32 %v237, %v298
  %v309 = vmul.f32 %v238, %v298
  %v310 = vmul.f32 %v239, %v298
  %v311 = vmul.f32 %v240, %v298
  %v312 = vmul.f32 %v241, %v298
  %v313 = vmul.f32 %v242, %v298
  %v314 = vmul.f32 %v243, %v298
  %v315 = vmul.f32 %v244, %v298
  %v316 = vmul.f32 %v245, %v298
  %v317 = vmul.f32 %v246, %v298
  %v318 = vmul.f32 %v247, %v298
  %v319 = vmul.f32 %v248, %v298
  %v320 = vmul.f32 %v249, %v298
  %v321 = vmul.f32 %v250, %v298
  %v322 = vmul.f32 %v251, %v298
  %v323 = vmul.f32 %v252, %v298
  %v324 = vmul.f32 %v253, %v298
  %v325 = vmul.f32 %v254, %v298
  %v326 = vmul.f32 %v255, %v298
  %v327 = vmul.f32 %v256, %v298
  %v328 = vmul.f32 %v257, %v298
  %v329 = vmul.f32 %v258, %v298
  %v330 = vmul.f32 %v259, %v298
  %v331 = vmul.f32 %v260, %v298
  %v332 = vmul.f32 %v261, %v298
  %v333 = vmul.f32 %v262, %v298
  %v334 = vmul.f32 %v263, %v298
  %v335 = vmul.f32 %v264, %v298
  %v336 = vmul.f32 %v265, %v298
  %v337 = vmul.f32 %v266, %v298
  %v338 = vmul.f32 %v267, %v298
  %v339 = vmul.f32 %v268, %v298
  %v340 = vmul.f32 %v269, %v298
  %v341 = vmul.f32 %v270, %v298
  %v342 = vmul.f32 %v271, %v298
  %v343 = vmul.f32 %v272, %v298
  %v344 = vmul.f32 %v273, %v298
  %v345 = vmul.f32 %v274, %v298
  %v346 = vmul.f32 %v275, %v298
  %v347 = vmul.f32 %v276, %v298
  %v348 = vmul.f32 %v277, %v298
  %v349 = vmul.f32 %v278, %v298
  %v350 = vmul.f32 %v279, %v298
  %v351 = vmul.f32 %v280, %v298
  %v352 = vmul.f32 %v281, %v298
  %v353 = vmul.f32 %v282, %v298
  %v354 = vmul.f32 %v283, %v298
  %v355 = vmul.f32 %v284, %v298
  %v356 = vmul.f32 %v285, %v298
  %v357 = vmul.f32 %v286, %v298
  %v358 = vmul.f32 %v287, %v298
  %v359 = vmul.f32 %v288, %v298
  %v360 = vmul.f32 %v289, %v298
  %v361 = vmul.f32 %v290, %v298
  %v362 = vmul.f32 %v291, %v298
  %v363 = vmul.f32 %v292, %v298
  %v364 = vld [vmem:[%s5] sm:$0x1]
  %v366 = vlaneseq
  %v367 = vshrl.u32 %v366, 7
  %v368 = vsub.s32 0, %v367
  %v369 = vrot.slane %v364, %v368
  %v371 = vadd.f32 %v300, %v369
  %v372 = vadd.f32 %v301, %v369
  %v373 = vadd.f32 %v302, %v369
  %v374 = vadd.f32 %v303, %v369
  %v375 = vadd.f32 %v304, %v369
  %v376 = vadd.f32 %v305, %v369
  %v377 = vadd.f32 %v306, %v369
  %v378 = vadd.f32 %v307, %v369
  %v379 = vadd.f32 %v308, %v369
  %v380 = vadd.f32 %v309, %v369
  %v381 = vadd.f32 %v310, %v369
  %v382 = vadd.f32 %v311, %v369
  %v383 = vadd.f32 %v312, %v369
  %v384 = vadd.f32 %v313, %v369
  %v385 = vadd.f32 %v314, %v369
  %v386 = vadd.f32 %v315, %v369
  %v387 = vadd.f32 %v316, %v369
  %v388 = vadd.f32 %v317, %v369
  %v389 = vadd.f32 %v318, %v369
  %v390 = vadd.f32 %v319, %v369
  %v391 = vadd.f32 %v320, %v369
  %v392 = vadd.f32 %v321, %v369
  %v393 = vadd.f32 %v322, %v369
  %v394 = vadd.f32 %v323, %v369
  %v395 = vadd.f32 %v324, %v369
  %v396 = vadd.f32 %v325, %v369
  %v397 = vadd.f32 %v326, %v369
  %v398 = vadd.f32 %v327, %v369
  %v399 = vadd.f32 %v328, %v369
  %v400 = vadd.f32 %v329, %v369
  %v401 = vadd.f32 %v330, %v369
  %v402 = vadd.f32 %v331, %v369
  %v403 = vadd.f32 %v332, %v369
  %v404 = vadd.f32 %v333, %v369
  %v405 = vadd.f32 %v334, %v369
  %v406 = vadd.f32 %v335, %v369
  %v407 = vadd.f32 %v336, %v369
  %v408 = vadd.f32 %v337, %v369
  %v409 = vadd.f32 %v338, %v369
  %v410 = vadd.f32 %v339, %v369
  %v411 = vadd.f32 %v340, %v369
  %v412 = vadd.f32 %v341, %v369
  %v413 = vadd.f32 %v342, %v369
  %v414 = vadd.f32 %v343, %v369
  %v415 = vadd.f32 %v344, %v369
  %v416 = vadd.f32 %v345, %v369
  %v417 = vadd.f32 %v346, %v369
  %v418 = vadd.f32 %v347, %v369
  %v419 = vadd.f32 %v348, %v369
  %v420 = vadd.f32 %v349, %v369
  %v421 = vadd.f32 %v350, %v369
  %v422 = vadd.f32 %v351, %v369
  %v423 = vadd.f32 %v352, %v369
  %v424 = vadd.f32 %v353, %v369
  %v425 = vadd.f32 %v354, %v369
  %v426 = vadd.f32 %v355, %v369
  %v427 = vadd.f32 %v356, %v369
  %v428 = vadd.f32 %v357, %v369
  %v429 = vadd.f32 %v358, %v369
  %v430 = vadd.f32 %v359, %v369
  %v431 = vadd.f32 %v360, %v369
  %v432 = vadd.f32 %v361, %v369
  %v433 = vadd.f32 %v362, %v369
  %v434 = vadd.f32 %v363, %v369
  %v435 = vadd.f32 %v165, %v371
  %v436 = vadd.f32 %v166, %v372
  %v437 = vadd.f32 %v167, %v373
  %v438 = vadd.f32 %v168, %v374
  %v439 = vadd.f32 %v169, %v375
  %v440 = vadd.f32 %v170, %v376
  %v441 = vadd.f32 %v171, %v377
  %v442 = vadd.f32 %v172, %v378
  %v443 = vadd.f32 %v173, %v379
  %v444 = vadd.f32 %v174, %v380
  %v445 = vadd.f32 %v175, %v381
  %v446 = vadd.f32 %v176, %v382
  %v447 = vadd.f32 %v177, %v383
  %v448 = vadd.f32 %v178, %v384
  %v449 = vadd.f32 %v179, %v385
  %v450 = vadd.f32 %v180, %v386
  %v451 = vadd.f32 %v181, %v387
  %v452 = vadd.f32 %v182, %v388
  %v453 = vadd.f32 %v183, %v389
  %v454 = vadd.f32 %v184, %v390
  %v455 = vadd.f32 %v185, %v391
  %v456 = vadd.f32 %v186, %v392
  %v457 = vadd.f32 %v187, %v393
  %v458 = vadd.f32 %v188, %v394
  %v459 = vadd.f32 %v189, %v395
  %v460 = vadd.f32 %v190, %v396
  %v461 = vadd.f32 %v191, %v397
  %v462 = vadd.f32 %v192, %v398
  %v463 = vadd.f32 %v193, %v399
  %v464 = vadd.f32 %v194, %v400
  %v465 = vadd.f32 %v195, %v401
  %v466 = vadd.f32 %v196, %v402
  %v467 = vadd.f32 %v197, %v403
  %v468 = vadd.f32 %v198, %v404
  %v469 = vadd.f32 %v199, %v405
  %v470 = vadd.f32 %v200, %v406
  %v471 = vadd.f32 %v201, %v407
  %v472 = vadd.f32 %v202, %v408
  %v473 = vadd.f32 %v203, %v409
  %v474 = vadd.f32 %v204, %v410
  %v475 = vadd.f32 %v205, %v411
  %v476 = vadd.f32 %v206, %v412
  %v477 = vadd.f32 %v207, %v413
  %v478 = vadd.f32 %v208, %v414
  %v479 = vadd.f32 %v209, %v415
  %v480 = vadd.f32 %v210, %v416
  %v481 = vadd.f32 %v211, %v417
  %v482 = vadd.f32 %v212, %v418
  %v483 = vadd.f32 %v213, %v419
  %v484 = vadd.f32 %v214, %v420
  %v485 = vadd.f32 %v215, %v421
  %v486 = vadd.f32 %v216, %v422
  %v487 = vadd.f32 %v217, %v423
  %v488 = vadd.f32 %v218, %v424
  %v489 = vadd.f32 %v219, %v425
  %v490 = vadd.f32 %v220, %v426
  %v491 = vadd.f32 %v221, %v427
  %v492 = vadd.f32 %v222, %v428
  %v493 = vadd.f32 %v223, %v429
  %v494 = vadd.f32 %v224, %v430
  %v495 = vadd.f32 %v225, %v431
  %v496 = vadd.f32 %v226, %v432
  %v497 = vadd.f32 %v227, %v433
  %v498 = vadd.f32 %v228, %v434
  %v499 = vmax.f32 %v435, 0.0
  %v500 = vmax.f32 %v436, 0.0
  %v501 = vmax.f32 %v437, 0.0
  %v502 = vmax.f32 %v438, 0.0
  %v503 = vmax.f32 %v439, 0.0
  %v504 = vmax.f32 %v440, 0.0
  %v505 = vmax.f32 %v441, 0.0
  %v506 = vmax.f32 %v442, 0.0
  %v507 = vmax.f32 %v443, 0.0
  %v508 = vmax.f32 %v444, 0.0
  %v509 = vmax.f32 %v445, 0.0
  %v510 = vmax.f32 %v446, 0.0
  %v511 = vmax.f32 %v447, 0.0
  %v512 = vmax.f32 %v448, 0.0
  %v513 = vmax.f32 %v449, 0.0
  %v514 = vmax.f32 %v450, 0.0
  %v515 = vmax.f32 %v451, 0.0
  %v516 = vmax.f32 %v452, 0.0
  %v517 = vmax.f32 %v453, 0.0
  %v518 = vmax.f32 %v454, 0.0
  %v519 = vmax.f32 %v455, 0.0
  %v520 = vmax.f32 %v456, 0.0
  %v521 = vmax.f32 %v457, 0.0
  %v522 = vmax.f32 %v458, 0.0
  %v523 = vmax.f32 %v459, 0.0
  %v524 = vmax.f32 %v460, 0.0
  %v525 = vmax.f32 %v461, 0.0
  %v526 = vmax.f32 %v462, 0.0
  %v527 = vmax.f32 %v463, 0.0
  %v528 = vmax.f32 %v464, 0.0
  %v529 = vmax.f32 %v465, 0.0
  %v530 = vmax.f32 %v466, 0.0
  %v531 = vmax.f32 %v467, 0.0
  %v532 = vmax.f32 %v468, 0.0
  %v533 = vmax.f32 %v469, 0.0
  %v534 = vmax.f32 %v470, 0.0
  %v535 = vmax.f32 %v471, 0.0
  %v536 = vmax.f32 %v472, 0.0
  %v537 = vmax.f32 %v473, 0.0
  %v538 = vmax.f32 %v474, 0.0
  %v539 = vmax.f32 %v475, 0.0
  %v540 = vmax.f32 %v476, 0.0
  %v541 = vmax.f32 %v477, 0.0
  %v542 = vmax.f32 %v478, 0.0
  %v543 = vmax.f32 %v479, 0.0
  %v544 = vmax.f32 %v480, 0.0
  %v545 = vmax.f32 %v481, 0.0
  %v546 = vmax.f32 %v482, 0.0
  %v547 = vmax.f32 %v483, 0.0
  %v548 = vmax.f32 %v484, 0.0
  %v549 = vmax.f32 %v485, 0.0
  %v550 = vmax.f32 %v486, 0.0
  %v551 = vmax.f32 %v487, 0.0
  %v552 = vmax.f32 %v488, 0.0
  %v553 = vmax.f32 %v489, 0.0
  %v554 = vmax.f32 %v490, 0.0
  %v555 = vmax.f32 %v491, 0.0
  %v556 = vmax.f32 %v492, 0.0
  %v557 = vmax.f32 %v493, 0.0
  %v558 = vmax.f32 %v494, 0.0
  %v559 = vmax.f32 %v495, 0.0
  %v560 = vmax.f32 %v496, 0.0
  %v561 = vmax.f32 %v497, 0.0
  %v562 = vmax.f32 %v498, 0.0
  %vm563 = vcmask 64512
  %564 = vst.msk [vmem:[%s6] sm:$0xff] %vm563, %v499
  %565 = vst.msk [vmem:[%s6 + $0x8] sm:$0xff] %vm563, %v500
  %566 = vst.msk [vmem:[%s6 + $0x10] sm:$0xff] %vm563, %v501
  %567 = vst.msk [vmem:[%s6 + $0x18] sm:$0xff] %vm563, %v502
  %568 = vst.msk [vmem:[%s6 + $0x20] sm:$0xff] %vm563, %v503
  %569 = vst.msk [vmem:[%s6 + $0x28] sm:$0xff] %vm563, %v504
  %570 = vst.msk [vmem:[%s6 + $0x30] sm:$0xff] %vm563, %v505
  %571 = vst.msk [vmem:[%s6 + $0x38] sm:$0xff] %vm563, %v506
  %572 = vst.msk [vmem:[%s6 + $0x40] sm:$0xff] %vm563, %v507
  %573 = vst.msk [vmem:[%s6 + $0x48] sm:$0xff] %vm563, %v508
  %574 = vst.msk [vmem:[%s6 + $0x50] sm:$0xff] %vm563, %v509
  %575 = vst.msk [vmem:[%s6 + $0x58] sm:$0xff] %vm563, %v510
  %576 = vst.msk [vmem:[%s6 + $0x60] sm:$0xff] %vm563, %v511
  %577 = vst.msk [vmem:[%s6 + $0x68] sm:$0xff] %vm563, %v512
  %578 = vst.msk [vmem:[%s6 + $0x70] sm:$0xff] %vm563, %v513
  %579 = vst.msk [vmem:[%s6 + $0x78] sm:$0xff] %vm563, %v514
  %580 = vst.msk [vmem:[%s6 + $0x80] sm:$0xff] %vm563, %v515
  %581 = vst.msk [vmem:[%s6 + $0x88] sm:$0xff] %vm563, %v516
  %582 = vst.msk [vmem:[%s6 + $0x90] sm:$0xff] %vm563, %v517
  %583 = vst.msk [vmem:[%s6 + $0x98] sm:$0xff] %vm563, %v518
  %584 = vst.msk [vmem:[%s6 + $0xa0] sm:$0xff] %vm563, %v519
  %585 = vst.msk [vmem:[%s6 + $0xa8] sm:$0xff] %vm563, %v520
  %586 = vst.msk [vmem:[%s6 + $0xb0] sm:$0xff] %vm563, %v521
  %587 = vst.msk [vmem:[%s6 + $0xb8] sm:$0xff] %vm563, %v522
  %588 = vst.msk [vmem:[%s6 + $0xc0] sm:$0xff] %vm563, %v523
  %589 = vst.msk [vmem:[%s6 + $0xc8] sm:$0xff] %vm563, %v524
  %590 = vst.msk [vmem:[%s6 + $0xd0] sm:$0xff] %vm563, %v525
  %591 = vst.msk [vmem:[%s6 + $0xd8] sm:$0xff] %vm563, %v526
  %592 = vst.msk [vmem:[%s6 + $0xe0] sm:$0xff] %vm563, %v527
  %593 = vst.msk [vmem:[%s6 + $0xe8] sm:$0xff] %vm563, %v528
  %594 = vst.msk [vmem:[%s6 + $0xf0] sm:$0xff] %vm563, %v529
  %595 = vst.msk [vmem:[%s6 + $0xf8] sm:$0xff] %vm563, %v530
  %596 = vst.msk [vmem:[%s6 + $0x100] sm:$0xff] %vm563, %v531
  %597 = vst.msk [vmem:[%s6 + $0x108] sm:$0xff] %vm563, %v532
  %598 = vst.msk [vmem:[%s6 + $0x110] sm:$0xff] %vm563, %v533
  %599 = vst.msk [vmem:[%s6 + $0x118] sm:$0xff] %vm563, %v534
  %600 = vst.msk [vmem:[%s6 + $0x120] sm:$0xff] %vm563, %v535
  %601 = vst.msk [vmem:[%s6 + $0x128] sm:$0xff] %vm563, %v536
  %602 = vst.msk [vmem:[%s6 + $0x130] sm:$0xff] %vm563, %v537
  %603 = vst.msk [vmem:[%s6 + $0x138] sm:$0xff] %vm563, %v538
  %604 = vst.msk [vmem:[%s6 + $0x140] sm:$0xff] %vm563, %v539
  %605 = vst.msk [vmem:[%s6 + $0x148] sm:$0xff] %vm563, %v540
  %606 = vst.msk [vmem:[%s6 + $0x150] sm:$0xff] %vm563, %v541
  %607 = vst.msk [vmem:[%s6 + $0x158] sm:$0xff] %vm563, %v542
  %608 = vst.msk [vmem:[%s6 + $0x160] sm:$0xff] %vm563, %v543
  %609 = vst.msk [vmem:[%s6 + $0x168] sm:$0xff] %vm563, %v544
  %610 = vst.msk [vmem:[%s6 + $0x170] sm:$0xff] %vm563, %v545
  %611 = vst.msk [vmem:[%s6 + $0x178] sm:$0xff] %vm563, %v546
  %612 = vst.msk [vmem:[%s6 + $0x180] sm:$0xff] %vm563, %v547
  %613 = vst.msk [vmem:[%s6 + $0x188] sm:$0xff] %vm563, %v548
  %614 = vst.msk [vmem:[%s6 + $0x190] sm:$0xff] %vm563, %v549
  %615 = vst.msk [vmem:[%s6 + $0x198] sm:$0xff] %vm563, %v550
  %616 = vst.msk [vmem:[%s6 + $0x1a0] sm:$0xff] %vm563, %v551
  %617 = vst.msk [vmem:[%s6 + $0x1a8] sm:$0xff] %vm563, %v552
  %618 = vst.msk [vmem:[%s6 + $0x1b0] sm:$0xff] %vm563, %v553
  %619 = vst.msk [vmem:[%s6 + $0x1b8] sm:$0xff] %vm563, %v554
  %620 = vst.msk [vmem:[%s6 + $0x1c0] sm:$0xff] %vm563, %v555
  %621 = vst.msk [vmem:[%s6 + $0x1c8] sm:$0xff] %vm563, %v556
  %622 = vst.msk [vmem:[%s6 + $0x1d0] sm:$0xff] %vm563, %v557
  %623 = vst.msk [vmem:[%s6 + $0x1d8] sm:$0xff] %vm563, %v558
  %624 = vst.msk [vmem:[%s6 + $0x1e0] sm:$0xff] %vm563, %v559
  %625 = vst.msk [vmem:[%s6 + $0x1e8] sm:$0xff] %vm563, %v560
  %626 = vst.msk [vmem:[%s6 + $0x1f0] sm:$0xff] %vm563, %v561
  %627 = vst.msk [vmem:[%s6 + $0x1f8] sm:$0xff] %vm563, %v562
  // Predicated region
  $region26: #{conv_bottleneck_forward.9} parent=0 // pred_check
    _
  $region27: #{conv_bottleneck_forward.9} parent=0 // pred_check_branch
    %629 = sbr.rel (0) target = $region29
  $region28: #{conv_bottleneck_forward.9} parent=0 // pred_region
    _
  $region29: #{conv_bottleneck_forward.9} parent=0 // pred_fallthru
    _
  // Predicated region
  $region30: #{conv_bottleneck_forward.9} parent=0 // pred_check
    _
  $region31: #{conv_bottleneck_forward.9} parent=0 // pred_check_branch
    %631 = sbr.rel (0) target = $region33
  $region32: #{conv_bottleneck_forward.9} parent=0 // pred_region
    _
  $region33: #{conv_bottleneck_forward.9} parent=0 // pred_fallthru
    _

// kernel: conv_bottleneck_forward.6
$region0: #{conv_bottleneck_forward.6}
  #allocation0 [shape = 'u32[]', space=smem, size = 0x4, offset = 0x4, fixed_abs, tag = 'smem constant byte address 0x4 - core index']
  #allocation1 [shape = 'u32[144,128]{1,0:T(1,128)}', space=vmem, size = 0x12000, scoped, tag = 'internal scratch']
  #allocation2 [shape = 'bf16[1,18,18,4]{3,2,1,0:T(8,128)(2,1)}', space=vmem, size = 0x1b000, scoped, tag = 'scratch operand']
  #allocation3 [shape = 'f32[16,16,4]{2,1,0:T(8,128)}', space=vmem, size = 0x20000, scoped, tag = 'scratch operand']
  %s0 = inlined_call_operand.vmem [shape: f32[2,16,1,16,4], index: 0, kind: input, shape index: {}]
  %s1 = inlined_call_operand.vmem [shape: bf16[3,3,4,4], index: 1, kind: input, shape index: {}]
  %s2 = inlined_call_operand.vmem [shape: f32[1,4], index: 2, kind: input, shape index: {}]
  %s3 = inlined_call_operand.vmem [shape: f32[1,4], index: 3, kind: input, shape index: {}]
  %s4 = inlined_call_operand.vmem [shape: f32[2,16,16,4], index: 4, kind: output, shape index: {0}]
  %s5 = inlined_call_operand.vmem [shape: f32[2,8,4], index: 5, kind: output, shape index: {1}]
  %s6 = inlined_call_operand.vmem [shape: f32[2,8,4], index: 6, kind: output, shape index: {2}]
  %7 = xla_tuple %s4, %s5, %s6
  %s8 = sld [smem:[#allocation0]]
  $region65: #{conv_bottleneck_forward.6} parent=0
    _
  %s10 = ssub.s32 1, %s8
  %s11 = scalar_select 0, %s10, %s8
  loop: start=0, step=1, limit=4
  $region2: #{conv_bottleneck_forward.6} parent=0 // loop_pre_header
    _
  $region3: #{conv_bottleneck_forward.6} parent=0 // loop_header
    %s13 = sphi 0, %s17
    %p14 = scmp.ge.s32.totalorder %s13, 4
    %s23 = sphi 0, %s25
    %s26 = sphi 0, %s23
    %s27 = sphi 0, %s26
    %s43 = sphi 0, %s27
    %s47 = sphi 0, %s47
    %s49 = sphi 0, %s47
    %s50 = sphi 0, %s49
    %s64 = sphi 0, %s50
    %s68 = sphi 0, %s68
    %s70 = sphi 0, %s68
    %s71 = sphi 0, %s70
    %s85 = sphi 0, %s71
    %s89 = sphi 0, %s89
    %s91 = sphi 0, %s89
    %s92 = sphi 0, %s91
    %s106 = sphi 0, %s92
    %s112 = sphi 0, %s114
    %s115 = sphi 0, %s112
    %s116 = sphi 0, %s115
    %s132 = sphi 0, %s116
    %s138 = sphi 0, %s140
    %s141 = sphi 0, %s138
    %s142 = sphi 0, %s141
    %s158 = sphi 0, %s142
    %s164 = sphi 0, %s166
    %s167 = sphi 0, %s164
    %s168 = sphi 0, %s167
    %s184 = sphi 0, %s168
  $region4: #{conv_bottleneck_forward.6} parent=0 // loop_header_branch
    %16 = sbr.rel (%p14) target = $region8
  $region5: #{conv_bottleneck_forward.6} parent=0 // loop_body
    %s18 = ssub.s32 %s13, 1
    %s19 = ssub.s32 %s13, 2
    %s20 = sadd.s32 %s13, 1
    %s21 = ssub.s32 %s13, %s20
    %p22 = scmp.eq.s32.totalorder %s21, 0
    %s24 = sadd.s32 %s23, 1
    %s25 = scalar_select %p22, %s23, %s24
    %p28 = pneg %p22
    %p29 = scmp.eq.s32.totalorder %s13, 1
    %p30 = por %p28, %p29
    %p31 = scmp.ne.s32.totalorder %s23, %s26
    %p32 = scmp.eq.s32.totalorder %s13, 0
    %p33 = por %p31, %p32
    %p34 = scmp.ne.s32.totalorder %s23, %s26
    %p35 = scmp.eq.s32.totalorder %s18, 1
    %p36 = por %p34, %p35
    %p37 = scmp.ne.s32.totalorder %s26, %s27
    %p38 = scmp.eq.s32.totalorder %s18, 0
    %p39 = por %p37, %p38
    %p40 = scmp.ne.s32.totalorder %s26, %s27
    %p41 = scmp.eq.s32.totalorder %s19, 1
    %p42 = por %p40, %p41
    %p44 = scmp.ne.s32.totalorder %s27, %s43
    %p45 = scmp.eq.s32.totalorder %s19, 0
    %p46 = por %p44, %p45
    %s48 = sadd.s32 %s47, 1
    %p51 = scmp.eq.s32.totalorder %s13, 1
    %p52 = scmp.ne.s32.totalorder %s47, %s49
    %p53 = scmp.eq.s32.totalorder %s13, 0
    %p54 = por %p52, %p53
    %p55 = scmp.ne.s32.totalorder %s47, %s49
    %p56 = scmp.eq.s32.totalorder %s18, 1
    %p57 = por %p55, %p56
    %p58 = scmp.ne.s32.totalorder %s49, %s50
    %p59 = scmp.eq.s32.totalorder %s18, 0
    %p60 = por %p58, %p59
    %p61 = scmp.ne.s32.totalorder %s49, %s50
    %p62 = scmp.eq.s32.totalorder %s19, 1
    %p63 = por %p61, %p62
    %p65 = scmp.ne.s32.totalorder %s50, %s64
    %p66 = scmp.eq.s32.totalorder %s19, 0
    %p67 = por %p65, %p66
    %s69 = sadd.s32 %s68, 1
    %p72 = scmp.eq.s32.totalorder %s13, 1
    %p73 = scmp.ne.s32.totalorder %s68, %s70
    %p74 = scmp.eq.s32.totalorder %s13, 0
    %p75 = por %p73, %p74
    %p76 = scmp.ne.s32.totalorder %s68, %s70
    %p77 = scmp.eq.s32.totalorder %s18, 1
    %p78 = por %p76, %p77
    %p79 = scmp.ne.s32.totalorder %s70, %s71
    %p80 = scmp.eq.s32.totalorder %s18, 0
    %p81 = por %p79, %p80
    %p82 = scmp.ne.s32.totalorder %s70, %s71
    %p83 = scmp.eq.s32.totalorder %s19, 1
    %p84 = por %p82, %p83
    %p86 = scmp.ne.s32.totalorder %s71, %s85
    %p87 = scmp.eq.s32.totalorder %s19, 0
    %p88 = por %p86, %p87
    %s90 = sadd.s32 %s89, 1
    %p93 = scmp.eq.s32.totalorder %s13, 1
    %p94 = scmp.ne.s32.totalorder %s89, %s91
    %p95 = scmp.eq.s32.totalorder %s13, 0
    %p96 = por %p94, %p95
    %p97 = scmp.ne.s32.totalorder %s89, %s91
    %p98 = scmp.eq.s32.totalorder %s18, 1
    %p99 = por %p97, %p98
    %p100 = scmp.ne.s32.totalorder %s91, %s92
    %p101 = scmp.eq.s32.totalorder %s18, 0
    %p102 = por %p100, %p101
    %p103 = scmp.ne.s32.totalorder %s91, %s92
    %p104 = scmp.eq.s32.totalorder %s19, 1
    %p105 = por %p103, %p104
    %p107 = scmp.ne.s32.totalorder %s92, %s106
    %p108 = scmp.eq.s32.totalorder %s19, 0
    %p109 = por %p107, %p108
    %s110 = ssub.s32 %s13, %s20
    %p111 = scmp.eq.s32.totalorder %s110, 0
    %s113 = sadd.s32 %s112, 1
    %s114 = scalar_select %p111, %s112, %s113
    %p117 = pneg %p111
    %p118 = scmp.eq.s32.totalorder %s13, 1
    %p119 = por %p117, %p118
    %p120 = scmp.ne.s32.totalorder %s112, %s115
    %p121 = scmp.eq.s32.totalorder %s13, 0
    %p122 = por %p120, %p121
    %p123 = scmp.ne.s32.totalorder %s112, %s115
    %p124 = scmp.eq.s32.totalorder %s18, 1
    %p125 = por %p123, %p124
    %p126 = scmp.ne.s32.totalorder %s115, %s116
    %p127 = scmp.eq.s32.totalorder %s18, 0
    %p128 = por %p126, %p127
    %p129 = scmp.ne.s32.totalorder %s115, %s116
    %p130 = scmp.eq.s32.totalorder %s19, 1
    %p131 = por %p129, %p130
    %p133 = scmp.ne.s32.totalorder %s116, %s132
    %p134 = scmp.eq.s32.totalorder %s19, 0
    %p135 = por %p133, %p134
    %s136 = ssub.s32 %s13, %s20
    %p137 = scmp.eq.s32.totalorder %s136, 0
    %s139 = sadd.s32 %s138, 1
    %s140 = scalar_select %p137, %s138, %s139
    %p143 = pneg %p137
    %p144 = scmp.eq.s32.totalorder %s13, 1
    %p145 = por %p143, %p144
    %p146 = scmp.ne.s32.totalorder %s138, %s141
    %p147 = scmp.eq.s32.totalorder %s13, 0
    %p148 = por %p146, %p147
    %p149 = scmp.ne.s32.totalorder %s138, %s141
    %p150 = scmp.eq.s32.totalorder %s18, 1
    %p151 = por %p149, %p150
    %p152 = scmp.ne.s32.totalorder %s141, %s142
    %p153 = scmp.eq.s32.totalorder %s18, 0
    %p154 = por %p152, %p153
    %p155 = scmp.ne.s32.totalorder %s141, %s142
    %p156 = scmp.eq.s32.totalorder %s19, 1
    %p157 = por %p155, %p156
    %p159 = scmp.ne.s32.totalorder %s142, %s158
    %p160 = scmp.eq.s32.totalorder %s19, 0
    %p161 = por %p159, %p160
    %s162 = ssub.s32 %s13, %s20
    %p163 = scmp.eq.s32.totalorder %s162, 0
    %s165 = sadd.s32 %s164, 1
    %s166 = scalar_select %p163, %s164, %s165
    %p169 = pneg %p163
    %p170 = scmp.eq.s32.totalorder %s13, 1
    %p171 = por %p169, %p170
    %p172 = scmp.ne.s32.totalorder %s164, %s167
    %p173 = scmp.eq.s32.totalorder %s13, 0
    %p174 = por %p172, %p173
    %p175 = scmp.ne.s32.totalorder %s164, %s167
    %p176 = scmp.eq.s32.totalorder %s18, 1
    %p177 = por %p175, %p176
    %p178 = scmp.ne.s32.totalorder %s167, %s168
    %p179 = scmp.eq.s32.totalorder %s18, 0
    %p180 = por %p178, %p179
    %p181 = scmp.ne.s32.totalorder %s167, %s168
    %p182 = scmp.eq.s32.totalorder %s19, 1
    %p183 = por %p181, %p182
    %p185 = scmp.ne.s32.totalorder %s168, %s184
    %p186 = scmp.eq.s32.totalorder %s19, 0
    %p187 = por %p185, %p186
    %p188 = scmp.le.s32.totalorder 1, %s13
    %p189 = scmp.lt.s32.totalorder %s13, 3
    %p190 = pnand %p188, %p189
    %p191 = pneg %p190
    // Predicated region
    $region9: #{conv_bottleneck_forward.6} parent=5 // pred_check
      _
    $region10: #{conv_bottleneck_forward.6} parent=5 // pred_check_branch
      %193 = sbr.rel (%p190) target = $region12
    $region11: #{conv_bottleneck_forward.6} parent=5 // pred_region
      %s194 = ssub.s32 %s13, 1
      // Predicated region
      $region13: #{conv_bottleneck_forward.6} parent=11 // pred_check
        %p195 = pneg %p60
      $region14: #{conv_bottleneck_forward.6} parent=11 // pred_check_branch
        %197 = sbr.rel (%p195) target = $region16
      $region15: #{conv_bottleneck_forward.6} parent=11 // pred_region
        _
      $region16: #{conv_bottleneck_forward.6} parent=11 // pred_fallthru
        _
      // Predicated region
      $region17: #{conv_bottleneck_forward.6} parent=11 // pred_check
        %p198 = pneg %p81
      $region18: #{conv_bottleneck_forward.6} parent=11 // pred_check_branch
        %200 = sbr.rel (%p198) target = $region20
      $region19: #{conv_bottleneck_forward.6} parent=11 // pred_region
        _
      $region20: #{conv_bottleneck_forward.6} parent=11 // pred_fallthru
        _
      // Predicated region
      $region21: #{conv_bottleneck_forward.6} parent=11 // pred_check
        %p201 = pneg %p102
      $region22: #{conv_bottleneck_forward.6} parent=11 // pred_check_branch
        %203 = sbr.rel (%p201) target = $region24
      $region23: #{conv_bottleneck_forward.6} parent=11 // pred_region
        _
      $region24: #{conv_bottleneck_forward.6} parent=11 // pred_fallthru
        _
    $region12: #{conv_bottleneck_forward.6} parent=5 // pred_fallthru
      _
    %p204 = scmp.lt.s32.totalorder %s13, 2
    // Predicated region
    $region25: #{conv_bottleneck_forward.6} parent=5 // pred_check
      %p205 = pneg %p204
    $region26: #{conv_bottleneck_forward.6} parent=5 // pred_check_branch
      %207 = sbr.rel (%p205) target = $region28
    $region27: #{conv_bottleneck_forward.6} parent=5 // pred_region
      // Predicated region
      $region29: #{conv_bottleneck_forward.6} parent=27 // pred_check
        %p208 = pneg %p33
      $region30: #{conv_bottleneck_forward.6} parent=27 // pred_check_branch
        %210 = sbr.rel (%p208) target = $region32
      $region31: #{conv_bottleneck_forward.6} parent=27 // pred_region
        %p211 = scmp.lt.s32.totalorder %s13, 1
        %s212 = scalar_select %p211, %s13, 1
        %s213 = smul.addr %s212, 32
        %s214 = smul.addr %s213, 8
        %s215 = scalar_lea.vmem %s0, %s214
      $region32: #{conv_bottleneck_forward.6} parent=27 // pred_fallthru
        _
    $region28: #{conv_bottleneck_forward.6} parent=5 // pred_fallthru
      _
    %p216 = scmp.le.s32.totalorder 1, %s13
    %p217 = scmp.lt.s32.totalorder %s13, 3
    %p218 = pnand %p216, %p217
    %p219 = pneg %p218
    // Predicated region
    $region33: #{conv_bottleneck_forward.6} parent=5 // pred_check
      _
    $region34: #{conv_bottleneck_forward.6} parent=5 // pred_check_branch
      %221 = sbr.rel (%p218) target = $region36
    $region35: #{conv_bottleneck_forward.6} parent=5 // pred_region
      %s222 = ssub.s32 %s13, 1
      %p223 = scmp.lt.s32.totalorder %s18, 1
      %s224 = scalar_select %p223, %s18, 1
      %s225 = smul.addr %s224, 32
      %s226 = smul.addr %s225, 8
      %s227 = scalar_lea.vmem %s0, %s226
      %p228 = pneg %p39
      %p229 = pneg %p36
      %p230 = pneg %p60
      %p231 = pneg %p57
      %p232 = pneg %p81
      %p233 = pneg %p78
      %p234 = pneg %p102
      %p235 = pneg %p99
      %p236 = pneg %p128
      %p237 = pneg %p125
      %p238 = scmp.lt.s32.totalorder %s18, 1
      %s239 = scalar_select %p238, %s18, 1
      %s240 = smul.addr %s239, 32
      %s241 = smul.addr %s240, 8
      %s242 = scalar_lea.vmem %s4, %s241
      %p243 = pneg %p154
      %p244 = pneg %p151
      %p245 = scmp.lt.s32.totalorder %s18, 1
      %s246 = scalar_select %p245, %s18, 1
      %s247 = smul.addr %s246, 8
      %s248 = scalar_lea.vmem %s5, %s247
      %p249 = pneg %p180
      %p250 = pneg %p177
      %p251 = scmp.lt.s32.totalorder %s18, 1
      %s252 = scalar_select %p251, %s18, 1
      %s253 = smul.addr %s252, 8
      %s254 = scalar_lea.vmem %s6, %s253
      %p255 = scmp.lt.s32.totalorder %s18, 1
      %s256 = scalar_select %p255, %s18, 1
      %s257 = smul.addr %s256, 32
      %s258 = smul.addr %s257, 8
      %s259 = scalar_lea.vmem %s0, %s258
      %p260 = scmp.lt.s32.totalorder %s18, 1
      %s261 = scalar_select %p260, %s18, 1
      %s262 = smul.addr %s261, 32
      %s263 = smul.addr %s262, 8
      %s264 = scalar_lea.vmem %s4, %s263
      %p265 = scmp.lt.s32.totalorder %s18, 1
      %s266 = scalar_select %p265, %s18, 1
      %s267 = smul.addr %s266, 8
      %s268 = scalar_lea.vmem %s5, %s267
      %p269 = scmp.lt.s32.totalorder %s18, 1
      %s270 = scalar_select %p269, %s18, 1
      %s271 = smul.addr %s270, 8
      %s272 = scalar_lea.vmem %s6, %s271
      %v274 = vld [vmem:[%s259] sm:$0xff]
      %v275 = vld [vmem:[%s259 + $0x8] sm:$0xff]
      %v276 = vld [vmem:[%s259 + $0x10] sm:$0xff]
      %v277 = vld [vmem:[%s259 + $0x18] sm:$0xff]
      %v278 = vld [vmem:[%s259 + $0x20] sm:$0xff]
      %v279 = vld [vmem:[%s259 + $0x28] sm:$0xff]
      %v280 = vld [vmem:[%s259 + $0x30] sm:$0xff]
      %v281 = vld [vmem:[%s259 + $0x38] sm:$0xff]
      %v282 = vld [vmem:[%s259 + $0x40] sm:$0xff]
      %v283 = vld [vmem:[%s259 + $0x48] sm:$0xff]
      %v284 = vld [vmem:[%s259 + $0x50] sm:$0xff]
      %v285 = vld [vmem:[%s259 + $0x58] sm:$0xff]
      %v286 = vld [vmem:[%s259 + $0x60] sm:$0xff]
      %v287 = vld [vmem:[%s259 + $0x68] sm:$0xff]
      %v288 = vld [vmem:[%s259 + $0x70] sm:$0xff]
      %v289 = vld [vmem:[%s259 + $0x78] sm:$0xff]
      %v290 = vld [vmem:[%s259 + $0x80] sm:$0xff]
      %v291 = vld [vmem:[%s259 + $0x88] sm:$0xff]
      %v292 = vld [vmem:[%s259 + $0x90] sm:$0xff]
      %v293 = vld [vmem:[%s259 + $0x98] sm:$0xff]
      %v294 = vld [vmem:[%s259 + $0xa0] sm:$0xff]
      %v295 = vld [vmem:[%s259 + $0xa8] sm:$0xff]
      %v296 = vld [vmem:[%s259 + $0xb0] sm:$0xff]
      %v297 = vld [vmem:[%s259 + $0xb8] sm:$0xff]
      %v298 = vld [vmem:[%s259 + $0xc0] sm:$0xff]
      %v299 = vld [vmem:[%s259 + $0xc8] sm:$0xff]
      %v300 = vld [vmem:[%s259 + $0xd0] sm:$0xff]
      %v301 = vld [vmem:[%s259 + $0xd8] sm:$0xff]
      %v302 = vld [vmem:[%s259 + $0xe0] sm:$0xff]
      %v303 = vld [vmem:[%s259 + $0xe8] sm:$0xff]
      %v304 = vld [vmem:[%s259 + $0xf0] sm:$0xff]
      %v305 = vld [vmem:[%s259 + $0xf8] sm:$0xff]
      %v306 = vld [vmem:[%s2] sm:$0x1]
      %v308 = vlaneseq
      %v309 = vshrl.u32 %v308, 7
      %v310 = vsub.s32 0, %v309
      %v311 = vrot.slane %v306, %v310
      %v313 = vmul.f32 %v274, %v311
      %v314 = vmul.f32 %v275, %v311
      %v315 = vmul.f32 %v276, %v311
      %v316 = vmul.f32 %v277, %v311
      %v317 = vmul.f32 %v278, %v311
      %v318 = vmul.f32 %v279, %v311
      %v319 = vmul.f32 %v280, %v311
      %v320 = vmul.f32 %v281, %v311
      %v321 = vmul.f32 %v282, %v311
      %v322 = vmul.f32 %v283, %v311
      %v323 = vmul.f32 %v284, %v311
      %v324 = vmul.f32 %v285, %v311
      %v325 = vmul.f32 %v286, %v311
      %v326 = vmul.f32 %v287, %v311
      %v327 = vmul.f32 %v288, %v311
      %v328 = vmul.f32 %v289, %v311
      %v329 = vmul.f32 %v290, %v311
      %v330 = vmul.f32 %v291, %v311
      %v331 = vmul.f32 %v292, %v311
      %v332 = vmul.f32 %v293, %v311
      %v333 = vmul.f32 %v294, %v311
      %v334 = vmul.f32 %v295, %v311
      %v335 = vmul.f32 %v296, %v311
      %v336 = vmul.f32 %v297, %v311
      %v337 = vmul.f32 %v298, %v311
      %v338 = vmul.f32 %v299, %v311
      %v339 = vmul.f32 %v300, %v311
      %v340 = vmul.f32 %v301, %v311
      %v341 = vmul.f32 %v302, %v311
      %v342 = vmul.f32 %v303, %v311
      %v343 = vmul.f32 %v304, %v311
      %v344 = vmul.f32 %v305, %v311
      %v345 = vld [vmem:[%s3] sm:$0x1]
      %v347 = vlaneseq
      %v348 = vshrl.u32 %v347, 7
      %v349 = vsub.s32 0, %v348
      %v350 = vrot.slane %v345, %v349
      %v352 = vadd.f32 %v313, %v350
      %v353 = vadd.f32 %v314, %v350
      %v354 = vadd.f32 %v315, %v350
      %v355 = vadd.f32 %v316, %v350
      %v356 = vadd.f32 %v317, %v350
      %v357 = vadd.f32 %v318, %v350
      %v358 = vadd.f32 %v319, %v350
      %v359 = vadd.f32 %v320, %v350
      %v360 = vadd.f32 %v321, %v350
      %v361 = vadd.f32 %v322, %v350
      %v362 = vadd.f32 %v323, %v350
      %v363 = vadd.f32 %v324, %v350
      %v364 = vadd.f32 %v325, %v350
      %v365 = vadd.f32 %v326, %v350
      %v366 = vadd.f32 %v327, %v350
      %v367 = vadd.f32 %v328, %v350
      %v368 = vadd.f32 %v329, %v350
      %v369 = vadd.f32 %v330, %v350
      %v370 = vadd.f32 %v331, %v350
      %v371 = vadd.f32 %v332, %v350
      %v372 = vadd.f32 %v333, %v350
      %v373 = vadd.f32 %v334, %v350
      %v374 = vadd.f32 %v335, %v350
      %v375 = vadd.f32 %v336, %v350
      %v376 = vadd.f32 %v337, %v350
      %v377 = vadd.f32 %v338, %v350
      %v378 = vadd.f32 %v339, %v350
      %v379 = vadd.f32 %v340, %v350
      %v380 = vadd.f32 %v341, %v350
      %v381 = vadd.f32 %v342, %v350
      %v382 = vadd.f32 %v343, %v350
      %v383 = vadd.f32 %v344, %v350
      %v384 = vmax.f32 %v352, 0.0
      %v385 = vmax.f32 %v353, 0.0
      %v386 = vmax.f32 %v354, 0.0
      %v387 = vmax.f32 %v355, 0.0
      %v388 = vmax.f32 %v356, 0.0
      %v389 = vmax.f32 %v357, 0.0
      %v390 = vmax.f32 %v358, 0.0
      %v391 = vmax.f32 %v359, 0.0
      %v392 = vmax.f32 %v360, 0.0
      %v393 = vmax.f32 %v361, 0.0
      %v394 = vmax.f32 %v362, 0.0
      %v395 = vmax.f32 %v363, 0.0
      %v396 = vmax.f32 %v364, 0.0
      %v397 = vmax.f32 %v365, 0.0
      %v398 = vmax.f32 %v366, 0.0
      %v399 = vmax.f32 %v367, 0.0
      %v400 = vmax.f32 %v368, 0.0
      %v401 = vmax.f32 %v369, 0.0
      %v402 = vmax.f32 %v370, 0.0
      %v403 = vmax.f32 %v371, 0.0
      %v404 = vmax.f32 %v372, 0.0
      %v405 = vmax.f32 %v373, 0.0
      %v406 = vmax.f32 %v374, 0.0
      %v407 = vmax.f32 %v375, 0.0
      %v408 = vmax.f32 %v376, 0.0
      %v409 = vmax.f32 %v377, 0.0
      %v410 = vmax.f32 %v378, 0.0
      %v411 = vmax.f32 %v379, 0.0
      %v412 = vmax.f32 %v380, 0.0
      %v413 = vmax.f32 %v381, 0.0
      %v414 = vmax.f32 %v382, 0.0
      %v415 = vmax.f32 %v383, 0.0
      %vm416 = vcmask 27648
      %417 = vst.msk [vmem:[#allocation2] sm:$0xf] %vm416, 0
      %418 = vst.msk [vmem:[#allocation2 + $0x4] sm:$0xf] %vm416, 0
      %vm419 = vcmask 24576
      %420 = vst.msk [vmem:[#allocation2 + $0x8] sm:$0x1] %vm419, 0
      %421 = vst.msk [vmem:[#allocation2 + $0xc] sm:$0xf] %vm416, 0
      %422 = vst.msk [vmem:[#allocation2 + $0x10] sm:$0xf] %vm416, 0
      %423 = vst.msk [vmem:[#allocation2 + $0x14] sm:$0x1] %vm419, 0
      %424 = vst.msk [vmem:[#allocation2 + $0x18] sm:$0xf] %vm416, 0
      %425 = vst.msk [vmem:[#allocation2 + $0x1c] sm:$0xf] %vm416, 0
      %426 = vst.msk [vmem:[#allocation2 + $0x20] sm:$0x1] %vm419, 0
      %427 = vst.msk [vmem:[#allocation2 + $0x24] sm:$0xf] %vm416, 0
      %428 = vst.msk [vmem:[#allocation2 + $0x28] sm:$0xf] %vm416, 0
      %429 = vst.msk [vmem:[#allocation2 + $0x2c] sm:$0x1] %vm419, 0
      %430 = vst.msk [vmem:[#allocation2 + $0x30] sm:$0xf] %vm416, 0
      %431 = vst.msk [vmem:[#allocation2 + $0x34] sm:$0xf] %vm416, 0
      %432 = vst.msk [vmem:[#allocation2 + $0x38] sm:$0x1] %vm419, 0
      %433 = vst.msk [vmem:[#allocation2 + $0x3c] sm:$0xf] %vm416, 0
      %434 = vst.msk [vmem:[#allocation2 + $0x40] sm:$0xf] %vm416, 0
      %435 = vst.msk [vmem:[#allocation2 + $0x44] sm:$0x1] %vm419, 0
      %436 = vst.msk [vmem:[#allocation2 + $0x48] sm:$0xf] %vm416, 0
      %437 = vst.msk [vmem:[#allocation2 + $0x4c] sm:$0xf] %vm416, 0
      %438 = vst.msk [vmem:[#allocation2 + $0x50] sm:$0x1] %vm419, 0
      %439 = vst.msk [vmem:[#allocation2 + $0x54] sm:$0xf] %vm416, 0
      %440 = vst.msk [vmem:[#allocation2 + $0x58] sm:$0xf] %vm416, 0
      %441 = vst.msk [vmem:[#allocation2 + $0x5c] sm:$0x1] %vm419, 0
      %442 = vst.msk [vmem:[#allocation2 + $0x60] sm:$0xf] %vm416, 0
      %443 = vst.msk [vmem:[#allocation2 + $0x64] sm:$0xf] %vm416, 0
      %444 = vst.msk [vmem:[#allocation2 + $0x68] sm:$0x1] %vm419, 0
      %445 = vst.msk [vmem:[#allocation2 + $0x6c] sm:$0xf] %vm416, 0
      %446 = vst.msk [vmem:[#allocation2 + $0x70] sm:$0xf] %vm416, 0
      %447 = vst.msk [vmem:[#allocation2 + $0x74] sm:$0x1] %vm419, 0
      %448 = vst.msk [vmem:[#allocation2 + $0x78] sm:$0xf] %vm416, 0
      %449 = vst.msk [vmem:[#allocation2 + $0x7c] sm:$0xf] %vm416, 0
      %450 = vst.msk [vmem:[#allocation2 + $0x80] sm:$0x1] %vm419, 0
      %451 = vst.msk [vmem:[#allocation2 + $0x84] sm:$0xf] %vm416, 0
      %452 = vst.msk [vmem:[#allocation2 + $0x88] sm:$0xf] %vm416, 0
      %453 = vst.msk [vmem:[#allocation2 + $0x8c] sm:$0x1] %vm419, 0
      %454 = vst.msk [vmem:[#allocation2 + $0x90] sm:$0xf] %vm416, 0
      %455 = vst.msk [vmem:[#allocation2 + $0x94] sm:$0xf] %vm416, 0
      %456 = vst.msk [vmem:[#allocation2 + $0x98] sm:$0x1] %vm419, 0
      %457 = vst.msk [vmem:[#allocation2 + $0x9c] sm:$0xf] %vm416, 0
      %458 = vst.msk [vmem:[#allocation2 + $0xa0] sm:$0xf] %vm416, 0
      %459 = vst.msk [vmem:[#allocation2 + $0xa4] sm:$0x1] %vm419, 0
      %460 = vst.msk [vmem:[#allocation2 + $0xa8] sm:$0xf] %vm416, 0
      %461 = vst.msk [vmem:[#allocation2 + $0xac] sm:$0xf] %vm416, 0
      %462 = vst.msk [vmem:[#allocation2 + $0xb0] sm:$0x1] %vm419, 0
      %463 = vst.msk [vmem:[#allocation2 + $0xb4] sm:$0xf] %vm416, 0
      %464 = vst.msk [vmem:[#allocation2 + $0xb8] sm:$0xf] %vm416, 0
      %465 = vst.msk [vmem:[#allocation2 + $0xbc] sm:$0x1] %vm419, 0
      %466 = vst.msk [vmem:[#allocation2 + $0xc0] sm:$0xf] %vm416, 0
      %467 = vst.msk [vmem:[#allocation2 + $0xc4] sm:$0xf] %vm416, 0
      %468 = vst.msk [vmem:[#allocation2 + $0xc8] sm:$0x1] %vm419, 0
      %469 = vst.msk [vmem:[#allocation2 + $0xcc] sm:$0xf] %vm416, 0
      %470 = vst.msk [vmem:[#allocation2 + $0xd0] sm:$0xf] %vm416, 0
      %471 = vst.msk [vmem:[#allocation2 + $0xd4] sm:$0x1] %vm419, 0
      %v472 = vpack.c.bf16 %v385, %v384
      %v473 = vpack.c.bf16 %v387, %v386
      %v474 = vpack.c.bf16 %v389, %v388
      %v475 = vpack.c.bf16 %v391, %v390
      %v476 = vpack.c.bf16 %v393, %v392
      %v477 = vpack.c.bf16 %v395, %v394
      %v478 = vpack.c.bf16 %v397, %v396
      %v479 = vpack.c.bf16 %v399, %v398
      %v480 = vpack.c.bf16 %v401, %v400
      %v481 = vpack.c.bf16 %v403, %v402
      %v482 = vpack.c.bf16 %v405, %v404
      %v483 = vpack.c.bf16 %v407, %v406
      %v484 = vpack.c.bf16 %v409, %v408
      %v485 = vpack.c.bf16 %v411, %v410
      %v486 = vpack.c.bf16 %v413, %v412
      %v487 = vpack.c.bf16 %v415, %v414
      %v504 = vunpack.c.l.b16 %v472
      %v505 = vunpack.c.h.b16 %v472
      %v506 = vunpack.c.l.b16 %v473
      %v507 = vunpack.c.h.b16 %v473
      %v508 = vunpack.c.l.b16 %v474
      %v509 = vunpack.c.h.b16 %v474
      %v510 = vunpack.c.l.b16 %v475
      %v511 = vunpack.c.h.b16 %v475
      %v512 = vunpack.c.l.b16 %v476
      %v513 = vunpack.c.h.b16 %v476
      %v514 = vunpack.c.l.b16 %v477
      %v515 = vunpack.c.h.b16 %v477
      %v516 = vunpack.c.l.b16 %v478
      %v517 = vunpack.c.h.b16 %v478
      %v518 = vunpack.c.l.b16 %v479
      %v519 = vunpack.c.h.b16 %v479
      %v520 = vunpack.c.l.b16 %v480
      %v521 = vunpack.c.h.b16 %v480
      %v522 = vunpack.c.l.b16 %v481
      %v523 = vunpack.c.h.b16 %v481
      %v524 = vunpack.c.l.b16 %v482
      %v525 = vunpack.c.h.b16 %v482
      %v526 = vunpack.c.l.b16 %v483
      %v527 = vunpack.c.h.b16 %v483
      %v528 = vunpack.c.l.b16 %v484
      %v529 = vunpack.c.h.b16 %v484
      %v530 = vunpack.c.l.b16 %v485
      %v531 = vunpack.c.h.b16 %v485
      %v532 = vunpack.c.l.b16 %v486
      %v533 = vunpack.c.h.b16 %v486
      %v534 = vunpack.c.l.b16 %v487
      %v535 = vunpack.c.h.b16 %v487
      %v536 = vpack.c.b16 %v504, %v504
      %v537 = vpack.c.b16 %v505, %v505
      %v538 = vpack.c.b16 %v506, %v506
      %v539 = vpack.c.b16 %v507, %v507
      %v540 = vpack.c.b16 %v508, %v508
      %v541 = vpack.c.b16 %v509, %v509
      %v542 = vpack.c.b16 %v510, %v510
      %v543 = vpack.c.b16 %v511, %v511
      %v544 = vpack.c.b16 %v512, %v512
      %v545 = vpack.c.b16 %v513, %v513
      %v546 = vpack.c.b16 %v514, %v514
      %v547 = vpack.c.b16 %v515, %v515
      %v548 = vpack.c.b16 %v516, %v516
      %v549 = vpack.c.b16 %v517, %v517
      %v550 = vpack.c.b16 %v518, %v518
      %v551 = vpack.c.b16 %v519, %v519
      %v552 = vpack.c.b16 %v520, %v520
      %v553 = vpack.c.b16 %v521, %v521
      %v554 = vpack.c.b16 %v522, %v522
      %v555 = vpack.c.b16 %v523, %v523
      %v556 = vpack.c.b16 %v524, %v524
      %v557 = vpack.c.b16 %v525, %v525
      %v558 = vpack.c.b16 %v526, %v526
      %v559 = vpack.c.b16 %v527, %v527
      %v560 = vpack.c.b16 %v528, %v528
      %v561 = vpack.c.b16 %v529, %v529
      %v562 = vpack.c.b16 %v530, %v530
      %v563 = vpack.c.b16 %v531, %v531
      %v564 = vpack.c.b16 %v532, %v532
      %v565 = vpack.c.b16 %v533, %v533
      %v566 = vpack.c.b16 %v534, %v534
      %v567 = vpack.c.b16 %v535, %v535
      %vm568 = vsmask.f32 256
      %vm569 = vsmask.f32 4368
      %vm570 = vmor %vm568, %vm569
      %v572 = vshrl.u32 %v536, 16
      %v574 = vrot.slane %v572, 7
      %v575 = vshll.u32 %v536, 16
      %v577 = vor.u32 %v574, %v575
      %v578 = vrot.slane %v574, 4
      %v580 = vshrl.u32 %v537, 16
      %v582 = vrot.slane %v580, 7
      %v583 = vshll.u32 %v537, 16
      %v585 = vor.u32 %v582, %v583
      %v586 = vsel %vm570, %v578, %v585
      %v587 = vrot.slane %v582, 4
      %v589 = vshrl.u32 %v538, 16
      %v591 = vrot.slane %v589, 7
      %v592 = vshll.u32 %v538, 16
      %v594 = vor.u32 %v591, %v592
      %v595 = vrot.slane %v591, 4
      %v597 = vshrl.u32 %v539, 16
      %v599 = vrot.slane %v597, 7
      %v600 = vshll.u32 %v539, 16
      %v602 = vor.u32 %v599, %v600
      %v603 = vsel %vm570, %v595, %v602
      %v604 = vrot.slane %v599, 4
      %v606 = vshrl.u32 %v540, 16
      %v608 = vrot.slane %v606, 7
      %v609 = vshll.u32 %v540, 16
      %v611 = vor.u32 %v608, %v609
      %v612 = vrot.slane %v608, 4
      %v614 = vshrl.u32 %v541, 16
      %v616 = vrot.slane %v614, 7
      %v617 = vshll.u32 %v541, 16
      %v619 = vor.u32 %v616, %v617
      %v620 = vsel %vm570, %v612, %v619
      %v621 = vrot.slane %v616, 4
      %v623 = vshrl.u32 %v542, 16
      %v625 = vrot.slane %v623, 7
      %v626 = vshll.u32 %v542, 16
      %v628 = vor.u32 %v625, %v626
      %v629 = vrot.slane %v625, 4
      %v631 = vshrl.u32 %v543, 16
      %v633 = vrot.slane %v631, 7
      %v634 = vshll.u32 %v543, 16
      %v636 = vor.u32 %v633, %v634
      %v637 = vsel %vm570, %v629, %v636
      %v638 = vrot.slane %v633, 4
      %v640 = vshrl.u32 %v544, 16
      %v642 = vrot.slane %v640, 7
      %v643 = vshll.u32 %v544, 16
      %v645 = vor.u32 %v642, %v643
      %v646 = vrot.slane %v642, 4
      %v648 = vshrl.u32 %v545, 16
      %v650 = vrot.slane %v648, 7
      %v651 = vshll.u32 %v545, 16
      %v653 = vor.u32 %v650, %v651
      %v654 = vsel %vm570, %v646, %v653
      %v655 = vrot.slane %v650, 4
      %v657 = vshrl.u32 %v546, 16
      %v659 = vrot.slane %v657, 7
      %v660 = vshll.u32 %v546, 16
      %v662 = vor.u32 %v659, %v660
      %v663 = vrot.slane %v659, 4
      %v665 = vshrl.u32 %v547, 16
      %v667 = vrot.slane %v665, 7
      %v668 = vshll.u32 %v547, 16
      %v670 = vor.u32 %v667, %v668
      %v671 = vsel %vm570, %v663, %v670
      %v672 = vrot.slane %v667, 4
      %v674 = vshrl.u32 %v548, 16
      %v676 = vrot.slane %v674, 7
      %v677 = vshll.u32 %v548, 16
      %v679 = vor.u32 %v676, %v677
      %v680 = vrot.slane %v676, 4
      %v682 = vshrl.u32 %v549, 16
      %v684 = vrot.slane %v682, 7
      %v685 = vshll.u32 %v549, 16
      %v687 = vor.u32 %v684, %v685
      %v688 = vsel %vm570, %v680, %v687
      %v689 = vrot.slane %v684, 4
      %v691 = vshrl.u32 %v550, 16
      %v693 = vrot.slane %v691, 7
      %v694 = vshll.u32 %v550, 16
      %v696 = vor.u32 %v693, %v694
      %v697 = vrot.slane %v693, 4
      %v699 = vshrl.u32 %v551, 16
      %v701 = vrot.slane %v699, 7
      %v702 = vshll.u32 %v551, 16
      %v704 = vor.u32 %v701, %v702
      %v705 = vsel %vm570, %v697, %v704
      %v706 = vrot.slane %v701, 4
      %v708 = vshrl.u32 %v552, 16
      %v710 = vrot.slane %v708, 7
      %v711 = vshll.u32 %v552, 16
      %v713 = vor.u32 %v710, %v711
      %v714 = vrot.slane %v710, 4
      %v716 = vshrl.u32 %v553, 16
      %v718 = vrot.slane %v716, 7
      %v719 = vshll.u32 %v553, 16
      %v721 = vor.u32 %v718, %v719
      %v722 = vsel %vm570, %v714, %v721
      %v723 = vrot.slane %v718, 4
      %v725 = vshrl.u32 %v554, 16
      %v727 = vrot.slane %v725, 7
      %v728 = vshll.u32 %v554, 16
      %v730 = vor.u32 %v727, %v728
      %v731 = vrot.slane %v727, 4
      %v733 = vshrl.u32 %v555, 16
      %v735 = vrot.slane %v733, 7
      %v736 = vshll.u32 %v555, 16
      %v738 = vor.u32 %v735, %v736
      %v739 = vsel %vm570, %v731, %v738
      %v740 = vrot.slane %v735, 4
      %v742 = vshrl.u32 %v556, 16
      %v744 = vrot.slane %v742, 7
      %v745 = vshll.u32 %v556, 16
      %v747 = vor.u32 %v744, %v745
      %v748 = vrot.slane %v744, 4
      %v750 = vshrl.u32 %v557, 16
      %v752 = vrot.slane %v750, 7
      %v753 = vshll.u32 %v557, 16
      %v755 = vor.u32 %v752, %v753
      %v756 = vsel %vm570, %v748, %v755
      %v757 = vrot.slane %v752, 4
      %v759 = vshrl.u32 %v558, 16
      %v761 = vrot.slane %v759, 7
      %v762 = vshll.u32 %v558, 16
      %v764 = vor.u32 %v761, %v762
      %v765 = vrot.slane %v761, 4
      %v767 = vshrl.u32 %v559, 16
      %v769 = vrot.slane %v767, 7
      %v770 = vshll.u32 %v559, 16
      %v772 = vor.u32 %v769, %v770
      %v773 = vsel %vm570, %v765, %v772
      %v774 = vrot.slane %v769, 4
      %v776 = vshrl.u32 %v560, 16
      %v778 = vrot.slane %v776, 7
      %v779 = vshll.u32 %v560, 16
      %v781 = vor.u32 %v778, %v779
      %v782 = vrot.slane %v778, 4
      %v784 = vshrl.u32 %v561, 16
      %v786 = vrot.slane %v784, 7
      %v787 = vshll.u32 %v561, 16
      %v789 = vor.u32 %v786, %v787
      %v790 = vsel %vm570, %v782, %v789
      %v791 = vrot.slane %v786, 4
      %v793 = vshrl.u32 %v562, 16
      %v795 = vrot.slane %v793, 7
      %v796 = vshll.u32 %v562, 16
      %v798 = vor.u32 %v795, %v796
      %v799 = vrot.slane %v795, 4
      %v801 = vshrl.u32 %v563, 16
      %v803 = vrot.slane %v801, 7
      %v804 = vshll.u32 %v563, 16
      %v806 = vor.u32 %v803, %v804
      %v807 = vsel %vm570, %v799, %v806
      %v808 = vrot.slane %v803, 4
      %v810 = vshrl.u32 %v564, 16
      %v812 = vrot.slane %v810, 7
      %v813 = vshll.u32 %v564, 16
      %v815 = vor.u32 %v812, %v813
      %v816 = vrot.slane %v812, 4
      %v818 = vshrl.u32 %v565, 16
      %v820 = vrot.slane %v818, 7
      %v821 = vshll.u32 %v565, 16
      %v823 = vor.u32 %v820, %v821
      %v824 = vsel %vm570, %v816, %v823
      %v825 = vrot.slane %v820, 4
      %v827 = vshrl.u32 %v566, 16
      %v829 = vrot.slane %v827, 7
      %v830 = vshll.u32 %v566, 16
      %v832 = vor.u32 %v829, %v830
      %v833 = vrot.slane %v829, 4
      %v835 = vshrl.u32 %v567, 16
      %v837 = vrot.slane %v835, 7
      %v838 = vshll.u32 %v567, 16
      %v840 = vor.u32 %v837, %v838
      %v841 = vsel %vm570, %v833, %v840
      %v842 = vrot.slane %v837, 4
      %s891 = scalar_lea.vmem [#allocation2], 12
      %vm892 = vcmask 27648
      %vm893 = vsmask.f32 7938
      %vm894 = vmand %vm892, %vm893
      %v895 = vld [vmem:[%s891] sm:$0xf]
      %v896 = vsel %vm894, %v577, %v895
      %897 = vst [vmem:[%s891] sm:$0xf] %v896
      %898 = vst.msk [vmem:[%s891 + $0x4] sm:$0xf] %vm416, %v586
      %vm899 = vcmask 24576
      %vm900 = vmand %vm899, %vm568
      %v901 = vld [vmem:[%s891 + $0x8] sm:$0x1]
      %v902 = vsel %vm900, %v587, %v901
      %903 = vst [vmem:[%s891 + $0x8] sm:$0x1] %v902
      %v904 = vld [vmem:[%s891 + $0xc] sm:$0xf]
      %v905 = vsel %vm894, %v594, %v904
      %906 = vst [vmem:[%s891 + $0xc] sm:$0xf] %v905
      %907 = vst.msk [vmem:[%s891 + $0x10] sm:$0xf] %vm416, %v603
      %v908 = vld [vmem:[%s891 + $0x14] sm:$0x1]
      %v909 = vsel %vm900, %v604, %v908
      %910 = vst [vmem:[%s891 + $0x14] sm:$0x1] %v909
      %v911 = vld [vmem:[%s891 + $0x18] sm:$0xf]
      %v912 = vsel %vm894, %v611, %v911
      %913 = vst [vmem:[%s891 + $0x18] sm:$0xf] %v912
      %914 = vst.msk [vmem:[%s891 + $0x1c] sm:$0xf] %vm416, %v620
      %v915 = vld [vmem:[%s891 + $0x20] sm:$0x1]
      %v916 = vsel %vm900, %v621, %v915
      %917 = vst [vmem:[%s891 + $0x20] sm:$0x1] %v916
      %v918 = vld [vmem:[%s891 + $0x24] sm:$0xf]
      %v919 = vsel %vm894, %v628, %v918
      %920 = vst [vmem:[%s891 + $0x24] sm:$0xf] %v919
      %921 = vst.msk [vmem:[%s891 + $0x28] sm:$0xf] %vm416, %v637
      %v922 = vld [vmem:[%s891 + $0x2c] sm:$0x1]
      %v923 = vsel %vm900, %v638, %v922
      %924 = vst [vmem:[%s891 + $0x2c] sm:$0x1] %v923
      %v925 = vld [vmem:[%s891 + $0x30] sm:$0xf]
      %v926 = vsel %vm894, %v645, %v925
      %927 = vst [vmem:[%s891 + $0x30] sm:$0xf] %v926
      %928 = vst.msk [vmem:[%s891 + $0x34] sm:$0xf] %vm416, %v654
      %v929 = vld [vmem:[%s891 + $0x38] sm:$0x1]
      %v930 = vsel %vm900, %v655, %v929
      %931 = vst [vmem:[%s891 + $0x38] sm:$0x1] %v930
      %v932 = vld [vmem:[%s891 + $0x3c] sm:$0xf]
      %v933 = vsel %vm894, %v662, %v932
      %934 = vst [vmem:[%s891 + $0x3c] sm:$0xf] %v933
      %935 = vst.msk [vmem:[%s891 + $0x40] sm:$0xf] %vm416, %v671
      %v936 = vld [vmem:[%s891 + $0x44] sm:$0x1]
      %v937 = vsel %vm900, %v672, %v936
      %938 = vst [vmem:[%s891 + $0x44] sm:$0x1] %v937
      %v939 = vld [vmem:[%s891 + $0x48] sm:$0xf]
      %v940 = vsel %vm894, %v679, %v939
      %941 = vst [vmem:[%s891 + $0x48] sm:$0xf] %v940
      %942 = vst.msk [vmem:[%s891 + $0x4c] sm:$0xf] %vm416, %v688
      %v943 = vld [vmem:[%s891 + $0x50] sm:$0x1]
      %v944 = vsel %vm900, %v689, %v943
      %945 = vst [vmem:[%s891 + $0x50] sm:$0x1] %v944
      %v946 = vld [vmem:[%s891 + $0x54] sm:$0xf]
      %v947 = vsel %vm894, %v696, %v946
      %948 = vst [vmem:[%s891 + $0x54] sm:$0xf] %v947
      %949 = vst.msk [vmem:[%s891 + $0x58] sm:$0xf] %vm416, %v705
      %v950 = vld [vmem:[%s891 + $0x5c] sm:$0x1]
      %v951 = vsel %vm900, %v706, %v950
      %952 = vst [vmem:[%s891 + $0x5c] sm:$0x1] %v951
      %v953 = vld [vmem:[%s891 + $0x60] sm:$0xf]
      %v954 = vsel %vm894, %v713, %v953
      %955 = vst [vmem:[%s891 + $0x60] sm:$0xf] %v954
      %956 = vst.msk [vmem:[%s891 + $0x64] sm:$0xf] %vm416, %v722
      %v957 = vld [vmem:[%s891 + $0x68] sm:$0x1]
      %v958 = vsel %vm900, %v723, %v957
      %959 = vst [vmem:[%s891 + $0x68] sm:$0x1] %v958
      %v960 = vld [vmem:[%s891 + $0x6c] sm:$0xf]
      %v961 = vsel %vm894, %v730, %v960
      %962 = vst [vmem:[%s891 + $0x6c] sm:$0xf] %v961
      %963 = vst.msk [vmem:[%s891 + $0x70] sm:$0xf] %vm416, %v739
      %v964 = vld [vmem:[%s891 + $0x74] sm:$0x1]
      %v965 = vsel %vm900, %v740, %v964
      %966 = vst [vmem:[%s891 + $0x74] sm:$0x1] %v965
      %v967 = vld [vmem:[%s891 + $0x78] sm:$0xf]
      %v968 = vsel %vm894, %v747, %v967
      %969 = vst [vmem:[%s891 + $0x78] sm:$0xf] %v968
      %970 = vst.msk [vmem:[%s891 + $0x7c] sm:$0xf] %vm416, %v756
      %v971 = vld [vmem:[%s891 + $0x80] sm:$0x1]
      %v972 = vsel %vm900, %v757, %v971
      %973 = vst [vmem:[%s891 + $0x80] sm:$0x1] %v972
      %v974 = vld [vmem:[%s891 + $0x84] sm:$0xf]
      %v975 = vsel %vm894, %v764, %v974
      %976 = vst [vmem:[%s891 + $0x84] sm:$0xf] %v975
      %977 = vst.msk [vmem:[%s891 + $0x88] sm:$0xf] %vm416, %v773
      %v978 = vld [vmem:[%s891 + $0x8c] sm:$0x1]
      %v979 = vsel %vm900, %v774, %v978
      %980 = vst [vmem:[%s891 + $0x8c] sm:$0x1] %v979
      %v981 = vld [vmem:[%s891 + $0x90] sm:$0xf]
      %v982 = vsel %vm894, %v781, %v981
      %983 = vst [vmem:[%s891 + $0x90] sm:$0xf] %v982
      %984 = vst.msk [vmem:[%s891 + $0x94] sm:$0xf] %vm416, %v790
      %v985 = vld [vmem:[%s891 + $0x98] sm:$0x1]
      %v986 = vsel %vm900, %v791, %v985
      %987 = vst [vmem:[%s891 + $0x98] sm:$0x1] %v986
      %v988 = vld [vmem:[%s891 + $0x9c] sm:$0xf]
      %v989 = vsel %vm894, %v798, %v988
      %990 = vst [vmem:[%s891 + $0x9c] sm:$0xf] %v989
      %991 = vst.msk [vmem:[%s891 + $0xa0] sm:$0xf] %vm416, %v807
      %v992 = vld [vmem:[%s891 + $0xa4] sm:$0x1]
      %v993 = vsel %vm900, %v808, %v992
      %994 = vst [vmem:[%s891 + $0xa4] sm:$0x1] %v993
      %v995 = vld [vmem:[%s891 + $0xa8] sm:$0xf]
      %v996 = vsel %vm894, %v815, %v995
      %997 = vst [vmem:[%s891 + $0xa8] sm:$0xf] %v996
      %998 = vst.msk [vmem:[%s891 + $0xac] sm:$0xf] %vm416, %v824
      %v999 = vld [vmem:[%s891 + $0xb0] sm:$0x1]
      %v1000 = vsel %vm900, %v825, %v999
      %1001 = vst [vmem:[%s891 + $0xb0] sm:$0x1] %v1000
      %v1002 = vld [vmem:[%s891 + $0xb4] sm:$0xf]
      %v1003 = vsel %vm894, %v832, %v1002
      %1004 = vst [vmem:[%s891 + $0xb4] sm:$0xf] %v1003
      %1005 = vst.msk [vmem:[%s891 + $0xb8] sm:$0xf] %vm416, %v841
      %v1006 = vld [vmem:[%s891 + $0xbc] sm:$0x1]
      %v1007 = vsel %vm900, %v842, %v1006
      %1008 = vst [vmem:[%s891 + $0xbc] sm:$0x1] %v1007
      %vm1009 = vcmask 31744
      %1010 = vst.msk [vmem:[#allocation3] sm:$0xff] %vm1009, 0.0
      %1011 = vst.msk [vmem:[#allocation3 + $0x8] sm:$0xff] %vm1009, 0.0
      %1012 = vst.msk [vmem:[#allocation3 + $0x10] sm:$0xff] %vm1009, 0.0
      %1013 = vst.msk [vmem:[#allocation3 + $0x18] sm:$0xff] %vm1009, 0.0
      %1014 = vst.msk [vmem:[#allocation3 + $0x20] sm:$0xff] %vm1009, 0.0
      %1015 = vst.msk [vmem:[#allocation3 + $0x28] sm:$0xff] %vm1009, 0.0
      %1016 = vst.msk [vmem:[#allocation3 + $0x30] sm:$0xff] %vm1009, 0.0
      %1017 = vst.msk [vmem:[#allocation3 + $0x38] sm:$0xff] %vm1009, 0.0
      %1018 = vst.msk [vmem:[#allocation3 + $0x40] sm:$0xff] %vm1009, 0.0
      %1019 = vst.msk [vmem:[#allocation3 + $0x48] sm:$0xff] %vm1009, 0.0
      %1020 = vst.msk [vmem:[#allocation3 + $0x50] sm:$0xff] %vm1009, 0.0
      %1021 = vst.msk [vmem:[#allocation3 + $0x58] sm:$0xff] %vm1009, 0.0
      %1022 = vst.msk [vmem:[#allocation3 + $0x60] sm:$0xff] %vm1009, 0.0
      %1023 = vst.msk [vmem:[#allocation3 + $0x68] sm:$0xff] %vm1009, 0.0
      %1024 = vst.msk [vmem:[#allocation3 + $0x70] sm:$0xff] %vm1009, 0.0
      %1025 = vst.msk [vmem:[#allocation3 + $0x78] sm:$0xff] %vm1009, 0.0
      %1026 = vst.msk [vmem:[#allocation3 + $0x80] sm:$0xff] %vm1009, 0.0
      %1027 = vst.msk [vmem:[#allocation3 + $0x88] sm:$0xff] %vm1009, 0.0
      %1028 = vst.msk [vmem:[#allocation3 + $0x90] sm:$0xff] %vm1009, 0.0
      %1029 = vst.msk [vmem:[#allocation3 + $0x98] sm:$0xff] %vm1009, 0.0
      %1030 = vst.msk [vmem:[#allocation3 + $0xa0] sm:$0xff] %vm1009, 0.0
      %1031 = vst.msk [vmem:[#allocation3 + $0xa8] sm:$0xff] %vm1009, 0.0
      %1032 = vst.msk [vmem:[#allocation3 + $0xb0] sm:$0xff] %vm1009, 0.0
      %1033 = vst.msk [vmem:[#allocation3 + $0xb8] sm:$0xff] %vm1009, 0.0
      %1034 = vst.msk [vmem:[#allocation3 + $0xc0] sm:$0xff] %vm1009, 0.0
      %1035 = vst.msk [vmem:[#allocation3 + $0xc8] sm:$0xff] %vm1009, 0.0
      %1036 = vst.msk [vmem:[#allocation3 + $0xd0] sm:$0xff] %vm1009, 0.0
      %1037 = vst.msk [vmem:[#allocation3 + $0xd8] sm:$0xff] %vm1009, 0.0
      %1038 = vst.msk [vmem:[#allocation3 + $0xe0] sm:$0xff] %vm1009, 0.0
      %1039 = vst.msk [vmem:[#allocation3 + $0xe8] sm:$0xff] %vm1009, 0.0
      %1040 = vst.msk [vmem:[#allocation3 + $0xf0] sm:$0xff] %vm1009, 0.0
      %1041 = vst.msk [vmem:[#allocation3 + $0xf8] sm:$0xff] %vm1009, 0.0
      %v1042 = vld [vmem:[#allocation2] sm:$0xf]
      %v1043 = vld [vmem:[#allocation2 + $0x4] sm:$0xf]
      %v1044 = vld [vmem:[#allocation2 + $0xc] sm:$0xf]
      %v1045 = vld [vmem:[#allocation2 + $0x10] sm:$0xf]
      %v1046 = vld [vmem:[#allocation2 + $0x18] sm:$0xf]
      %v1047 = vld [vmem:[#allocation2 + $0x1c] sm:$0xf]
      %v1048 = vld [vmem:[#allocation2 + $0x24] sm:$0xf]
      %v1049 = vld [vmem:[#allocation2 + $0x28] sm:$0xf]
      %v1050 = vld [vmem:[#allocation2 + $0x30] sm:$0xf]
      %v1051 = vld [vmem:[#allocation2 + $0x34] sm:$0xf]
      %v1052 = vld [vmem:[#allocation2 + $0x3c] sm:$0xf]
      %v1053 = vld [vmem:[#allocation2 + $0x40] sm:$0xf]
      %v1054 = vld [vmem:[#allocation2 + $0x48] sm:$0xf]
      %v1055 = vld [vmem:[#allocation2 + $0x4c] sm:$0xf]
      %v1056 = vld [vmem:[#allocation2 + $0x54] sm:$0xf]
      %v1057 = vld [vmem:[#allocation2 + $0x58] sm:$0xf]
      %v1058 = vld [vmem:[#allocation2 + $0x60] sm:$0xf]
      %v1059 = vld [vmem:[#allocation2 + $0x64] sm:$0xf]
      %v1060 = vld [vmem:[#allocation2 + $0x6c] sm:$0xf]
      %v1061 = vld [vmem:[#allocation2 + $0x70] sm:$0xf]
      %v1062 = vld [vmem:[#allocation2 + $0x78] sm:$0xf]
      %v1063 = vld [vmem:[#allocation2 + $0x7c] sm:$0xf]
      %v1064 = vld [vmem:[#allocation2 + $0x84] sm:$0xf]
      %v1065 = vld [vmem:[#allocation2 + $0x88] sm:$0xf]
      %v1066 = vld [vmem:[#allocation2 + $0x90] sm:$0xf]
      %v1067 = vld [vmem:[#allocation2 + $0x94] sm:$0xf]
      %v1068 = vld [vmem:[#allocation2 + $0x9c] sm:$0xf]
      %v1069 = vld [vmem:[#allocation2 + $0xa0] sm:$0xf]
      %v1070 = vld [vmem:[#allocation2 + $0xa8] sm:$0xf]
      %v1071 = vld [vmem:[#allocation2 + $0xac] sm:$0xf]
      %v1072 = vld [vmem:[#allocation2 + $0xb4] sm:$0xf]
      %v1073 = vld [vmem:[#allocation2 + $0xb8] sm:$0xf]
      %v1074 = vld [vmem:[#allocation2 + $0xc0] sm:$0xf]
      %v1075 = vld [vmem:[#allocation2 + $0xc4] sm:$0xf]
      %v1076 = vld [vmem:[#allocation2 + $0xcc] sm:$0xf]
      %v1077 = vld [vmem:[#allocation2 + $0xd0] sm:$0xf]
      %v1078 = vld [vmem:[#allocation3] sm:$0xff]
      %v1079 = vld [vmem:[#allocation3 + $0x8] sm:$0xff]
      %v1080 = vld [vmem:[#allocation3 + $0x10] sm:$0xff]
      %v1081 = vld [vmem:[#allocation3 + $0x18] sm:$0xff]
      %v1082 = vld [vmem:[#allocation3 + $0x20] sm:$0xff]
      %v1083 = vld [vmem:[#allocation3 + $0x28] sm:$0xff]
      %v1084 = vld [vmem:[#allocation3 + $0x30] sm:$0xff]
      %v1085 = vld [vmem:[#allocation3 + $0x38] sm:$0xff]
      %v1086 = vld [vmem:[#allocation3 + $0x40] sm:$0xff]
      %v1087 = vld [vmem:[#allocation3 + $0x48] sm:$0xff]
      %v1088 = vld [vmem:[#allocation3 + $0x50] sm:$0xff]
      %v1089 = vld [vmem:[#allocation3 + $0x58] sm:$0xff]
      %v1090 = vld [vmem:[#allocation3 + $0x60] sm:$0xff]
      %v1091 = vld [vmem:[#allocation3 + $0x68] sm:$0xff]
      %v1092 = vld [vmem:[#allocation3 + $0x70] sm:$0xff]
      %v1093 = vld [vmem:[#allocation3 + $0x78] sm:$0xff]
      %v1094 = vld [vmem:[#allocation3 + $0x80] sm:$0xff]
      %v1095 = vld [vmem:[#allocation3 + $0x88] sm:$0xff]
      %v1096 = vld [vmem:[#allocation3 + $0x90] sm:$0xff]
      %v1097 = vld [vmem:[#allocation3 + $0x98] sm:$0xff]
      %v1098 = vld [vmem:[#allocation3 + $0xa0] sm:$0xff]
      %v1099 = vld [vmem:[#allocation3 + $0xa8] sm:$0xff]
      %v1100 = vld [vmem:[#allocation3 + $0xb0] sm:$0xff]
      %v1101 = vld [vmem:[#allocation3 + $0xb8] sm:$0xff]
      %v1102 = vld [vmem:[#allocation3 + $0xc0] sm:$0xff]
      %v1103 = vld [vmem:[#allocation3 + $0xc8] sm:$0xff]
      %v1104 = vld [vmem:[#allocation3 + $0xd0] sm:$0xff]
      %v1105 = vld [vmem:[#allocation3 + $0xd8] sm:$0xff]
      %v1106 = vld [vmem:[#allocation3 + $0xe0] sm:$0xff]
      %v1107 = vld [vmem:[#allocation3 + $0xe8] sm:$0xff]
      %v1108 = vld [vmem:[#allocation3 + $0xf0] sm:$0xff]
      %v1109 = vld [vmem:[#allocation3 + $0xf8] sm:$0xff]
      %v1110 = vld [vmem:[%s1] sm:$0x3]
      %v1143 = vunpack.c.l.b16 %v1042
      %v1144 = vunpack.c.l.b16 %v1043
      %v1145 = vunpack.c.l.b16 %v1044
      %v1146 = vunpack.c.l.b16 %v1045
      %v1147 = vunpack.c.l.b16 %v1046
      %v1148 = vunpack.c.l.b16 %v1047
      %v1149 = vunpack.c.l.b16 %v1048
      %v1150 = vunpack.c.l.b16 %v1049
      %v1151 = vunpack.c.l.b16 %v1050
      %v1152 = vunpack.c.l.b16 %v1051
      %v1153 = vunpack.c.l.b16 %v1052
      %v1154 = vunpack.c.l.b16 %v1053
      %v1155 = vunpack.c.l.b16 %v1054
      %v1156 = vunpack.c.l.b16 %v1055
      %v1157 = vunpack.c.l.b16 %v1056
      %v1158 = vunpack.c.l.b16 %v1057
      %v1159 = vunpack.c.l.b16 %v1058
      %v1160 = vunpack.c.l.b16 %v1059
      %v1161 = vunpack.c.l.b16 %v1060
      %v1162 = vunpack.c.l.b16 %v1061
      %v1163 = vunpack.c.l.b16 %v1062
      %v1164 = vunpack.c.l.b16 %v1063
      %v1165 = vunpack.c.l.b16 %v1064
      %v1166 = vunpack.c.l.b16 %v1065
      %v1167 = vunpack.c.l.b16 %v1066
      %v1168 = vunpack.c.l.b16 %v1067
      %v1169 = vunpack.c.l.b16 %v1068
      %v1170 = vunpack.c.l.b16 %v1069
      %v1171 = vunpack.c.l.b16 %v1070
      %v1172 = vunpack.c.l.b16 %v1071
      %v1173 = vunpack.c.l.b16 %v1072
      %v1174 = vunpack.c.l.b16 %v1073
      %v1175 = vpack.c.b16 %v1144, %v1143
      %v1176 = vpack.c.b16 %v1146, %v1145
      %v1177 = vpack.c.b16 %v1148, %v1147
      %v1178 = vpack.c.b16 %v1150, %v1149
      %v1179 = vpack.c.b16 %v1152, %v1151
      %v1180 = vpack.c.b16 %v1154, %v1153
      %v1181 = vpack.c.b16 %v1156, %v1155
      %v1182 = vpack.c.b16 %v1158, %v1157
      %v1183 = vpack.c.b16 %v1160, %v1159
      %v1184 = vpack.c.b16 %v1162, %v1161
      %v1185 = vpack.c.b16 %v1164, %v1163
      %v1186 = vpack.c.b16 %v1166, %v1165
      %v1187 = vpack.c.b16 %v1168, %v1167
      %v1188 = vpack.c.b16 %v1170, %v1169
      %v1189 = vpack.c.b16 %v1172, %v1171
      %v1190 = vpack.c.b16 %v1174, %v1173
      %v1192 = vsel %vm1009, %v1175, 0
      %v1195 = vsel %vm1009, %v1176, 0
      %v1198 = vsel %vm1009, %v1177, 0
      %v1201 = vsel %vm1009, %v1178, 0
      %v1204 = vsel %vm1009, %v1179, 0
      %v1207 = vsel %vm1009, %v1180, 0
      %v1210 = vsel %vm1009, %v1181, 0
      %v1213 = vsel %vm1009, %v1182, 0
      %v1216 = vsel %vm1009, %v1183, 0
      %v1219 = vsel %vm1009, %v1184, 0
      %v1222 = vsel %vm1009, %v1185, 0
      %v1225 = vsel %vm1009, %v1186, 0
      %v1228 = vsel %vm1009, %v1187, 0
      %v1231 = vsel %vm1009, %v1188, 0
      %v1234 = vsel %vm1009, %v1189, 0
      %v1237 = vsel %vm1009, %v1190, 0
      %vm1239 = vcmask 1041408
      %v1241 = vsel %vm1239, %v1110, 0
      %1243 = vmatprep.subr.bf16.mxu0 0
      %1244 = vmatpush1.bf16.msra.mxu0 %v1241
      %1245 = vmatprep.subr.bf16.mxu0 0
      %1246 = vmatpush1.bf16.msra.mxu0 0
      %1247 = vmatprep.subr.bf16.mxu0 0
      %1248 = vmatpush1.bf16.msra.mxu0 0
      %1249 = vmatprep.subr.bf16.mxu0 0
      %1250 = vmatpush1.bf16.msra.mxu0 0
      %1251 = vmatprep.subr.bf16.mxu0 0
      %1252 = vmatpush1.bf16.msra.mxu0 0
      %1253 = vmatprep.subr.bf16.mxu0 0
      %1254 = vmatpush1.bf16.msra.mxu0 0
      %1255 = vmatprep.subr.bf16.mxu0 0
      %1256 = vmatpush1.bf16.msra.mxu0 0
      %1257 = vmatprep.subr.bf16.mxu0 0
      %1258 = vmatpush1.bf16.msra.mxu0 0
      %1259 = vmatprep.subr.bf16.mxu0 0
      %1260 = vmatpush1.bf16.msra.mxu0 0
      %1261 = vmatprep.subr.bf16.mxu0 0
      %1262 = vmatpush1.bf16.msra.mxu0 0
      %1263 = vmatprep.subr.bf16.mxu0 0
      %1264 = vmatpush1.bf16.msra.mxu0 0
      %1265 = vmatprep.subr.bf16.mxu0 0
      %1266 = vmatpush1.bf16.msra.mxu0 0
      %1267 = vmatprep.subr.bf16.mxu0 0
      %1268 = vmatpush1.bf16.msra.mxu0 0
      %1269 = vmatprep.subr.bf16.mxu0 0
      %1270 = vmatpush1.bf16.msra.mxu0 0
      %1271 = vmatprep.subr.bf16.mxu0 0
      %1272 = vmatpush1.bf16.msra.mxu0 0
      %1273 = vmatprep.subr.bf16.mxu0 0
      %1274 = vmatpush1.bf16.msra.mxu0 0
      %1275 = vmatprep.mubr.bf16.mxu0 0
      %1276 = vmatmul.mubr.bf16.gmra.mrb[0].mxu0 %v1192
      %v1277 = vpop.f32.mrb[0].mxu0
      %v1278 = vadd.f32 0.0, %v1277
      %v1279 = vpop.f32.mrb[0].mxu0
      %v1280 = vpop.f32.mrb[0].mxu0
      %v1281 = vadd.f32 0.0, %v1280
      %v1282 = vpop.f32.mrb[0].mxu0
      %1283 = vmatprep.mubr.bf16.mxu0 0
      %1284 = vmatmul.mubr.bf16.gmra.mrb[0].mxu0 %v1195
      %v1285 = vpop.f32.mrb[0].mxu0
      %v1286 = vadd.f32 0.0, %v1285
      %v1287 = vpop.f32.mrb[0].mxu0
      %v1288 = vpop.f32.mrb[0].mxu0
      %v1289 = vadd.f32 0.0, %v1288
      %v1290 = vpop.f32.mrb[0].mxu0
      %1291 = vmatprep.mubr.bf16.mxu0 0
      %1292 = vmatmul.mubr.bf16.gmra.mrb[0].mxu0 %v1198
      %v1293 = vpop.f32.mrb[0].mxu0
      %v1294 = vadd.f32 0.0, %v1293
      %v1295 = vpop.f32.mrb[0].mxu0
      %v1296 = vpop.f32.mrb[0].mxu0
      %v1297 = vadd.f32 0.0, %v1296
      %v1298 = vpop.f32.mrb[0].mxu0
      %1299 = vmatprep.mubr.bf16.mxu0 0
      %1300 = vmatmul.mubr.bf16.gmra.mrb[0].mxu0 %v1201
      %v1301 = vpop.f32.mrb[0].mxu0
      %v1302 = vadd.f32 0.0, %v1301
      %v1303 = vpop.f32.mrb[0].mxu0
      %v1304 = vpop.f32.mrb[0].mxu0
      %v1305 = vadd.f32 0.0, %v1304
      %v1306 = vpop.f32.mrb[0].mxu0
      %1307 = vmatprep.mubr.bf16.mxu0 0
      %1308 = vmatmul.mubr.bf16.gmra.mrb[0].mxu0 %v1204
      %v1309 = vpop.f32.mrb[0].mxu0
      %v1310 = vadd.f32 0.0, %v1309
      %v1311 = vpop.f32.mrb[0].mxu0
      %v1312 = vpop.f32.mrb[0].mxu0
      %v1313 = vadd.f32 0.0, %v1312
      %v1314 = vpop.f32.mrb[0].mxu0
      %1315 = vmatprep.mubr.bf16.mxu0 0
      %1316 = vmatmul.mubr.bf16.gmra.mrb[0].mxu0 %v1207
      %v1317 = vpop.f32.mrb[0].mxu0
      %v1318 = vadd.f32 0.0, %v1317
      %v1319 = vpop.f32.mrb[0].mxu0
      %v1320 = vpop.f32.mrb[0].mxu0
      %v1321 = vadd.f32 0.0, %v1320
      %v1322 = vpop.f32.mrb[0].mxu0
      %1323 = vmatprep.mubr.bf16.mxu0 0
      %1324 = vmatmul.mubr.bf16.gmra.mrb[0].mxu0 %v1210
      %v1325 = vpop.f32.mrb[0].mxu0
      %v1326 = vadd.f32 0.0, %v1325
      %v1327 = vpop.f32.mrb[0].mxu0
      %v1328 = vpop.f32.mrb[0].mxu0
      %v1329 = vadd.f32 0.0, %v1328
      %v1330 = vpop.f32.mrb[0].mxu0
      %1331 = vmatprep.mubr.bf16.mxu0 0
      %1332 = vmatmul.mubr.bf16.gmra.mrb[0].mxu0 %v1213
      %v1333 = vpop.f32.mrb[0].mxu0
      %v1334 = vadd.f32 0.0, %v1333
      %v1335 = vpop.f32.mrb[0].mxu0
      %v1336 = vpop.f32.mrb[0].mxu0
      %v1337 = vadd.f32 0.0, %v1336
      %v1338 = vpop.f32.mrb[0].mxu0
      %1339 = vmatprep.mubr.bf16.mxu0 0
      %1340 = vmatmul.mubr.bf16.gmra.mrb[0].mxu0 %v1216
      %v1341 = vpop.f32.mrb[0].mxu0
      %v1342 = vadd.f32 0.0, %v1341
      %v1343 = vpop.f32.mrb[0].mxu0
      %v1344 = vpop.f32.mrb[0].mxu0
      %v1345 = vadd.f32 0.0, %v1344
      %v1346 = vpop.f32.mrb[0].mxu0
      %1347 = vmatprep.mubr.bf16.mxu0 0
      %1348 = vmatmul.mubr.bf16.gmra.mrb[0].mxu0 %v1219
      %v1349 = vpop.f32.mrb[0].mxu0
      %v1350 = vadd.f32 0.0, %v1349
      %v1351 = vpop.f32.mrb[0].mxu0
      %v1352 = vpop.f32.mrb[0].mxu0
      %v1353 = vadd.f32 0.0, %v1352
      %v1354 = vpop.f32.mrb[0].mxu0
      %1355 = vmatprep.mubr.bf16.mxu0 0
      %1356 = vmatmul.mubr.bf16.gmra.mrb[0].mxu0 %v1222
      %v1357 = vpop.f32.mrb[0].mxu0
      %v1358 = vadd.f32 0.0, %v1357
      %v1359 = vpop.f32.mrb[0].mxu0
      %v1360 = vpop.f32.mrb[0].mxu0
      %v1361 = vadd.f32 0.0, %v1360
      %v1362 = vpop.f32.mrb[0].mxu0
      %1363 = vmatprep.mubr.bf16.mxu0 0
      %1364 = vmatmul.mubr.bf16.gmra.mrb[0].mxu0 %v1225
      %v1365 = vpop.f32.mrb[0].mxu0
      %v1366 = vadd.f32 0.0, %v1365
      %v1367 = vpop.f32.mrb[0].mxu0
      %v1368 = vpop.f32.mrb[0].mxu0
      %v1369 = vadd.f32 0.0, %v1368
      %v1370 = vpop.f32.mrb[0].mxu0
      %1371 = vmatprep.mubr.bf16.mxu0 0
      %1372 = vmatmul.mubr.bf16.gmra.mrb[0].mxu0 %v1228
      %v1373 = vpop.f32.mrb[0].mxu0
      %v1374 = vadd.f32 0.0, %v1373
      %v1375 = vpop.f32.mrb[0].mxu0
      %v1376 = vpop.f32.mrb[0].mxu0
      %v1377 = vadd.f32 0.0, %v1376
      %v1378 = vpop.f32.mrb[0].mxu0
      %1379 = vmatprep.mubr.bf16.mxu0 0
      %1380 = vmatmul.mubr.bf16.gmra.mrb[0].mxu0 %v1231
      %v1381 = vpop.f32.mrb[0].mxu0
      %v1382 = vadd.f32 0.0, %v1381
      %v1383 = vpop.f32.mrb[0].mxu0
      %v1384 = vpop.f32.mrb[0].mxu0
      %v1385 = vadd.f32 0.0, %v1384
      %v1386 = vpop.f32.mrb[0].mxu0
      %1387 = vmatprep.mubr.bf16.mxu0 0
      %1388 = vmatmul.mubr.bf16.gmra.mrb[0].mxu0 %v1234
      %v1389 = vpop.f32.mrb[0].mxu0
      %v1390 = vadd.f32 0.0, %v1389
      %v1391 = vpop.f32.mrb[0].mxu0
      %v1392 = vpop.f32.mrb[0].mxu0
      %v1393 = vadd.f32 0.0, %v1392
      %v1394 = vpop.f32.mrb[0].mxu0
      %1395 = vmatprep.mubr.bf16.mxu0 0
      %1396 = vmatmul.mubr.bf16.gmra.mrb[0].mxu0 %v1237
      %v1397 = vpop.f32.mrb[0].mxu0
      %v1398 = vadd.f32 0.0, %v1397
      %v1399 = vpop.f32.mrb[0].mxu0
      %v1400 = vpop.f32.mrb[0].mxu0
      %v1401 = vadd.f32 0.0, %v1400
      %v1402 = vpop.f32.mrb[0].mxu0
      %1403 = vdwg.mxu0
      %v1404 = vadd.f32 %v1078, %v1278
      %v1405 = vadd.f32 %v1079, %v1281
      %v1406 = vadd.f32 %v1080, %v1286
      %v1407 = vadd.f32 %v1081, %v1289
      %v1408 = vadd.f32 %v1082, %v1294
      %v1409 = vadd.f32 %v1083, %v1297
      %v1410 = vadd.f32 %v1084, %v1302
      %v1411 = vadd.f32 %v1085, %v1305
      %v1412 = vadd.f32 %v1086, %v1310
      %v1413 = vadd.f32 %v1087, %v1313
      %v1414 = vadd.f32 %v1088, %v1318
      %v1415 = vadd.f32 %v1089, %v1321
      %v1416 = vadd.f32 %v1090, %v1326
      %v1417 = vadd.f32 %v1091, %v1329
      %v1418 = vadd.f32 %v1092, %v1334
      %v1419 = vadd.f32 %v1093, %v1337
      %v1420 = vadd.f32 %v1094, %v1342
      %v1421 = vadd.f32 %v1095, %v1345
      %v1422 = vadd.f32 %v1096, %v1350
      %v1423 = vadd.f32 %v1097, %v1353
      %v1424 = vadd.f32 %v1098, %v1358
      %v1425 = vadd.f32 %v1099, %v1361
      %v1426 = vadd.f32 %v1100, %v1366
      %v1427 = vadd.f32 %v1101, %v1369
      %v1428 = vadd.f32 %v1102, %v1374
      %v1429 = vadd.f32 %v1103, %v1377
      %v1430 = vadd.f32 %v1104, %v1382
      %v1431 = vadd.f32 %v1105, %v1385
      %v1432 = vadd.f32 %v1106, %v1390
      %v1433 = vadd.f32 %v1107, %v1393
      %v1434 = vadd.f32 %v1108, %v1398
      %v1435 = vadd.f32 %v1109, %v1401
      %1436 = vst.msk [vmem:[#allocation3] sm:$0xff] %vm1009, %v1404
      %1437 = vst.msk [vmem:[#allocation3 + $0x8] sm:$0xff] %vm1009, %v1405
      %1438 = vst.msk [vmem:[#allocation3 + $0x10] sm:$0xff] %vm1009, %v1406
      %1439 = vst.msk [vmem:[#allocation3 + $0x18] sm:$0xff] %vm1009, %v1407
      %1440 = vst.msk [vmem:[#allocation3 + $0x20] sm:$0xff] %vm1009, %v1408
      %1441 = vst.msk [vmem:[#allocation3 + $0x28] sm:$0xff] %vm1009, %v1409
      %1442 = vst.msk [vmem:[#allocation3 + $0x30] sm:$0xff] %vm1009, %v1410
      %1443 = vst.msk [vmem:[#allocation3 + $0x38] sm:$0xff] %vm1009, %v1411
      %1444 = vst.msk [vmem:[#allocation3 + $0x40] sm:$0xff] %vm1009, %v1412
      %1445 = vst.msk [vmem:[#allocation3 + $0x48] sm:$0xff] %vm1009, %v1413
      %1446 = vst.msk [vmem:[#allocation3 + $0x50] sm:$0xff] %vm1009, %v1414
      %1447 = vst.msk [vmem:[#allocation3 + $0x58] sm:$0xff] %vm1009, %v1415
      %1448 = vst.msk [vmem:[#allocation3 + $0x60] sm:$0xff] %vm1009, %v1416
      %1449 = vst.msk [vmem:[#allocation3 + $0x68] sm:$0xff] %vm1009, %v1417
      %1450 = vst.msk [vmem:[#allocation3 + $0x70] sm:$0xff] %vm1009, %v1418
      %1451 = vst.msk [vmem:[#allocation3 + $0x78] sm:$0xff] %vm1009, %v1419
      %1452 = vst.msk [vmem:[#allocation3 + $0x80] sm:$0xff] %vm1009, %v1420
      %1453 = vst.msk [vmem:[#allocation3 + $0x88] sm:$0xff] %vm1009, %v1421
      %1454 = vst.msk [vmem:[#allocation3 + $0x90] sm:$0xff] %vm1009, %v1422
      %1455 = vst.msk [vmem:[#allocation3 + $0x98] sm:$0xff] %vm1009, %v1423
      %1456 = vst.msk [vmem:[#allocation3 + $0xa0] sm:$0xff] %vm1009, %v1424
      %1457 = vst.msk [vmem:[#allocation3 + $0xa8] sm:$0xff] %vm1009, %v1425
      %1458 = vst.msk [vmem:[#allocation3 + $0xb0] sm:$0xff] %vm1009, %v1426
      %1459 = vst.msk [vmem:[#allocation3 + $0xb8] sm:$0xff] %vm1009, %v1427
      %1460 = vst.msk [vmem:[#allocation3 + $0xc0] sm:$0xff] %vm1009, %v1428
      %1461 = vst.msk [vmem:[#allocation3 + $0xc8] sm:$0xff] %vm1009, %v1429
      %1462 = vst.msk [vmem:[#allocation3 + $0xd0] sm:$0xff] %vm1009, %v1430
      %1463 = vst.msk [vmem:[#allocation3 + $0xd8] sm:$0xff] %vm1009, %v1431
      %1464 = vst.msk [vmem:[#allocation3 + $0xe0] sm:$0xff] %vm1009, %v1432
      %1465 = vst.msk [vmem:[#allocation3 + $0xe8] sm:$0xff] %vm1009, %v1433
      %1466 = vst.msk [vmem:[#allocation3 + $0xf0] sm:$0xff] %vm1009, %v1434
      %1467 = vst.msk [vmem:[#allocation3 + $0xf8] sm:$0xff] %vm1009, %v1435
      %v1468 = vld [vmem:[#allocation3] sm:$0xff]
      %v1469 = vld [vmem:[#allocation3 + $0x8] sm:$0xff]
      %v1470 = vld [vmem:[#allocation3 + $0x10] sm:$0xff]
      %v1471 = vld [vmem:[#allocation3 + $0x18] sm:$0xff]
      %v1472 = vld [vmem:[#allocation3 + $0x20] sm:$0xff]
      %v1473 = vld [vmem:[#allocation3 + $0x28] sm:$0xff]
      %v1474 = vld [vmem:[#allocation3 + $0x30] sm:$0xff]
      %v1475 = vld [vmem:[#allocation3 + $0x38] sm:$0xff]
      %v1476 = vld [vmem:[#allocation3 + $0x40] sm:$0xff]
      %v1477 = vld [vmem:[#allocation3 + $0x48] sm:$0xff]
      %v1478 = vld [vmem:[#allocation3 + $0x50] sm:$0xff]
      %v1479 = vld [vmem:[#allocation3 + $0x58] sm:$0xff]
      %v1480 = vld [vmem:[#allocation3 + $0x60] sm:$0xff]
      %v1481 = vld [vmem:[#allocation3 + $0x68] sm:$0xff]
      %v1482 = vld [vmem:[#allocation3 + $0x70] sm:$0xff]
      %v1483 = vld [vmem:[#allocation3 + $0x78] sm:$0xff]
      %v1484 = vld [vmem:[#allocation3 + $0x80] sm:$0xff]
      %v1485 = vld [vmem:[#allocation3 + $0x88] sm:$0xff]
      %v1486 = vld [vmem:[#allocation3 + $0x90] sm:$0xff]
      %v1487 = vld [vmem:[#allocation3 + $0x98] sm:$0xff]
      %v1488 = vld [vmem:[#allocation3 + $0xa0] sm:$0xff]
      %v1489 = vld [vmem:[#allocation3 + $0xa8] sm:$0xff]
      %v1490 = vld [vmem:[#allocation3 + $0xb0] sm:$0xff]
      %v1491 = vld [vmem:[#allocation3 + $0xb8] sm:$0xff]
      %v1492 = vld [vmem:[#allocation3 + $0xc0] sm:$0xff]
      %v1493 = vld [vmem:[#allocation3 + $0xc8] sm:$0xff]
      %v1494 = vld [vmem:[#allocation3 + $0xd0] sm:$0xff]
      %v1495 = vld [vmem:[#allocation3 + $0xd8] sm:$0xff]
      %v1496 = vld [vmem:[#allocation3 + $0xe0] sm:$0xff]
      %v1497 = vld [vmem:[#allocation3 + $0xe8] sm:$0xff]
      %v1498 = vld [vmem:[#allocation3 + $0xf0] sm:$0xff]
      %v1499 = vld [vmem:[#allocation3 + $0xf8] sm:$0xff]
      %s1500 = scalar_lea.vmem %s1, 6
      %v1501 = vld [vmem:[%s1500] sm:$0x3]
      %v1504 = vunpack.c.l.b16 %v1074
      %v1505 = vunpack.c.l.b16 %v1075
      %v1506 = vpack.c.b16 %v1505, %v1504
      %v1508 = vsel %vm1009, %v1506, 0
      %v1511 = vsel %vm1239, %v1501, 0
      %1513 = vmatprep.subr.bf16.mxu0 0
      %1514 = vmatpush1.bf16.msra.mxu0 %v1511
      %1515 = vmatprep.subr.bf16.mxu0 0
      %1516 = vmatpush1.bf16.msra.mxu0 0
      %1517 = vmatprep.subr.bf16.mxu0 0
      %1518 = vmatpush1.bf16.msra.mxu0 0
      %1519 = vmatprep.subr.bf16.mxu0 0
      %1520 = vmatpush1.bf16.msra.mxu0 0
      %1521 = vmatprep.subr.bf16.mxu0 0
      %1522 = vmatpush1.bf16.msra.mxu0 0
      %1523 = vmatprep.subr.bf16.mxu0 0
      %1524 = vmatpush1.bf16.msra.mxu0 0
      %1525 = vmatprep.subr.bf16.mxu0 0
      %1526 = vmatpush1.bf16.msra.mxu0 0
      %1527 = vmatprep.subr.bf16.mxu0 0
      %1528 = vmatpush1.bf16.msra.mxu0 0
      %1529 = vmatprep.subr.bf16.mxu0 0
      %1530 = vmatpush1.bf16.msra.mxu0 0
      %1531 = vmatprep.subr.bf16.mxu0 0
      %1532 = vmatpush1.bf16.msra.mxu0 0
      %1533 = vmatprep.subr.bf16.mxu0 0
      %1534 = vmatpush1.bf16.msra.mxu0 0
      %1535 = vmatprep.subr.bf16.mxu0 0
      %1536 = vmatpush1.bf16.msra.mxu0 0
      %1537 = vmatprep.subr.bf16.mxu0 0
      %1538 = vmatpush1.bf16.msra.mxu0 0
      %1539 = vmatprep.subr.bf16.mxu0 0
      %1540 = vmatpush1.bf16.msra.mxu0 0
      %1541 = vmatprep.subr.bf16.mxu0 0
      %1542 = vmatpush1.bf16.msra.mxu0 0
      %1543 = vmatprep.subr.bf16.mxu0 0
      %1544 = vmatpush1.bf16.msra.mxu0 0
      %1545 = vmatprep.mubr.bf16.mxu0 0
      %1546 = vmatmul.mubr.bf16.gmra.mrb[0].mxu0 %v1195
      %v1547 = vpop.f32.mrb[0].mxu0
      %v1548 = vadd.f32 0.0, %v1547
      %v1549 = vpop.f32.mrb[0].mxu0
      %v1550 = vpop.f32.mrb[0].mxu0
      %v1551 = vadd.f32 0.0, %v1550
      %v1552 = vpop.f32.mrb[0].mxu0
      %1553 = vmatprep.mubr.bf16.mxu0 0
      %1554 = vmatmul.mubr.bf16.gmra.mrb[0].mxu0 %v1198
      %v1555 = vpop.f32.mrb[0].mxu0
      %v1556 = vadd.f32 0.0, %v1555
      %v1557 = vpop.f32.mrb[0].mxu0
      %v1558 = vpop.f32.mrb[0].mxu0
      %v1559 = vadd.f32 0.0, %v1558
      %v1560 = vpop.f32.mrb[0].mxu0
      %1561 = vmatprep.mubr.bf16.mxu0 0
      %1562 = vmatmul.mubr.bf16.gmra.mrb[0].mxu0 %v1201
      %v1563 = vpop.f32.mrb[0].mxu0
      %v1564 = vadd.f32 0.0, %v1563
      %v1565 = vpop.f32.mrb[0].mxu0
      %v1566 = vpop.f32.mrb[0].mxu0
      %v1567 = vadd.f32 0.0, %v1566
      %v1568 = vpop.f32.mrb[0].mxu0
      %1569 = vmatprep.mubr.bf16.mxu0 0
      %1570 = vmatmul.mubr.bf16.gmra.mrb[0].mxu0 %v1204
      %v1571 = vpop.f32.mrb[0].mxu0
      %v1572 = vadd.f32 0.0, %v1571
      %v1573 = vpop.f32.mrb[0].mxu0
      %v1574 = vpop.f32.mrb[0].mxu0
      %v1575 = vadd.f32 0.0, %v1574
      %v1576 = vpop.f32.mrb[0].mxu0
      %1577 = vmatprep.mubr.bf16.mxu0 0
      %1578 = vmatmul.mubr.bf16.gmra.mrb[0].mxu0 %v1207
      %v1579 = vpop.f32.mrb[0].mxu0
      %v1580 = vadd.f32 0.0, %v1579
      %v1581 = vpop.f32.mrb[0].mxu0
      %v1582 = vpop.f32.mrb[0].mxu0
      %v1583 = vadd.f32 0.0, %v1582
      %v1584 = vpop.f32.mrb[0].mxu0
      %1585 = vmatprep.mubr.bf16.mxu0 0
      %1586 = vmatmul.mubr.bf16.gmra.mrb[0].mxu0 %v1210
      %v1587 = vpop.f32.mrb[0].mxu0
      %v1588 = vadd.f32 0.0, %v1587
      %v1589 = vpop.f32.mrb[0].mxu0
      %v1590 = vpop.f32.mrb[0].mxu0
      %v1591 = vadd.f32 0.0, %v1590
      %v1592 = vpop.f32.mrb[0].mxu0
      %1593 = vmatprep.mubr.bf16.mxu0 0
      %1594 = vmatmul.mubr.bf16.gmra.mrb[0].mxu0 %v1213
      %v1595 = vpop.f32.mrb[0].mxu0
      %v1596 = vadd.f32 0.0, %v1595
      %v1597 = vpop.f32.mrb[0].mxu0
      %v1598 = vpop.f32.mrb[0].mxu0
      %v1599 = vadd.f32 0.0, %v1598
      %v1600 = vpop.f32.mrb[0].mxu0
      %1601 = vmatprep.mubr.bf16.mxu0 0
      %1602 = vmatmul.mubr.bf16.gmra.mrb[0].mxu0 %v1216
      %v1603 = vpop.f32.mrb[0].mxu0
      %v1604 = vadd.f32 0.0, %v1603
      %v1605 = vpop.f32.mrb[0].mxu0
      %v1606 = vpop.f32.mrb[0].mxu0
      %v1607 = vadd.f32 0.0, %v1606
      %v1608 = vpop.f32.mrb[0].mxu0
      %1609 = vmatprep.mubr.bf16.mxu0 0
      %1610 = vmatmul.mubr.bf16.gmra.mrb[0].mxu0 %v1219
      %v1611 = vpop.f32.mrb[0].mxu0
      %v1612 = vadd.f32 0.0, %v1611
      %v1613 = vpop.f32.mrb[0].mxu0
      %v1614 = vpop.f32.mrb[0].mxu0
      %v1615 = vadd.f32 0.0, %v1614
      %v1616 = vpop.f32.mrb[0].mxu0
      %1617 = vmatprep.mubr.bf16.mxu0 0
      %1618 = vmatmul.mubr.bf16.gmra.mrb[0].mxu0 %v1222
      %v1619 = vpop.f32.mrb[0].mxu0
      %v1620 = vadd.f32 0.0, %v1619
      %v1621 = vpop.f32.mrb[0].mxu0
      %v1622 = vpop.f32.mrb[0].mxu0
      %v1623 = vadd.f32 0.0, %v1622
      %v1624 = vpop.f32.mrb[0].mxu0
      %1625 = vmatprep.mubr.bf16.mxu0 0
      %1626 = vmatmul.mubr.bf16.gmra.mrb[0].mxu0 %v1225
      %v1627 = vpop.f32.mrb[0].mxu0
      %v1628 = vadd.f32 0.0, %v1627
      %v1629 = vpop.f32.mrb[0].mxu0
      %v1630 = vpop.f32.mrb[0].mxu0
      %v1631 = vadd.f32 0.0, %v1630
      %v1632 = vpop.f32.mrb[0].mxu0
      %1633 = vmatprep.mubr.bf16.mxu0 0
      %1634 = vmatmul.mubr.bf16.gmra.mrb[0].mxu0 %v1228
      %v1635 = vpop.f32.mrb[0].mxu0
      %v1636 = vadd.f32 0.0, %v1635
      %v1637 = vpop.f32.mrb[0].mxu0
      %v1638 = vpop.f32.mrb[0].mxu0
      %v1639 = vadd.f32 0.0, %v1638
      %v1640 = vpop.f32.mrb[0].mxu0
      %1641 = vmatprep.mubr.bf16.mxu0 0
      %1642 = vmatmul.mubr.bf16.gmra.mrb[0].mxu0 %v1231
      %v1643 = vpop.f32.mrb[0].mxu0
      %v1644 = vadd.f32 0.0, %v1643
      %v1645 = vpop.f32.mrb[0].mxu0
      %v1646 = vpop.f32.mrb[0].mxu0
      %v1647 = vadd.f32 0.0, %v1646
      %v1648 = vpop.f32.mrb[0].mxu0
      %1649 = vmatprep.mubr.bf16.mxu0 0
      %1650 = vmatmul.mubr.bf16.gmra.mrb[0].mxu0 %v1234
      %v1651 = vpop.f32.mrb[0].mxu0
      %v1652 = vadd.f32 0.0, %v1651
      %v1653 = vpop.f32.mrb[0].mxu0
      %v1654 = vpop.f32.mrb[0].mxu0
      %v1655 = vadd.f32 0.0, %v1654
      %v1656 = vpop.f32.mrb[0].mxu0
      %1657 = vmatprep.mubr.bf16.mxu0 0
      %1658 = vmatmul.mubr.bf16.gmra.mrb[0].mxu0 %v1237
      %v1659 = vpop.f32.mrb[0].mxu0
      %v1660 = vadd.f32 0.0, %v1659
      %v1661 = vpop.f32.mrb[0].mxu0
      %v1662 = vpop.f32.mrb[0].mxu0
      %v1663 = vadd.f32 0.0, %v1662
      %v1664 = vpop.f32.mrb[0].mxu0
      %1665 = vmatprep.mubr.bf16.mxu0 0
      %1666 = vmatmul.mubr.bf16.gmra.mrb[0].mxu0 %v1508
      %v1667 = vpop.f32.mrb[0].mxu0
      %v1668 = vadd.f32 0.0, %v1667
      %v1669 = vpop.f32.mrb[0].mxu0
      %v1670 = vpop.f32.mrb[0].mxu0
      %v1671 = vadd.f32 0.0, %v1670
      %v1672 = vpop.f32.mrb[0].mxu0
      %1673 = vdwg.mxu0
      %v1674 = vadd.f32 %v1468, %v1548
      %v1675 = vadd.f32 %v1469, %v1551
      %v1676 = vadd.f32 %v1470, %v1556
      %v1677 = vadd.f32 %v1471, %v1559
      %v1678 = vadd.f32 %v1472, %v1564
      %v1679 = vadd.f32 %v1473, %v1567
      %v1680 = vadd.f32 %v1474, %v1572
      %v1681 = vadd.f32 %v1475, %v1575
      %v1682 = vadd.f32 %v1476, %v1580
      %v1683 = vadd.f32 %v1477, %v1583
      %v1684 = vadd.f32 %v1478, %v1588
      %v1685 = vadd.f32 %v1479, %v1591
      %v1686 = vadd.f32 %v1480, %v1596
      %v1687 = vadd.f32 %v1481, %v1599
      %v1688 = vadd.f32 %v1482, %v1604
      %v1689 = vadd.f32 %v1483, %v1607
      %v1690 = vadd.f32 %v1484, %v1612
      %v1691 = vadd.f32 %v1485, %v1615
      %v1692 = vadd.f32 %v1486, %v1620
      %v1693 = vadd.f32 %v1487, %v1623
      %v1694 = vadd.f32 %v1488, %v1628
      %v1695 = vadd.f32 %v1489, %v1631
      %v1696 = vadd.f32 %v1490, %v1636
      %v1697 = vadd.f32 %v1491, %v1639
      %v1698 = vadd.f32 %v1492, %v1644
      %v1699 = vadd.f32 %v1493, %v1647
      %v1700 = vadd.f32 %v1494, %v1652
      %v1701 = vadd.f32 %v1495, %v1655
      %v1702 = vadd.f32 %v1496, %v1660
      %v1703 = vadd.f32 %v1497, %v1663
      %v1704 = vadd.f32 %v1498, %v1668
      %v1705 = vadd.f32 %v1499, %v1671
      %1706 = vst.msk [vmem:[#allocation3] sm:$0xff] %vm1009, %v1674
      %1707 = vst.msk [vmem:[#allocation3 + $0x8] sm:$0xff] %vm1009, %v1675
      %1708 = vst.msk [vmem:[#allocation3 + $0x10] sm:$0xff] %vm1009, %v1676
      %1709 = vst.msk [vmem:[#allocation3 + $0x18] sm:$0xff] %vm1009, %v1677
      %1710 = vst.msk [vmem:[#allocation3 + $0x20] sm:$0xff] %vm1009, %v1678
      %1711 = vst.msk [vmem:[#allocation3 + $0x28] sm:$0xff] %vm1009, %v1679
      %1712 = vst.msk [vmem:[#allocation3 + $0x30] sm:$0xff] %vm1009, %v1680
      %1713 = vst.msk [vmem:[#allocation3 + $0x38] sm:$0xff] %vm1009, %v1681
      %1714 = vst.msk [vmem:[#allocation3 + $0x40] sm:$0xff] %vm1009, %v1682
      %1715 = vst.msk [vmem:[#allocation3 + $0x48] sm:$0xff] %vm1009, %v1683
      %1716 = vst.msk [vmem:[#allocation3 + $0x50] sm:$0xff] %vm1009, %v1684
      %1717 = vst.msk [vmem:[#allocation3 + $0x58] sm:$0xff] %vm1009, %v1685
      %1718 = vst.msk [vmem:[#allocation3 + $0x60] sm:$0xff] %vm1009, %v1686
      %1719 = vst.msk [vmem:[#allocation3 + $0x68] sm:$0xff] %vm1009, %v1687
      %1720 = vst.msk [vmem:[#allocation3 + $0x70] sm:$0xff] %vm1009, %v1688
      %1721 = vst.msk [vmem:[#allocation3 + $0x78] sm:$0xff] %vm1009, %v1689
      %1722 = vst.msk [vmem:[#allocation3 + $0x80] sm:$0xff] %vm1009, %v1690
      %1723 = vst.msk [vmem:[#allocation3 + $0x88] sm:$0xff] %vm1009, %v1691
      %1724 = vst.msk [vmem:[#allocation3 + $0x90] sm:$0xff] %vm1009, %v1692
      %1725 = vst.msk [vmem:[#allocation3 + $0x98] sm:$0xff] %vm1009, %v1693
      %1726 = vst.msk [vmem:[#allocation3 + $0xa0] sm:$0xff] %vm1009, %v1694
      %1727 = vst.msk [vmem:[#allocation3 + $0xa8] sm:$0xff] %vm1009, %v1695
      %1728 = vst.msk [vmem:[#allocation3 + $0xb0] sm:$0xff] %vm1009, %v1696
      %1729 = vst.msk [vmem:[#allocation3 + $0xb8] sm:$0xff] %vm1009, %v1697
      %1730 = vst.msk [vmem:[#allocation3 + $0xc0] sm:$0xff] %vm1009, %v1698
      %1731 = vst.msk [vmem:[#allocation3 + $0xc8] sm:$0xff] %vm1009, %v1699
      %1732 = vst.msk [vmem:[#allocation3 + $0xd0] sm:$0xff] %vm1009, %v1700
      %1733 = vst.msk [vmem:[#allocation3 + $0xd8] sm:$0xff] %vm1009, %v1701
      %1734 = vst.msk [vmem:[#allocation3 + $0xe0] sm:$0xff] %vm1009, %v1702
      %1735 = vst.msk [vmem:[#allocation3 + $0xe8] sm:$0xff] %vm1009, %v1703
      %1736 = vst.msk [vmem:[#allocation3 + $0xf0] sm:$0xff] %vm1009, %v1704
      %1737 = vst.msk [vmem:[#allocation3 + $0xf8] sm:$0xff] %vm1009, %v1705
      %v1738 = vld [vmem:[#allocation3] sm:$0xff]
      %v1739 = vld [vmem:[#allocation3 + $0x8] sm:$0xff]
      %v1740 = vld [vmem:[#allocation3 + $0x10] sm:$0xff]
      %v1741 = vld [vmem:[#allocation3 + $0x18] sm:$0xff]
      %v1742 = vld [vmem:[#allocation3 + $0x20] sm:$0xff]
      %v1743 = vld [vmem:[#allocation3 + $0x28] sm:$0xff]
      %v1744 = vld [vmem:[#allocation3 + $0x30] sm:$0xff]
      %v1745 = vld [vmem:[#allocation3 + $0x38] sm:$0xff]
      %v1746 = vld [vmem:[#allocation3 + $0x40] sm:$0xff]
      %v1747 = vld [vmem:[#allocation3 + $0x48] sm:$0xff]
      %v1748 = vld [vmem:[#allocation3 + $0x50] sm:$0xff]
      %v1749 = vld [vmem:[#allocation3 + $0x58] sm:$0xff]
      %v1750 = vld [vmem:[#allocation3 + $0x60] sm:$0xff]
      %v1751 = vld [vmem:[#allocation3 + $0x68] sm:$0xff]
      %v1752 = vld [vmem:[#allocation3 + $0x70] sm:$0xff]
      %v1753 = vld [vmem:[#allocation3 + $0x78] sm:$0xff]
      %v1754 = vld [vmem:[#allocation3 + $0x80] sm:$0xff]
      %v1755 = vld [vmem:[#allocation3 + $0x88] sm:$0xff]
      %v1756 = vld [vmem:[#allocation3 + $0x90] sm:$0xff]
      %v1757 = vld [vmem:[#allocation3 + $0x98] sm:$0xff]
      %v1758 = vld [vmem:[#allocation3 + $0xa0] sm:$0xff]
      %v1759 = vld [vmem:[#allocation3 + $0xa8] sm:$0xff]
      %v1760 = vld [vmem:[#allocation3 + $0xb0] sm:$0xff]
      %v1761 = vld [vmem:[#allocation3 + $0xb8] sm:$0xff]
      %v1762 = vld [vmem:[#allocation3 + $0xc0] sm:$0xff]
      %v1763 = vld [vmem:[#allocation3 + $0xc8] sm:$0xff]
      %v1764 = vld [vmem:[#allocation3 + $0xd0] sm:$0xff]
      %v1765 = vld [vmem:[#allocation3 + $0xd8] sm:$0xff]
      %v1766 = vld [vmem:[#allocation3 + $0xe0] sm:$0xff]
      %v1767 = vld [vmem:[#allocation3 + $0xe8] sm:$0xff]
      %v1768 = vld [vmem:[#allocation3 + $0xf0] sm:$0xff]
      %v1769 = vld [vmem:[#allocation3 + $0xf8] sm:$0xff]
      %s1770 = scalar_lea.vmem %s1, 12
      %v1771 = vld [vmem:[%s1770] sm:$0x3]
      %v1774 = vunpack.c.l.b16 %v1076
      %v1775 = vunpack.c.l.b16 %v1077
      %v1776 = vpack.c.b16 %v1775, %v1774
      %v1778 = vsel %vm1009, %v1776, 0
      %v1781 = vsel %vm1239, %v1771, 0
      %1783 = vmatprep.subr.bf16.mxu0 0
      %1784 = vmatpush1.bf16.msra.mxu0 %v1781
      %1785 = vmatprep.subr.bf16.mxu0 0
      %1786 = vmatpush1.bf16.msra.mxu0 0
      %1787 = vmatprep.subr.bf16.mxu0 0
      %1788 = vmatpush1.bf16.msra.mxu0 0
      %1789 = vmatprep.subr.bf16.mxu0 0
      %1790 = vmatpush1.bf16.msra.mxu0 0
      %1791 = vmatprep.subr.bf16.mxu0 0
      %1792 = vmatpush1.bf16.msra.mxu0 0
      %1793 = vmatprep.subr.bf16.mxu0 0
      %1794 = vmatpush1.bf16.msra.mxu0 0
      %1795 = vmatprep.subr.bf16.mxu0 0
      %1796 = vmatpush1.bf16.msra.mxu0 0
      %1797 = vmatprep.subr.bf16.mxu0 0
      %1798 = vmatpush1.bf16.msra.mxu0 0
      %1799 = vmatprep.subr.bf16.mxu0 0
      %1800 = vmatpush1.bf16.msra.mxu0 0
      %1801 = vmatprep.subr.bf16.mxu0 0
      %1802 = vmatpush1.bf16.msra.mxu0 0
      %1803 = vmatprep.subr.bf16.mxu0 0
      %1804 = vmatpush1.bf16.msra.mxu0 0
      %1805 = vmatprep.subr.bf16.mxu0 0
      %1806 = vmatpush1.bf16.msra.mxu0 0
      %1807 = vmatprep.subr.bf16.mxu0 0
      %1808 = vmatpush1.bf16.msra.mxu0 0
      %1809 = vmatprep.subr.bf16.mxu0 0
      %1810 = vmatpush1.bf16.msra.mxu0 0
      %1811 = vmatprep.subr.bf16.mxu0 0
      %1812 = vmatpush1.bf16.msra.mxu0 0
      %1813 = vmatprep.subr.bf16.mxu0 0
      %1814 = vmatpush1.bf16.msra.mxu0 0
      %1815 = vmatprep.mubr.bf16.mxu0 0
      %1816 = vmatmul.mubr.bf16.gmra.mrb[0].mxu0 %v1198
      %v1817 = vpop.f32.mrb[0].mxu0
      %v1818 = vadd.f32 0.0, %v1817
      %v1819 = vpop.f32.mrb[0].mxu0
      %v1820 = vpop.f32.mrb[0].mxu0
      %v1821 = vadd.f32 0.0, %v1820
      %v1822 = vpop.f32.mrb[0].mxu0
      %1823 = vmatprep.mubr.bf16.mxu0 0
      %1824 = vmatmul.mubr.bf16.gmra.mrb[0].mxu0 %v1201
      %v1825 = vpop.f32.mrb[0].mxu0
      %v1826 = vadd.f32 0.0, %v1825
      %v1827 = vpop.f32.mrb[0].mxu0
      %v1828 = vpop.f32.mrb[0].mxu0
      %v1829 = vadd.f32 0.0, %v1828
      %v1830 = vpop.f32.mrb[0].mxu0
      %1831 = vmatprep.mubr.bf16.mxu0 0
      %1832 = vmatmul.mubr.bf16.gmra.mrb[0].mxu0 %v1204
      %v1833 = vpop.f32.mrb[0].mxu0
      %v1834 = vadd.f32 0.0, %v1833
      %v1835 = vpop.f32.mrb[0].mxu0
      %v1836 = vpop.f32.mrb[0].mxu0
      %v1837 = vadd.f32 0.0, %v1836
      %v1838 = vpop.f32.mrb[0].mxu0
      %1839 = vmatprep.mubr.bf16.mxu0 0
      %1840 = vmatmul.mubr.bf16.gmra.mrb[0].mxu0 %v1207
      %v1841 = vpop.f32.mrb[0].mxu0
      %v1842 = vadd.f32 0.0, %v1841
      %v1843 = vpop.f32.mrb[0].mxu0
      %v1844 = vpop.f32.mrb[0].mxu0
      %v1845 = vadd.f32 0.0, %v1844
      %v1846 = vpop.f32.mrb[0].mxu0
      %1847 = vmatprep.mubr.bf16.mxu0 0
      %1848 = vmatmul.mubr.bf16.gmra.mrb[0].mxu0 %v1210
      %v1849 = vpop.f32.mrb[0].mxu0
      %v1850 = vadd.f32 0.0, %v1849
      %v1851 = vpop.f32.mrb[0].mxu0
      %v1852 = vpop.f32.mrb[0].mxu0
      %v1853 = vadd.f32 0.0, %v1852
      %v1854 = vpop.f32.mrb[0].mxu0
      %1855 = vmatprep.mubr.bf16.mxu0 0
      %1856 = vmatmul.mubr.bf16.gmra.mrb[0].mxu0 %v1213
      %v1857 = vpop.f32.mrb[0].mxu0
      %v1858 = vadd.f32 0.0, %v1857
      %v1859 = vpop.f32.mrb[0].mxu0
      %v1860 = vpop.f32.mrb[0].mxu0
      %v1861 = vadd.f32 0.0, %v1860
      %v1862 = vpop.f32.mrb[0].mxu0
      %1863 = vmatprep.mubr.bf16.mxu0 0
      %1864 = vmatmul.mubr.bf16.gmra.mrb[0].mxu0 %v1216
      %v1865 = vpop.f32.mrb[0].mxu0
      %v1866 = vadd.f32 0.0, %v1865
      %v1867 = vpop.f32.mrb[0].mxu0
      %v1868 = vpop.f32.mrb[0].mxu0
      %v1869 = vadd.f32 0.0, %v1868
      %v1870 = vpop.f32.mrb[0].mxu0
      %1871 = vmatprep.mubr.bf16.mxu0 0
      %1872 = vmatmul.mubr.bf16.gmra.mrb[0].mxu0 %v1219
      %v1873 = vpop.f32.mrb[0].mxu0
      %v1874 = vadd.f32 0.0, %v1873
      %v1875 = vpop.f32.mrb[0].mxu0
      %v1876 = vpop.f32.mrb[0].mxu0
      %v1877 = vadd.f32 0.0, %v1876
      %v1878 = vpop.f32.mrb[0].mxu0
      %1879 = vmatprep.mubr.bf16.mxu0 0
      %1880 = vmatmul.mubr.bf16.gmra.mrb[0].mxu0 %v1222
      %v1881 = vpop.f32.mrb[0].mxu0
      %v1882 = vadd.f32 0.0, %v1881
      %v1883 = vpop.f32.mrb[0].mxu0
      %v1884 = vpop.f32.mrb[0].mxu0
      %v1885 = vadd.f32 0.0, %v1884
      %v1886 = vpop.f32.mrb[0].mxu0
      %1887 = vmatprep.mubr.bf16.mxu0 0
      %1888 = vmatmul.mubr.bf16.gmra.mrb[0].mxu0 %v1225
      %v1889 = vpop.f32.mrb[0].mxu0
      %v1890 = vadd.f32 0.0, %v1889
      %v1891 = vpop.f32.mrb[0].mxu0
      %v1892 = vpop.f32.mrb[0].mxu0
      %v1893 = vadd.f32 0.0, %v1892
      %v1894 = vpop.f32.mrb[0].mxu0
      %1895 = vmatprep.mubr.bf16.mxu0 0
      %1896 = vmatmul.mubr.bf16.gmra.mrb[0].mxu0 %v1228
      %v1897 = vpop.f32.mrb[0].mxu0
      %v1898 = vadd.f32 0.0, %v1897
      %v1899 = vpop.f32.mrb[0].mxu0
      %v1900 = vpop.f32.mrb[0].mxu0
      %v1901 = vadd.f32 0.0, %v1900
      %v1902 = vpop.f32.mrb[0].mxu0
      %1903 = vmatprep.mubr.bf16.mxu0 0
      %1904 = vmatmul.mubr.bf16.gmra.mrb[0].mxu0 %v1231
      %v1905 = vpop.f32.mrb[0].mxu0
      %v1906 = vadd.f32 0.0, %v1905
      %v1907 = vpop.f32.mrb[0].mxu0
      %v1908 = vpop.f32.mrb[0].mxu0
      %v1909 = vadd.f32 0.0, %v1908
      %v1910 = vpop.f32.mrb[0].mxu0
      %1911 = vmatprep.mubr.bf16.mxu0 0
      %1912 = vmatmul.mubr.bf16.gmra.mrb[0].mxu0 %v1234
      %v1913 = vpop.f32.mrb[0].mxu0
      %v1914 = vadd.f32 0.0, %v1913
      %v1915 = vpop.f32.mrb[0].mxu0
      %v1916 = vpop.f32.mrb[0].mxu0
      %v1917 = vadd.f32 0.0, %v1916
      %v1918 = vpop.f32.mrb[0].mxu0
      %1919 = vmatprep.mubr.bf16.mxu0 0
      %1920 = vmatmul.mubr.bf16.gmra.mrb[0].mxu0 %v1237
      %v1921 = vpop.f32.mrb[0].mxu0
      %v1922 = vadd.f32 0.0, %v1921
      %v1923 = vpop.f32.mrb[0].mxu0
      %v1924 = vpop.f32.mrb[0].mxu0
      %v1925 = vadd.f32 0.0, %v1924
      %v1926 = vpop.f32.mrb[0].mxu0
      %1927 = vmatprep.mubr.bf16.mxu0 0
      %1928 = vmatmul.mubr.bf16.gmra.mrb[0].mxu0 %v1508
      %v1929 = vpop.f32.mrb[0].mxu0
      %v1930 = vadd.f32 0.0, %v1929
      %v1931 = vpop.f32.mrb[0].mxu0
      %v1932 = vpop.f32.mrb[0].mxu0
      %v1933 = vadd.f32 0.0, %v1932
      %v1934 = vpop.f32.mrb[0].mxu0
      %1935 = vmatprep.mubr.bf16.mxu0 0
      %1936 = vmatmul.mubr.bf16.gmra.mrb[0].mxu0 %v1778
      %v1937 = vpop.f32.mrb[0].mxu0
      %v1938 = vadd.f32 0.0, %v1937
      %v1939 = vpop.f32.mrb[0].mxu0
      %v1940 = vpop.f32.mrb[0].mxu0
      %v1941 = vadd.f32 0.0, %v1940
      %v1942 = vpop.f32.mrb[0].mxu0
      %1943 = vdwg.mxu0
      %v1944 = vadd.f32 %v1738, %v1818
      %v1945 = vadd.f32 %v1739, %v1821
      %v1946 = vadd.f32 %v1740, %v1826
      %v1947 = vadd.f32 %v1741, %v1829
      %v1948 = vadd.f32 %v1742, %v1834
      %v1949 = vadd.f32 %v1743, %v1837
      %v1950 = vadd.f32 %v1744, %v1842
      %v1951 = vadd.f32 %v1745, %v1845
      %v1952 = vadd.f32 %v1746, %v1850
      %v1953 = vadd.f32 %v1747, %v1853
      %v1954 = vadd.f32 %v1748, %v1858
      %v1955 = vadd.f32 %v1749, %v1861
      %v1956 = vadd.f32 %v1750, %v1866
      %v1957 = vadd.f32 %v1751, %v1869
      %v1958 = vadd.f32 %v1752, %v1874
      %v1959 = vadd.f32 %v1753, %v1877
      %v1960 = vadd.f32 %v1754, %v1882
      %v1961 = vadd.f32 %v1755, %v1885
      %v1962 = vadd.f32 %v1756, %v1890
      %v1963 = vadd.f32 %v1757, %v1893
      %v1964 = vadd.f32 %v1758, %v1898
      %v1965 = vadd.f32 %v1759, %v1901
      %v1966 = vadd.f32 %v1760, %v1906
      %v1967 = vadd.f32 %v1761, %v1909
      %v1968 = vadd.f32 %v1762, %v1914
      %v1969 = vadd.f32 %v1763, %v1917
      %v1970 = vadd.f32 %v1764, %v1922
      %v1971 = vadd.f32 %v1765, %v1925
      %v1972 = vadd.f32 %v1766, %v1930
      %v1973 = vadd.f32 %v1767, %v1933
      %v1974 = vadd.f32 %v1768, %v1938
      %v1975 = vadd.f32 %v1769, %v1941
      %1976 = vst.msk [vmem:[#allocation3] sm:$0xff] %vm1009, %v1944
      %1977 = vst.msk [vmem:[#allocation3 + $0x8] sm:$0xff] %vm1009, %v1945
      %1978 = vst.msk [vmem:[#allocation3 + $0x10] sm:$0xff] %vm1009, %v1946
      %1979 = vst.msk [vmem:[#allocation3 + $0x18] sm:$0xff] %vm1009, %v1947
      %1980 = vst.msk [vmem:[#allocation3 + $0x20] sm:$0xff] %vm1009, %v1948
      %1981 = vst.msk [vmem:[#allocation3 + $0x28] sm:$0xff] %vm1009, %v1949
      %1982 = vst.msk [vmem:[#allocation3 + $0x30] sm:$0xff] %vm1009, %v1950
      %1983 = vst.msk [vmem:[#allocation3 + $0x38] sm:$0xff] %vm1009, %v1951
      %1984 = vst.msk [vmem:[#allocation3 + $0x40] sm:$0xff] %vm1009, %v1952
      %1985 = vst.msk [vmem:[#allocation3 + $0x48] sm:$0xff] %vm1009, %v1953
      %1986 = vst.msk [vmem:[#allocation3 + $0x50] sm:$0xff] %vm1009, %v1954
      %1987 = vst.msk [vmem:[#allocation3 + $0x58] sm:$0xff] %vm1009, %v1955
      %1988 = vst.msk [vmem:[#allocation3 + $0x60] sm:$0xff] %vm1009, %v1956
      %1989 = vst.msk [vmem:[#allocation3 + $0x68] sm:$0xff] %vm1009, %v1957
      %1990 = vst.msk [vmem:[#allocation3 + $0x70] sm:$0xff] %vm1009, %v1958
      %1991 = vst.msk [vmem:[#allocation3 + $0x78] sm:$0xff] %vm1009, %v1959
      %1992 = vst.msk [vmem:[#allocation3 + $0x80] sm:$0xff] %vm1009, %v1960
      %1993 = vst.msk [vmem:[#allocation3 + $0x88] sm:$0xff] %vm1009, %v1961
      %1994 = vst.msk [vmem:[#allocation3 + $0x90] sm:$0xff] %vm1009, %v1962
      %1995 = vst.msk [vmem:[#allocation3 + $0x98] sm:$0xff] %vm1009, %v1963
      %1996 = vst.msk [vmem:[#allocation3 + $0xa0] sm:$0xff] %vm1009, %v1964
      %1997 = vst.msk [vmem:[#allocation3 + $0xa8] sm:$0xff] %vm1009, %v1965
      %1998 = vst.msk [vmem:[#allocation3 + $0xb0] sm:$0xff] %vm1009, %v1966
      %1999 = vst.msk [vmem:[#allocation3 + $0xb8] sm:$0xff] %vm1009, %v1967
      %2000 = vst.msk [vmem:[#allocation3 + $0xc0] sm:$0xff] %vm1009, %v1968
      %2001 = vst.msk [vmem:[#allocation3 + $0xc8] sm:$0xff] %vm1009, %v1969
      %2002 = vst.msk [vmem:[#allocation3 + $0xd0] sm:$0xff] %vm1009, %v1970
      %2003 = vst.msk [vmem:[#allocation3 + $0xd8] sm:$0xff] %vm1009, %v1971
      %2004 = vst.msk [vmem:[#allocation3 + $0xe0] sm:$0xff] %vm1009, %v1972
      %2005 = vst.msk [vmem:[#allocation3 + $0xe8] sm:$0xff] %vm1009, %v1973
      %2006 = vst.msk [vmem:[#allocation3 + $0xf0] sm:$0xff] %vm1009, %v1974
      %2007 = vst.msk [vmem:[#allocation3 + $0xf8] sm:$0xff] %vm1009, %v1975
      %v2008 = vld [vmem:[#allocation2] sm:$0xf]
      %v2009 = vld [vmem:[#allocation2 + $0x4] sm:$0xf]
      %v2010 = vld [vmem:[#allocation2 + $0x8] sm:$0x1]
      %v2011 = vld [vmem:[#allocation2 + $0xc] sm:$0xf]
      %v2012 = vld [vmem:[#allocation2 + $0x10] sm:$0xf]
      %v2013 = vld [vmem:[#allocation2 + $0x14] sm:$0x1]
      %v2014 = vld [vmem:[#allocation2 + $0x18] sm:$0xf]
      %v2015 = vld [vmem:[#allocation2 + $0x1c] sm:$0xf]
      %v2016 = vld [vmem:[#allocation2 + $0x20] sm:$0x1]
      %v2017 = vld [vmem:[#allocation2 + $0x24] sm:$0xf]
      %v2018 = vld [vmem:[#allocation2 + $0x28] sm:$0xf]
      %v2019 = vld [vmem:[#allocation2 + $0x2c] sm:$0x1]
      %v2020 = vld [vmem:[#allocation2 + $0x30] sm:$0xf]
      %v2021 = vld [vmem:[#allocation2 + $0x34] sm:$0xf]
      %v2022 = vld [vmem:[#allocation2 + $0x38] sm:$0x1]
      %v2023 = vld [vmem:[#allocation2 + $0x3c] sm:$0xf]
      %v2024 = vld [vmem:[#allocation2 + $0x40] sm:$0xf]
      %v2025 = vld [vmem:[#allocation2 + $0x44] sm:$0x1]
      %v2026 = vld [vmem:[#allocation2 + $0x48] sm:$0xf]
      %v2027 = vld [vmem:[#allocation2 + $0x4c] sm:$0xf]
      %v2028 = vld [vmem:[#allocation2 + $0x50] sm:$0x1]
      %v2029 = vld [vmem:[#allocation2 + $0x54] sm:$0xf]
      %v2030 = vld [vmem:[#allocation2 + $0x58] sm:$0xf]
      %v2031 = vld [vmem:[#allocation2 + $0x5c] sm:$0x1]
      %v2032 = vld [vmem:[#allocation2 + $0x60] sm:$0xf]
      %v2033 = vld [vmem:[#allocation2 + $0x64] sm:$0xf]
      %v2034 = vld [vmem:[#allocation2 + $0x68] sm:$0x1]
      %v2035 = vld [vmem:[#allocation2 + $0x6c] sm:$0xf]
      %v2036 = vld [vmem:[#allocation2 + $0x70] sm:$0xf]
      %v2037 = vld [vmem:[#allocation2 + $0x74] sm:$0x1]
      %v2038 = vld [vmem:[#allocation2 + $0x78] sm:$0xf]
      %v2039 = vld [vmem:[#allocation2 + $0x7c] sm:$0xf]
      %v2040 = vld [vmem:[#allocation2 + $0x80] sm:$0x1]
      %v2041 = vld [vmem:[#allocation2 + $0x84] sm:$0xf]
      %v2042 = vld [vmem:[#allocation2 + $0x88] sm:$0xf]
      %v2043 = vld [vmem:[#allocation2 + $0x8c] sm:$0x1]
      %v2044 = vld [vmem:[#allocation2 + $0x90] sm:$0xf]
      %v2045 = vld [vmem:[#allocation2 + $0x94] sm:$0xf]
      %v2046 = vld [vmem:[#allocation2 + $0x98] sm:$0x1]
      %v2047 = vld [vmem:[#allocation2 + $0x9c] sm:$0xf]
      %v2048 = vld [vmem:[#allocation2 + $0xa0] sm:$0xf]
      %v2049 = vld [vmem:[#allocation2 + $0xa4] sm:$0x1]
      %v2050 = vld [vmem:[#allocation2 + $0xa8] sm:$0xf]
      %v2051 = vld [vmem:[#allocation2 + $0xac] sm:$0xf]
      %v2052 = vld [vmem:[#allocation2 + $0xb0] sm:$0x1]
      %v2053 = vld [vmem:[#allocation2 + $0xb4] sm:$0xf]
      %v2054 = vld [vmem:[#allocation2 + $0xb8] sm:$0xf]
      %v2055 = vld [vmem:[#allocation2 + $0xbc] sm:$0x1]
      %v2056 = vld [vmem:[#allocation2 + $0xc0] sm:$0xf]
      %v2057 = vld [vmem:[#allocation2 + $0xc4] sm:$0xf]
      %v2058 = vld [vmem:[#allocation2 + $0xc8] sm:$0x1]
      %v2059 = vld [vmem:[#allocation2 + $0xcc] sm:$0xf]
      %v2060 = vld [vmem:[#allocation2 + $0xd0] sm:$0xf]
      %v2061 = vld [vmem:[#allocation2 + $0xd4] sm:$0x1]
      %v2062 = vld [vmem:[#allocation3] sm:$0xff]
      %v2063 = vld [vmem:[#allocation3 + $0x8] sm:$0xff]
      %v2064 = vld [vmem:[#allocation3 + $0x10] sm:$0xff]
      %v2065 = vld [vmem:[#allocation3 + $0x18] sm:$0xff]
      %v2066 = vld [vmem:[#allocation3 + $0x20] sm:$0xff]
      %v2067 = vld [vmem:[#allocation3 + $0x28] sm:$0xff]
      %v2068 = vld [vmem:[#allocation3 + $0x30] sm:$0xff]
      %v2069 = vld [vmem:[#allocation3 + $0x38] sm:$0xff]
      %v2070 = vld [vmem:[#allocation3 + $0x40] sm:$0xff]
      %v2071 = vld [vmem:[#allocation3 + $0x48] sm:$0xff]
      %v2072 = vld [vmem:[#allocation3 + $0x50] sm:$0xff]
      %v2073 = vld [vmem:[#allocation3 + $0x58] sm:$0xff]
      %v2074 = vld [vmem:[#allocation3 + $0x60] sm:$0xff]
      %v2075 = vld [vmem:[#allocation3 + $0x68] sm:$0xff]
      %v2076 = vld [vmem:[#allocation3 + $0x70] sm:$0xff]
      %v2077 = vld [vmem:[#allocation3 + $0x78] sm:$0xff]
      %v2078 = vld [vmem:[#allocation3 + $0x80] sm:$0xff]
      %v2079 = vld [vmem:[#allocation3 + $0x88] sm:$0xff]
      %v2080 = vld [vmem:[#allocation3 + $0x90] sm:$0xff]
      %v2081 = vld [vmem:[#allocation3 + $0x98] sm:$0xff]
      %v2082 = vld [vmem:[#allocation3 + $0xa0] sm:$0xff]
      %v2083 = vld [vmem:[#allocation3 + $0xa8] sm:$0xff]
      %v2084 = vld [vmem:[#allocation3 + $0xb0] sm:$0xff]
      %v2085 = vld [vmem:[#allocation3 + $0xb8] sm:$0xff]
      %v2086 = vld [vmem:[#allocation3 + $0xc0] sm:$0xff]
      %v2087 = vld [vmem:[#allocation3 + $0xc8] sm:$0xff]
      %v2088 = vld [vmem:[#allocation3 + $0xd0] sm:$0xff]
      %v2089 = vld [vmem:[#allocation3 + $0xd8] sm:$0xff]
      %v2090 = vld [vmem:[#allocation3 + $0xe0] sm:$0xff]
      %v2091 = vld [vmem:[#allocation3 + $0xe8] sm:$0xff]
      %v2092 = vld [vmem:[#allocation3 + $0xf0] sm:$0xff]
      %v2093 = vld [vmem:[#allocation3 + $0xf8] sm:$0xff]
      %s2094 = scalar_lea.vmem %s1, 2
      %v2095 = vld [vmem:[%s2094] sm:$0x3]
      %vm2096 = vsmask.f32 3328
      %vm2097 = vsmask.f32 7440
      %vm2098 = vmor %vm2096, %vm2097
      %v2100 = vshrl.u32 %v2008, 16
      %v2102 = vrot.slane %v2100, 4
      %v2103 = vshll.u32 %v2008, 16
      %v2105 = vrot.slane %v2103, 5
      %v2106 = vor.u32 %v2102, %v2105
      %v2107 = vrot.slane %v2106, 4
      %v2109 = vshll.u32 %v2009, 16
      %v2111 = vrot.slane %v2109, 5
      %v2112 = vsel %vm2098, %v2107, %v2111
      %v2113 = vshrl.u32 %v2009, 16
      %v2115 = vrot.slane %v2113, 4
      %v2116 = vor.u32 %v2115, %v2111
      %v2117 = vrot.slane %v2116, 4
      %v2119 = vshll.u32 %v2010, 16
      %v2121 = vrot.slane %v2119, 5
      %v2122 = vsel %vm2098, %v2117, %v2121
      %v2124 = vshrl.u32 %v2011, 16
      %v2126 = vrot.slane %v2124, 4
      %v2127 = vshll.u32 %v2011, 16
      %v2129 = vrot.slane %v2127, 5
      %v2130 = vor.u32 %v2126, %v2129
      %v2131 = vrot.slane %v2130, 4
      %v2133 = vshll.u32 %v2012, 16
      %v2135 = vrot.slane %v2133, 5
      %v2136 = vsel %vm2098, %v2131, %v2135
      %v2137 = vshrl.u32 %v2012, 16
      %v2139 = vrot.slane %v2137, 4
      %v2140 = vor.u32 %v2139, %v2135
      %v2141 = vrot.slane %v2140, 4
      %v2143 = vshll.u32 %v2013, 16
      %v2145 = vrot.slane %v2143, 5
      %v2146 = vsel %vm2098, %v2141, %v2145
      %v2148 = vshrl.u32 %v2014, 16
      %v2150 = vrot.slane %v2148, 4
      %v2151 = vshll.u32 %v2014, 16
      %v2153 = vrot.slane %v2151, 5
      %v2154 = vor.u32 %v2150, %v2153
      %v2155 = vrot.slane %v2154, 4
      %v2157 = vshll.u32 %v2015, 16
      %v2159 = vrot.slane %v2157, 5
      %v2160 = vsel %vm2098, %v2155, %v2159
      %v2161 = vshrl.u32 %v2015, 16
      %v2163 = vrot.slane %v2161, 4
      %v2164 = vor.u32 %v2163, %v2159
      %v2165 = vrot.slane %v2164, 4
      %v2167 = vshll.u32 %v2016, 16
      %v2169 = vrot.slane %v2167, 5
      %v2170 = vsel %vm2098, %v2165, %v2169
      %v2172 = vshrl.u32 %v2017, 16
      %v2174 = vrot.slane %v2172, 4
      %v2175 = vshll.u32 %v2017, 16
      %v2177 = vrot.slane %v2175, 5
      %v2178 = vor.u32 %v2174, %v2177
      %v2179 = vrot.slane %v2178, 4
      %v2181 = vshll.u32 %v2018, 16
      %v2183 = vrot.slane %v2181, 5
      %v2184 = vsel %vm2098, %v2179, %v2183
      %v2185 = vshrl.u32 %v2018, 16
      %v2187 = vrot.slane %v2185, 4
      %v2188 = vor.u32 %v2187, %v2183
      %v2189 = vrot.slane %v2188, 4
      %v2191 = vshll.u32 %v2019, 16
      %v2193 = vrot.slane %v2191, 5
      %v2194 = vsel %vm2098, %v2189, %v2193
      %v2196 = vshrl.u32 %v2020, 16
      %v2198 = vrot.slane %v2196, 4
      %v2199 = vshll.u32 %v2020, 16
      %v2201 = vrot.slane %v2199, 5
      %v2202 = vor.u32 %v2198, %v2201
      %v2203 = vrot.slane %v2202, 4
      %v2205 = vshll.u32 %v2021, 16
      %v2207 = vrot.slane %v2205, 5
      %v2208 = vsel %vm2098, %v2203, %v2207
      %v2209 = vshrl.u32 %v2021, 16
      %v2211 = vrot.slane %v2209, 4
      %v2212 = vor.u32 %v2211, %v2207
      %v2213 = vrot.slane %v2212, 4
      %v2215 = vshll.u32 %v2022, 16
      %v2217 = vrot.slane %v2215, 5
      %v2218 = vsel %vm2098, %v2213, %v2217
      %v2220 = vshrl.u32 %v2023, 16
      %v2222 = vrot.slane %v2220, 4
      %v2223 = vshll.u32 %v2023, 16
      %v2225 = vrot.slane %v2223, 5
      %v2226 = vor.u32 %v2222, %v2225
      %v2227 = vrot.slane %v2226, 4
      %v2229 = vshll.u32 %v2024, 16
      %v2231 = vrot.slane %v2229, 5
      %v2232 = vsel %vm2098, %v2227, %v2231
      %v2233 = vshrl.u32 %v2024, 16
      %v2235 = vrot.slane %v2233, 4
      %v2236 = vor.u32 %v2235, %v2231
      %v2237 = vrot.slane %v2236, 4
      %v2239 = vshll.u32 %v2025, 16
      %v2241 = vrot.slane %v2239, 5
      %v2242 = vsel %vm2098, %v2237, %v2241
      %v2244 = vshrl.u32 %v2026, 16
      %v2246 = vrot.slane %v2244, 4
      %v2247 = vshll.u32 %v2026, 16
      %v2249 = vrot.slane %v2247, 5
      %v2250 = vor.u32 %v2246, %v2249
      %v2251 = vrot.slane %v2250, 4
      %v2253 = vshll.u32 %v2027, 16
      %v2255 = vrot.slane %v2253, 5
      %v2256 = vsel %vm2098, %v2251, %v2255
      %v2257 = vshrl.u32 %v2027, 16
      %v2259 = vrot.slane %v2257, 4
      %v2260 = vor.u32 %v2259, %v2255
      %v2261 = vrot.slane %v2260, 4
      %v2263 = vshll.u32 %v2028, 16
      %v2265 = vrot.slane %v2263, 5
      %v2266 = vsel %vm2098, %v2261, %v2265
      %v2268 = vshrl.u32 %v2029, 16
      %v2270 = vrot.slane %v2268, 4
      %v2271 = vshll.u32 %v2029, 16
      %v2273 = vrot.slane %v2271, 5
      %v2274 = vor.u32 %v2270, %v2273
      %v2275 = vrot.slane %v2274, 4
      %v2277 = vshll.u32 %v2030, 16
      %v2279 = vrot.slane %v2277, 5
      %v2280 = vsel %vm2098, %v2275, %v2279
      %v2281 = vshrl.u32 %v2030, 16
      %v2283 = vrot.slane %v2281, 4
      %v2284 = vor.u32 %v2283, %v2279
      %v2285 = vrot.slane %v2284, 4
      %v2287 = vshll.u32 %v2031, 16
      %v2289 = vrot.slane %v2287, 5
      %v2290 = vsel %vm2098, %v2285, %v2289
      %v2292 = vshrl.u32 %v2032, 16
      %v2294 = vrot.slane %v2292, 4
      %v2295 = vshll.u32 %v2032, 16
      %v2297 = vrot.slane %v2295, 5
      %v2298 = vor.u32 %v2294, %v2297
      %v2299 = vrot.slane %v2298, 4
      %v2301 = vshll.u32 %v2033, 16
      %v2303 = vrot.slane %v2301, 5
      %v2304 = vsel %vm2098, %v2299, %v2303
      %v2305 = vshrl.u32 %v2033, 16
      %v2307 = vrot.slane %v2305, 4
      %v2308 = vor.u32 %v2307, %v2303
      %v2309 = vrot.slane %v2308, 4
      %v2311 = vshll.u32 %v2034, 16
      %v2313 = vrot.slane %v2311, 5
      %v2314 = vsel %vm2098, %v2309, %v2313
      %v2316 = vshrl.u32 %v2035, 16
      %v2318 = vrot.slane %v2316, 4
      %v2319 = vshll.u32 %v2035, 16
      %v2321 = vrot.slane %v2319, 5
      %v2322 = vor.u32 %v2318, %v2321
      %v2323 = vrot.slane %v2322, 4
      %v2325 = vshll.u32 %v2036, 16
      %v2327 = vrot.slane %v2325, 5
      %v2328 = vsel %vm2098, %v2323, %v2327
      %v2329 = vshrl.u32 %v2036, 16
      %v2331 = vrot.slane %v2329, 4
      %v2332 = vor.u32 %v2331, %v2327
      %v2333 = vrot.slane %v2332, 4
      %v2335 = vshll.u32 %v2037, 16
      %v2337 = vrot.slane %v2335, 5
      %v2338 = vsel %vm2098, %v2333, %v2337
      %v2340 = vshrl.u32 %v2038, 16
      %v2342 = vrot.slane %v2340, 4
      %v2343 = vshll.u32 %v2038, 16
      %v2345 = vrot.slane %v2343, 5
      %v2346 = vor.u32 %v2342, %v2345
      %v2347 = vrot.slane %v2346, 4
      %v2349 = vshll.u32 %v2039, 16
      %v2351 = vrot.slane %v2349, 5
      %v2352 = vsel %vm2098, %v2347, %v2351
      %v2353 = vshrl.u32 %v2039, 16
      %v2355 = vrot.slane %v2353, 4
      %v2356 = vor.u32 %v2355, %v2351
      %v2357 = vrot.slane %v2356, 4
      %v2359 = vshll.u32 %v2040, 16
      %v2361 = vrot.slane %v2359, 5
      %v2362 = vsel %vm2098, %v2357, %v2361
      %v2364 = vshrl.u32 %v2041, 16
      %v2366 = vrot.slane %v2364, 4
      %v2367 = vshll.u32 %v2041, 16
      %v2369 = vrot.slane %v2367, 5
      %v2370 = vor.u32 %v2366, %v2369
      %v2371 = vrot.slane %v2370, 4
      %v2373 = vshll.u32 %v2042, 16
      %v2375 = vrot.slane %v2373, 5
      %v2376 = vsel %vm2098, %v2371, %v2375
      %v2377 = vshrl.u32 %v2042, 16
      %v2379 = vrot.slane %v2377, 4
      %v2380 = vor.u32 %v2379, %v2375
      %v2381 = vrot.slane %v2380, 4
      %v2383 = vshll.u32 %v2043, 16
      %v2385 = vrot.slane %v2383, 5
      %v2386 = vsel %vm2098, %v2381, %v2385
      %v2388 = vshrl.u32 %v2044, 16
      %v2390 = vrot.slane %v2388, 4
      %v2391 = vshll.u32 %v2044, 16
      %v2393 = vrot.slane %v2391, 5
      %v2394 = vor.u32 %v2390, %v2393
      %v2395 = vrot.slane %v2394, 4
      %v2397 = vshll.u32 %v2045, 16
      %v2399 = vrot.slane %v2397, 5
      %v2400 = vsel %vm2098, %v2395, %v2399
      %v2401 = vshrl.u32 %v2045, 16
      %v2403 = vrot.slane %v2401, 4
      %v2404 = vor.u32 %v2403, %v2399
      %v2405 = vrot.slane %v2404, 4
      %v2407 = vshll.u32 %v2046, 16
      %v2409 = vrot.slane %v2407, 5
      %v2410 = vsel %vm2098, %v2405, %v2409
      %v2412 = vshrl.u32 %v2047, 16
      %v2414 = vrot.slane %v2412, 4
      %v2415 = vshll.u32 %v2047, 16
      %v2417 = vrot.slane %v2415, 5
      %v2418 = vor.u32 %v2414, %v2417
      %v2419 = vrot.slane %v2418, 4
      %v2421 = vshll.u32 %v2048, 16
      %v2423 = vrot.slane %v2421, 5
      %v2424 = vsel %vm2098, %v2419, %v2423
      %v2425 = vshrl.u32 %v2048, 16
      %v2427 = vrot.slane %v2425, 4
      %v2428 = vor.u32 %v2427, %v2423
      %v2429 = vrot.slane %v2428, 4
      %v2431 = vshll.u32 %v2049, 16
      %v2433 = vrot.slane %v2431, 5
      %v2434 = vsel %vm2098, %v2429, %v2433
      %v2436 = vshrl.u32 %v2050, 16
      %v2438 = vrot.slane %v2436, 4
      %v2439 = vshll.u32 %v2050, 16
      %v2441 = vrot.slane %v2439, 5
      %v2442 = vor.u32 %v2438, %v2441
      %v2443 = vrot.slane %v2442, 4
      %v2445 = vshll.u32 %v2051, 16
      %v2447 = vrot.slane %v2445, 5
      %v2448 = vsel %vm2098, %v2443, %v2447
      %v2449 = vshrl.u32 %v2051, 16
      %v2451 = vrot.slane %v2449, 4
      %v2452 = vor.u32 %v2451, %v2447
      %v2453 = vrot.slane %v2452, 4
      %v2455 = vshll.u32 %v2052, 16
      %v2457 = vrot.slane %v2455, 5
      %v2458 = vsel %vm2098, %v2453, %v2457
      %v2460 = vshrl.u32 %v2053, 16
      %v2462 = vrot.slane %v2460, 4
      %v2463 = vshll.u32 %v2053, 16
      %v2465 = vrot.slane %v2463, 5
      %v2466 = vor.u32 %v2462, %v2465
      %v2467 = vrot.slane %v2466, 4
      %v2469 = vshll.u32 %v2054, 16
      %v2471 = vrot.slane %v2469, 5
      %v2472 = vsel %vm2098, %v2467, %v2471
      %v2473 = vshrl.u32 %v2054, 16
      %v2475 = vrot.slane %v2473, 4
      %v2476 = vor.u32 %v2475, %v2471
      %v2477 = vrot.slane %v2476, 4
      %v2479 = vshll.u32 %v2055, 16
      %v2481 = vrot.slane %v2479, 5
      %v2482 = vsel %vm2098, %v2477, %v2481
      %v2483 = vunpack.c.l.b16 %v2112
      %v2484 = vunpack.c.l.b16 %v2122
      %v2485 = vunpack.c.l.b16 %v2136
      %v2486 = vunpack.c.l.b16 %v2146
      %v2487 = vunpack.c.l.b16 %v2160
      %v2488 = vunpack.c.l.b16 %v2170
      %v2489 = vunpack.c.l.b16 %v2184
      %v2490 = vunpack.c.l.b16 %v2194
      %v2491 = vunpack.c.l.b16 %v2208
      %v2492 = vunpack.c.l.b16 %v2218
      %v2493 = vunpack.c.l.b16 %v2232
      %v2494 = vunpack.c.l.b16 %v2242
      %v2495 = vunpack.c.l.b16 %v2256
      %v2496 = vunpack.c.l.b16 %v2266
      %v2497 = vunpack.c.l.b16 %v2280
      %v2498 = vunpack.c.l.b16 %v2290
      %v2499 = vunpack.c.l.b16 %v2304
      %v2500 = vunpack.c.l.b16 %v2314
      %v2501 = vunpack.c.l.b16 %v2328
      %v2502 = vunpack.c.l.b16 %v2338
      %v2503 = vunpack.c.l.b16 %v2352
      %v2504 = vunpack.c.l.b16 %v2362
      %v2505 = vunpack.c.l.b16 %v2376
      %v2506 = vunpack.c.l.b16 %v2386
      %v2507 = vunpack.c.l.b16 %v2400
      %v2508 = vunpack.c.l.b16 %v2410
      %v2509 = vunpack.c.l.b16 %v2424
      %v2510 = vunpack.c.l.b16 %v2434
      %v2511 = vunpack.c.l.b16 %v2448
      %v2512 = vunpack.c.l.b16 %v2458
      %v2513 = vunpack.c.l.b16 %v2472
      %v2514 = vunpack.c.l.b16 %v2482
      %v2515 = vpack.c.b16 %v2484, %v2483
      %v2516 = vpack.c.b16 %v2486, %v2485
      %v2517 = vpack.c.b16 %v2488, %v2487
      %v2518 = vpack.c.b16 %v2490, %v2489
      %v2519 = vpack.c.b16 %v2492, %v2491
      %v2520 = vpack.c.b16 %v2494, %v2493
      %v2521 = vpack.c.b16 %v2496, %v2495
      %v2522 = vpack.c.b16 %v2498, %v2497
      %v2523 = vpack.c.b16 %v2500, %v2499
      %v2524 = vpack.c.b16 %v2502, %v2501
      %v2525 = vpack.c.b16 %v2504, %v2503
      %v2526 = vpack.c.b16 %v2506, %v2505
      %v2527 = vpack.c.b16 %v2508, %v2507
      %v2528 = vpack.c.b16 %v2510, %v2509
      %v2529 = vpack.c.b16 %v2512, %v2511
      %v2530 = vpack.c.b16 %v2514, %v2513
      %v2532 = vsel %vm1009, %v2515, 0
      %v2535 = vsel %vm1009, %v2516, 0
      %v2538 = vsel %vm1009, %v2517, 0
      %v2541 = vsel %vm1009, %v2518, 0
      %v2544 = vsel %vm1009, %v2519, 0
      %v2547 = vsel %vm1009, %v2520, 0
      %v2550 = vsel %vm1009, %v2521, 0
      %v2553 = vsel %vm1009, %v2522, 0
      %v2556 = vsel %vm1009, %v2523, 0
      %v2559 = vsel %vm1009, %v2524, 0
      %v2562 = vsel %vm1009, %v2525, 0
      %v2565 = vsel %vm1009, %v2526, 0
      %v2568 = vsel %vm1009, %v2527, 0
      %v2571 = vsel %vm1009, %v2528, 0
      %v2574 = vsel %vm1009, %v2529, 0
      %v2577 = vsel %vm1009, %v2530, 0
      %v2580 = vsel %vm1239, %v2095, 0
      %2582 = vmatprep.subr.bf16.mxu0 0
      %2583 = vmatpush1.bf16.msra.mxu0 %v2580
      %2584 = vmatprep.subr.bf16.mxu0 0
      %2585 = vmatpush1.bf16.msra.mxu0 0
      %2586 = vmatprep.subr.bf16.mxu0 0
      %2587 = vmatpush1.bf16.msra.mxu0 0
      %2588 = vmatprep.subr.bf16.mxu0 0
      %2589 = vmatpush1.bf16.msra.mxu0 0
      %2590 = vmatprep.subr.bf16.mxu0 0
      %2591 = vmatpush1.bf16.msra.mxu0 0
      %2592 = vmatprep.subr.bf16.mxu0 0
      %2593 = vmatpush1.bf16.msra.mxu0 0
      %2594 = vmatprep.subr.bf16.mxu0 0
      %2595 = vmatpush1.bf16.msra.mxu0 0
      %2596 = vmatprep.subr.bf16.mxu0 0
      %2597 = vmatpush1.bf16.msra.mxu0 0
      %2598 = vmatprep.subr.bf16.mxu0 0
      %2599 = vmatpush1.bf16.msra.mxu0 0
      %2600 = vmatprep.subr.bf16.mxu0 0
      %2601 = vmatpush1.bf16.msra.mxu0 0
      %2602 = vmatprep.subr.bf16.mxu0 0
      %2603 = vmatpush1.bf16.msra.mxu0 0
      %2604 = vmatprep.subr.bf16.mxu0 0
      %2605 = vmatpush1.bf16.msra.mxu0 0
      %2606 = vmatprep.subr.bf16.mxu0 0
      %2607 = vmatpush1.bf16.msra.mxu0 0
      %2608 = vmatprep.subr.bf16.mxu0 0
      %2609 = vmatpush1.bf16.msra.mxu0 0
      %2610 = vmatprep.subr.bf16.mxu0 0
      %2611 = vmatpush1.bf16.msra.mxu0 0
      %2612 = vmatprep.subr.bf16.mxu0 0
      %2613 = vmatpush1.bf16.msra.mxu0 0
      %2614 = vmatprep.mubr.bf16.mxu0 0
      %2615 = vmatmul.mubr.bf16.gmra.mrb[0].mxu0 %v2532
      %v2616 = vpop.f32.mrb[0].mxu0
      %v2617 = vadd.f32 0.0, %v2616
      %v2618 = vpop.f32.mrb[0].mxu0
      %v2619 = vpop.f32.mrb[0].mxu0
      %v2620 = vadd.f32 0.0, %v2619
      %v2621 = vpop.f32.mrb[0].mxu0
      %2622 = vmatprep.mubr.bf16.mxu0 0
      %2623 = vmatmul.mubr.bf16.gmra.mrb[0].mxu0 %v2535
      %v2624 = vpop.f32.mrb[0].mxu0
      %v2625 = vadd.f32 0.0, %v2624
      %v2626 = vpop.f32.mrb[0].mxu0
      %v2627 = vpop.f32.mrb[0].mxu0
      %v2628 = vadd.f32 0.0, %v2627
      %v2629 = vpop.f32.mrb[0].mxu0
      %2630 = vmatprep.mubr.bf16.mxu0 0
      %2631 = vmatmul.mubr.bf16.gmra.mrb[0].mxu0 %v2538
      %v2632 = vpop.f32.mrb[0].mxu0
      %v2633 = vadd.f32 0.0, %v2632
      %v2634 = vpop.f32.mrb[0].mxu0
      %v2635 = vpop.f32.mrb[0].mxu0
      %v2636 = vadd.f32 0.0, %v2635
      %v2637 = vpop.f32.mrb[0].mxu0
      %2638 = vmatprep.mubr.bf16.mxu0 0
      %2639 = vmatmul.mubr.bf16.gmra.mrb[0].mxu0 %v2541
      %v2640 = vpop.f32.mrb[0].mxu0
      %v2641 = vadd.f32 0.0, %v2640
      %v2642 = vpop.f32.mrb[0].mxu0
      %v2643 = vpop.f32.mrb[0].mxu0
      %v2644 = vadd.f32 0.0, %v2643
      %v2645 = vpop.f32.mrb[0].mxu0
      %2646 = vmatprep.mubr.bf16.mxu0 0
      %2647 = vmatmul.mubr.bf16.gmra.mrb[0].mxu0 %v2544
      %v2648 = vpop.f32.mrb[0].mxu0
      %v2649 = vadd.f32 0.0, %v2648
      %v2650 = vpop.f32.mrb[0].mxu0
      %v2651 = vpop.f32.mrb[0].mxu0
      %v2652 = vadd.f32 0.0, %v2651
      %v2653 = vpop.f32.mrb[0].mxu0
      %2654 = vmatprep.mubr.bf16.mxu0 0
      %2655 = vmatmul.mubr.bf16.gmra.mrb[0].mxu0 %v2547
      %v2656 = vpop.f32.mrb[0].mxu0
      %v2657 = vadd.f32 0.0, %v2656
      %v2658 = vpop.f32.mrb[0].mxu0
      %v2659 = vpop.f32.mrb[0].mxu0
      %v2660 = vadd.f32 0.0, %v2659
      %v2661 = vpop.f32.mrb[0].mxu0
      %2662 = vmatprep.mubr.bf16.mxu0 0
      %2663 = vmatmul.mubr.bf16.gmra.mrb[0].mxu0 %v2550
      %v2664 = vpop.f32.mrb[0].mxu0
      %v2665 = vadd.f32 0.0, %v2664
      %v2666 = vpop.f32.mrb[0].mxu0
      %v2667 = vpop.f32.mrb[0].mxu0
      %v2668 = vadd.f32 0.0, %v2667
      %v2669 = vpop.f32.mrb[0].mxu0
      %2670 = vmatprep.mubr.bf16.mxu0 0
      %2671 = vmatmul.mubr.bf16.gmra.mrb[0].mxu0 %v2553
      %v2672 = vpop.f32.mrb[0].mxu0
      %v2673 = vadd.f32 0.0, %v2672
      %v2674 = vpop.f32.mrb[0].mxu0
      %v2675 = vpop.f32.mrb[0].mxu0
      %v2676 = vadd.f32 0.0, %v2675
      %v2677 = vpop.f32.mrb[0].mxu0
      %2678 = vmatprep.mubr.bf16.mxu0 0
      %2679 = vmatmul.mubr.bf16.gmra.mrb[0].mxu0 %v2556
      %v2680 = vpop.f32.mrb[0].mxu0
      %v2681 = vadd.f32 0.0, %v2680
      %v2682 = vpop.f32.mrb[0].mxu0
      %v2683 = vpop.f32.mrb[0].mxu0
      %v2684 = vadd.f32 0.0, %v2683
      %v2685 = vpop.f32.mrb[0].mxu0
      %2686 = vmatprep.mubr.bf16.mxu0 0
      %2687 = vmatmul.mubr.bf16.gmra.mrb[0].mxu0 %v2559
      %v2688 = vpop.f32.mrb[0].mxu0
      %v2689 = vadd.f32 0.0, %v2688
      %v2690 = vpop.f32.mrb[0].mxu0
      %v2691 = vpop.f32.mrb[0].mxu0
      %v2692 = vadd.f32 0.0, %v2691
      %v2693 = vpop.f32.mrb[0].mxu0
      %2694 = vmatprep.mubr.bf16.mxu0 0
      %2695 = vmatmul.mubr.bf16.gmra.mrb[0].mxu0 %v2562
      %v2696 = vpop.f32.mrb[0].mxu0
      %v2697 = vadd.f32 0.0, %v2696
      %v2698 = vpop.f32.mrb[0].mxu0
      %v2699 = vpop.f32.mrb[0].mxu0
      %v2700 = vadd.f32 0.0, %v2699
      %v2701 = vpop.f32.mrb[0].mxu0
      %2702 = vmatprep.mubr.bf16.mxu0 0
      %2703 = vmatmul.mubr.bf16.gmra.mrb[0].mxu0 %v2565
      %v2704 = vpop.f32.mrb[0].mxu0
      %v2705 = vadd.f32 0.0, %v2704
      %v2706 = vpop.f32.mrb[0].mxu0
      %v2707 = vpop.f32.mrb[0].mxu0
      %v2708 = vadd.f32 0.0, %v2707
      %v2709 = vpop.f32.mrb[0].mxu0
      %2710 = vmatprep.mubr.bf16.mxu0 0
      %2711 = vmatmul.mubr.bf16.gmra.mrb[0].mxu0 %v2568
      %v2712 = vpop.f32.mrb[0].mxu0
      %v2713 = vadd.f32 0.0, %v2712
      %v2714 = vpop.f32.mrb[0].mxu0
      %v2715 = vpop.f32.mrb[0].mxu0
      %v2716 = vadd.f32 0.0, %v2715
      %v2717 = vpop.f32.mrb[0].mxu0
      %2718 = vmatprep.mubr.bf16.mxu0 0
      %2719 = vmatmul.mubr.bf16.gmra.mrb[0].mxu0 %v2571
      %v2720 = vpop.f32.mrb[0].mxu0
      %v2721 = vadd.f32 0.0, %v2720
      %v2722 = vpop.f32.mrb[0].mxu0
      %v2723 = vpop.f32.mrb[0].mxu0
      %v2724 = vadd.f32 0.0, %v2723
      %v2725 = vpop.f32.mrb[0].mxu0
      %2726 = vmatprep.mubr.bf16.mxu0 0
      %2727 = vmatmul.mubr.bf16.gmra.mrb[0].mxu0 %v2574
      %v2728 = vpop.f32.mrb[0].mxu0
      %v2729 = vadd.f32 0.0, %v2728
      %v2730 = vpop.f32.mrb[0].mxu0
      %v2731 = vpop.f32.mrb[0].mxu0
      %v2732 = vadd.f32 0.0, %v2731
      %v2733 = vpop.f32.mrb[0].mxu0
      %2734 = vmatprep.mubr.bf16.mxu0 0
      %2735 = vmatmul.mubr.bf16.gmra.mrb[0].mxu0 %v2577
      %v2736 = vpop.f32.mrb[0].mxu0
      %v2737 = vadd.f32 0.0, %v2736
      %v2738 = vpop.f32.mrb[0].mxu0
      %v2739 = vpop.f32.mrb[0].mxu0
      %v2740 = vadd.f32 0.0, %v2739
      %v2741 = vpop.f32.mrb[0].mxu0
      %2742 = vdwg.mxu0
      %v2743 = vadd.f32 %v2062, %v2617
      %v2744 = vadd.f32 %v2063, %v2620
      %v2745 = vadd.f32 %v2064, %v2625
      %v2746 = vadd.f32 %v2065, %v2628
      %v2747 = vadd.f32 %v2066, %v2633
      %v2748 = vadd.f32 %v2067, %v2636
      %v2749 = vadd.f32 %v2068, %v2641
      %v2750 = vadd.f32 %v2069, %v2644
      %v2751 = vadd.f32 %v2070, %v2649
      %v2752 = vadd.f32 %v2071, %v2652
      %v2753 = vadd.f32 %v2072, %v2657
      %v2754 = vadd.f32 %v2073, %v2660
      %v2755 = vadd.f32 %v2074, %v2665
      %v2756 = vadd.f32 %v2075, %v2668
      %v2757 = vadd.f32 %v2076, %v2673
      %v2758 = vadd.f32 %v2077, %v2676
      %v2759 = vadd.f32 %v2078, %v2681
      %v2760 = vadd.f32 %v2079, %v2684
      %v2761 = vadd.f32 %v2080, %v2689
      %v2762 = vadd.f32 %v2081, %v2692
      %v2763 = vadd.f32 %v2082, %v2697
      %v2764 = vadd.f32 %v2083, %v2700
      %v2765 = vadd.f32 %v2084, %v2705
      %v2766 = vadd.f32 %v2085, %v2708
      %v2767 = vadd.f32 %v2086, %v2713
      %v2768 = vadd.f32 %v2087, %v2716
      %v2769 = vadd.f32 %v2088, %v2721
      %v2770 = vadd.f32 %v2089, %v2724
      %v2771 = vadd.f32 %v2090, %v2729
      %v2772 = vadd.f32 %v2091, %v2732
      %v2773 = vadd.f32 %v2092, %v2737
      %v2774 = vadd.f32 %v2093, %v2740
      %2775 = vst.msk [vmem:[#allocation3] sm:$0xff] %vm1009, %v2743
      %2776 = vst.msk [vmem:[#allocation3 + $0x8] sm:$0xff] %vm1009, %v2744
      %2777 = vst.msk [vmem:[#allocation3 + $0x10] sm:$0xff] %vm1009, %v2745
      %2778 = vst.msk [vmem:[#allocation3 + $0x18] sm:$0xff] %vm1009, %v2746
      %2779 = vst.msk [vmem:[#allocation3 + $0x20] sm:$0xff] %vm1009, %v2747
      %2780 = vst.msk [vmem:[#allocation3 + $0x28] sm:$0xff] %vm1009, %v2748
      %2781 = vst.msk [vmem:[#allocation3 + $0x30] sm:$0xff] %vm1009, %v2749
      %2782 = vst.msk [vmem:[#allocation3 + $0x38] sm:$0xff] %vm1009, %v2750
      %2783 = vst.msk [vmem:[#allocation3 + $0x40] sm:$0xff] %vm1009, %v2751
      %2784 = vst.msk [vmem:[#allocation3 + $0x48] sm:$0xff] %vm1009, %v2752
      %2785 = vst.msk [vmem:[#allocation3 + $0x50] sm:$0xff] %vm1009, %v2753
      %2786 = vst.msk [vmem:[#allocation3 + $0x58] sm:$0xff] %vm1009, %v2754
      %2787 = vst.msk [vmem:[#allocation3 + $0x60] sm:$0xff] %vm1009, %v2755
      %2788 = vst.msk [vmem:[#allocation3 + $0x68] sm:$0xff] %vm1009, %v2756
      %2789 = vst.msk [vmem:[#allocation3 + $0x70] sm:$0xff] %vm1009, %v2757
      %2790 = vst.msk [vmem:[#allocation3 + $0x78] sm:$0xff] %vm1009, %v2758
      %2791 = vst.msk [vmem:[#allocation3 + $0x80] sm:$0xff] %vm1009, %v2759
      %2792 = vst.msk [vmem:[#allocation3 + $0x88] sm:$0xff] %vm1009, %v2760
      %2793 = vst.msk [vmem:[#allocation3 + $0x90] sm:$0xff] %vm1009, %v2761
      %2794 = vst.msk [vmem:[#allocation3 + $0x98] sm:$0xff] %vm1009, %v2762
      %2795 = vst.msk [vmem:[#allocation3 + $0xa0] sm:$0xff] %vm1009, %v2763
      %2796 = vst.msk [vmem:[#allocation3 + $0xa8] sm:$0xff] %vm1009, %v2764
      %2797 = vst.msk [vmem:[#allocation3 + $0xb0] sm:$0xff] %vm1009, %v2765
      %2798 = vst.msk [vmem:[#allocation3 + $0xb8] sm:$0xff] %vm1009, %v2766
      %2799 = vst.msk [vmem:[#allocation3 + $0xc0] sm:$0xff] %vm1009, %v2767
      %2800 = vst.msk [vmem:[#allocation3 + $0xc8] sm:$0xff] %vm1009, %v2768
      %2801 = vst.msk [vmem:[#allocation3 + $0xd0] sm:$0xff] %vm1009, %v2769
      %2802 = vst.msk [vmem:[#allocation3 + $0xd8] sm:$0xff] %vm1009, %v2770
      %2803 = vst.msk [vmem:[#allocation3 + $0xe0] sm:$0xff] %vm1009, %v2771
      %2804 = vst.msk [vmem:[#allocation3 + $0xe8] sm:$0xff] %vm1009, %v2772
      %2805 = vst.msk [vmem:[#allocation3 + $0xf0] sm:$0xff] %vm1009, %v2773
      %2806 = vst.msk [vmem:[#allocation3 + $0xf8] sm:$0xff] %vm1009, %v2774
      %v2807 = vld [vmem:[#allocation3] sm:$0xff]
      %v2808 = vld [vmem:[#allocation3 + $0x8] sm:$0xff]
      %v2809 = vld [vmem:[#allocation3 + $0x10] sm:$0xff]
      %v2810 = vld [vmem:[#allocation3 + $0x18] sm:$0xff]
      %v2811 = vld [vmem:[#allocation3 + $0x20] sm:$0xff]
      %v2812 = vld [vmem:[#allocation3 + $0x28] sm:$0xff]
      %v2813 = vld [vmem:[#allocation3 + $0x30] sm:$0xff]
      %v2814 = vld [vmem:[#allocation3 + $0x38] sm:$0xff]
      %v2815 = vld [vmem:[#allocation3 + $0x40] sm:$0xff]
      %v2816 = vld [vmem:[#allocation3 + $0x48] sm:$0xff]
      %v2817 = vld [vmem:[#allocation3 + $0x50] sm:$0xff]
      %v2818 = vld [vmem:[#allocation3 + $0x58] sm:$0xff]
      %v2819 = vld [vmem:[#allocation3 + $0x60] sm:$0xff]
      %v2820 = vld [vmem:[#allocation3 + $0x68] sm:$0xff]
      %v2821 = vld [vmem:[#allocation3 + $0x70] sm:$0xff]
      %v2822 = vld [vmem:[#allocation3 + $0x78] sm:$0xff]
      %v2823 = vld [vmem:[#allocation3 + $0x80] sm:$0xff]
      %v2824 = vld [vmem:[#allocation3 + $0x88] sm:$0xff]
      %v2825 = vld [vmem:[#allocation3 + $0x90] sm:$0xff]
      %v2826 = vld [vmem:[#allocation3 + $0x98] sm:$0xff]
      %v2827 = vld [vmem:[#allocation3 + $0xa0] sm:$0xff]
      %v2828 = vld [vmem:[#allocation3 + $0xa8] sm:$0xff]
      %v2829 = vld [vmem:[#allocation3 + $0xb0] sm:$0xff]
      %v2830 = vld [vmem:[#allocation3 + $0xb8] sm:$0xff]
      %v2831 = vld [vmem:[#allocation3 + $0xc0] sm:$0xff]
      %v2832 = vld [vmem:[#allocation3 + $0xc8] sm:$0xff]
      %v2833 = vld [vmem:[#allocation3 + $0xd0] sm:$0xff]
      %v2834 = vld [vmem:[#allocation3 + $0xd8] sm:$0xff]
      %v2835 = vld [vmem:[#allocation3 + $0xe0] sm:$0xff]
      %v2836 = vld [vmem:[#allocation3 + $0xe8] sm:$0xff]
      %v2837 = vld [vmem:[#allocation3 + $0xf0] sm:$0xff]
      %v2838 = vld [vmem:[#allocation3 + $0xf8] sm:$0xff]
      %s2839 = scalar_lea.vmem %s1, 8
      %v2840 = vld [vmem:[%s2839] sm:$0x3]
      %v2842 = vshrl.u32 %v2056, 16
      %v2844 = vrot.slane %v2842, 4
      %v2845 = vshll.u32 %v2056, 16
      %v2847 = vrot.slane %v2845, 5
      %v2848 = vor.u32 %v2844, %v2847
      %v2849 = vrot.slane %v2848, 4
      %v2851 = vshll.u32 %v2057, 16
      %v2853 = vrot.slane %v2851, 5
      %v2854 = vsel %vm2098, %v2849, %v2853
      %v2855 = vshrl.u32 %v2057, 16
      %v2857 = vrot.slane %v2855, 4
      %v2858 = vor.u32 %v2857, %v2853
      %v2859 = vrot.slane %v2858, 4
      %v2861 = vshll.u32 %v2058, 16
      %v2863 = vrot.slane %v2861, 5
      %v2864 = vsel %vm2098, %v2859, %v2863
      %v2865 = vunpack.c.l.b16 %v2854
      %v2866 = vunpack.c.l.b16 %v2864
      %v2867 = vpack.c.b16 %v2866, %v2865
      %v2869 = vsel %vm1009, %v2867, 0
      %v2872 = vsel %vm1239, %v2840, 0
      %2874 = vmatprep.subr.bf16.mxu0 0
      %2875 = vmatpush1.bf16.msra.mxu0 %v2872
      %2876 = vmatprep.subr.bf16.mxu0 0
      %2877 = vmatpush1.bf16.msra.mxu0 0
      %2878 = vmatprep.subr.bf16.mxu0 0
      %2879 = vmatpush1.bf16.msra.mxu0 0
      %2880 = vmatprep.subr.bf16.mxu0 0
      %2881 = vmatpush1.bf16.msra.mxu0 0
      %2882 = vmatprep.subr.bf16.mxu0 0
      %2883 = vmatpush1.bf16.msra.mxu0 0
      %2884 = vmatprep.subr.bf16.mxu0 0
      %2885 = vmatpush1.bf16.msra.mxu0 0
      %2886 = vmatprep.subr.bf16.mxu0 0
      %2887 = vmatpush1.bf16.msra.mxu0 0
      %2888 = vmatprep.subr.bf16.mxu0 0
      %2889 = vmatpush1.bf16.msra.mxu0 0
      %2890 = vmatprep.subr.bf16.mxu0 0
      %2891 = vmatpush1.bf16.msra.mxu0 0
      %2892 = vmatprep.subr.bf16.mxu0 0
      %2893 = vmatpush1.bf16.msra.mxu0 0
      %2894 = vmatprep.subr.bf16.mxu0 0
      %2895 = vmatpush1.bf16.msra.mxu0 0
      %2896 = vmatprep.subr.bf16.mxu0 0
      %2897 = vmatpush1.bf16.msra.mxu0 0
      %2898 = vmatprep.subr.bf16.mxu0 0
      %2899 = vmatpush1.bf16.msra.mxu0 0
      %2900 = vmatprep.subr.bf16.mxu0 0
      %2901 = vmatpush1.bf16.msra.mxu0 0
      %2902 = vmatprep.subr.bf16.mxu0 0
      %2903 = vmatpush1.bf16.msra.mxu0 0
      %2904 = vmatprep.subr.bf16.mxu0 0
      %2905 = vmatpush1.bf16.msra.mxu0 0
      %2906 = vmatprep.mubr.bf16.mxu0 0
      %2907 = vmatmul.mubr.bf16.gmra.mrb[0].mxu0 %v2535
      %v2908 = vpop.f32.mrb[0].mxu0
      %v2909 = vadd.f32 0.0, %v2908
      %v2910 = vpop.f32.mrb[0].mxu0
      %v2911 = vpop.f32.mrb[0].mxu0
      %v2912 = vadd.f32 0.0, %v2911
      %v2913 = vpop.f32.mrb[0].mxu0
      %2914 = vmatprep.mubr.bf16.mxu0 0
      %2915 = vmatmul.mubr.bf16.gmra.mrb[0].mxu0 %v2538
      %v2916 = vpop.f32.mrb[0].mxu0
      %v2917 = vadd.f32 0.0, %v2916
      %v2918 = vpop.f32.mrb[0].mxu0
      %v2919 = vpop.f32.mrb[0].mxu0
      %v2920 = vadd.f32 0.0, %v2919
      %v2921 = vpop.f32.mrb[0].mxu0
      %2922 = vmatprep.mubr.bf16.mxu0 0
      %2923 = vmatmul.mubr.bf16.gmra.mrb[0].mxu0 %v2541
      %v2924 = vpop.f32.mrb[0].mxu0
      %v2925 = vadd.f32 0.0, %v2924
      %v2926 = vpop.f32.mrb[0].mxu0
      %v2927 = vpop.f32.mrb[0].mxu0
      %v2928 = vadd.f32 0.0, %v2927
      %v2929 = vpop.f32.mrb[0].mxu0
      %2930 = vmatprep.mubr.bf16.mxu0 0
      %2931 = vmatmul.mubr.bf16.gmra.mrb[0].mxu0 %v2544
      %v2932 = vpop.f32.mrb[0].mxu0
      %v2933 = vadd.f32 0.0, %v2932
      %v2934 = vpop.f32.mrb[0].mxu0
      %v2935 = vpop.f32.mrb[0].mxu0
      %v2936 = vadd.f32 0.0, %v2935
      %v2937 = vpop.f32.mrb[0].mxu0
      %2938 = vmatprep.mubr.bf16.mxu0 0
      %2939 = vmatmul.mubr.bf16.gmra.mrb[0].mxu0 %v2547
      %v2940 = vpop.f32.mrb[0].mxu0
      %v2941 = vadd.f32 0.0, %v2940
      %v2942 = vpop.f32.mrb[0].mxu0
      %v2943 = vpop.f32.mrb[0].mxu0
      %v2944 = vadd.f32 0.0, %v2943
      %v2945 = vpop.f32.mrb[0].mxu0
      %2946 = vmatprep.mubr.bf16.mxu0 0
      %2947 = vmatmul.mubr.bf16.gmra.mrb[0].mxu0 %v2550
      %v2948 = vpop.f32.mrb[0].mxu0
      %v2949 = vadd.f32 0.0, %v2948
      %v2950 = vpop.f32.mrb[0].mxu0
      %v2951 = vpop.f32.mrb[0].mxu0
      %v2952 = vadd.f32 0.0, %v2951
      %v2953 = vpop.f32.mrb[0].mxu0
      %2954 = vmatprep.mubr.bf16.mxu0 0
      %2955 = vmatmul.mubr.bf16.gmra.mrb[0].mxu0 %v2553
      %v2956 = vpop.f32.mrb[0].mxu0
      %v2957 = vadd.f32 0.0, %v2956
      %v2958 = vpop.f32.mrb[0].mxu0
      %v2959 = vpop.f32.mrb[0].mxu0
      %v2960 = vadd.f32 0.0, %v2959
      %v2961 = vpop.f32.mrb[0].mxu0
      %2962 = vmatprep.mubr.bf16.mxu0 0
      %2963 = vmatmul.mubr.bf16.gmra.mrb[0].mxu0 %v2556
      %v2964 = vpop.f32.mrb[0].mxu0
      %v2965 = vadd.f32 0.0, %v2964
      %v2966 = vpop.f32.mrb[0].mxu0
      %v2967 = vpop.f32.mrb[0].mxu0
      %v2968 = vadd.f32 0.0, %v2967
      %v2969 = vpop.f32.mrb[0].mxu0
      %2970 = vmatprep.mubr.bf16.mxu0 0
      %2971 = vmatmul.mubr.bf16.gmra.mrb[0].mxu0 %v2559
      %v2972 = vpop.f32.mrb[0].mxu0
      %v2973 = vadd.f32 0.0, %v2972
      %v2974 = vpop.f32.mrb[0].mxu0
      %v2975 = vpop.f32.mrb[0].mxu0
      %v2976 = vadd.f32 0.0, %v2975
      %v2977 = vpop.f32.mrb[0].mxu0
      %2978 = vmatprep.mubr.bf16.mxu0 0
      %2979 = vmatmul.mubr.bf16.gmra.mrb[0].mxu0 %v2562
      %v2980 = vpop.f32.mrb[0].mxu0
      %v2981 = vadd.f32 0.0, %v2980
      %v2982 = vpop.f32.mrb[0].mxu0
      %v2983 = vpop.f32.mrb[0].mxu0
      %v2984 = vadd.f32 0.0, %v2983
      %v2985 = vpop.f32.mrb[0].mxu0
      %2986 = vmatprep.mubr.bf16.mxu0 0
      %2987 = vmatmul.mubr.bf16.gmra.mrb[0].mxu0 %v2565
      %v2988 = vpop.f32.mrb[0].mxu0
      %v2989 = vadd.f32 0.0, %v2988
      %v2990 = vpop.f32.mrb[0].mxu0
      %v2991 = vpop.f32.mrb[0].mxu0
      %v2992 = vadd.f32 0.0, %v2991
      %v2993 = vpop.f32.mrb[0].mxu0
      %2994 = vmatprep.mubr.bf16.mxu0 0
      %2995 = vmatmul.mubr.bf16.gmra.mrb[0].mxu0 %v2568
      %v2996 = vpop.f32.mrb[0].mxu0
      %v2997 = vadd.f32 0.0, %v2996
      %v2998 = vpop.f32.mrb[0].mxu0
      %v2999 = vpop.f32.mrb[0].mxu0
      %v3000 = vadd.f32 0.0, %v2999
      %v3001 = vpop.f32.mrb[0].mxu0
      %3002 = vmatprep.mubr.bf16.mxu0 0
      %3003 = vmatmul.mubr.bf16.gmra.mrb[0].mxu0 %v2571
      %v3004 = vpop.f32.mrb[0].mxu0
      %v3005 = vadd.f32 0.0, %v3004
      %v3006 = vpop.f32.mrb[0].mxu0
      %v3007 = vpop.f32.mrb[0].mxu0
      %v3008 = vadd.f32 0.0, %v3007
      %v3009 = vpop.f32.mrb[0].mxu0
      %3010 = vmatprep.mubr.bf16.mxu0 0
      %3011 = vmatmul.mubr.bf16.gmra.mrb[0].mxu0 %v2574
      %v3012 = vpop.f32.mrb[0].mxu0
      %v3013 = vadd.f32 0.0, %v3012
      %v3014 = vpop.f32.mrb[0].mxu0
      %v3015 = vpop.f32.mrb[0].mxu0
      %v3016 = vadd.f32 0.0, %v3015
      %v3017 = vpop.f32.mrb[0].mxu0
      %3018 = vmatprep.mubr.bf16.mxu0 0
      %3019 = vmatmul.mubr.bf16.gmra.mrb[0].mxu0 %v2577
      %v3020 = vpop.f32.mrb[0].mxu0
      %v3021 = vadd.f32 0.0, %v3020
      %v3022 = vpop.f32.mrb[0].mxu0
      %v3023 = vpop.f32.mrb[0].mxu0
      %v3024 = vadd.f32 0.0, %v3023
      %v3025 = vpop.f32.mrb[0].mxu0
      %3026 = vmatprep.mubr.bf16.mxu0 0
      %3027 = vmatmul.mubr.bf16.gmra.mrb[0].mxu0 %v2869
      %v3028 = vpop.f32.mrb[0].mxu0
      %v3029 = vadd.f32 0.0, %v3028
      %v3030 = vpop.f32.mrb[0].mxu0
      %v3031 = vpop.f32.mrb[0].mxu0
      %v3032 = vadd.f32 0.0, %v3031
      %v3033 = vpop.f32.mrb[0].mxu0
      %3034 = vdwg.mxu0
      %v3035 = vadd.f32 %v2807, %v2909
      %v3036 = vadd.f32 %v2808, %v2912
      %v3037 = vadd.f32 %v2809, %v2917
      %v3038 = vadd.f32 %v2810, %v2920
      %v3039 = vadd.f32 %v2811, %v2925
      %v3040 = vadd.f32 %v2812, %v2928
      %v3041 = vadd.f32 %v2813, %v2933
      %v3042 = vadd.f32 %v2814, %v2936
      %v3043 = vadd.f32 %v2815, %v2941
      %v3044 = vadd.f32 %v2816, %v2944
      %v3045 = vadd.f32 %v2817, %v2949
      %v3046 = vadd.f32 %v2818, %v2952
      %v3047 = vadd.f32 %v2819, %v2957
      %v3048 = vadd.f32 %v2820, %v2960
      %v3049 = vadd.f32 %v2821, %v2965
      %v3050 = vadd.f32 %v2822, %v2968
      %v3051 = vadd.f32 %v2823, %v2973
      %v3052 = vadd.f32 %v2824, %v2976
      %v3053 = vadd.f32 %v2825, %v2981
      %v3054 = vadd.f32 %v2826, %v2984
      %v3055 = vadd.f32 %v2827, %v2989
      %v3056 = vadd.f32 %v2828, %v2992
      %v3057 = vadd.f32 %v2829, %v2997
      %v3058 = vadd.f32 %v2830, %v3000
      %v3059 = vadd.f32 %v2831, %v3005
      %v3060 = vadd.f32 %v2832, %v3008
      %v3061 = vadd.f32 %v2833, %v3013
      %v3062 = vadd.f32 %v2834, %v3016
      %v3063 = vadd.f32 %v2835, %v3021
      %v3064 = vadd.f32 %v2836, %v3024
      %v3065 = vadd.f32 %v2837, %v3029
      %v3066 = vadd.f32 %v2838, %v3032
      %3067 = vst.msk [vmem:[#allocation3] sm:$0xff] %vm1009, %v3035
      %3068 = vst.msk [vmem:[#allocation3 + $0x8] sm:$0xff] %vm1009, %v3036
      %3069 = vst.msk [vmem:[#allocation3 + $0x10] sm:$0xff] %vm1009, %v3037
      %3070 = vst.msk [vmem:[#allocation3 + $0x18] sm:$0xff] %vm1009, %v3038
      %3071 = vst.msk [vmem:[#allocation3 + $0x20] sm:$0xff] %vm1009, %v3039
      %3072 = vst.msk [vmem:[#allocation3 + $0x28] sm:$0xff] %vm1009, %v3040
      %3073 = vst.msk [vmem:[#allocation3 + $0x30] sm:$0xff] %vm1009, %v3041
      %3074 = vst.msk [vmem:[#allocation3 + $0x38] sm:$0xff] %vm1009, %v3042
      %3075 = vst.msk [vmem:[#allocation3 + $0x40] sm:$0xff] %vm1009, %v3043
      %3076 = vst.msk [vmem:[#allocation3 + $0x48] sm:$0xff] %vm1009, %v3044
      %3077 = vst.msk [vmem:[#allocation3 + $0x50] sm:$0xff] %vm1009, %v3045
      %3078 = vst.msk [vmem:[#allocation3 + $0x58] sm:$0xff] %vm1009, %v3046
      %3079 = vst.msk [vmem:[#allocation3 + $0x60] sm:$0xff] %vm1009, %v3047
      %3080 = vst.msk [vmem:[#allocation3 + $0x68] sm:$0xff] %vm1009, %v3048
      %3081 = vst.msk [vmem:[#allocation3 + $0x70] sm:$0xff] %vm1009, %v3049
      %3082 = vst.msk [vmem:[#allocation3 + $0x78] sm:$0xff] %vm1009, %v3050
      %3083 = vst.msk [vmem:[#allocation3 + $0x80] sm:$0xff] %vm1009, %v3051
      %3084 = vst.msk [vmem:[#allocation3 + $0x88] sm:$0xff] %vm1009, %v3052
      %3085 = vst.msk [vmem:[#allocation3 + $0x90] sm:$0xff] %vm1009, %v3053
      %3086 = vst.msk [vmem:[#allocation3 + $0x98] sm:$0xff] %vm1009, %v3054
      %3087 = vst.msk [vmem:[#allocation3 + $0xa0] sm:$0xff] %vm1009, %v3055
      %3088 = vst.msk [vmem:[#allocation3 + $0xa8] sm:$0xff] %vm1009, %v3056
      %3089 = vst.msk [vmem:[#allocation3 + $0xb0] sm:$0xff] %vm1009, %v3057
      %3090 = vst.msk [vmem:[#allocation3 + $0xb8] sm:$0xff] %vm1009, %v3058
      %3091 = vst.msk [vmem:[#allocation3 + $0xc0] sm:$0xff] %vm1009, %v3059
      %3092 = vst.msk [vmem:[#allocation3 + $0xc8] sm:$0xff] %vm1009, %v3060
      %3093 = vst.msk [vmem:[#allocation3 + $0xd0] sm:$0xff] %vm1009, %v3061
      %3094 = vst.msk [vmem:[#allocation3 + $0xd8] sm:$0xff] %vm1009, %v3062
      %3095 = vst.msk [vmem:[#allocation3 + $0xe0] sm:$0xff] %vm1009, %v3063
      %3096 = vst.msk [vmem:[#allocation3 + $0xe8] sm:$0xff] %vm1009, %v3064
      %3097 = vst.msk [vmem:[#allocation3 + $0xf0] sm:$0xff] %vm1009, %v3065
      %3098 = vst.msk [vmem:[#allocation3 + $0xf8] sm:$0xff] %vm1009, %v3066
      %v3099 = vld [vmem:[#allocation3] sm:$0xff]
      %v3100 = vld [vmem:[#allocation3 + $0x8] sm:$0xff]
      %v3101 = vld [vmem:[#allocation3 + $0x10] sm:$0xff]
      %v3102 = vld [vmem:[#allocation3 + $0x18] sm:$0xff]
      %v3103 = vld [vmem:[#allocation3 + $0x20] sm:$0xff]
      %v3104 = vld [vmem:[#allocation3 + $0x28] sm:$0xff]
      %v3105 = vld [vmem:[#allocation3 + $0x30] sm:$0xff]
      %v3106 = vld [vmem:[#allocation3 + $0x38] sm:$0xff]
      %v3107 = vld [vmem:[#allocation3 + $0x40] sm:$0xff]
      %v3108 = vld [vmem:[#allocation3 + $0x48] sm:$0xff]
      %v3109 = vld [vmem:[#allocation3 + $0x50] sm:$0xff]
      %v3110 = vld [vmem:[#allocation3 + $0x58] sm:$0xff]
      %v3111 = vld [vmem:[#allocation3 + $0x60] sm:$0xff]
      %v3112 = vld [vmem:[#allocation3 + $0x68] sm:$0xff]
      %v3113 = vld [vmem:[#allocation3 + $0x70] sm:$0xff]
      %v3114 = vld [vmem:[#allocation3 + $0x78] sm:$0xff]
      %v3115 = vld [vmem:[#allocation3 + $0x80] sm:$0xff]
      %v3116 = vld [vmem:[#allocation3 + $0x88] sm:$0xff]
      %v3117 = vld [vmem:[#allocation3 + $0x90] sm:$0xff]
      %v3118 = vld [vmem:[#allocation3 + $0x98] sm:$0xff]
      %v3119 = vld [vmem:[#allocation3 + $0xa0] sm:$0xff]
      %v3120 = vld [vmem:[#allocation3 + $0xa8] sm:$0xff]
      %v3121 = vld [vmem:[#allocation3 + $0xb0] sm:$0xff]
      %v3122 = vld [vmem:[#allocation3 + $0xb8] sm:$0xff]
      %v3123 = vld [vmem:[#allocation3 + $0xc0] sm:$0xff]
      %v3124 = vld [vmem:[#allocation3 + $0xc8] sm:$0xff]
      %v3125 = vld [vmem:[#allocation3 + $0xd0] sm:$0xff]
      %v3126 = vld [vmem:[#allocation3 + $0xd8] sm:$0xff]
      %v3127 = vld [vmem:[#allocation3 + $0xe0] sm:$0xff]
      %v3128 = vld [vmem:[#allocation3 + $0xe8] sm:$0xff]
      %v3129 = vld [vmem:[#allocation3 + $0xf0] sm:$0xff]
      %v3130 = vld [vmem:[#allocation3 + $0xf8] sm:$0xff]
      %s3131 = scalar_lea.vmem %s1, 14
      %v3132 = vld [vmem:[%s3131] sm:$0x3]
      %v3134 = vshrl.u32 %v2059, 16
      %v3136 = vrot.slane %v3134, 4
      %v3137 = vshll.u32 %v2059, 16
      %v3139 = vrot.slane %v3137, 5
      %v3140 = vor.u32 %v3136, %v3139
      %v3141 = vrot.slane %v3140, 4
      %v3143 = vshll.u32 %v2060, 16
      %v3145 = vrot.slane %v3143, 5
      %v3146 = vsel %vm2098, %v3141, %v3145
      %v3147 = vshrl.u32 %v2060, 16
      %v3149 = vrot.slane %v3147, 4
      %v3150 = vor.u32 %v3149, %v3145
      %v3151 = vrot.slane %v3150, 4
      %v3153 = vshll.u32 %v2061, 16
      %v3155 = vrot.slane %v3153, 5
      %v3156 = vsel %vm2098, %v3151, %v3155
      %v3157 = vunpack.c.l.b16 %v3146
      %v3158 = vunpack.c.l.b16 %v3156
      %v3159 = vpack.c.b16 %v3158, %v3157
      %v3161 = vsel %vm1009, %v3159, 0
      %v3164 = vsel %vm1239, %v3132, 0
      %3166 = vmatprep.subr.bf16.mxu0 0
      %3167 = vmatpush1.bf16.msra.mxu0 %v3164
      %3168 = vmatprep.subr.bf16.mxu0 0
      %3169 = vmatpush1.bf16.msra.mxu0 0
      %3170 = vmatprep.subr.bf16.mxu0 0
      %3171 = vmatpush1.bf16.msra.mxu0 0
      %3172 = vmatprep.subr.bf16.mxu0 0
      %3173 = vmatpush1.bf16.msra.mxu0 0
      %3174 = vmatprep.subr.bf16.mxu0 0
      %3175 = vmatpush1.bf16.msra.mxu0 0
      %3176 = vmatprep.subr.bf16.mxu0 0
      %3177 = vmatpush1.bf16.msra.mxu0 0
      %3178 = vmatprep.subr.bf16.mxu0 0
      %3179 = vmatpush1.bf16.msra.mxu0 0
      %3180 = vmatprep.subr.bf16.mxu0 0
      %3181 = vmatpush1.bf16.msra.mxu0 0
      %3182 = vmatprep.subr.bf16.mxu0 0
      %3183 = vmatpush1.bf16.msra.mxu0 0
      %3184 = vmatprep.subr.bf16.mxu0 0
      %3185 = vmatpush1.bf16.msra.mxu0 0
      %3186 = vmatprep.subr.bf16.mxu0 0
      %3187 = vmatpush1.bf16.msra.mxu0 0
      %3188 = vmatprep.subr.bf16.mxu0 0
      %3189 = vmatpush1.bf16.msra.mxu0 0
      %3190 = vmatprep.subr.bf16.mxu0 0
      %3191 = vmatpush1.bf16.msra.mxu0 0
      %3192 = vmatprep.subr.bf16.mxu0 0
      %3193 = vmatpush1.bf16.msra.mxu0 0
      %3194 = vmatprep.subr.bf16.mxu0 0
      %3195 = vmatpush1.bf16.msra.mxu0 0
      %3196 = vmatprep.subr.bf16.mxu0 0
      %3197 = vmatpush1.bf16.msra.mxu0 0
      %3198 = vmatprep.mubr.bf16.mxu0 0
      %3199 = vmatmul.mubr.bf16.gmra.mrb[0].mxu0 %v2538
      %v3200 = vpop.f32.mrb[0].mxu0
      %v3201 = vadd.f32 0.0, %v3200
      %v3202 = vpop.f32.mrb[0].mxu0
      %v3203 = vpop.f32.mrb[0].mxu0
      %v3204 = vadd.f32 0.0, %v3203
      %v3205 = vpop.f32.mrb[0].mxu0
      %3206 = vmatprep.mubr.bf16.mxu0 0
      %3207 = vmatmul.mubr.bf16.gmra.mrb[0].mxu0 %v2541
      %v3208 = vpop.f32.mrb[0].mxu0
      %v3209 = vadd.f32 0.0, %v3208
      %v3210 = vpop.f32.mrb[0].mxu0
      %v3211 = vpop.f32.mrb[0].mxu0
      %v3212 = vadd.f32 0.0, %v3211
      %v3213 = vpop.f32.mrb[0].mxu0
      %3214 = vmatprep.mubr.bf16.mxu0 0
      %3215 = vmatmul.mubr.bf16.gmra.mrb[0].mxu0 %v2544
      %v3216 = vpop.f32.mrb[0].mxu0
      %v3217 = vadd.f32 0.0, %v3216
      %v3218 = vpop.f32.mrb[0].mxu0
      %v3219 = vpop.f32.mrb[0].mxu0
      %v3220 = vadd.f32 0.0, %v3219
      %v3221 = vpop.f32.mrb[0].mxu0
      %3222 = vmatprep.mubr.bf16.mxu0 0
      %3223 = vmatmul.mubr.bf16.gmra.mrb[0].mxu0 %v2547
      %v3224 = vpop.f32.mrb[0].mxu0
      %v3225 = vadd.f32 0.0, %v3224
      %v3226 = vpop.f32.mrb[0].mxu0
      %v3227 = vpop.f32.mrb[0].mxu0
      %v3228 = vadd.f32 0.0, %v3227
      %v3229 = vpop.f32.mrb[0].mxu0
      %3230 = vmatprep.mubr.bf16.mxu0 0
      %3231 = vmatmul.mubr.bf16.gmra.mrb[0].mxu0 %v2550
      %v3232 = vpop.f32.mrb[0].mxu0
      %v3233 = vadd.f32 0.0, %v3232
      %v3234 = vpop.f32.mrb[0].mxu0
      %v3235 = vpop.f32.mrb[0].mxu0
      %v3236 = vadd.f32 0.0, %v3235
      %v3237 = vpop.f32.mrb[0].mxu0
      %3238 = vmatprep.mubr.bf16.mxu0 0
      %3239 = vmatmul.mubr.bf16.gmra.mrb[0].mxu0 %v2553
      %v3240 = vpop.f32.mrb[0].mxu0
      %v3241 = vadd.f32 0.0, %v3240
      %v3242 = vpop.f32.mrb[0].mxu0
      %v3243 = vpop.f32.mrb[0].mxu0
      %v3244 = vadd.f32 0.0, %v3243
      %v3245 = vpop.f32.mrb[0].mxu0
      %3246 = vmatprep.mubr.bf16.mxu0 0
      %3247 = vmatmul.mubr.bf16.gmra.mrb[0].mxu0 %v2556
      %v3248 = vpop.f32.mrb[0].mxu0
      %v3249 = vadd.f32 0.0, %v3248
      %v3250 = vpop.f32.mrb[0].mxu0
      %v3251 = vpop.f32.mrb[0].mxu0
      %v3252 = vadd.f32 0.0, %v3251
      %v3253 = vpop.f32.mrb[0].mxu0
      %3254 = vmatprep.mubr.bf16.mxu0 0
      %3255 = vmatmul.mubr.bf16.gmra.mrb[0].mxu0 %v2559
      %v3256 = vpop.f32.mrb[0].mxu0
      %v3257 = vadd.f32 0.0, %v3256
      %v3258 = vpop.f32.mrb[0].mxu0
      %v3259 = vpop.f32.mrb[0].mxu0
      %v3260 = vadd.f32 0.0, %v3259
      %v3261 = vpop.f32.mrb[0].mxu0
      %3262 = vmatprep.mubr.bf16.mxu0 0
      %3263 = vmatmul.mubr.bf16.gmra.mrb[0].mxu0 %v2562
      %v3264 = vpop.f32.mrb[0].mxu0
      %v3265 = vadd.f32 0.0, %v3264
      %v3266 = vpop.f32.mrb[0].mxu0
      %v3267 = vpop.f32.mrb[0].mxu0
      %v3268 = vadd.f32 0.0, %v3267
      %v3269 = vpop.f32.mrb[0].mxu0
      %3270 = vmatprep.mubr.bf16.mxu0 0
      %3271 = vmatmul.mubr.bf16.gmra.mrb[0].mxu0 %v2565
      %v3272 = vpop.f32.mrb[0].mxu0
      %v3273 = vadd.f32 0.0, %v3272
      %v3274 = vpop.f32.mrb[0].mxu0
      %v3275 = vpop.f32.mrb[0].mxu0
      %v3276 = vadd.f32 0.0, %v3275
      %v3277 = vpop.f32.mrb[0].mxu0
      %3278 = vmatprep.mubr.bf16.mxu0 0
      %3279 = vmatmul.mubr.bf16.gmra.mrb[0].mxu0 %v2568
      %v3280 = vpop.f32.mrb[0].mxu0
      %v3281 = vadd.f32 0.0, %v3280
      %v3282 = vpop.f32.mrb[0].mxu0
      %v3283 = vpop.f32.mrb[0].mxu0
      %v3284 = vadd.f32 0.0, %v3283
      %v3285 = vpop.f32.mrb[0].mxu0
      %3286 = vmatprep.mubr.bf16.mxu0 0
      %3287 = vmatmul.mubr.bf16.gmra.mrb[0].mxu0 %v2571
      %v3288 = vpop.f32.mrb[0].mxu0
      %v3289 = vadd.f32 0.0, %v3288
      %v3290 = vpop.f32.mrb[0].mxu0
      %v3291 = vpop.f32.mrb[0].mxu0
      %v3292 = vadd.f32 0.0, %v3291
      %v3293 = vpop.f32.mrb[0].mxu0
      %3294 = vmatprep.mubr.bf16.mxu0 0
      %3295 = vmatmul.mubr.bf16.gmra.mrb[0].mxu0 %v2574
      %v3296 = vpop.f32.mrb[0].mxu0
      %v3297 = vadd.f32 0.0, %v3296
      %v3298 = vpop.f32.mrb[0].mxu0
      %v3299 = vpop.f32.mrb[0].mxu0
      %v3300 = vadd.f32 0.0, %v3299
      %v3301 = vpop.f32.mrb[0].mxu0
      %3302 = vmatprep.mubr.bf16.mxu0 0
      %3303 = vmatmul.mubr.bf16.gmra.mrb[0].mxu0 %v2577
      %v3304 = vpop.f32.mrb[0].mxu0
      %v3305 = vadd.f32 0.0, %v3304
      %v3306 = vpop.f32.mrb[0].mxu0
      %v3307 = vpop.f32.mrb[0].mxu0
      %v3308 = vadd.f32 0.0, %v3307
      %v3309 = vpop.f32.mrb[0].mxu0
      %3310 = vmatprep.mubr.bf16.mxu0 0
      %3311 = vmatmul.mubr.bf16.gmra.mrb[0].mxu0 %v2869
      %v3312 = vpop.f32.mrb[0].mxu0
      %v3313 = vadd.f32 0.0, %v3312
      %v3314 = vpop.f32.mrb[0].mxu0
      %v3315 = vpop.f32.mrb[0].mxu0
      %v3316 = vadd.f32 0.0, %v3315
      %v3317 = vpop.f32.mrb[0].mxu0
      %3318 = vmatprep.mubr.bf16.mxu0 0
      %3319 = vmatmul.mubr.bf16.gmra.mrb[0].mxu0 %v3161
      %v3320 = vpop.f32.mrb[0].mxu0
      %v3321 = vadd.f32 0.0, %v3320
      %v3322 = vpop.f32.mrb[0].mxu0
      %v3323 = vpop.f32.mrb[0].mxu0
      %v3324 = vadd.f32 0.0, %v3323
      %v3325 = vpop.f32.mrb[0].mxu0
      %3326 = vdwg.mxu0
      %v3327 = vadd.f32 %v3099, %v3201
      %v3328 = vadd.f32 %v3100, %v3204
      %v3329 = vadd.f32 %v3101, %v3209
      %v3330 = vadd.f32 %v3102, %v3212
      %v3331 = vadd.f32 %v3103, %v3217
      %v3332 = vadd.f32 %v3104, %v3220
      %v3333 = vadd.f32 %v3105, %v3225
      %v3334 = vadd.f32 %v3106, %v3228
      %v3335 = vadd.f32 %v3107, %v3233
      %v3336 = vadd.f32 %v3108, %v3236
      %v3337 = vadd.f32 %v3109, %v3241
      %v3338 = vadd.f32 %v3110, %v3244
      %v3339 = vadd.f32 %v3111, %v3249
      %v3340 = vadd.f32 %v3112, %v3252
      %v3341 = vadd.f32 %v3113, %v3257
      %v3342 = vadd.f32 %v3114, %v3260
      %v3343 = vadd.f32 %v3115, %v3265
      %v3344 = vadd.f32 %v3116, %v3268
      %v3345 = vadd.f32 %v3117, %v3273
      %v3346 = vadd.f32 %v3118, %v3276
      %v3347 = vadd.f32 %v3119, %v3281
      %v3348 = vadd.f32 %v3120, %v3284
      %v3349 = vadd.f32 %v3121, %v3289
      %v3350 = vadd.f32 %v3122, %v3292
      %v3351 = vadd.f32 %v3123, %v3297
      %v3352 = vadd.f32 %v3124, %v3300
      %v3353 = vadd.f32 %v3125, %v3305
      %v3354 = vadd.f32 %v3126, %v3308
      %v3355 = vadd.f32 %v3127, %v3313
      %v3356 = vadd.f32 %v3128, %v3316
      %v3357 = vadd.f32 %v3129, %v3321
      %v3358 = vadd.f32 %v3130, %v3324
      %3359 = vst.msk [vmem:[#allocation3] sm:$0xff] %vm1009, %v3327
      %3360 = vst.msk [vmem:[#allocation3 + $0x8] sm:$0xff] %vm1009, %v3328
      %3361 = vst.msk [vmem:[#allocation3 + $0x10] sm:$0xff] %vm1009, %v3329
      %3362 = vst.msk [vmem:[#allocation3 + $0x18] sm:$0xff] %vm1009, %v3330
      %3363 = vst.msk [vmem:[#allocation3 + $0x20] sm:$0xff] %vm1009, %v3331
      %3364 = vst.msk [vmem:[#allocation3 + $0x28] sm:$0xff] %vm1009, %v3332
      %3365 = vst.msk [vmem:[#allocation3 + $0x30] sm:$0xff] %vm1009, %v3333
      %3366 = vst.msk [vmem:[#allocation3 + $0x38] sm:$0xff] %vm1009, %v3334
      %3367 = vst.msk [vmem:[#allocation3 + $0x40] sm:$0xff] %vm1009, %v3335
      %3368 = vst.msk [vmem:[#allocation3 + $0x48] sm:$0xff] %vm1009, %v3336
      %3369 = vst.msk [vmem:[#allocation3 + $0x50] sm:$0xff] %vm1009, %v3337
      %3370 = vst.msk [vmem:[#allocation3 + $0x58] sm:$0xff] %vm1009, %v3338
      %3371 = vst.msk [vmem:[#allocation3 + $0x60] sm:$0xff] %vm1009, %v3339
      %3372 = vst.msk [vmem:[#allocation3 + $0x68] sm:$0xff] %vm1009, %v3340
      %3373 = vst.msk [vmem:[#allocation3 + $0x70] sm:$0xff] %vm1009, %v3341
      %3374 = vst.msk [vmem:[#allocation3 + $0x78] sm:$0xff] %vm1009, %v3342
      %3375 = vst.msk [vmem:[#allocation3 + $0x80] sm:$0xff] %vm1009, %v3343
      %3376 = vst.msk [vmem:[#allocation3 + $0x88] sm:$0xff] %vm1009, %v3344
      %3377 = vst.msk [vmem:[#allocation3 + $0x90] sm:$0xff] %vm1009, %v3345
      %3378 = vst.msk [vmem:[#allocation3 + $0x98] sm:$0xff] %vm1009, %v3346
      %3379 = vst.msk [vmem:[#allocation3 + $0xa0] sm:$0xff] %vm1009, %v3347
      %3380 = vst.msk [vmem:[#allocation3 + $0xa8] sm:$0xff] %vm1009, %v3348
      %3381 = vst.msk [vmem:[#allocation3 + $0xb0] sm:$0xff] %vm1009, %v3349
      %3382 = vst.msk [vmem:[#allocation3 + $0xb8] sm:$0xff] %vm1009, %v3350
      %3383 = vst.msk [vmem:[#allocation3 + $0xc0] sm:$0xff] %vm1009, %v3351
      %3384 = vst.msk [vmem:[#allocation3 + $0xc8] sm:$0xff] %vm1009, %v3352
      %3385 = vst.msk [vmem:[#allocation3 + $0xd0] sm:$0xff] %vm1009, %v3353
      %3386 = vst.msk [vmem:[#allocation3 + $0xd8] sm:$0xff] %vm1009, %v3354
      %3387 = vst.msk [vmem:[#allocation3 + $0xe0] sm:$0xff] %vm1009, %v3355
      %3388 = vst.msk [vmem:[#allocation3 + $0xe8] sm:$0xff] %vm1009, %v3356
      %3389 = vst.msk [vmem:[#allocation3 + $0xf0] sm:$0xff] %vm1009, %v3357
      %3390 = vst.msk [vmem:[#allocation3 + $0xf8] sm:$0xff] %vm1009, %v3358
      %v3391 = vld [vmem:[#allocation2] sm:$0xe]
      %v3392 = vld [vmem:[#allocation2 + $0x4] sm:$0xf]
      %v3393 = vld [vmem:[#allocation2 + $0x8] sm:$0x1]
      %v3394 = vld [vmem:[#allocation2 + $0xc] sm:$0xe]
      %v3395 = vld [vmem:[#allocation2 + $0x10] sm:$0xf]
      %v3396 = vld [vmem:[#allocation2 + $0x14] sm:$0x1]
      %v3397 = vld [vmem:[#allocation2 + $0x18] sm:$0xe]
      %v3398 = vld [vmem:[#allocation2 + $0x1c] sm:$0xf]
      %v3399 = vld [vmem:[#allocation2 + $0x20] sm:$0x1]
      %v3400 = vld [vmem:[#allocation2 + $0x24] sm:$0xe]
      %v3401 = vld [vmem:[#allocation2 + $0x28] sm:$0xf]
      %v3402 = vld [vmem:[#allocation2 + $0x2c] sm:$0x1]
      %v3403 = vld [vmem:[#allocation2 + $0x30] sm:$0xe]
      %v3404 = vld [vmem:[#allocation2 + $0x34] sm:$0xf]
      %v3405 = vld [vmem:[#allocation2 + $0x38] sm:$0x1]
      %v3406 = vld [vmem:[#allocation2 + $0x3c] sm:$0xe]
      %v3407 = vld [vmem:[#allocation2 + $0x40] sm:$0xf]
      %v3408 = vld [vmem:[#allocation2 + $0x44] sm:$0x1]
      %v3409 = vld [vmem:[#allocation2 + $0x48] sm:$0xe]
      %v3410 = vld [vmem:[#allocation2 + $0x4c] sm:$0xf]
      %v3411 = vld [vmem:[#allocation2 + $0x50] sm:$0x1]
      %v3412 = vld [vmem:[#allocation2 + $0x54] sm:$0xe]
      %v3413 = vld [vmem:[#allocation2 + $0x58] sm:$0xf]
      %v3414 = vld [vmem:[#allocation2 + $0x5c] sm:$0x1]
      %v3415 = vld [vmem:[#allocation2 + $0x60] sm:$0xe]
      %v3416 = vld [vmem:[#allocation2 + $0x64] sm:$0xf]
      %v3417 = vld [vmem:[#allocation2 + $0x68] sm:$0x1]
      %v3418 = vld [vmem:[#allocation2 + $0x6c] sm:$0xe]
      %v3419 = vld [vmem:[#allocation2 + $0x70] sm:$0xf]
      %v3420 = vld [vmem:[#allocation2 + $0x74] sm:$0x1]
      %v3421 = vld [vmem:[#allocation2 + $0x78] sm:$0xe]
      %v3422 = vld [vmem:[#allocation2 + $0x7c] sm:$0xf]
      %v3423 = vld [vmem:[#allocation2 + $0x80] sm:$0x1]
      %v3424 = vld [vmem:[#allocation2 + $0x84] sm:$0xe]
      %v3425 = vld [vmem:[#allocation2 + $0x88] sm:$0xf]
      %v3426 = vld [vmem:[#allocation2 + $0x8c] sm:$0x1]
      %v3427 = vld [vmem:[#allocation2 + $0x90] sm:$0xe]
      %v3428 = vld [vmem:[#allocation2 + $0x94] sm:$0xf]
      %v3429 = vld [vmem:[#allocation2 + $0x98] sm:$0x1]
      %v3430 = vld [vmem:[#allocation2 + $0x9c] sm:$0xe]
      %v3431 = vld [vmem:[#allocation2 + $0xa0] sm:$0xf]
      %v3432 = vld [vmem:[#allocation2 + $0xa4] sm:$0x1]
      %v3433 = vld [vmem:[#allocation2 + $0xa8] sm:$0xe]
      %v3434 = vld [vmem:[#allocation2 + $0xac] sm:$0xf]
      %v3435 = vld [vmem:[#allocation2 + $0xb0] sm:$0x1]
      %v3436 = vld [vmem:[#allocation2 + $0xb4] sm:$0xe]
      %v3437 = vld [vmem:[#allocation2 + $0xb8] sm:$0xf]
      %v3438 = vld [vmem:[#allocation2 + $0xbc] sm:$0x1]
      %v3439 = vld [vmem:[#allocation2 + $0xc0] sm:$0xe]
      %v3440 = vld [vmem:[#allocation2 + $0xc4] sm:$0xf]
      %v3441 = vld [vmem:[#allocation2 + $0xc8] sm:$0x1]
      %v3442 = vld [vmem:[#allocation2 + $0xcc] sm:$0xe]
      %v3443 = vld [vmem:[#allocation2 + $0xd0] sm:$0xf]
      %v3444 = vld [vmem:[#allocation2 + $0xd4] sm:$0x1]
      %v3445 = vld [vmem:[#allocation3] sm:$0xff]
      %v3446 = vld [vmem:[#allocation3 + $0x8] sm:$0xff]
      %v3447 = vld [vmem:[#allocation3 + $0x10] sm:$0xff]
      %v3448 = vld [vmem:[#allocation3 + $0x18] sm:$0xff]
      %v3449 = vld [vmem:[#allocation3 + $0x20] sm:$0xff]
      %v3450 = vld [vmem:[#allocation3 + $0x28] sm:$0xff]
      %v3451 = vld [vmem:[#allocation3 + $0x30] sm:$0xff]
      %v3452 = vld [vmem:[#allocation3 + $0x38] sm:$0xff]
      %v3453 = vld [vmem:[#allocation3 + $0x40] sm:$0xff]
      %v3454 = vld [vmem:[#allocation3 + $0x48] sm:$0xff]
      %v3455 = vld [vmem:[#allocation3 + $0x50] sm:$0xff]
      %v3456 = vld [vmem:[#allocation3 + $0x58] sm:$0xff]
      %v3457 = vld [vmem:[#allocation3 + $0x60] sm:$0xff]
      %v3458 = vld [vmem:[#allocation3 + $0x68] sm:$0xff]
      %v3459 = vld [vmem:[#allocation3 + $0x70] sm:$0xff]
      %v3460 = vld [vmem:[#allocation3 + $0x78] sm:$0xff]
      %v3461 = vld [vmem:[#allocation3 + $0x80] sm:$0xff]
      %v3462 = vld [vmem:[#allocation3 + $0x88] sm:$0xff]
      %v3463 = vld [vmem:[#allocation3 + $0x90] sm:$0xff]
      %v3464 = vld [vmem:[#allocation3 + $0x98] sm:$0xff]
      %v3465 = vld [vmem:[#allocation3 + $0xa0] sm:$0xff]
      %v3466 = vld [vmem:[#allocation3 + $0xa8] sm:$0xff]
      %v3467 = vld [vmem:[#allocation3 + $0xb0] sm:$0xff]
      %v3468 = vld [vmem:[#allocation3 + $0xb8] sm:$0xff]
      %v3469 = vld [vmem:[#allocation3 + $0xc0] sm:$0xff]
      %v3470 = vld [vmem:[#allocation3 + $0xc8] sm:$0xff]
      %v3471 = vld [vmem:[#allocation3 + $0xd0] sm:$0xff]
      %v3472 = vld [vmem:[#allocation3 + $0xd8] sm:$0xff]
      %v3473 = vld [vmem:[#allocation3 + $0xe0] sm:$0xff]
      %v3474 = vld [vmem:[#allocation3 + $0xe8] sm:$0xff]
      %v3475 = vld [vmem:[#allocation3 + $0xf0] sm:$0xff]
      %v3476 = vld [vmem:[#allocation3 + $0xf8] sm:$0xff]
      %s3477 = scalar_lea.vmem %s1, 4
      %v3478 = vld [vmem:[%s3477] sm:$0x3]
      %vm3527 = vcmask 1042432
      %vm3528 = vcmask 1046532
      %vm3529 = vmor %vm3527, %vm3528
      %v3530 = vrot.slane %v3391, 5
      %v3531 = vrot.slane %v3530, 4
      %v3532 = vrot.slane %v3392, 5
      %v3533 = vsel %vm3529, %v3531, %v3532
      %v3534 = vrot.slane %v3532, 4
      %v3535 = vrot.slane %v3393, 5
      %v3536 = vsel %vm3529, %v3534, %v3535
      %v3537 = vrot.slane %v3394, 5
      %v3538 = vrot.slane %v3537, 4
      %v3539 = vrot.slane %v3395, 5
      %v3540 = vsel %vm3529, %v3538, %v3539
      %v3541 = vrot.slane %v3539, 4
      %v3542 = vrot.slane %v3396, 5
      %v3543 = vsel %vm3529, %v3541, %v3542
      %v3544 = vrot.slane %v3397, 5
      %v3545 = vrot.slane %v3544, 4
      %v3546 = vrot.slane %v3398, 5
      %v3547 = vsel %vm3529, %v3545, %v3546
      %v3548 = vrot.slane %v3546, 4
      %v3549 = vrot.slane %v3399, 5
      %v3550 = vsel %vm3529, %v3548, %v3549
      %v3551 = vrot.slane %v3400, 5
      %v3552 = vrot.slane %v3551, 4
      %v3553 = vrot.slane %v3401, 5
      %v3554 = vsel %vm3529, %v3552, %v3553
      %v3555 = vrot.slane %v3553, 4
      %v3556 = vrot.slane %v3402, 5
      %v3557 = vsel %vm3529, %v3555, %v3556
      %v3558 = vrot.slane %v3403, 5
      %v3559 = vrot.slane %v3558, 4
      %v3560 = vrot.slane %v3404, 5
      %v3561 = vsel %vm3529, %v3559, %v3560
      %v3562 = vrot.slane %v3560, 4
      %v3563 = vrot.slane %v3405, 5
      %v3564 = vsel %vm3529, %v3562, %v3563
      %v3565 = vrot.slane %v3406, 5
      %v3566 = vrot.slane %v3565, 4
      %v3567 = vrot.slane %v3407, 5
      %v3568 = vsel %vm3529, %v3566, %v3567
      %v3569 = vrot.slane %v3567, 4
      %v3570 = vrot.slane %v3408, 5
      %v3571 = vsel %vm3529, %v3569, %v3570
      %v3572 = vrot.slane %v3409, 5
      %v3573 = vrot.slane %v3572, 4
      %v3574 = vrot.slane %v3410, 5
      %v3575 = vsel %vm3529, %v3573, %v3574
      %v3576 = vrot.slane %v3574, 4
      %v3577 = vrot.slane %v3411, 5
      %v3578 = vsel %vm3529, %v3576, %v3577
      %v3579 = vrot.slane %v3412, 5
      %v3580 = vrot.slane %v3579, 4
      %v3581 = vrot.slane %v3413, 5
      %v3582 = vsel %vm3529, %v3580, %v3581
      %v3583 = vrot.slane %v3581, 4
      %v3584 = vrot.slane %v3414, 5
      %v3585 = vsel %vm3529, %v3583, %v3584
      %v3586 = vrot.slane %v3415, 5
      %v3587 = vrot.slane %v3586, 4
      %v3588 = vrot.slane %v3416, 5
      %v3589 = vsel %vm3529, %v3587, %v3588
      %v3590 = vrot.slane %v3588, 4
      %v3591 = vrot.slane %v3417, 5
      %v3592 = vsel %vm3529, %v3590, %v3591
      %v3593 = vrot.slane %v3418, 5
      %v3594 = vrot.slane %v3593, 4
      %v3595 = vrot.slane %v3419, 5
      %v3596 = vsel %vm3529, %v3594, %v3595
      %v3597 = vrot.slane %v3595, 4
      %v3598 = vrot.slane %v3420, 5
      %v3599 = vsel %vm3529, %v3597, %v3598
      %v3600 = vrot.slane %v3421, 5
      %v3601 = vrot.slane %v3600, 4
      %v3602 = vrot.slane %v3422, 5
      %v3603 = vsel %vm3529, %v3601, %v3602
      %v3604 = vrot.slane %v3602, 4
      %v3605 = vrot.slane %v3423, 5
      %v3606 = vsel %vm3529, %v3604, %v3605
      %v3607 = vrot.slane %v3424, 5
      %v3608 = vrot.slane %v3607, 4
      %v3609 = vrot.slane %v3425, 5
      %v3610 = vsel %vm3529, %v3608, %v3609
      %v3611 = vrot.slane %v3609, 4
      %v3612 = vrot.slane %v3426, 5
      %v3613 = vsel %vm3529, %v3611, %v3612
      %v3614 = vrot.slane %v3427, 5
      %v3615 = vrot.slane %v3614, 4
      %v3616 = vrot.slane %v3428, 5
      %v3617 = vsel %vm3529, %v3615, %v3616
      %v3618 = vrot.slane %v3616, 4
      %v3619 = vrot.slane %v3429, 5
      %v3620 = vsel %vm3529, %v3618, %v3619
      %v3621 = vrot.slane %v3430, 5
      %v3622 = vrot.slane %v3621, 4
      %v3623 = vrot.slane %v3431, 5
      %v3624 = vsel %vm3529, %v3622, %v3623
      %v3625 = vrot.slane %v3623, 4
      %v3626 = vrot.slane %v3432, 5
      %v3627 = vsel %vm3529, %v3625, %v3626
      %v3628 = vrot.slane %v3433, 5
      %v3629 = vrot.slane %v3628, 4
      %v3630 = vrot.slane %v3434, 5
      %v3631 = vsel %vm3529, %v3629, %v3630
      %v3632 = vrot.slane %v3630, 4
      %v3633 = vrot.slane %v3435, 5
      %v3634 = vsel %vm3529, %v3632, %v3633
      %v3635 = vrot.slane %v3436, 5
      %v3636 = vrot.slane %v3635, 4
      %v3637 = vrot.slane %v3437, 5
      %v3638 = vsel %vm3529, %v3636, %v3637
      %v3639 = vrot.slane %v3637, 4
      %v3640 = vrot.slane %v3438, 5
      %v3641 = vsel %vm3529, %v3639, %v3640
      %v3642 = vunpack.c.l.b16 %v3533
      %v3643 = vunpack.c.l.b16 %v3536
      %v3644 = vunpack.c.l.b16 %v3540
      %v3645 = vunpack.c.l.b16 %v3543
      %v3646 = vunpack.c.l.b16 %v3547
      %v3647 = vunpack.c.l.b16 %v3550
      %v3648 = vunpack.c.l.b16 %v3554
      %v3649 = vunpack.c.l.b16 %v3557
      %v3650 = vunpack.c.l.b16 %v3561
      %v3651 = vunpack.c.l.b16 %v3564
      %v3652 = vunpack.c.l.b16 %v3568
      %v3653 = vunpack.c.l.b16 %v3571
      %v3654 = vunpack.c.l.b16 %v3575
      %v3655 = vunpack.c.l.b16 %v3578
      %v3656 = vunpack.c.l.b16 %v3582
      %v3657 = vunpack.c.l.b16 %v3585
      %v3658 = vunpack.c.l.b16 %v3589
      %v3659 = vunpack.c.l.b16 %v3592
      %v3660 = vunpack.c.l.b16 %v3596
      %v3661 = vunpack.c.l.b16 %v3599
      %v3662 = vunpack.c.l.b16 %v3603
      %v3663 = vunpack.c.l.b16 %v3606
      %v3664 = vunpack.c.l.b16 %v3610
      %v3665 = vunpack.c.l.b16 %v3613
      %v3666 = vunpack.c.l.b16 %v3617
      %v3667 = vunpack.c.l.b16 %v3620
      %v3668 = vunpack.c.l.b16 %v3624
      %v3669 = vunpack.c.l.b16 %v3627
      %v3670 = vunpack.c.l.b16 %v3631
      %v3671 = vunpack.c.l.b16 %v3634
      %v3672 = vunpack.c.l.b16 %v3638
      %v3673 = vunpack.c.l.b16 %v3641
      %v3674 = vpack.c.b16 %v3643, %v3642
      %v3675 = vpack.c.b16 %v3645, %v3644
      %v3676 = vpack.c.b16 %v3647, %v3646
      %v3677 = vpack.c.b16 %v3649, %v3648
      %v3678 = vpack.c.b16 %v3651, %v3650
      %v3679 = vpack.c.b16 %v3653, %v3652
      %v3680 = vpack.c.b16 %v3655, %v3654
      %v3681 = vpack.c.b16 %v3657, %v3656
      %v3682 = vpack.c.b16 %v3659, %v3658
      %v3683 = vpack.c.b16 %v3661, %v3660
      %v3684 = vpack.c.b16 %v3663, %v3662
      %v3685 = vpack.c.b16 %v3665, %v3664
      %v3686 = vpack.c.b16 %v3667, %v3666
      %v3687 = vpack.c.b16 %v3669, %v3668
      %v3688 = vpack.c.b16 %v3671, %v3670
      %v3689 = vpack.c.b16 %v3673, %v3672
      %v3691 = vsel %vm1009, %v3674, 0
      %v3694 = vsel %vm1009, %v3675, 0
      %v3697 = vsel %vm1009, %v3676, 0
      %v3700 = vsel %vm1009, %v3677, 0
      %v3703 = vsel %vm1009, %v3678, 0
      %v3706 = vsel %vm1009, %v3679, 0
      %v3709 = vsel %vm1009, %v3680, 0
      %v3712 = vsel %vm1009, %v3681, 0
      %v3715 = vsel %vm1009, %v3682, 0
      %v3718 = vsel %vm1009, %v3683, 0
      %v3721 = vsel %vm1009, %v3684, 0
      %v3724 = vsel %vm1009, %v3685, 0
      %v3727 = vsel %vm1009, %v3686, 0
      %v3730 = vsel %vm1009, %v3687, 0
      %v3733 = vsel %vm1009, %v3688, 0
      %v3736 = vsel %vm1009, %v3689, 0
      %v3739 = vsel %vm1239, %v3478, 0
      %3741 = vmatprep.subr.bf16.mxu0 0
      %3742 = vmatpush1.bf16.msra.mxu0 %v3739
      %3743 = vmatprep.subr.bf16.mxu0 0
      %3744 = vmatpush1.bf16.msra.mxu0 0
      %3745 = vmatprep.subr.bf16.mxu0 0
      %3746 = vmatpush1.bf16.msra.mxu0 0
      %3747 = vmatprep.subr.bf16.mxu0 0
      %3748 = vmatpush1.bf16.msra.mxu0 0
      %3749 = vmatprep.subr.bf16.mxu0 0
      %3750 = vmatpush1.bf16.msra.mxu0 0
      %3751 = vmatprep.subr.bf16.mxu0 0
      %3752 = vmatpush1.bf16.msra.mxu0 0
      %3753 = vmatprep.subr.bf16.mxu0 0
      %3754 = vmatpush1.bf16.msra.mxu0 0
      %3755 = vmatprep.subr.bf16.mxu0 0
      %3756 = vmatpush1.bf16.msra.mxu0 0
      %3757 = vmatprep.subr.bf16.mxu0 0
      %3758 = vmatpush1.bf16.msra.mxu0 0
      %3759 = vmatprep.subr.bf16.mxu0 0
      %3760 = vmatpush1.bf16.msra.mxu0 0
      %3761 = vmatprep.subr.bf16.mxu0 0
      %3762 = vmatpush1.bf16.msra.mxu0 0
      %3763 = vmatprep.subr.bf16.mxu0 0
      %3764 = vmatpush1.bf16.msra.mxu0 0
      %3765 = vmatprep.subr.bf16.mxu0 0
      %3766 = vmatpush1.bf16.msra.mxu0 0
      %3767 = vmatprep.subr.bf16.mxu0 0
      %3768 = vmatpush1.bf16.msra.mxu0 0
      %3769 = vmatprep.subr.bf16.mxu0 0
      %3770 = vmatpush1.bf16.msra.mxu0 0
      %3771 = vmatprep.subr.bf16.mxu0 0
      %3772 = vmatpush1.bf16.msra.mxu0 0
      %3773 = vmatprep.mubr.bf16.mxu0 0
      %3774 = vmatmul.mubr.bf16.gmra.mrb[0].mxu0 %v3691
      %v3775 = vpop.f32.mrb[0].mxu0
      %v3776 = vadd.f32 0.0, %v3775
      %v3777 = vpop.f32.mrb[0].mxu0
      %v3778 = vpop.f32.mrb[0].mxu0
      %v3779 = vadd.f32 0.0, %v3778
      %v3780 = vpop.f32.mrb[0].mxu0
      %3781 = vmatprep.mubr.bf16.mxu0 0
      %3782 = vmatmul.mubr.bf16.gmra.mrb[0].mxu0 %v3694
      %v3783 = vpop.f32.mrb[0].mxu0
      %v3784 = vadd.f32 0.0, %v3783
      %v3785 = vpop.f32.mrb[0].mxu0
      %v3786 = vpop.f32.mrb[0].mxu0
      %v3787 = vadd.f32 0.0, %v3786
      %v3788 = vpop.f32.mrb[0].mxu0
      %3789 = vmatprep.mubr.bf16.mxu0 0
      %3790 = vmatmul.mubr.bf16.gmra.mrb[0].mxu0 %v3697
      %v3791 = vpop.f32.mrb[0].mxu0
      %v3792 = vadd.f32 0.0, %v3791
      %v3793 = vpop.f32.mrb[0].mxu0
      %v3794 = vpop.f32.mrb[0].mxu0
      %v3795 = vadd.f32 0.0, %v3794
      %v3796 = vpop.f32.mrb[0].mxu0
      %3797 = vmatprep.mubr.bf16.mxu0 0
      %3798 = vmatmul.mubr.bf16.gmra.mrb[0].mxu0 %v3700
      %v3799 = vpop.f32.mrb[0].mxu0
      %v3800 = vadd.f32 0.0, %v3799
      %v3801 = vpop.f32.mrb[0].mxu0
      %v3802 = vpop.f32.mrb[0].mxu0
      %v3803 = vadd.f32 0.0, %v3802
      %v3804 = vpop.f32.mrb[0].mxu0
      %3805 = vmatprep.mubr.bf16.mxu0 0
      %3806 = vmatmul.mubr.bf16.gmra.mrb[0].mxu0 %v3703
      %v3807 = vpop.f32.mrb[0].mxu0
      %v3808 = vadd.f32 0.0, %v3807
      %v3809 = vpop.f32.mrb[0].mxu0
      %v3810 = vpop.f32.mrb[0].mxu0
      %v3811 = vadd.f32 0.0, %v3810
      %v3812 = vpop.f32.mrb[0].mxu0
      %3813 = vmatprep.mubr.bf16.mxu0 0
      %3814 = vmatmul.mubr.bf16.gmra.mrb[0].mxu0 %v3706
      %v3815 = vpop.f32.mrb[0].mxu0
      %v3816 = vadd.f32 0.0, %v3815
      %v3817 = vpop.f32.mrb[0].mxu0
      %v3818 = vpop.f32.mrb[0].mxu0
      %v3819 = vadd.f32 0.0, %v3818
      %v3820 = vpop.f32.mrb[0].mxu0
      %3821 = vmatprep.mubr.bf16.mxu0 0
      %3822 = vmatmul.mubr.bf16.gmra.mrb[0].mxu0 %v3709
      %v3823 = vpop.f32.mrb[0].mxu0
      %v3824 = vadd.f32 0.0, %v3823
      %v3825 = vpop.f32.mrb[0].mxu0
      %v3826 = vpop.f32.mrb[0].mxu0
      %v3827 = vadd.f32 0.0, %v3826
      %v3828 = vpop.f32.mrb[0].mxu0
      %3829 = vmatprep.mubr.bf16.mxu0 0
      %3830 = vmatmul.mubr.bf16.gmra.mrb[0].mxu0 %v3712
      %v3831 = vpop.f32.mrb[0].mxu0
      %v3832 = vadd.f32 0.0, %v3831
      %v3833 = vpop.f32.mrb[0].mxu0
      %v3834 = vpop.f32.mrb[0].mxu0
      %v3835 = vadd.f32 0.0, %v3834
      %v3836 = vpop.f32.mrb[0].mxu0
      %3837 = vmatprep.mubr.bf16.mxu0 0
      %3838 = vmatmul.mubr.bf16.gmra.mrb[0].mxu0 %v3715
      %v3839 = vpop.f32.mrb[0].mxu0
      %v3840 = vadd.f32 0.0, %v3839
      %v3841 = vpop.f32.mrb[0].mxu0
      %v3842 = vpop.f32.mrb[0].mxu0
      %v3843 = vadd.f32 0.0, %v3842
      %v3844 = vpop.f32.mrb[0].mxu0
      %3845 = vmatprep.mubr.bf16.mxu0 0
      %3846 = vmatmul.mubr.bf16.gmra.mrb[0].mxu0 %v3718
      %v3847 = vpop.f32.mrb[0].mxu0
      %v3848 = vadd.f32 0.0, %v3847
      %v3849 = vpop.f32.mrb[0].mxu0
      %v3850 = vpop.f32.mrb[0].mxu0
      %v3851 = vadd.f32 0.0, %v3850
      %v3852 = vpop.f32.mrb[0].mxu0
      %3853 = vmatprep.mubr.bf16.mxu0 0
      %3854 = vmatmul.mubr.bf16.gmra.mrb[0].mxu0 %v3721
      %v3855 = vpop.f32.mrb[0].mxu0
      %v3856 = vadd.f32 0.0, %v3855
      %v3857 = vpop.f32.mrb[0].mxu0
      %v3858 = vpop.f32.mrb[0].mxu0
      %v3859 = vadd.f32 0.0, %v3858
      %v3860 = vpop.f32.mrb[0].mxu0
      %3861 = vmatprep.mubr.bf16.mxu0 0
      %3862 = vmatmul.mubr.bf16.gmra.mrb[0].mxu0 %v3724
      %v3863 = vpop.f32.mrb[0].mxu0
      %v3864 = vadd.f32 0.0, %v3863
      %v3865 = vpop.f32.mrb[0].mxu0
      %v3866 = vpop.f32.mrb[0].mxu0
      %v3867 = vadd.f32 0.0, %v3866
      %v3868 = vpop.f32.mrb[0].mxu0
      %3869 = vmatprep.mubr.bf16.mxu0 0
      %3870 = vmatmul.mubr.bf16.gmra.mrb[0].mxu0 %v3727
      %v3871 = vpop.f32.mrb[0].mxu0
      %v3872 = vadd.f32 0.0, %v3871
      %v3873 = vpop.f32.mrb[0].mxu0
      %v3874 = vpop.f32.mrb[0].mxu0
      %v3875 = vadd.f32 0.0, %v3874
      %v3876 = vpop.f32.mrb[0].mxu0
      %3877 = vmatprep.mubr.bf16.mxu0 0
      %3878 = vmatmul.mubr.bf16.gmra.mrb[0].mxu0 %v3730
      %v3879 = vpop.f32.mrb[0].mxu0
      %v3880 = vadd.f32 0.0, %v3879
      %v3881 = vpop.f32.mrb[0].mxu0
      %v3882 = vpop.f32.mrb[0].mxu0
      %v3883 = vadd.f32 0.0, %v3882
      %v3884 = vpop.f32.mrb[0].mxu0
      %3885 = vmatprep.mubr.bf16.mxu0 0
      %3886 = vmatmul.mubr.bf16.gmra.mrb[0].mxu0 %v3733
      %v3887 = vpop.f32.mrb[0].mxu0
      %v3888 = vadd.f32 0.0, %v3887
      %v3889 = vpop.f32.mrb[0].mxu0
      %v3890 = vpop.f32.mrb[0].mxu0
      %v3891 = vadd.f32 0.0, %v3890
      %v3892 = vpop.f32.mrb[0].mxu0
      %3893 = vmatprep.mubr.bf16.mxu0 0
      %3894 = vmatmul.mubr.bf16.gmra.mrb[0].mxu0 %v3736
      %v3895 = vpop.f32.mrb[0].mxu0
      %v3896 = vadd.f32 0.0, %v3895
      %v3897 = vpop.f32.mrb[0].mxu0
      %v3898 = vpop.f32.mrb[0].mxu0
      %v3899 = vadd.f32 0.0, %v3898
      %v3900 = vpop.f32.mrb[0].mxu0
      %3901 = vdwg.mxu0
      %v3902 = vadd.f32 %v3445, %v3776
      %v3903 = vadd.f32 %v3446, %v3779
      %v3904 = vadd.f32 %v3447, %v3784
      %v3905 = vadd.f32 %v3448, %v3787
      %v3906 = vadd.f32 %v3449, %v3792
      %v3907 = vadd.f32 %v3450, %v3795
      %v3908 = vadd.f32 %v3451, %v3800
      %v3909 = vadd.f32 %v3452, %v3803
      %v3910 = vadd.f32 %v3453, %v3808
      %v3911 = vadd.f32 %v3454, %v3811
      %v3912 = vadd.f32 %v3455, %v3816
      %v3913 = vadd.f32 %v3456, %v3819
      %v3914 = vadd.f32 %v3457, %v3824
      %v3915 = vadd.f32 %v3458, %v3827
      %v3916 = vadd.f32 %v3459, %v3832
      %v3917 = vadd.f32 %v3460, %v3835
      %v3918 = vadd.f32 %v3461, %v3840
      %v3919 = vadd.f32 %v3462, %v3843
      %v3920 = vadd.f32 %v3463, %v3848
      %v3921 = vadd.f32 %v3464, %v3851
      %v3922 = vadd.f32 %v3465, %v3856
      %v3923 = vadd.f32 %v3466, %v3859
      %v3924 = vadd.f32 %v3467, %v3864
      %v3925 = vadd.f32 %v3468, %v3867
      %v3926 = vadd.f32 %v3469, %v3872
      %v3927 = vadd.f32 %v3470, %v3875
      %v3928 = vadd.f32 %v3471, %v3880
      %v3929 = vadd.f32 %v3472, %v3883
      %v3930 = vadd.f32 %v3473, %v3888
      %v3931 = vadd.f32 %v3474, %v3891
      %v3932 = vadd.f32 %v3475, %v3896
      %v3933 = vadd.f32 %v3476, %v3899
      %3934 = vst.msk [vmem:[#allocation3] sm:$0xff] %vm1009, %v3902
      %3935 = vst.msk [vmem:[#allocation3 + $0x8] sm:$0xff] %vm1009, %v3903
      %3936 = vst.msk [vmem:[#allocation3 + $0x10] sm:$0xff] %vm1009, %v3904
      %3937 = vst.msk [vmem:[#allocation3 + $0x18] sm:$0xff] %vm1009, %v3905
      %3938 = vst.msk [vmem:[#allocation3 + $0x20] sm:$0xff] %vm1009, %v3906
      %3939 = vst.msk [vmem:[#allocation3 + $0x28] sm:$0xff] %vm1009, %v3907
      %3940 = vst.msk [vmem:[#allocation3 + $0x30] sm:$0xff] %vm1009, %v3908
      %3941 = vst.msk [vmem:[#allocation3 + $0x38] sm:$0xff] %vm1009, %v3909
      %3942 = vst.msk [vmem:[#allocation3 + $0x40] sm:$0xff] %vm1009, %v3910
      %3943 = vst.msk [vmem:[#allocation3 + $0x48] sm:$0xff] %vm1009, %v3911
      %3944 = vst.msk [vmem:[#allocation3 + $0x50] sm:$0xff] %vm1009, %v3912
      %3945 = vst.msk [vmem:[#allocation3 + $0x58] sm:$0xff] %vm1009, %v3913
      %3946 = vst.msk [vmem:[#allocation3 + $0x60] sm:$0xff] %vm1009, %v3914
      %3947 = vst.msk [vmem:[#allocation3 + $0x68] sm:$0xff] %vm1009, %v3915
      %3948 = vst.msk [vmem:[#allocation3 + $0x70] sm:$0xff] %vm1009, %v3916
      %3949 = vst.msk [vmem:[#allocation3 + $0x78] sm:$0xff] %vm1009, %v3917
      %3950 = vst.msk [vmem:[#allocation3 + $0x80] sm:$0xff] %vm1009, %v3918
      %3951 = vst.msk [vmem:[#allocation3 + $0x88] sm:$0xff] %vm1009, %v3919
      %3952 = vst.msk [vmem:[#allocation3 + $0x90] sm:$0xff] %vm1009, %v3920
      %3953 = vst.msk [vmem:[#allocation3 + $0x98] sm:$0xff] %vm1009, %v3921
      %3954 = vst.msk [vmem:[#allocation3 + $0xa0] sm:$0xff] %vm1009, %v3922
      %3955 = vst.msk [vmem:[#allocation3 + $0xa8] sm:$0xff] %vm1009, %v3923
      %3956 = vst.msk [vmem:[#allocation3 + $0xb0] sm:$0xff] %vm1009, %v3924
      %3957 = vst.msk [vmem:[#allocation3 + $0xb8] sm:$0xff] %vm1009, %v3925
      %3958 = vst.msk [vmem:[#allocation3 + $0xc0] sm:$0xff] %vm1009, %v3926
      %3959 = vst.msk [vmem:[#allocation3 + $0xc8] sm:$0xff] %vm1009, %v3927
      %3960 = vst.msk [vmem:[#allocation3 + $0xd0] sm:$0xff] %vm1009, %v3928
      %3961 = vst.msk [vmem:[#allocation3 + $0xd8] sm:$0xff] %vm1009, %v3929
      %3962 = vst.msk [vmem:[#allocation3 + $0xe0] sm:$0xff] %vm1009, %v3930
      %3963 = vst.msk [vmem:[#allocation3 + $0xe8] sm:$0xff] %vm1009, %v3931
      %3964 = vst.msk [vmem:[#allocation3 + $0xf0] sm:$0xff] %vm1009, %v3932
      %3965 = vst.msk [vmem:[#allocation3 + $0xf8] sm:$0xff] %vm1009, %v3933
      %v3966 = vld [vmem:[#allocation3] sm:$0xff]
      %v3967 = vld [vmem:[#allocation3 + $0x8] sm:$0xff]
      %v3968 = vld [vmem:[#allocation3 + $0x10] sm:$0xff]
      %v3969 = vld [vmem:[#allocation3 + $0x18] sm:$0xff]
      %v3970 = vld [vmem:[#allocation3 + $0x20] sm:$0xff]
      %v3971 = vld [vmem:[#allocation3 + $0x28] sm:$0xff]
      %v3972 = vld [vmem:[#allocation3 + $0x30] sm:$0xff]
      %v3973 = vld [vmem:[#allocation3 + $0x38] sm:$0xff]
      %v3974 = vld [vmem:[#allocation3 + $0x40] sm:$0xff]
      %v3975 = vld [vmem:[#allocation3 + $0x48] sm:$0xff]
      %v3976 = vld [vmem:[#allocation3 + $0x50] sm:$0xff]
      %v3977 = vld [vmem:[#allocation3 + $0x58] sm:$0xff]
      %v3978 = vld [vmem:[#allocation3 + $0x60] sm:$0xff]
      %v3979 = vld [vmem:[#allocation3 + $0x68] sm:$0xff]
      %v3980 = vld [vmem:[#allocation3 + $0x70] sm:$0xff]
      %v3981 = vld [vmem:[#allocation3 + $0x78] sm:$0xff]
      %v3982 = vld [vmem:[#allocation3 + $0x80] sm:$0xff]
      %v3983 = vld [vmem:[#allocation3 + $0x88] sm:$0xff]
      %v3984 = vld [vmem:[#allocation3 + $0x90] sm:$0xff]
      %v3985 = vld [vmem:[#allocation3 + $0x98] sm:$0xff]
      %v3986 = vld [vmem:[#allocation3 + $0xa0] sm:$0xff]
      %v3987 = vld [vmem:[#allocation3 + $0xa8] sm:$0xff]
      %v3988 = vld [vmem:[#allocation3 + $0xb0] sm:$0xff]
      %v3989 = vld [vmem:[#allocation3 + $0xb8] sm:$0xff]
      %v3990 = vld [vmem:[#allocation3 + $0xc0] sm:$0xff]
      %v3991 = vld [vmem:[#allocation3 + $0xc8] sm:$0xff]
      %v3992 = vld [vmem:[#allocation3 + $0xd0] sm:$0xff]
      %v3993 = vld [vmem:[#allocation3 + $0xd8] sm:$0xff]
      %v3994 = vld [vmem:[#allocation3 + $0xe0] sm:$0xff]
      %v3995 = vld [vmem:[#allocation3 + $0xe8] sm:$0xff]
      %v3996 = vld [vmem:[#allocation3 + $0xf0] sm:$0xff]
      %v3997 = vld [vmem:[#allocation3 + $0xf8] sm:$0xff]
      %s3998 = scalar_lea.vmem %s1, 10
      %v3999 = vld [vmem:[%s3998] sm:$0x3]
      %v4003 = vrot.slane %v3439, 5
      %v4004 = vrot.slane %v4003, 4
      %v4005 = vrot.slane %v3440, 5
      %v4006 = vsel %vm3529, %v4004, %v4005
      %v4007 = vrot.slane %v4005, 4
      %v4008 = vrot.slane %v3441, 5
      %v4009 = vsel %vm3529, %v4007, %v4008
      %v4010 = vunpack.c.l.b16 %v4006
      %v4011 = vunpack.c.l.b16 %v4009
      %v4012 = vpack.c.b16 %v4011, %v4010
      %v4014 = vsel %vm1009, %v4012, 0
      %v4017 = vsel %vm1239, %v3999, 0
      %4019 = vmatprep.subr.bf16.mxu0 0
      %4020 = vmatpush1.bf16.msra.mxu0 %v4017
      %4021 = vmatprep.subr.bf16.mxu0 0
      %4022 = vmatpush1.bf16.msra.mxu0 0
      %4023 = vmatprep.subr.bf16.mxu0 0
      %4024 = vmatpush1.bf16.msra.mxu0 0
      %4025 = vmatprep.subr.bf16.mxu0 0
      %4026 = vmatpush1.bf16.msra.mxu0 0
      %4027 = vmatprep.subr.bf16.mxu0 0
      %4028 = vmatpush1.bf16.msra.mxu0 0
      %4029 = vmatprep.subr.bf16.mxu0 0
      %4030 = vmatpush1.bf16.msra.mxu0 0
      %4031 = vmatprep.subr.bf16.mxu0 0
      %4032 = vmatpush1.bf16.msra.mxu0 0
      %4033 = vmatprep.subr.bf16.mxu0 0
      %4034 = vmatpush1.bf16.msra.mxu0 0
      %4035 = vmatprep.subr.bf16.mxu0 0
      %4036 = vmatpush1.bf16.msra.mxu0 0
      %4037 = vmatprep.subr.bf16.mxu0 0
      %4038 = vmatpush1.bf16.msra.mxu0 0
      %4039 = vmatprep.subr.bf16.mxu0 0
      %4040 = vmatpush1.bf16.msra.mxu0 0
      %4041 = vmatprep.subr.bf16.mxu0 0
      %4042 = vmatpush1.bf16.msra.mxu0 0
      %4043 = vmatprep.subr.bf16.mxu0 0
      %4044 = vmatpush1.bf16.msra.mxu0 0
      %4045 = vmatprep.subr.bf16.mxu0 0
      %4046 = vmatpush1.bf16.msra.mxu0 0
      %4047 = vmatprep.subr.bf16.mxu0 0
      %4048 = vmatpush1.bf16.msra.mxu0 0
      %4049 = vmatprep.subr.bf16.mxu0 0
      %4050 = vmatpush1.bf16.msra.mxu0 0
      %4051 = vmatprep.mubr.bf16.mxu0 0
      %4052 = vmatmul.mubr.bf16.gmra.mrb[0].mxu0 %v3694
      %v4053 = vpop.f32.mrb[0].mxu0
      %v4054 = vadd.f32 0.0, %v4053
      %v4055 = vpop.f32.mrb[0].mxu0
      %v4056 = vpop.f32.mrb[0].mxu0
      %v4057 = vadd.f32 0.0, %v4056
      %v4058 = vpop.f32.mrb[0].mxu0
      %4059 = vmatprep.mubr.bf16.mxu0 0
      %4060 = vmatmul.mubr.bf16.gmra.mrb[0].mxu0 %v3697
      %v4061 = vpop.f32.mrb[0].mxu0
      %v4062 = vadd.f32 0.0, %v4061
      %v4063 = vpop.f32.mrb[0].mxu0
      %v4064 = vpop.f32.mrb[0].mxu0
      %v4065 = vadd.f32 0.0, %v4064
      %v4066 = vpop.f32.mrb[0].mxu0
      %4067 = vmatprep.mubr.bf16.mxu0 0
      %4068 = vmatmul.mubr.bf16.gmra.mrb[0].mxu0 %v3700
      %v4069 = vpop.f32.mrb[0].mxu0
      %v4070 = vadd.f32 0.0, %v4069
      %v4071 = vpop.f32.mrb[0].mxu0
      %v4072 = vpop.f32.mrb[0].mxu0
      %v4073 = vadd.f32 0.0, %v4072
      %v4074 = vpop.f32.mrb[0].mxu0
      %4075 = vmatprep.mubr.bf16.mxu0 0
      %4076 = vmatmul.mubr.bf16.gmra.mrb[0].mxu0 %v3703
      %v4077 = vpop.f32.mrb[0].mxu0
      %v4078 = vadd.f32 0.0, %v4077
      %v4079 = vpop.f32.mrb[0].mxu0
      %v4080 = vpop.f32.mrb[0].mxu0
      %v4081 = vadd.f32 0.0, %v4080
      %v4082 = vpop.f32.mrb[0].mxu0
      %4083 = vmatprep.mubr.bf16.mxu0 0
      %4084 = vmatmul.mubr.bf16.gmra.mrb[0].mxu0 %v3706
      %v4085 = vpop.f32.mrb[0].mxu0
      %v4086 = vadd.f32 0.0, %v4085
      %v4087 = vpop.f32.mrb[0].mxu0
      %v4088 = vpop.f32.mrb[0].mxu0
      %v4089 = vadd.f32 0.0, %v4088
      %v4090 = vpop.f32.mrb[0].mxu0
      %4091 = vmatprep.mubr.bf16.mxu0 0
      %4092 = vmatmul.mubr.bf16.gmra.mrb[0].mxu0 %v3709
      %v4093 = vpop.f32.mrb[0].mxu0
      %v4094 = vadd.f32 0.0, %v4093
      %v4095 = vpop.f32.mrb[0].mxu0
      %v4096 = vpop.f32.mrb[0].mxu0
      %v4097 = vadd.f32 0.0, %v4096
      %v4098 = vpop.f32.mrb[0].mxu0
      %4099 = vmatprep.mubr.bf16.mxu0 0
      %4100 = vmatmul.mubr.bf16.gmra.mrb[0].mxu0 %v3712
      %v4101 = vpop.f32.mrb[0].mxu0
      %v4102 = vadd.f32 0.0, %v4101
      %v4103 = vpop.f32.mrb[0].mxu0
      %v4104 = vpop.f32.mrb[0].mxu0
      %v4105 = vadd.f32 0.0, %v4104
      %v4106 = vpop.f32.mrb[0].mxu0
      %4107 = vmatprep.mubr.bf16.mxu0 0
      %4108 = vmatmul.mubr.bf16.gmra.mrb[0].mxu0 %v3715
      %v4109 = vpop.f32.mrb[0].mxu0
      %v4110 = vadd.f32 0.0, %v4109
      %v4111 = vpop.f32.mrb[0].mxu0
      %v4112 = vpop.f32.mrb[0].mxu0
      %v4113 = vadd.f32 0.0, %v4112
      %v4114 = vpop.f32.mrb[0].mxu0
      %4115 = vmatprep.mubr.bf16.mxu0 0
      %4116 = vmatmul.mubr.bf16.gmra.mrb[0].mxu0 %v3718
      %v4117 = vpop.f32.mrb[0].mxu0
      %v4118 = vadd.f32 0.0, %v4117
      %v4119 = vpop.f32.mrb[0].mxu0
      %v4120 = vpop.f32.mrb[0].mxu0
      %v4121 = vadd.f32 0.0, %v4120
      %v4122 = vpop.f32.mrb[0].mxu0
      %4123 = vmatprep.mubr.bf16.mxu0 0
      %4124 = vmatmul.mubr.bf16.gmra.mrb[0].mxu0 %v3721
      %v4125 = vpop.f32.mrb[0].mxu0
      %v4126 = vadd.f32 0.0, %v4125
      %v4127 = vpop.f32.mrb[0].mxu0
      %v4128 = vpop.f32.mrb[0].mxu0
      %v4129 = vadd.f32 0.0, %v4128
      %v4130 = vpop.f32.mrb[0].mxu0
      %4131 = vmatprep.mubr.bf16.mxu0 0
      %4132 = vmatmul.mubr.bf16.gmra.mrb[0].mxu0 %v3724
      %v4133 = vpop.f32.mrb[0].mxu0
      %v4134 = vadd.f32 0.0, %v4133
      %v4135 = vpop.f32.mrb[0].mxu0
      %v4136 = vpop.f32.mrb[0].mxu0
      %v4137 = vadd.f32 0.0, %v4136
      %v4138 = vpop.f32.mrb[0].mxu0
      %4139 = vmatprep.mubr.bf16.mxu0 0
      %4140 = vmatmul.mubr.bf16.gmra.mrb[0].mxu0 %v3727
      %v4141 = vpop.f32.mrb[0].mxu0
      %v4142 = vadd.f32 0.0, %v4141
      %v4143 = vpop.f32.mrb[0].mxu0
      %v4144 = vpop.f32.mrb[0].mxu0
      %v4145 = vadd.f32 0.0, %v4144
      %v4146 = vpop.f32.mrb[0].mxu0
      %4147 = vmatprep.mubr.bf16.mxu0 0
      %4148 = vmatmul.mubr.bf16.gmra.mrb[0].mxu0 %v3730
      %v4149 = vpop.f32.mrb[0].mxu0
      %v4150 = vadd.f32 0.0, %v4149
      %v4151 = vpop.f32.mrb[0].mxu0
      %v4152 = vpop.f32.mrb[0].mxu0
      %v4153 = vadd.f32 0.0, %v4152
      %v4154 = vpop.f32.mrb[0].mxu0
      %4155 = vmatprep.mubr.bf16.mxu0 0
      %4156 = vmatmul.mubr.bf16.gmra.mrb[0].mxu0 %v3733
      %v4157 = vpop.f32.mrb[0].mxu0
      %v4158 = vadd.f32 0.0, %v4157
      %v4159 = vpop.f32.mrb[0].mxu0
      %v4160 = vpop.f32.mrb[0].mxu0
      %v4161 = vadd.f32 0.0, %v4160
      %v4162 = vpop.f32.mrb[0].mxu0
      %4163 = vmatprep.mubr.bf16.mxu0 0
      %4164 = vmatmul.mubr.bf16.gmra.mrb[0].mxu0 %v3736
      %v4165 = vpop.f32.mrb[0].mxu0
      %v4166 = vadd.f32 0.0, %v4165
      %v4167 = vpop.f32.mrb[0].mxu0
      %v4168 = vpop.f32.mrb[0].mxu0
      %v4169 = vadd.f32 0.0, %v4168
      %v4170 = vpop.f32.mrb[0].mxu0
      %4171 = vmatprep.mubr.bf16.mxu0 0
      %4172 = vmatmul.mubr.bf16.gmra.mrb[0].mxu0 %v4014
      %v4173 = vpop.f32.mrb[0].mxu0
      %v4174 = vadd.f32 0.0, %v4173
      %v4175 = vpop.f32.mrb[0].mxu0
      %v4176 = vpop.f32.mrb[0].mxu0
      %v4177 = vadd.f32 0.0, %v4176
      %v4178 = vpop.f32.mrb[0].mxu0
      %4179 = vdwg.mxu0
      %v4180 = vadd.f32 %v3966, %v4054
      %v4181 = vadd.f32 %v3967, %v4057
      %v4182 = vadd.f32 %v3968, %v4062
      %v4183 = vadd.f32 %v3969, %v4065
      %v4184 = vadd.f32 %v3970, %v4070
      %v4185 = vadd.f32 %v3971, %v4073
      %v4186 = vadd.f32 %v3972, %v4078
      %v4187 = vadd.f32 %v3973, %v4081
      %v4188 = vadd.f32 %v3974, %v4086
      %v4189 = vadd.f32 %v3975, %v4089
      %v4190 = vadd.f32 %v3976, %v4094
      %v4191 = vadd.f32 %v3977, %v4097
      %v4192 = vadd.f32 %v3978, %v4102
      %v4193 = vadd.f32 %v3979, %v4105
      %v4194 = vadd.f32 %v3980, %v4110
      %v4195 = vadd.f32 %v3981, %v4113
      %v4196 = vadd.f32 %v3982, %v4118
      %v4197 = vadd.f32 %v3983, %v4121
      %v4198 = vadd.f32 %v3984, %v4126
      %v4199 = vadd.f32 %v3985, %v4129
      %v4200 = vadd.f32 %v3986, %v4134
      %v4201 = vadd.f32 %v3987, %v4137
      %v4202 = vadd.f32 %v3988, %v4142
      %v4203 = vadd.f32 %v3989, %v4145
      %v4204 = vadd.f32 %v3990, %v4150
      %v4205 = vadd.f32 %v3991, %v4153
      %v4206 = vadd.f32 %v3992, %v4158
      %v4207 = vadd.f32 %v3993, %v4161
      %v4208 = vadd.f32 %v3994, %v4166
      %v4209 = vadd.f32 %v3995, %v4169
      %v4210 = vadd.f32 %v3996, %v4174
      %v4211 = vadd.f32 %v3997, %v4177
      %4212 = vst.msk [vmem:[#allocation3] sm:$0xff] %vm1009, %v4180
      %4213 = vst.msk [vmem:[#allocation3 + $0x8] sm:$0xff] %vm1009, %v4181
      %4214 = vst.msk [vmem:[#allocation3 + $0x10] sm:$0xff] %vm1009, %v4182
      %4215 = vst.msk [vmem:[#allocation3 + $0x18] sm:$0xff] %vm1009, %v4183
      %4216 = vst.msk [vmem:[#allocation3 + $0x20] sm:$0xff] %vm1009, %v4184
      %4217 = vst.msk [vmem:[#allocation3 + $0x28] sm:$0xff] %vm1009, %v4185
      %4218 = vst.msk [vmem:[#allocation3 + $0x30] sm:$0xff] %vm1009, %v4186
      %4219 = vst.msk [vmem:[#allocation3 + $0x38] sm:$0xff] %vm1009, %v4187
      %4220 = vst.msk [vmem:[#allocation3 + $0x40] sm:$0xff] %vm1009, %v4188
      %4221 = vst.msk [vmem:[#allocation3 + $0x48] sm:$0xff] %vm1009, %v4189
      %4222 = vst.msk [vmem:[#allocation3 + $0x50] sm:$0xff] %vm1009, %v4190
      %4223 = vst.msk [vmem:[#allocation3 + $0x58] sm:$0xff] %vm1009, %v4191
      %4224 = vst.msk [vmem:[#allocation3 + $0x60] sm:$0xff] %vm1009, %v4192
      %4225 = vst.msk [vmem:[#allocation3 + $0x68] sm:$0xff] %vm1009, %v4193
      %4226 = vst.msk [vmem:[#allocation3 + $0x70] sm:$0xff] %vm1009, %v4194
      %4227 = vst.msk [vmem:[#allocation3 + $0x78] sm:$0xff] %vm1009, %v4195
      %4228 = vst.msk [vmem:[#allocation3 + $0x80] sm:$0xff] %vm1009, %v4196
      %4229 = vst.msk [vmem:[#allocation3 + $0x88] sm:$0xff] %vm1009, %v4197
      %4230 = vst.msk [vmem:[#allocation3 + $0x90] sm:$0xff] %vm1009, %v4198
      %4231 = vst.msk [vmem:[#allocation3 + $0x98] sm:$0xff] %vm1009, %v4199
      %4232 = vst.msk [vmem:[#allocation3 + $0xa0] sm:$0xff] %vm1009, %v4200
      %4233 = vst.msk [vmem:[#allocation3 + $0xa8] sm:$0xff] %vm1009, %v4201
      %4234 = vst.msk [vmem:[#allocation3 + $0xb0] sm:$0xff] %vm1009, %v4202
      %4235 = vst.msk [vmem:[#allocation3 + $0xb8] sm:$0xff] %vm1009, %v4203
      %4236 = vst.msk [vmem:[#allocation3 + $0xc0] sm:$0xff] %vm1009, %v4204
      %4237 = vst.msk [vmem:[#allocation3 + $0xc8] sm:$0xff] %vm1009, %v4205
      %4238 = vst.msk [vmem:[#allocation3 + $0xd0] sm:$0xff] %vm1009, %v4206
      %4239 = vst.msk [vmem:[#allocation3 + $0xd8] sm:$0xff] %vm1009, %v4207
      %4240 = vst.msk [vmem:[#allocation3 + $0xe0] sm:$0xff] %vm1009, %v4208
      %4241 = vst.msk [vmem:[#allocation3 + $0xe8] sm:$0xff] %vm1009, %v4209
      %4242 = vst.msk [vmem:[#allocation3 + $0xf0] sm:$0xff] %vm1009, %v4210
      %4243 = vst.msk [vmem:[#allocation3 + $0xf8] sm:$0xff] %vm1009, %v4211
      %v4244 = vld [vmem:[#allocation3] sm:$0xff]
      %v4245 = vld [vmem:[#allocation3 + $0x8] sm:$0xff]
      %v4246 = vld [vmem:[#allocation3 + $0x10] sm:$0xff]
      %v4247 = vld [vmem:[#allocation3 + $0x18] sm:$0xff]
      %v4248 = vld [vmem:[#allocation3 + $0x20] sm:$0xff]
      %v4249 = vld [vmem:[#allocation3 + $0x28] sm:$0xff]
      %v4250 = vld [vmem:[#allocation3 + $0x30] sm:$0xff]
      %v4251 = vld [vmem:[#allocation3 + $0x38] sm:$0xff]
      %v4252 = vld [vmem:[#allocation3 + $0x40] sm:$0xff]
      %v4253 = vld [vmem:[#allocation3 + $0x48] sm:$0xff]
      %v4254 = vld [vmem:[#allocation3 + $0x50] sm:$0xff]
      %v4255 = vld [vmem:[#allocation3 + $0x58] sm:$0xff]
      %v4256 = vld [vmem:[#allocation3 + $0x60] sm:$0xff]
      %v4257 = vld [vmem:[#allocation3 + $0x68] sm:$0xff]
      %v4258 = vld [vmem:[#allocation3 + $0x70] sm:$0xff]
      %v4259 = vld [vmem:[#allocation3 + $0x78] sm:$0xff]
      %v4260 = vld [vmem:[#allocation3 + $0x80] sm:$0xff]
      %v4261 = vld [vmem:[#allocation3 + $0x88] sm:$0xff]
      %v4262 = vld [vmem:[#allocation3 + $0x90] sm:$0xff]
      %v4263 = vld [vmem:[#allocation3 + $0x98] sm:$0xff]
      %v4264 = vld [vmem:[#allocation3 + $0xa0] sm:$0xff]
      %v4265 = vld [vmem:[#allocation3 + $0xa8] sm:$0xff]
      %v4266 = vld [vmem:[#allocation3 + $0xb0] sm:$0xff]
      %v4267 = vld [vmem:[#allocation3 + $0xb8] sm:$0xff]
      %v4268 = vld [vmem:[#allocation3 + $0xc0] sm:$0xff]
      %v4269 = vld [vmem:[#allocation3 + $0xc8] sm:$0xff]
      %v4270 = vld [vmem:[#allocation3 + $0xd0] sm:$0xff]
      %v4271 = vld [vmem:[#allocation3 + $0xd8] sm:$0xff]
      %v4272 = vld [vmem:[#allocation3 + $0xe0] sm:$0xff]
      %v4273 = vld [vmem:[#allocation3 + $0xe8] sm:$0xff]
      %v4274 = vld [vmem:[#allocation3 + $0xf0] sm:$0xff]
      %v4275 = vld [vmem:[#allocation3 + $0xf8] sm:$0xff]
      %s4276 = scalar_lea.vmem %s1, 16
      %v4277 = vld [vmem:[%s4276] sm:$0x3]
      %v4281 = vrot.slane %v3442, 5
      %v4282 = vrot.slane %v4281, 4
      %v4283 = vrot.slane %v3443, 5
      %v4284 = vsel %vm3529, %v4282, %v4283
      %v4285 = vrot.slane %v4283, 4
      %v4286 = vrot.slane %v3444, 5
      %v4287 = vsel %vm3529, %v4285, %v4286
      %v4288 = vunpack.c.l.b16 %v4284
      %v4289 = vunpack.c.l.b16 %v4287
      %v4290 = vpack.c.b16 %v4289, %v4288
      %v4292 = vsel %vm1009, %v4290, 0
      %v4295 = vsel %vm1239, %v4277, 0
      %4297 = vmatprep.subr.bf16.mxu0 0
      %4298 = vmatpush1.bf16.msra.mxu0 %v4295
      %4299 = vmatprep.subr.bf16.mxu0 0
      %4300 = vmatpush1.bf16.msra.mxu0 0
      %4301 = vmatprep.subr.bf16.mxu0 0
      %4302 = vmatpush1.bf16.msra.mxu0 0
      %4303 = vmatprep.subr.bf16.mxu0 0
      %4304 = vmatpush1.bf16.msra.mxu0 0
      %4305 = vmatprep.subr.bf16.mxu0 0
      %4306 = vmatpush1.bf16.msra.mxu0 0
      %4307 = vmatprep.subr.bf16.mxu0 0
      %4308 = vmatpush1.bf16.msra.mxu0 0
      %4309 = vmatprep.subr.bf16.mxu0 0
      %4310 = vmatpush1.bf16.msra.mxu0 0
      %4311 = vmatprep.subr.bf16.mxu0 0
      %4312 = vmatpush1.bf16.msra.mxu0 0
      %4313 = vmatprep.subr.bf16.mxu0 0
      %4314 = vmatpush1.bf16.msra.mxu0 0
      %4315 = vmatprep.subr.bf16.mxu0 0
      %4316 = vmatpush1.bf16.msra.mxu0 0
      %4317 = vmatprep.subr.bf16.mxu0 0
      %4318 = vmatpush1.bf16.msra.mxu0 0
      %4319 = vmatprep.subr.bf16.mxu0 0
      %4320 = vmatpush1.bf16.msra.mxu0 0
      %4321 = vmatprep.subr.bf16.mxu0 0
      %4322 = vmatpush1.bf16.msra.mxu0 0
      %4323 = vmatprep.subr.bf16.mxu0 0
      %4324 = vmatpush1.bf16.msra.mxu0 0
      %4325 = vmatprep.subr.bf16.mxu0 0
      %4326 = vmatpush1.bf16.msra.mxu0 0
      %4327 = vmatprep.subr.bf16.mxu0 0
      %4328 = vmatpush1.bf16.msra.mxu0 0
      %4329 = vmatprep.mubr.bf16.mxu0 0
      %4330 = vmatmul.mubr.bf16.gmra.mrb[0].mxu0 %v3697
      %v4331 = vpop.f32.mrb[0].mxu0
      %v4332 = vadd.f32 0.0, %v4331
      %v4333 = vpop.f32.mrb[0].mxu0
      %v4334 = vpop.f32.mrb[0].mxu0
      %v4335 = vadd.f32 0.0, %v4334
      %v4336 = vpop.f32.mrb[0].mxu0
      %4337 = vmatprep.mubr.bf16.mxu0 0
      %4338 = vmatmul.mubr.bf16.gmra.mrb[0].mxu0 %v3700
      %v4339 = vpop.f32.mrb[0].mxu0
      %v4340 = vadd.f32 0.0, %v4339
      %v4341 = vpop.f32.mrb[0].mxu0
      %v4342 = vpop.f32.mrb[0].mxu0
      %v4343 = vadd.f32 0.0, %v4342
      %v4344 = vpop.f32.mrb[0].mxu0
      %4345 = vmatprep.mubr.bf16.mxu0 0
      %4346 = vmatmul.mubr.bf16.gmra.mrb[0].mxu0 %v3703
      %v4347 = vpop.f32.mrb[0].mxu0
      %v4348 = vadd.f32 0.0, %v4347
      %v4349 = vpop.f32.mrb[0].mxu0
      %v4350 = vpop.f32.mrb[0].mxu0
      %v4351 = vadd.f32 0.0, %v4350
      %v4352 = vpop.f32.mrb[0].mxu0
      %4353 = vmatprep.mubr.bf16.mxu0 0
      %4354 = vmatmul.mubr.bf16.gmra.mrb[0].mxu0 %v3706
      %v4355 = vpop.f32.mrb[0].mxu0
      %v4356 = vadd.f32 0.0, %v4355
      %v4357 = vpop.f32.mrb[0].mxu0
      %v4358 = vpop.f32.mrb[0].mxu0
      %v4359 = vadd.f32 0.0, %v4358
      %v4360 = vpop.f32.mrb[0].mxu0
      %4361 = vmatprep.mubr.bf16.mxu0 0
      %4362 = vmatmul.mubr.bf16.gmra.mrb[0].mxu0 %v3709
      %v4363 = vpop.f32.mrb[0].mxu0
      %v4364 = vadd.f32 0.0, %v4363
      %v4365 = vpop.f32.mrb[0].mxu0
      %v4366 = vpop.f32.mrb[0].mxu0
      %v4367 = vadd.f32 0.0, %v4366
      %v4368 = vpop.f32.mrb[0].mxu0
      %4369 = vmatprep.mubr.bf16.mxu0 0
      %4370 = vmatmul.mubr.bf16.gmra.mrb[0].mxu0 %v3712
      %v4371 = vpop.f32.mrb[0].mxu0
      %v4372 = vadd.f32 0.0, %v4371
      %v4373 = vpop.f32.mrb[0].mxu0
      %v4374 = vpop.f32.mrb[0].mxu0
      %v4375 = vadd.f32 0.0, %v4374
      %v4376 = vpop.f32.mrb[0].mxu0
      %4377 = vmatprep.mubr.bf16.mxu0 0
      %4378 = vmatmul.mubr.bf16.gmra.mrb[0].mxu0 %v3715
      %v4379 = vpop.f32.mrb[0].mxu0
      %v4380 = vadd.f32 0.0, %v4379
      %v4381 = vpop.f32.mrb[0].mxu0
      %v4382 = vpop.f32.mrb[0].mxu0
      %v4383 = vadd.f32 0.0, %v4382
      %v4384 = vpop.f32.mrb[0].mxu0
      %4385 = vmatprep.mubr.bf16.mxu0 0
      %4386 = vmatmul.mubr.bf16.gmra.mrb[0].mxu0 %v3718
      %v4387 = vpop.f32.mrb[0].mxu0
      %v4388 = vadd.f32 0.0, %v4387
      %v4389 = vpop.f32.mrb[0].mxu0
      %v4390 = vpop.f32.mrb[0].mxu0
      %v4391 = vadd.f32 0.0, %v4390
      %v4392 = vpop.f32.mrb[0].mxu0
      %4393 = vmatprep.mubr.bf16.mxu0 0
      %4394 = vmatmul.mubr.bf16.gmra.mrb[0].mxu0 %v3721
      %v4395 = vpop.f32.mrb[0].mxu0
      %v4396 = vadd.f32 0.0, %v4395
      %v4397 = vpop.f32.mrb[0].mxu0
      %v4398 = vpop.f32.mrb[0].mxu0
      %v4399 = vadd.f32 0.0, %v4398
      %v4400 = vpop.f32.mrb[0].mxu0
      %4401 = vmatprep.mubr.bf16.mxu0 0
      %4402 = vmatmul.mubr.bf16.gmra.mrb[0].mxu0 %v3724
      %v4403 = vpop.f32.mrb[0].mxu0
      %v4404 = vadd.f32 0.0, %v4403
      %v4405 = vpop.f32.mrb[0].mxu0
      %v4406 = vpop.f32.mrb[0].mxu0
      %v4407 = vadd.f32 0.0, %v4406
      %v4408 = vpop.f32.mrb[0].mxu0
      %4409 = vmatprep.mubr.bf16.mxu0 0
      %4410 = vmatmul.mubr.bf16.gmra.mrb[0].mxu0 %v3727
      %v4411 = vpop.f32.mrb[0].mxu0
      %v4412 = vadd.f32 0.0, %v4411
      %v4413 = vpop.f32.mrb[0].mxu0
      %v4414 = vpop.f32.mrb[0].mxu0
      %v4415 = vadd.f32 0.0, %v4414
      %v4416 = vpop.f32.mrb[0].mxu0
      %4417 = vmatprep.mubr.bf16.mxu0 0
      %4418 = vmatmul.mubr.bf16.gmra.mrb[0].mxu0 %v3730
      %v4419 = vpop.f32.mrb[0].mxu0
      %v4420 = vadd.f32 0.0, %v4419
      %v4421 = vpop.f32.mrb[0].mxu0
      %v4422 = vpop.f32.mrb[0].mxu0
      %v4423 = vadd.f32 0.0, %v4422
      %v4424 = vpop.f32.mrb[0].mxu0
      %4425 = vmatprep.mubr.bf16.mxu0 0
      %4426 = vmatmul.mubr.bf16.gmra.mrb[0].mxu0 %v3733
      %v4427 = vpop.f32.mrb[0].mxu0
      %v4428 = vadd.f32 0.0, %v4427
      %v4429 = vpop.f32.mrb[0].mxu0
      %v4430 = vpop.f32.mrb[0].mxu0
      %v4431 = vadd.f32 0.0, %v4430
      %v4432 = vpop.f32.mrb[0].mxu0
      %4433 = vmatprep.mubr.bf16.mxu0 0
      %4434 = vmatmul.mubr.bf16.gmra.mrb[0].mxu0 %v3736
      %v4435 = vpop.f32.mrb[0].mxu0
      %v4436 = vadd.f32 0.0, %v4435
      %v4437 = vpop.f32.mrb[0].mxu0
      %v4438 = vpop.f32.mrb[0].mxu0
      %v4439 = vadd.f32 0.0, %v4438
      %v4440 = vpop.f32.mrb[0].mxu0
      %4441 = vmatprep.mubr.bf16.mxu0 0
      %4442 = vmatmul.mubr.bf16.gmra.mrb[0].mxu0 %v4014
      %v4443 = vpop.f32.mrb[0].mxu0
      %v4444 = vadd.f32 0.0, %v4443
      %v4445 = vpop.f32.mrb[0].mxu0
      %v4446 = vpop.f32.mrb[0].mxu0
      %v4447 = vadd.f32 0.0, %v4446
      %v4448 = vpop.f32.mrb[0].mxu0
      %4449 = vmatprep.mubr.bf16.mxu0 0
      %4450 = vmatmul.mubr.bf16.gmra.mrb[0].mxu0 %v4292
      %v4451 = vpop.f32.mrb[0].mxu0
      %v4452 = vadd.f32 0.0, %v4451
      %v4453 = vpop.f32.mrb[0].mxu0
      %v4454 = vpop.f32.mrb[0].mxu0
      %v4455 = vadd.f32 0.0, %v4454
      %v4456 = vpop.f32.mrb[0].mxu0
      %4457 = vdwg.mxu0
      %v4458 = vadd.f32 %v4244, %v4332
      %v4459 = vadd.f32 %v4245, %v4335
      %v4460 = vadd.f32 %v4246, %v4340
      %v4461 = vadd.f32 %v4247, %v4343
      %v4462 = vadd.f32 %v4248, %v4348
      %v4463 = vadd.f32 %v4249, %v4351
      %v4464 = vadd.f32 %v4250, %v4356
      %v4465 = vadd.f32 %v4251, %v4359
      %v4466 = vadd.f32 %v4252, %v4364
      %v4467 = vadd.f32 %v4253, %v4367
      %v4468 = vadd.f32 %v4254, %v4372
      %v4469 = vadd.f32 %v4255, %v4375
      %v4470 = vadd.f32 %v4256, %v4380
      %v4471 = vadd.f32 %v4257, %v4383
      %v4472 = vadd.f32 %v4258, %v4388
      %v4473 = vadd.f32 %v4259, %v4391
      %v4474 = vadd.f32 %v4260, %v4396
      %v4475 = vadd.f32 %v4261, %v4399
      %v4476 = vadd.f32 %v4262, %v4404
      %v4477 = vadd.f32 %v4263, %v4407
      %v4478 = vadd.f32 %v4264, %v4412
      %v4479 = vadd.f32 %v4265, %v4415
      %v4480 = vadd.f32 %v4266, %v4420
      %v4481 = vadd.f32 %v4267, %v4423
      %v4482 = vadd.f32 %v4268, %v4428
      %v4483 = vadd.f32 %v4269, %v4431
      %v4484 = vadd.f32 %v4270, %v4436
      %v4485 = vadd.f32 %v4271, %v4439
      %v4486 = vadd.f32 %v4272, %v4444
      %v4487 = vadd.f32 %v4273, %v4447
      %v4488 = vadd.f32 %v4274, %v4452
      %v4489 = vadd.f32 %v4275, %v4455
      %4490 = vst.msk [vmem:[#allocation3] sm:$0xff] %vm1009, %v4458
      %4491 = vst.msk [vmem:[#allocation3 + $0x8] sm:$0xff] %vm1009, %v4459
      %4492 = vst.msk [vmem:[#allocation3 + $0x10] sm:$0xff] %vm1009, %v4460
      %4493 = vst.msk [vmem:[#allocation3 + $0x18] sm:$0xff] %vm1009, %v4461
      %4494 = vst.msk [vmem:[#allocation3 + $0x20] sm:$0xff] %vm1009, %v4462
      %4495 = vst.msk [vmem:[#allocation3 + $0x28] sm:$0xff] %vm1009, %v4463
      %4496 = vst.msk [vmem:[#allocation3 + $0x30] sm:$0xff] %vm1009, %v4464
      %4497 = vst.msk [vmem:[#allocation3 + $0x38] sm:$0xff] %vm1009, %v4465
      %4498 = vst.msk [vmem:[#allocation3 + $0x40] sm:$0xff] %vm1009, %v4466
      %4499 = vst.msk [vmem:[#allocation3 + $0x48] sm:$0xff] %vm1009, %v4467
      %4500 = vst.msk [vmem:[#allocation3 + $0x50] sm:$0xff] %vm1009, %v4468
      %4501 = vst.msk [vmem:[#allocation3 + $0x58] sm:$0xff] %vm1009, %v4469
      %4502 = vst.msk [vmem:[#allocation3 + $0x60] sm:$0xff] %vm1009, %v4470
      %4503 = vst.msk [vmem:[#allocation3 + $0x68] sm:$0xff] %vm1009, %v4471
      %4504 = vst.msk [vmem:[#allocation3 + $0x70] sm:$0xff] %vm1009, %v4472
      %4505 = vst.msk [vmem:[#allocation3 + $0x78] sm:$0xff] %vm1009, %v4473
      %4506 = vst.msk [vmem:[#allocation3 + $0x80] sm:$0xff] %vm1009, %v4474
      %4507 = vst.msk [vmem:[#allocation3 + $0x88] sm:$0xff] %vm1009, %v4475
      %4508 = vst.msk [vmem:[#allocation3 + $0x90] sm:$0xff] %vm1009, %v4476
      %4509 = vst.msk [vmem:[#allocation3 + $0x98] sm:$0xff] %vm1009, %v4477
      %4510 = vst.msk [vmem:[#allocation3 + $0xa0] sm:$0xff] %vm1009, %v4478
      %4511 = vst.msk [vmem:[#allocation3 + $0xa8] sm:$0xff] %vm1009, %v4479
      %4512 = vst.msk [vmem:[#allocation3 + $0xb0] sm:$0xff] %vm1009, %v4480
      %4513 = vst.msk [vmem:[#allocation3 + $0xb8] sm:$0xff] %vm1009, %v4481
      %4514 = vst.msk [vmem:[#allocation3 + $0xc0] sm:$0xff] %vm1009, %v4482
      %4515 = vst.msk [vmem:[#allocation3 + $0xc8] sm:$0xff] %vm1009, %v4483
      %4516 = vst.msk [vmem:[#allocation3 + $0xd0] sm:$0xff] %vm1009, %v4484
      %4517 = vst.msk [vmem:[#allocation3 + $0xd8] sm:$0xff] %vm1009, %v4485
      %4518 = vst.msk [vmem:[#allocation3 + $0xe0] sm:$0xff] %vm1009, %v4486
      %4519 = vst.msk [vmem:[#allocation3 + $0xe8] sm:$0xff] %vm1009, %v4487
      %4520 = vst.msk [vmem:[#allocation3 + $0xf0] sm:$0xff] %vm1009, %v4488
      %4521 = vst.msk [vmem:[#allocation3 + $0xf8] sm:$0xff] %vm1009, %v4489
      %v4522 = vld [vmem:[#allocation3] sm:$0xff]
      %v4523 = vld [vmem:[#allocation3 + $0x8] sm:$0xff]
      %v4524 = vld [vmem:[#allocation3 + $0x10] sm:$0xff]
      %v4525 = vld [vmem:[#allocation3 + $0x18] sm:$0xff]
      %v4526 = vld [vmem:[#allocation3 + $0x20] sm:$0xff]
      %v4527 = vld [vmem:[#allocation3 + $0x28] sm:$0xff]
      %v4528 = vld [vmem:[#allocation3 + $0x30] sm:$0xff]
      %v4529 = vld [vmem:[#allocation3 + $0x38] sm:$0xff]
      %v4530 = vld [vmem:[#allocation3 + $0x40] sm:$0xff]
      %v4531 = vld [vmem:[#allocation3 + $0x48] sm:$0xff]
      %v4532 = vld [vmem:[#allocation3 + $0x50] sm:$0xff]
      %v4533 = vld [vmem:[#allocation3 + $0x58] sm:$0xff]
      %v4534 = vld [vmem:[#allocation3 + $0x60] sm:$0xff]
      %v4535 = vld [vmem:[#allocation3 + $0x68] sm:$0xff]
      %v4536 = vld [vmem:[#allocation3 + $0x70] sm:$0xff]
      %v4537 = vld [vmem:[#allocation3 + $0x78] sm:$0xff]
      %v4538 = vld [vmem:[#allocation3 + $0x80] sm:$0xff]
      %v4539 = vld [vmem:[#allocation3 + $0x88] sm:$0xff]
      %v4540 = vld [vmem:[#allocation3 + $0x90] sm:$0xff]
      %v4541 = vld [vmem:[#allocation3 + $0x98] sm:$0xff]
      %v4542 = vld [vmem:[#allocation3 + $0xa0] sm:$0xff]
      %v4543 = vld [vmem:[#allocation3 + $0xa8] sm:$0xff]
      %v4544 = vld [vmem:[#allocation3 + $0xb0] sm:$0xff]
      %v4545 = vld [vmem:[#allocation3 + $0xb8] sm:$0xff]
      %v4546 = vld [vmem:[#allocation3 + $0xc0] sm:$0xff]
      %v4547 = vld [vmem:[#allocation3 + $0xc8] sm:$0xff]
      %v4548 = vld [vmem:[#allocation3 + $0xd0] sm:$0xff]
      %v4549 = vld [vmem:[#allocation3 + $0xd8] sm:$0xff]
      %v4550 = vld [vmem:[#allocation3 + $0xe0] sm:$0xff]
      %v4551 = vld [vmem:[#allocation3 + $0xe8] sm:$0xff]
      %v4552 = vld [vmem:[#allocation3 + $0xf0] sm:$0xff]
      %v4553 = vld [vmem:[#allocation3 + $0xf8] sm:$0xff]
      %4554 = vst.msk [vmem:[%s264] sm:$0xff] %vm1009, %v4522
      %4555 = vst.msk [vmem:[%s264 + $0x8] sm:$0xff] %vm1009, %v4523
      %4556 = vst.msk [vmem:[%s264 + $0x10] sm:$0xff] %vm1009, %v4524
      %4557 = vst.msk [vmem:[%s264 + $0x18] sm:$0xff] %vm1009, %v4525
      %4558 = vst.msk [vmem:[%s264 + $0x20] sm:$0xff] %vm1009, %v4526
      %4559 = vst.msk [vmem:[%s264 + $0x28] sm:$0xff] %vm1009, %v4527
      %4560 = vst.msk [vmem:[%s264 + $0x30] sm:$0xff] %vm1009, %v4528
      %4561 = vst.msk [vmem:[%s264 + $0x38] sm:$0xff] %vm1009, %v4529
      %4562 = vst.msk [vmem:[%s264 + $0x40] sm:$0xff] %vm1009, %v4530
      %4563 = vst.msk [vmem:[%s264 + $0x48] sm:$0xff] %vm1009, %v4531
      %4564 = vst.msk [vmem:[%s264 + $0x50] sm:$0xff] %vm1009, %v4532
      %4565 = vst.msk [vmem:[%s264 + $0x58] sm:$0xff] %vm1009, %v4533
      %4566 = vst.msk [vmem:[%s264 + $0x60] sm:$0xff] %vm1009, %v4534
      %4567 = vst.msk [vmem:[%s264 + $0x68] sm:$0xff] %vm1009, %v4535
      %4568 = vst.msk [vmem:[%s264 + $0x70] sm:$0xff] %vm1009, %v4536
      %4569 = vst.msk [vmem:[%s264 + $0x78] sm:$0xff] %vm1009, %v4537
      %4570 = vst.msk [vmem:[%s264 + $0x80] sm:$0xff] %vm1009, %v4538
      %4571 = vst.msk [vmem:[%s264 + $0x88] sm:$0xff] %vm1009, %v4539
      %4572 = vst.msk [vmem:[%s264 + $0x90] sm:$0xff] %vm1009, %v4540
      %4573 = vst.msk [vmem:[%s264 + $0x98] sm:$0xff] %vm1009, %v4541
      %4574 = vst.msk [vmem:[%s264 + $0xa0] sm:$0xff] %vm1009, %v4542
      %4575 = vst.msk [vmem:[%s264 + $0xa8] sm:$0xff] %vm1009, %v4543
      %4576 = vst.msk [vmem:[%s264 + $0xb0] sm:$0xff] %vm1009, %v4544
      %4577 = vst.msk [vmem:[%s264 + $0xb8] sm:$0xff] %vm1009, %v4545
      %4578 = vst.msk [vmem:[%s264 + $0xc0] sm:$0xff] %vm1009, %v4546
      %4579 = vst.msk [vmem:[%s264 + $0xc8] sm:$0xff] %vm1009, %v4547
      %4580 = vst.msk [vmem:[%s264 + $0xd0] sm:$0xff] %vm1009, %v4548
      %4581 = vst.msk [vmem:[%s264 + $0xd8] sm:$0xff] %vm1009, %v4549
      %4582 = vst.msk [vmem:[%s264 + $0xe0] sm:$0xff] %vm1009, %v4550
      %4583 = vst.msk [vmem:[%s264 + $0xe8] sm:$0xff] %vm1009, %v4551
      %4584 = vst.msk [vmem:[%s264 + $0xf0] sm:$0xff] %vm1009, %v4552
      %4585 = vst.msk [vmem:[%s264 + $0xf8] sm:$0xff] %vm1009, %v4553
      %v4586 = vsel %vm1009, %v4522, 0.0
      %v4587 = vsel %vm1009, %v4523, 0.0
      %v4588 = vadd.f32 %v4586, %v4587
      %v4589 = vsel %vm1009, %v4524, 0.0
      %v4590 = vadd.f32 %v4588, %v4589
      %v4591 = vsel %vm1009, %v4525, 0.0
      %v4592 = vadd.f32 %v4590, %v4591
      %v4593 = vsel %vm1009, %v4526, 0.0
      %v4594 = vadd.f32 %v4592, %v4593
      %v4595 = vsel %vm1009, %v4527, 0.0
      %v4596 = vadd.f32 %v4594, %v4595
      %v4597 = vsel %vm1009, %v4528, 0.0
      %v4598 = vadd.f32 %v4596, %v4597
      %v4599 = vsel %vm1009, %v4529, 0.0
      %v4600 = vadd.f32 %v4598, %v4599
      %v4601 = vsel %vm1009, %v4530, 0.0
      %v4602 = vadd.f32 %v4600, %v4601
      %v4603 = vsel %vm1009, %v4531, 0.0
      %v4604 = vadd.f32 %v4602, %v4603
      %v4605 = vsel %vm1009, %v4532, 0.0
      %v4606 = vadd.f32 %v4604, %v4605
      %v4607 = vsel %vm1009, %v4533, 0.0
      %v4608 = vadd.f32 %v4606, %v4607
      %v4609 = vsel %vm1009, %v4534, 0.0
      %v4610 = vadd.f32 %v4608, %v4609
      %v4611 = vsel %vm1009, %v4535, 0.0
      %v4612 = vadd.f32 %v4610, %v4611
      %v4613 = vsel %vm1009, %v4536, 0.0
      %v4614 = vadd.f32 %v4612, %v4613
      %v4615 = vsel %vm1009, %v4537, 0.0
      %v4616 = vadd.f32 %v4614, %v4615
      %v4617 = vsel %vm1009, %v4538, 0.0
      %v4618 = vadd.f32 %v4616, %v4617
      %v4619 = vsel %vm1009, %v4539, 0.0
      %v4620 = vadd.f32 %v4618, %v4619
      %v4621 = vsel %vm1009, %v4540, 0.0
      %v4622 = vadd.f32 %v4620, %v4621
      %v4623 = vsel %vm1009, %v4541, 0.0
      %v4624 = vadd.f32 %v4622, %v4623
      %v4625 = vsel %vm1009, %v4542, 0.0
      %v4626 = vadd.f32 %v4624, %v4625
      %v4627 = vsel %vm1009, %v4543, 0.0
      %v4628 = vadd.f32 %v4626, %v4627
      %v4629 = vsel %vm1009, %v4544, 0.0
      %v4630 = vadd.f32 %v4628, %v4629
      %v4631 = vsel %vm1009, %v4545, 0.0
      %v4632 = vadd.f32 %v4630, %v4631
      %v4633 = vsel %vm1009, %v4546, 0.0
      %v4634 = vadd.f32 %v4632, %v4633
      %v4635 = vsel %vm1009, %v4547, 0.0
      %v4636 = vadd.f32 %v4634, %v4635
      %v4637 = vsel %vm1009, %v4548, 0.0
      %v4638 = vadd.f32 %v4636, %v4637
      %v4639 = vsel %vm1009, %v4549, 0.0
      %v4640 = vadd.f32 %v4638, %v4639
      %v4641 = vsel %vm1009, %v4550, 0.0
      %v4642 = vadd.f32 %v4640, %v4641
      %v4643 = vsel %vm1009, %v4551, 0.0
      %v4644 = vadd.f32 %v4642, %v4643
      %v4645 = vsel %vm1009, %v4552, 0.0
      %v4646 = vadd.f32 %v4644, %v4645
      %v4647 = vsel %vm1009, %v4553, 0.0
      %v4648 = vadd.f32 %v4646, %v4647
      %v4649 = vrot.slane %v4648, 4
      %v4650 = vadd.f32 %v4648, %v4649
      %v4651 = vrot.slane %v4650, 2
      %v4652 = vadd.f32 %v4650, %v4651
      %v4653 = vrot.slane %v4652, 1
      %v4654 = vadd.f32 %v4652, %v4653
      %v4655 = vmul.f32 %v4522, %v4522
      %v4656 = vmul.f32 %v4523, %v4523
      %v4657 = vmul.f32 %v4524, %v4524
      %v4658 = vmul.f32 %v4525, %v4525
      %v4659 = vmul.f32 %v4526, %v4526
      %v4660 = vmul.f32 %v4527, %v4527
      %v4661 = vmul.f32 %v4528, %v4528
      %v4662 = vmul.f32 %v4529, %v4529
      %v4663 = vmul.f32 %v4530, %v4530
      %v4664 = vmul.f32 %v4531, %v4531
      %v4665 = vmul.f32 %v4532, %v4532
      %v4666 = vmul.f32 %v4533, %v4533
      %v4667 = vmul.f32 %v4534, %v4534
      %v4668 = vmul.f32 %v4535, %v4535
      %v4669 = vmul.f32 %v4536, %v4536
      %v4670 = vmul.f32 %v4537, %v4537
      %v4671 = vmul.f32 %v4538, %v4538
      %v4672 = vmul.f32 %v4539, %v4539
      %v4673 = vmul.f32 %v4540, %v4540
      %v4674 = vmul.f32 %v4541, %v4541
      %v4675 = vmul.f32 %v4542, %v4542
      %v4676 = vmul.f32 %v4543, %v4543
      %v4677 = vmul.f32 %v4544, %v4544
      %v4678 = vmul.f32 %v4545, %v4545
      %v4679 = vmul.f32 %v4546, %v4546
      %v4680 = vmul.f32 %v4547, %v4547
      %v4681 = vmul.f32 %v4548, %v4548
      %v4682 = vmul.f32 %v4549, %v4549
      %v4683 = vmul.f32 %v4550, %v4550
      %v4684 = vmul.f32 %v4551, %v4551
      %v4685 = vmul.f32 %v4552, %v4552
      %v4686 = vmul.f32 %v4553, %v4553
      %v4687 = vsel %vm1009, %v4655, 0.0
      %v4688 = vsel %vm1009, %v4656, 0.0
      %v4689 = vadd.f32 %v4687, %v4688
      %v4690 = vsel %vm1009, %v4657, 0.0
      %v4691 = vadd.f32 %v4689, %v4690
      %v4692 = vsel %vm1009, %v4658, 0.0
      %v4693 = vadd.f32 %v4691, %v4692
      %v4694 = vsel %vm1009, %v4659, 0.0
      %v4695 = vadd.f32 %v4693, %v4694
      %v4696 = vsel %vm1009, %v4660, 0.0
      %v4697 = vadd.f32 %v4695, %v4696
      %v4698 = vsel %vm1009, %v4661, 0.0
      %v4699 = vadd.f32 %v4697, %v4698
      %v4700 = vsel %vm1009, %v4662, 0.0
      %v4701 = vadd.f32 %v4699, %v4700
      %v4702 = vsel %vm1009, %v4663, 0.0
      %v4703 = vadd.f32 %v4701, %v4702
      %v4704 = vsel %vm1009, %v4664, 0.0
      %v4705 = vadd.f32 %v4703, %v4704
      %v4706 = vsel %vm1009, %v4665, 0.0
      %v4707 = vadd.f32 %v4705, %v4706
      %v4708 = vsel %vm1009, %v4666, 0.0
      %v4709 = vadd.f32 %v4707, %v4708
      %v4710 = vsel %vm1009, %v4667, 0.0
      %v4711 = vadd.f32 %v4709, %v4710
      %v4712 = vsel %vm1009, %v4668, 0.0
      %v4713 = vadd.f32 %v4711, %v4712
      %v4714 = vsel %vm1009, %v4669, 0.0
      %v4715 = vadd.f32 %v4713, %v4714
      %v4716 = vsel %vm1009, %v4670, 0.0
      %v4717 = vadd.f32 %v4715, %v4716
      %v4718 = vsel %vm1009, %v4671, 0.0
      %v4719 = vadd.f32 %v4717, %v4718
      %v4720 = vsel %vm1009, %v4672, 0.0
      %v4721 = vadd.f32 %v4719, %v4720
      %v4722 = vsel %vm1009, %v4673, 0.0
      %v4723 = vadd.f32 %v4721, %v4722
      %v4724 = vsel %vm1009, %v4674, 0.0
      %v4725 = vadd.f32 %v4723, %v4724
      %v4726 = vsel %vm1009, %v4675, 0.0
      %v4727 = vadd.f32 %v4725, %v4726
      %v4728 = vsel %vm1009, %v4676, 0.0
      %v4729 = vadd.f32 %v4727, %v4728
      %v4730 = vsel %vm1009, %v4677, 0.0
      %v4731 = vadd.f32 %v4729, %v4730
      %v4732 = vsel %vm1009, %v4678, 0.0
      %v4733 = vadd.f32 %v4731, %v4732
      %v4734 = vsel %vm1009, %v4679, 0.0
      %v4735 = vadd.f32 %v4733, %v4734
      %v4736 = vsel %vm1009, %v4680, 0.0
      %v4737 = vadd.f32 %v4735, %v4736
      %v4738 = vsel %vm1009, %v4681, 0.0
      %v4739 = vadd.f32 %v4737, %v4738
      %v4740 = vsel %vm1009, %v4682, 0.0
      %v4741 = vadd.f32 %v4739, %v4740
      %v4742 = vsel %vm1009, %v4683, 0.0
      %v4743 = vadd.f32 %v4741, %v4742
      %v4744 = vsel %vm1009, %v4684, 0.0
      %v4745 = vadd.f32 %v4743, %v4744
      %v4746 = vsel %vm1009, %v4685, 0.0
      %v4747 = vadd.f32 %v4745, %v4746
      %v4748 = vsel %vm1009, %v4686, 0.0
      %v4749 = vadd.f32 %v4747, %v4748
      %v4750 = vrot.slane %v4749, 4
      %v4751 = vadd.f32 %v4749, %v4750
      %v4752 = vrot.slane %v4751, 2
      %v4753 = vadd.f32 %v4751, %v4752
      %v4754 = vrot.slane %v4753, 1
      %v4755 = vadd.f32 %v4753, %v4754
      %4756 = vst.msk [vmem:[%s268] sm:$0xff] %vm1009, %v4654
      %4757 = vst.msk [vmem:[%s272] sm:$0xff] %vm1009, %v4755
      %p4758 = scmp.lt.s32.totalorder %s18, 1
      %s4759 = scalar_select %p4758, %s18, 1
      %s4760 = smul.addr %s4759, 32
      %s4761 = smul.addr %s4760, 8
      %s4762 = scalar_lea.vmem %s4, %s4761
      %p4763 = scmp.lt.s32.totalorder %s18, 1
      %s4764 = scalar_select %p4763, %s18, 1
      %s4765 = smul.addr %s4764, 8
      %s4766 = scalar_lea.vmem %s5, %s4765
      %p4767 = scmp.lt.s32.totalorder %s18, 1
      %s4768 = scalar_select %p4767, %s18, 1
      %s4769 = smul.addr %s4768, 8
      %s4770 = scalar_lea.vmem %s6, %s4769
      // Predicated region
      $region37: #{conv_bottleneck_forward.6} parent=35 // pred_check
        %p4771 = pneg %p125
      $region38: #{conv_bottleneck_forward.6} parent=35 // pred_check_branch
        %4773 = sbr.rel (%p4771) target = $region40
      $region39: #{conv_bottleneck_forward.6} parent=35 // pred_region
        _
      $region40: #{conv_bottleneck_forward.6} parent=35 // pred_fallthru
        _
      // Predicated region
      $region41: #{conv_bottleneck_forward.6} parent=35 // pred_check
        %p4774 = pneg %p151
      $region42: #{conv_bottleneck_forward.6} parent=35 // pred_check_branch
        %4776 = sbr.rel (%p4774) target = $region44
      $region43: #{conv_bottleneck_forward.6} parent=35 // pred_region
        _
      $region44: #{conv_bottleneck_forward.6} parent=35 // pred_fallthru
        _
      // Predicated region
      $region45: #{conv_bottleneck_forward.6} parent=35 // pred_check
        %p4777 = pneg %p177
      $region46: #{conv_bottleneck_forward.6} parent=35 // pred_check_branch
        %4779 = sbr.rel (%p4777) target = $region48
      $region47: #{conv_bottleneck_forward.6} parent=35 // pred_region
        _
      $region48: #{conv_bottleneck_forward.6} parent=35 // pred_fallthru
        _
    $region36: #{conv_bottleneck_forward.6} parent=5 // pred_fallthru
      _
    %p4780 = scmp.le.s32.totalorder 2, %s13
    // Predicated region
    $region49: #{conv_bottleneck_forward.6} parent=5 // pred_check
      %p4781 = pneg %p4780
    $region50: #{conv_bottleneck_forward.6} parent=5 // pred_check_branch
      %4783 = sbr.rel (%p4781) target = $region52
    $region51: #{conv_bottleneck_forward.6} parent=5 // pred_region
      %s4784 = ssub.s32 %s13, 2
      // Predicated region
      $region53: #{conv_bottleneck_forward.6} parent=51 // pred_check
        %p4785 = pneg %p131
      $region54: #{conv_bottleneck_forward.6} parent=51 // pred_check_branch
        %4787 = sbr.rel (%p4785) target = $region56
      $region55: #{conv_bottleneck_forward.6} parent=51 // pred_region
        %p4788 = scmp.lt.s32.totalorder %s19, 1
        %s4789 = scalar_select %p4788, %s19, 1
        %s4790 = smul.addr %s4789, 32
        %s4791 = smul.addr %s4790, 8
        %s4792 = scalar_lea.vmem %s4, %s4791
      $region56: #{conv_bottleneck_forward.6} parent=51 // pred_fallthru
        _
      // Predicated region
      $region57: #{conv_bottleneck_forward.6} parent=51 // pred_check
        %p4793 = pneg %p157
      $region58: #{conv_bottleneck_forward.6} parent=51 // pred_check_branch
        %4795 = sbr.rel (%p4793) target = $region60
      $region59: #{conv_bottleneck_forward.6} parent=51 // pred_region
        %p4796 = scmp.lt.s32.totalorder %s19, 1
        %s4797 = scalar_select %p4796, %s19, 1
        %s4798 = smul.addr %s4797, 8
        %s4799 = scalar_lea.vmem %s5, %s4798
      $region60: #{conv_bottleneck_forward.6} parent=51 // pred_fallthru
        _
      // Predicated region
      $region61: #{conv_bottleneck_forward.6} parent=51 // pred_check
        %p4800 = pneg %p183
      $region62: #{conv_bottleneck_forward.6} parent=51 // pred_check_branch
        %4802 = sbr.rel (%p4800) target = $region64
      $region63: #{conv_bottleneck_forward.6} parent=51 // pred_region
        %p4803 = scmp.lt.s32.totalorder %s19, 1
        %s4804 = scalar_select %p4803, %s19, 1
        %s4805 = smul.addr %s4804, 8
        %s4806 = scalar_lea.vmem %s6, %s4805
      $region64: #{conv_bottleneck_forward.6} parent=51 // pred_fallthru
        _
    $region52: #{conv_bottleneck_forward.6} parent=5 // pred_fallthru
      _
  $region6: #{conv_bottleneck_forward.6} parent=0 // loop_footer
    %s17 = sadd.s32 1, %s13
  $region7: #{conv_bottleneck_forward.6} parent=0 // loop_footer_branch
    %12 = sbr.rel target = $region3
  $region8: #{conv_bottleneck_forward.6} parent=0 // loop_exit
    _

</llo_original>
